<compile_context>
chip_gen: v7x
topology: tpu7x:2x2x1
jax: 0.10.0
libtpu: 0.0.40
codegen_flags: <defaults>
</compile_context>

<pallas_src>
import numpy as np
import jax
import jax.numpy as jnp
from jax import lax
from jax.experimental import pallas as pl
from jax.experimental.pallas import tpu as pltpu

# ----------------------------- model config ------------------------------------
IN_NODE_NF = 8        # == IN_CHANNEL (vel_angle goes through embedding2)
HIDDEN_NF = 32
IN_CHANNEL = 8
HID_CHANNEL = 16
OUT_CHANNEL = 8
N_LAYERS = 2
CATEGORY_NUM = 2
TAO = 1.0             # softmax temperature used by the parent EqMotion model

H1 = HIDDEN_NF * (1 + CATEGORY_NUM)   # consolidated edge first-layer width (96)

# weight-slab packing groups weights by fan-in; this config satisfies:
assert 2 * IN_NODE_NF == HID_CHANNEL
assert 2 * HID_CHANNEL == HIDDEN_NF


# ----------------------------- weight slab layout --------------------------------


def _align128(n):
    return ((n + 127) // 128) * 128


def _build_layout():
    """Static layout of every consolidated weight inside the 4 packed slabs.
    Each weight starts at a 128-lane-aligned column offset so in-kernel loads are
    unmasked / un-rotated."""
    lay = {}

    def reg(group, entries):
        off = 0
        for name, cols in entries:
            lay[name] = (group, off, cols)
            off += _align128(cols)
        return off

    F, C, C2 = HIDDEN_NF, HID_CHANNEL, 2 * HID_CHANNEL
    w16 = [("emb_w", F)]
    w32 = [("cm_w1", F), ("cm_w2", C2), ("df_proj", 2 * F), ("hproj_cc", 3 * F),
           ("em_w2", F), ("nm_agg_cc", F), ("nm_w2_cc", F), ("nn_proj", 2 * F),
           ("ct_w2", CATEGORY_NUM)]
    w96 = []
    bias = [("emb_b", F), ("cm_b1", F), ("cm_b2", C2), ("em_b1", F), ("em_b2", F),
            ("nm_b1_cc", F), ("nm_b2_cc", F), ("ct_b1", F), ("ct_b2", CATEGORY_NUM)]
    for l in range(N_LAYERS):
        w16 += [(f"ec_dist_{l}", H1), (f"fac_w1_{l}", C), (f"fac_w2_{l}", C),
                (f"cv_w_{l}", C), (f"qk_w_{l}", 2 * C)]
        w32 += [(f"hproj_{l}", 2 * H1 + C + F), (f"nm_agg_{l}", F), (f"nm_w2_{l}", F)]
        w96 += [(f"ec_w2_{l}", F + CATEGORY_NUM * C)]
        bias += [(f"ec_b1_{l}", H1), (f"ec_b2_{l}", F + CATEGORY_NUM * C),
                 (f"q_b_{l}", C), (f"fac_b1_{l}", C), (f"fac_b2_{l}", C),
                 (f"nm_b1_{l}", F), (f"nm_b2_{l}", F)]
    sizes = {"w16": reg("w16", w16), "w32": reg("w32", w32),
             "w96": reg("w96", w96), "bias": reg("bias", bias)}
    return lay, sizes


_LAYOUT, _SIZES = _build_layout()


# ----------------------------- small helpers -------------------------------------


def _silu(x):
    return x * jax.nn.sigmoid(x)


def _offdiag_mask(n, dtype):
    ii = lax.broadcasted_iota(jnp.int32, (n, n), 0)
    jj = lax.broadcasted_iota(jnp.int32, (n, n), 1)
    return (ii != jj).astype(dtype)


# ----------------------------- fused Pallas kernel --------------------------------


def _fused_kernel(hv_ref, x_ref, v_ref, w16_ref, w32_ref, w96_ref, b_ref,
                  h_out, x_out):
    F, C, C2 = HIDDEN_NF, HID_CHANNEL, 2 * HID_CHANNEL
    N = hv_ref.shape[1]
    D = x_ref.shape[1]
    refs = {"w16": w16_ref, "w32": w32_ref, "w96": w96_ref, "bias": b_ref}

    def W(name):
        g, off, cols = _LAYOUT[name]
        return refs[g][:, off:off + cols]       # biases come back as (1, cols)

    def dot(a, b):
        return jnp.dot(a, b, preferred_element_type=jnp.float32)

    hv = hv_ref[0]          # (N, 2*IN_NODE_NF)
    coord = x_ref[0]        # (D, N, C)   channels-last
    vel = v_ref[0]          # (D, N, C)
    offdiag = _offdiag_mask(N, jnp.float32)[:, :, None]       # (N, N, 1), built once

    # ---- embedding (embedding | embedding2 block-diag, lane-dense) ----
    h = dot(hv, W("emb_w")) + W("emb_b")                      # (N, F)

    # ---- calc_category ----
    xc = jnp.concatenate([coord, vel], axis=-1)               # (D, N, 2C)
    dsq = jnp.zeros((N, N, C2), jnp.float32)
    for d in range(D):
        dd = xc[d][:, None, :] - xc[d][None, :, :]
        dsq = dsq + dd * dd
    dist_cc = jnp.sqrt(dsq).reshape(N * N, C2)

    t = _silu(dot(dist_cc, W("cm_w1")) + W("cm_b1"))
    dist_feat = _silu(dot(t, W("cm_w2")) + W("cm_b2"))        # (N*N, 2C)

    dfp = dot(dist_feat, W("df_proj"))                        # (N*N, 2F) [edge | cat]
    hp = dot(h, W("hproj_cc"))                                # (N, 3F)  [src | dst | node]
    e1 = _silu(hp[:, :F][:, None, :] + hp[:, F:2 * F][None, :, :]
               + dfp[:, :F].reshape(N, N, F) + W("em_b1"))
    e = _silu(dot(e1.reshape(N * N, F), W("em_w2")) + W("em_b2"))     # (N*N, F)

    agg = jnp.sum(e.reshape(N, N, F) * offdiag, axis=1)               # (N, F)
    nn1 = _silu(hp[:, 2 * F:3 * F] + dot(agg, W("nm_agg_cc")) + W("nm_b1_cc"))
    nn2 = _silu(dot(nn1, W("nm_w2_cc")) + W("nm_b2_cc"))              # (N, F)

    nnp = dot(nn2, W("nn_proj"))                                      # (N, 2F)
    c1 = _silu(nnp[:, :F][:, None, :] + nnp[:, F:][None, :, :]
               + dfp[:, F:].reshape(N, N, F) + W("ct_b1"))
    logits = _silu(dot(c1.reshape(N * N, F), W("ct_w2")) + W("ct_b2"))  # (N*N, 2)
    # CATEGORY_NUM == 2  ->  softmax(l/TAO) == [sigmoid((l0-l1)/TAO), 1 - p0]
    p0 = jax.nn.sigmoid((logits[:, 0:1] - logits[:, 1:2]) * (1.0 / TAO))  # (N*N, 1)

    # ---- N_LAYERS x Feature_learning_layer, unrolled, everything VMEM resident ----
    for l in range(N_LAYERS):
        dsq = jnp.zeros((N, N, C), jnp.float32)
        cdiff = []
        for d in range(D):
            dd = coord[d][:, None, :] - coord[d][None, :, :]          # (N, N, C)
            cdiff.append(dd)
            dsq = dsq + dd * dd
        dist = jnp.sqrt(dsq)                                          # (N, N, C)

        # consolidated per-node projection: [ec_src | ec_dst | q | node_mlp(h part)]
        hp = dot(h, W(f"hproj_{l}"))                                  # (N, 2*H1+C+F)
        ec_src = hp[:, :H1]
        ec_dst = hp[:, H1:2 * H1]
        att = _silu(hp[:, 2 * H1:2 * H1 + C] + W(f"q_b_{l}"))          # (N, C)
        nm_h = hp[:, 2 * H1 + C:2 * H1 + C + F]                        # (N, F)

        # edge block (edge_mlp + both category branches, consolidated weights)
        dp = dot(dist.reshape(N * N, C), W(f"ec_dist_{l}"))            # (N*N, H1)
        hid = _silu(ec_src[:, None, :] + ec_dst[None, :, :]
                    + dp.reshape(N, N, H1) + W(f"ec_b1_{l}"))
        out2 = _silu(dot(hid.reshape(N * N, H1), W(f"ec_w2_{l}")) + W(f"ec_b2_{l}"))
        edge_feat = out2[:, :F]                                        # (N*N, F)
        br0 = out2[:, F:F + C]
        br1 = out2[:, F + C:F + 2 * C]

        # category-weighted interaction factors + factor_mlp
        fac = br1 + p0 * (br0 - br1)
        fac = _silu(dot(fac, W(f"fac_w1_{l}")) + W(f"fac_b1_{l}"))
        fac = _silu(dot(fac, W(f"fac_w2_{l}")) + W(f"fac_b2_{l}"))
        factors = fac.reshape(N, N, C)

        # inner agent attention (residual)
        v_mean = jnp.mean(jnp.mean(coord, axis=2, keepdims=True), axis=1, keepdims=True)
        coord_u = att[None, :, :] * (coord - v_mean) + coord

        # neighbor effect (uses this layer's ORIGINAL coord_diff)
        ne = jnp.concatenate(
            [jnp.sum(factors * cdiff[d], axis=1)[None] for d in range(D)], axis=0)
        coord_u = coord_u + ne

        # velocity channel mix
        coord_u = coord_u + dot(vel.reshape(D * N, C), W(f"cv_w_{l}")).reshape(D, N, C)

        # non_linear (layer_q | layer_k consolidated into one matmul)
        c_mean = jnp.mean(jnp.mean(coord_u, axis=2, keepdims=True), axis=1, keepdims=True)
        cc = coord_u - c_mean
        qk = dot(cc.reshape(D * N, C), W(f"qk_w_{l}"))                 # (D*N, 2C)
        q = qk[:, :C].reshape(D, N, C)
        k = qk[:, C:].reshape(D, N, C)
        prod = jnp.sum(q * k, axis=0, keepdims=True)                   # (1, N, C)
        knorm = jnp.sum(k * k, axis=0, keepdims=True)
        adj = q - (prod * pl.reciprocal(knorm + 1e-4, approx=True)) * k
        coord = jnp.where(prod >= 0, q, adj) + c_mean

        # node model (off-diagonal aggregation + node_mlp, recurrent=False)
        agg = jnp.sum(edge_feat.reshape(N, N, F) * offdiag, axis=1)    # (N, F)
        hn = _silu(nm_h + dot(agg, W(f"nm_agg_{l}")) + W(f"nm_b1_{l}"))
        h = dot(hn, W(f"nm_w2_{l}")) + W(f"nm_b2_{l}")

    h_out[0] = h.astype(h_out.dtype)
    x_out[0] = coord.astype(x_out.dtype)


def pallas_eqmotion_core(params, hv, x, vel):
    B, N, K = hv.shape
    D, C = x.shape[1], x.shape[3]
    F = HIDDEN_NF
    w16, w32, w96, bias = params["w16"], params["w32"], params["w96"], params["bias"]
    return pl.pallas_call(
        _fused_kernel,
        out_shape=(jax.ShapeDtypeStruct((B, N, F), jnp.float32),
                   jax.ShapeDtypeStruct((B, D, N, C), jnp.float32)),
        grid=(B,),
        in_specs=[pl.BlockSpec((1, N, K), lambda b: (b, 0, 0)),
                  pl.BlockSpec((1, D, N, C), lambda b: (b, 0, 0, 0)),
                  pl.BlockSpec((1, D, N, C), lambda b: (b, 0, 0, 0)),
                  pl.BlockSpec(w16.shape, lambda b: (0, 0)),
                  pl.BlockSpec(w32.shape, lambda b: (0, 0)),
                  pl.BlockSpec(w96.shape, lambda b: (0, 0)),
                  pl.BlockSpec(bias.shape, lambda b: (0, 0))],
        out_specs=(pl.BlockSpec((1, N, F), lambda b: (b, 0, 0)),
                   pl.BlockSpec((1, D, N, C), lambda b: (b, 0, 0, 0))),
        compiler_params=pltpu.CompilerParams(dimension_semantics=("parallel",)),
    )(hv, x, vel, w16, w32, w96, bias)


# ----------------------------- parameters ----------------------------------------


def _init_linear(key, fan_in, fan_out, bias=True):
    w = jax.random.normal(key, (fan_in, fan_out), jnp.float32) / jnp.sqrt(float(fan_in))
    b = jnp.zeros((fan_out,), jnp.float32) if bias else None
    return {"w": w, "b": b}


def make_params(key):
    keys = iter(jax.random.split(key, 256))

    def lin(fi, fo, bias=True):
        return _init_linear(next(keys), fi, fo, bias)

    hnf2 = HIDDEN_NF // 2
    p = {
        "embedding": lin(IN_NODE_NF, hnf2),
        "embedding2": lin(IN_NODE_NF, hnf2),
        "coord_trans": lin(IN_CHANNEL, HID_CHANNEL, bias=False),
        "vel_trans": lin(IN_CHANNEL, HID_CHANNEL, bias=False),
        "predict_head": lin(HID_CHANNEL, OUT_CHANNEL, bias=False),
        # calc_category MLPs
        "edge_mlp": [lin(2 * HIDDEN_NF + 2 * HID_CHANNEL, HIDDEN_NF), lin(HIDDEN_NF, HIDDEN_NF)],
        "coord_mlp": [lin(2 * HID_CHANNEL, HIDDEN_NF), lin(HIDDEN_NF, 2 * HID_CHANNEL)],
        "node_mlp": [lin(2 * HIDDEN_NF, HIDDEN_NF), lin(HIDDEN_NF, HIDDEN_NF)],
        "category_mlp": [lin(2 * HIDDEN_NF + 2 * HID_CHANNEL, HIDDEN_NF), lin(HIDDEN_NF, CATEGORY_NUM)],
        "layers": [],
    }
    for _ in range(N_LAYERS):
        lp = {
            "coord_vel": lin(HID_CHANNEL, HID_CHANNEL, bias=False),
            "edge_mlp": [lin(2 * HIDDEN_NF + HID_CHANNEL, HIDDEN_NF), lin(HIDDEN_NF, HIDDEN_NF)],
            "category_mlp": [
                [lin(2 * HIDDEN_NF + HID_CHANNEL, HIDDEN_NF), lin(HIDDEN_NF, HID_CHANNEL)]
                for _ in range(CATEGORY_NUM)
            ],
            "factor_mlp": [lin(HID_CHANNEL, HID_CHANNEL), lin(HID_CHANNEL, HID_CHANNEL)],
            "node_mlp": [lin(2 * HIDDEN_NF, HIDDEN_NF), lin(HIDDEN_NF, HIDDEN_NF)],
            "mlp_q": lin(HIDDEN_NF, HID_CHANNEL),
            "layer_q": lin(HID_CHANNEL, HID_CHANNEL, bias=False),
            "layer_k": lin(HID_CHANNEL, HID_CHANNEL, bias=False),
        }
        p["layers"].append(lp)
    return p


def block_diag(*ms):
    rows = sum(m.shape[0] for m in ms)
    cols = sum(m.shape[1] for m in ms)
    out = jnp.zeros((rows, cols), ms[0].dtype)
    r = c = 0
    for m in ms:
        out = out.at[r:r + m.shape[0], c:c + m.shape[1]].set(m)
        r += m.shape[0]
        c += m.shape[1]
    return out


def prepare_params(raw):
    """One-time, eager (outside jit) weight consolidation and packing into the four
    lane-aligned slabs the fused kernel slices with static offsets."""
    F = HIDDEN_NF
    named = {}

    # embedding + embedding2 -> one lane-dense block-diagonal matmul
    named["emb_w"] = block_diag(raw["embedding"]["w"], raw["embedding2"]["w"])
    named["emb_b"] = jnp.concatenate([raw["embedding"]["b"], raw["embedding2"]["b"]])

    cm1, cm2 = raw["coord_mlp"]
    em1, em2 = raw["edge_mlp"]
    nm1, nm2 = raw["node_mlp"]
    ct1, ct2 = raw["category_mlp"]
    named["cm_w1"], named["cm_b1"] = cm1["w"], cm1["b"]
    named["cm_w2"], named["cm_b2"] = cm2["w"], cm2["b"]
    # edge/category first layers split by input operand (h_src / h_dst / dist_feat)
    named["hproj_cc"] = jnp.concatenate([em1["w"][:F], em1["w"][F:2 * F], nm1["w"][:F]], axis=1)
    named["df_proj"] = jnp.concatenate([em1["w"][2 * F:], ct1["w"][2 * F:]], axis=1)
    named["em_b1"] = em1["b"]
    named["em_w2"], named["em_b2"] = em2["w"], em2["b"]
    named["nm_agg_cc"], named["nm_b1_cc"] = nm1["w"][F:], nm1["b"]
    named["nm_w2_cc"], named["nm_b2_cc"] = nm2["w"], nm2["b"]
    named["nn_proj"] = jnp.concatenate([ct1["w"][:F], ct1["w"][F:2 * F]], axis=1)
    named["ct_b1"] = ct1["b"]
    named["ct_w2"], named["ct_b2"] = ct2["w"], ct2["b"]

    for l, lp in enumerate(raw["layers"]):
        e1, e2 = lp["edge_mlp"]
        cat1 = [m[0] for m in lp["category_mlp"]]
        cat2 = [m[1] for m in lp["category_mlp"]]
        # edge_mlp + all category branches share ef_in -> first layers concat along Nout
        ec_w1 = jnp.concatenate([e1["w"]] + [m["w"] for m in cat1], axis=1)   # (2F+C, H1)
        ec_b1 = jnp.concatenate([e1["b"]] + [m["b"] for m in cat1])
        named[f"hproj_{l}"] = jnp.concatenate(
            [ec_w1[:F], ec_w1[F:2 * F], lp["mlp_q"]["w"], lp["node_mlp"][0]["w"][:F]], axis=1)
        named[f"ec_dist_{l}"] = ec_w1[2 * F:]
        named[f"ec_b1_{l}"] = ec_b1
        named[f"ec_w2_{l}"] = block_diag(e2["w"], *[m["w"] for m in cat2])
        named[f"ec_b2_{l}"] = jnp.concatenate([e2["b"]] + [m["b"] for m in cat2])
        named[f"q_b_{l}"] = lp["mlp_q"]["b"]
        named[f"fac_w1_{l}"], named[f"fac_b1_{l}"] = lp["factor_mlp"][0]["w"], lp["factor_mlp"][0]["b"]
        named[f"fac_w2_{l}"], named[f"fac_b2_{l}"] = lp["factor_mlp"][1]["w"], lp["factor_mlp"][1]["b"]
        named[f"cv_w_{l}"] = lp["coord_vel"]["w"]
        named[f"qk_w_{l}"] = jnp.concatenate([lp["layer_q"]["w"], lp["layer_k"]["w"]], axis=1)
        named[f"nm_agg_{l}"], named[f"nm_b1_{l}"] = lp["node_mlp"][0]["w"][F:], lp["node_mlp"][0]["b"]
        named[f"nm_w2_{l}"], named[f"nm_b2_{l}"] = lp["node_mlp"][1]["w"], lp["node_mlp"][1]["b"]

    group_rows = {"w16": HID_CHANNEL, "w32": HIDDEN_NF, "w96": H1, "bias": 1}
    slabs = {}
    for group, rows in group_rows.items():
        buf = np.zeros((rows, _SIZES[group]), np.float32)
        for name, (g, off, cols) in _LAYOUT.items():
            if g != group:
                continue
            w = np.asarray(named[name], np.float32)
            if group == "bias":
                w = w.reshape(1, -1)
            assert w.shape == (rows, cols), (name, w.shape, (rows, cols))
            buf[:, off:off + cols] = w
        slabs[group] = jnp.asarray(buf)

    return {
        "w16": slabs["w16"], "w32": slabs["w32"], "w96": slabs["w96"], "bias": slabs["bias"],
        "coord_trans_w": raw["coord_trans"]["w"],
        "vel_trans_w": raw["vel_trans"]["w"],
        "predict_head_w": raw["predict_head"]["w"],
    }


# ----------------------------- DCT helpers ---------------------------------------


def get_dct_matrices(n_in, n_out):
    def dct(n):
        m = np.eye(n)
        for k in range(n):
            for i in range(n):
                w = np.sqrt(2.0 / n)
                if k == 0:
                    w = np.sqrt(1.0 / n)
                m[k, i] = w * np.cos(np.pi * (i + 0.5) * k / n)
        return m

    return (jnp.asarray(dct(n_in), jnp.float32),
            jnp.asarray(np.linalg.inv(dct(n_out)), jnp.float32))


# ----------------------------- model forward -------------------------------------


def eqmotion_forward(params, h_in, x_in, vel_in):
    """h_in: [B,N,IN_NODE_NF], x_in/vel_in: [B,N,IN_CHANNEL,D] (PyTorch layout)."""
    EPS = 1e-6

    # velocity-angle features (raw [B,N,C,D] layout)
    vel_pre = jnp.concatenate([vel_in[:, :, :1], vel_in[:, :, :-1]], axis=2)
    num = jnp.sum(vel_pre * vel_in, axis=-1)
    den = (jnp.linalg.norm(vel_pre, axis=-1) + EPS) * (jnp.linalg.norm(vel_in, axis=-1) + EPS)
    vel_angle = jnp.arccos(jnp.clip(num / den, -1.0, 1.0))          # [B,N,C]

    # center trajectories
    x_center = jnp.mean(x_in, axis=(1, 2), keepdims=True)           # [B,1,1,D]
    x = x_in - x_center

    # channels-last layout [B, D, N, C]: channel mixes are plain dots, no swapaxes pairs
    x = jnp.transpose(x, (0, 3, 1, 2))
    vel = jnp.transpose(vel_in, (0, 3, 1, 2))

    # DCT over the temporal/channel axis
    dct_m, idct_m = get_dct_matrices(IN_CHANNEL, OUT_CHANNEL)
    x = jnp.einsum("ki,bdni->bdnk", dct_m, x)
    vel = jnp.einsum("ki,bdni->bdnk", dct_m, vel)

    # coordinate / velocity channel transforms (single XLA dots, channels-last)
    x_mean = jnp.mean(x, axis=(2, 3), keepdims=True)
    x = jnp.einsum("bdnc,ck->bdnk", x - x_mean, params["coord_trans_w"]) + x_mean
    vel = jnp.einsum("bdnc,ck->bdnk", vel, params["vel_trans_w"])

    # ONE fused Pallas call: embedding + calc_category + all feature layers
    hv = jnp.concatenate([h_in, vel_angle], axis=-1)                 # [B,N,2*IN_NODE_NF]
    h, x = pallas_eqmotion_core(params, hv, x, vel)

    # predict head + inverse DCT, then un-center and restore [B,N,C,D]
    x_mean = jnp.mean(x, axis=(2, 3), keepdims=True)
    x = jnp.einsum("bdnc,ck->bdnk", x - x_mean, params["predict_head_w"]) + x_mean
    x = jnp.einsum("ki,bdni->bdnk", idct_m, x)
    x = jnp.transpose(x, (0, 2, 3, 1)) + x_center
    return x, h


# ----------------------------- main ----------------------------------------------

if __name__ == "__main__":
    key = jax.random.PRNGKey(0)
    kp, kh, kx, kv = jax.random.split(key, 4)
    raw_params = make_params(kp)
    params = prepare_params(raw_params)     # one-time eager weight consolidation + packing

    # N chosen as a multiple of 8 so all in-kernel (N*N, F) reshapes are sublane-aligned.
    B, N, D = 2, 8, 3
    h_in = jax.random.normal(kh, (B, N, IN_NODE_NF), jnp.float32)
    x_in = jax.random.normal(kx, (B, N, IN_CHANNEL, D), jnp.float32)
    v_in = jax.random.normal(kv, (B, N, IN_CHANNEL, D), jnp.float32)

    fwd = jax.jit(eqmotion_forward)
    x_out, h_out = fwd(params, h_in, x_in, v_in)
    jax.block_until_ready((x_out, h_out))

    assert x_out.shape == (B, N, OUT_CHANNEL, D)
    assert h_out.shape == (B, N, HIDDEN_NF)
    assert bool(jnp.all(jnp.isfinite(x_out))) and bool(jnp.all(jnp.isfinite(h_out)))
    print("KERNEL_OK")
</pallas_src>

<mosaic_0001>
module attributes {stable_mosaic.version = 11 : i64} {
  func.func @_fused_kernel(%arg0: i32, %arg1: memref<1x8x16xf32, #tpu.memory_space<vmem>>, %arg2: memref<1x3x8x16xf32, #tpu.memory_space<vmem>>, %arg3: memref<1x3x8x16xf32, #tpu.memory_space<vmem>>, %arg4: memref<16x1408xf32, #tpu.memory_space<vmem>>, %arg5: memref<32x2176xf32, #tpu.memory_space<vmem>>, %arg6: memref<96x256xf32, #tpu.memory_space<vmem>>, %arg7: memref<1x2944xf32, #tpu.memory_space<vmem>>, %arg8: memref<1x8x32xf32, #tpu.memory_space<vmem>>, %arg9: memref<1x3x8x16xf32, #tpu.memory_space<vmem>>) attributes {dimension_semantics = [#tpu.dimension_semantics<parallel>], iteration_bounds = array<i64: 2>, scalar_prefetch = 0 : i64, scratch_operands = 0 : i64, tpu.core_type = #tpu.core_type<tc>, window_params = [{transform_indices = @transform_0, window_bounds = array<i64: 1, 8, 16>}, {transform_indices = @transform_1, window_bounds = array<i64: 1, 3, 8, 16>}, {transform_indices = @transform_2, window_bounds = array<i64: 1, 3, 8, 16>}, {pipeline_mode = #tpu.pipeline_mode<synchronous>, transform_indices = @transform_3, window_bounds = array<i64: 16, 1408>}, {pipeline_mode = #tpu.pipeline_mode<synchronous>, transform_indices = @transform_4, window_bounds = array<i64: 32, 2176>}, {pipeline_mode = #tpu.pipeline_mode<synchronous>, transform_indices = @transform_5, window_bounds = array<i64: 96, 256>}, {pipeline_mode = #tpu.pipeline_mode<synchronous>, transform_indices = @transform_6, window_bounds = array<i64: 1, 2944>}, {transform_indices = @transform_7, window_bounds = array<i64: 1, 8, 32>}, {transform_indices = @transform_8, window_bounds = array<i64: 1, 3, 8, 16>}]} {
    %c0 = arith.constant 0 : index
    %c0_0 = arith.constant 0 : index
    %c0_1 = arith.constant 0 : index
    %0 = vector.load %arg1[%c0, %c0_0, %c0_1] : memref<1x8x16xf32, #tpu.memory_space<vmem>>, vector<1x8x16xf32>
    %1 = vector.shape_cast %0 : vector<1x8x16xf32> to vector<8x16xf32>
    %c0_2 = arith.constant 0 : index
    %c0_3 = arith.constant 0 : index
    %c0_4 = arith.constant 0 : index
    %c0_5 = arith.constant 0 : index
    %2 = vector.load %arg2[%c0_2, %c0_3, %c0_4, %c0_5] : memref<1x3x8x16xf32, #tpu.memory_space<vmem>>, vector<1x3x8x16xf32>
    %3 = vector.shape_cast %2 : vector<1x3x8x16xf32> to vector<3x8x16xf32>
    %c0_6 = arith.constant 0 : index
    %c0_7 = arith.constant 0 : index
    %c0_8 = arith.constant 0 : index
    %c0_9 = arith.constant 0 : index
    %4 = vector.load %arg3[%c0_6, %c0_7, %c0_8, %c0_9] : memref<1x3x8x16xf32, #tpu.memory_space<vmem>>, vector<1x3x8x16xf32>
    %5 = vector.shape_cast %4 : vector<1x3x8x16xf32> to vector<3x8x16xf32>
    %6 = tpu.iota {dimensions = array<i32: 0>} : vector<8x8xi32>
    %7 = tpu.iota {dimensions = array<i32: 1>} : vector<8x8xi32>
    %8 = arith.cmpi ne, %6, %7 : vector<8x8xi32>
    %9 = arith.extui %8 : vector<8x8xi1> to vector<8x8xi32>
    %10 = arith.sitofp %9 : vector<8x8xi32> to vector<8x8xf32>
    %11 = vector.shape_cast %10 : vector<8x8xf32> to vector<8x8x1xf32>
    %c0_10 = arith.constant 0 : index
    %c0_11 = arith.constant 0 : index
    %12 = vector.load %arg4[%c0_10, %c0_11] : memref<16x1408xf32, #tpu.memory_space<vmem>>, vector<16x32xf32>
    %cst = arith.constant dense<0.000000e+00> : vector<8x32xf32>
    %13 = tpu.matmul %1, %12, %cst {dimension_numbers = #tpu.dot_dimension_numbers<[1], [0], [0], [1], [0, 0, 1, 1], [], []>} : vector<8x16xf32>, vector<16x32xf32>, vector<8x32xf32> -> vector<8x32xf32>
    %c0_12 = arith.constant 0 : index
    %c0_13 = arith.constant 0 : index
    %14 = vector.load %arg7[%c0_12, %c0_13] : memref<1x2944xf32, #tpu.memory_space<vmem>>, vector<1x32xf32>
    %15 = vector.broadcast %14 : vector<1x32xf32> to vector<8x32xf32>
    %16 = arith.addf %13, %15 : vector<8x32xf32>
    %17 = tpu.concatenate %3, %5 in 2 : vector<3x8x16xf32>, vector<3x8x16xf32> -> vector<3x8x32xf32>
    %cst_14 = arith.constant 0.000000e+00 : f32
    %18 = vector.broadcast %cst_14 : f32 to vector<8x8x32xf32>
    %19 = vector.extract_strided_slice %17 {offsets = [0, 0, 0], sizes = [1, 8, 32], strides = [1, 1, 1]} : vector<3x8x32xf32> to vector<1x8x32xf32>
    %20 = vector.shape_cast %19 : vector<1x8x32xf32> to vector<8x32xf32>
    %21 = vector.shape_cast %20 : vector<8x32xf32> to vector<8x1x32xf32>
    %22 = vector.extract_strided_slice %17 {offsets = [0, 0, 0], sizes = [1, 8, 32], strides = [1, 1, 1]} : vector<3x8x32xf32> to vector<1x8x32xf32>
    %23 = vector.shape_cast %22 : vector<1x8x32xf32> to vector<8x32xf32>
    %24 = vector.shape_cast %23 : vector<8x32xf32> to vector<1x8x32xf32>
    %25 = vector.broadcast %21 : vector<8x1x32xf32> to vector<8x8x32xf32>
    %26 = vector.broadcast %24 : vector<1x8x32xf32> to vector<8x8x32xf32>
    %27 = arith.subf %25, %26 : vector<8x8x32xf32>
    %28 = arith.mulf %27, %27 : vector<8x8x32xf32>
    %29 = arith.addf %18, %28 : vector<8x8x32xf32>
    %30 = vector.extract_strided_slice %17 {offsets = [1, 0, 0], sizes = [1, 8, 32], strides = [1, 1, 1]} : vector<3x8x32xf32> to vector<1x8x32xf32>
    %31 = vector.shape_cast %30 : vector<1x8x32xf32> to vector<8x32xf32>
    %32 = vector.shape_cast %31 : vector<8x32xf32> to vector<8x1x32xf32>
    %33 = vector.extract_strided_slice %17 {offsets = [1, 0, 0], sizes = [1, 8, 32], strides = [1, 1, 1]} : vector<3x8x32xf32> to vector<1x8x32xf32>
    %34 = vector.shape_cast %33 : vector<1x8x32xf32> to vector<8x32xf32>
    %35 = vector.shape_cast %34 : vector<8x32xf32> to vector<1x8x32xf32>
    %36 = vector.broadcast %32 : vector<8x1x32xf32> to vector<8x8x32xf32>
    %37 = vector.broadcast %35 : vector<1x8x32xf32> to vector<8x8x32xf32>
    %38 = arith.subf %36, %37 : vector<8x8x32xf32>
    %39 = arith.mulf %38, %38 : vector<8x8x32xf32>
    %40 = arith.addf %29, %39 : vector<8x8x32xf32>
    %41 = vector.extract_strided_slice %17 {offsets = [2, 0, 0], sizes = [1, 8, 32], strides = [1, 1, 1]} : vector<3x8x32xf32> to vector<1x8x32xf32>
    %42 = vector.shape_cast %41 : vector<1x8x32xf32> to vector<8x32xf32>
    %43 = vector.shape_cast %42 : vector<8x32xf32> to vector<8x1x32xf32>
    %44 = vector.extract_strided_slice %17 {offsets = [2, 0, 0], sizes = [1, 8, 32], strides = [1, 1, 1]} : vector<3x8x32xf32> to vector<1x8x32xf32>
    %45 = vector.shape_cast %44 : vector<1x8x32xf32> to vector<8x32xf32>
    %46 = vector.shape_cast %45 : vector<8x32xf32> to vector<1x8x32xf32>
    %47 = vector.broadcast %43 : vector<8x1x32xf32> to vector<8x8x32xf32>
    %48 = vector.broadcast %46 : vector<1x8x32xf32> to vector<8x8x32xf32>
    %49 = arith.subf %47, %48 : vector<8x8x32xf32>
    %50 = arith.mulf %49, %49 : vector<8x8x32xf32>
    %51 = arith.addf %40, %50 : vector<8x8x32xf32>
    %52 = math.sqrt %51 : vector<8x8x32xf32>
    %53 = vector.shape_cast %52 : vector<8x8x32xf32> to vector<64x32xf32>
    %c0_15 = arith.constant 0 : index
    %c0_16 = arith.constant 0 : index
    %54 = vector.load %arg5[%c0_15, %c0_16] : memref<32x2176xf32, #tpu.memory_space<vmem>>, vector<32x32xf32>
    %cst_17 = arith.constant dense<0.000000e+00> : vector<64x32xf32>
    %55 = tpu.matmul %53, %54, %cst_17 {dimension_numbers = #tpu.dot_dimension_numbers<[1], [0], [0], [1], [0, 0, 1, 1], [], []>} : vector<64x32xf32>, vector<32x32xf32>, vector<64x32xf32> -> vector<64x32xf32>
    %c0_18 = arith.constant 0 : index
    %c128 = arith.constant 128 : index
    %56 = vector.load %arg7[%c0_18, %c128] : memref<1x2944xf32, #tpu.memory_space<vmem>>, vector<1x32xf32>
    %57 = vector.broadcast %56 : vector<1x32xf32> to vector<64x32xf32>
    %58 = arith.addf %55, %57 : vector<64x32xf32>
    %59 = arith.negf %58 : vector<64x32xf32>
    %60 = math.exp %59 : vector<64x32xf32>
    %cst_19 = arith.constant 1.000000e+00 : f32
    %61 = vector.broadcast %cst_19 : f32 to vector<64x32xf32>
    %62 = arith.addf %61, %60 : vector<64x32xf32>
    %63 = arith.divf %61, %62 : vector<64x32xf32>
    %64 = arith.mulf %58, %63 : vector<64x32xf32>
    %c0_20 = arith.constant 0 : index
    %c128_21 = arith.constant 128 : index
    %65 = vector.load %arg5[%c0_20, %c128_21] : memref<32x2176xf32, #tpu.memory_space<vmem>>, vector<32x32xf32>
    %cst_22 = arith.constant dense<0.000000e+00> : vector<64x32xf32>
    %66 = tpu.matmul %64, %65, %cst_22 {dimension_numbers = #tpu.dot_dimension_numbers<[1], [0], [0], [1], [0, 0, 1, 1], [], []>} : vector<64x32xf32>, vector<32x32xf32>, vector<64x32xf32> -> vector<64x32xf32>
    %c0_23 = arith.constant 0 : index
    %c256 = arith.constant 256 : index
    %67 = vector.load %arg7[%c0_23, %c256] : memref<1x2944xf32, #tpu.memory_space<vmem>>, vector<1x32xf32>
    %68 = vector.broadcast %67 : vector<1x32xf32> to vector<64x32xf32>
    %69 = arith.addf %66, %68 : vector<64x32xf32>
    %70 = arith.negf %69 : vector<64x32xf32>
    %71 = math.exp %70 : vector<64x32xf32>
    %cst_24 = arith.constant 1.000000e+00 : f32
    %72 = vector.broadcast %cst_24 : f32 to vector<64x32xf32>
    %73 = arith.addf %72, %71 : vector<64x32xf32>
    %74 = arith.divf %72, %73 : vector<64x32xf32>
    %75 = arith.mulf %69, %74 : vector<64x32xf32>
    %c0_25 = arith.constant 0 : index
    %c256_26 = arith.constant 256 : index
    %76 = vector.load %arg5[%c0_25, %c256_26] : memref<32x2176xf32, #tpu.memory_space<vmem>>, vector<32x64xf32>
    %cst_27 = arith.constant dense<0.000000e+00> : vector<64x64xf32>
    %77 = tpu.matmul %75, %76, %cst_27 {dimension_numbers = #tpu.dot_dimension_numbers<[1], [0], [0], [1], [0, 0, 1, 1], [], []>} : vector<64x32xf32>, vector<32x64xf32>, vector<64x64xf32> -> vector<64x64xf32>
    %c0_28 = arith.constant 0 : index
    %c384 = arith.constant 384 : index
    %78 = vector.load %arg5[%c0_28, %c384] : memref<32x2176xf32, #tpu.memory_space<vmem>>, vector<32x96xf32>
    %cst_29 = arith.constant dense<0.000000e+00> : vector<8x96xf32>
    %79 = tpu.matmul %16, %78, %cst_29 {dimension_numbers = #tpu.dot_dimension_numbers<[1], [0], [0], [1], [0, 0, 1, 1], [], []>} : vector<8x32xf32>, vector<32x96xf32>, vector<8x96xf32> -> vector<8x96xf32>
    %80 = vector.extract_strided_slice %79 {offsets = [0, 0], sizes = [8, 32], strides = [1, 1]} : vector<8x96xf32> to vector<8x32xf32>
    %81 = vector.shape_cast %80 : vector<8x32xf32> to vector<8x1x32xf32>
    %82 = vector.extract_strided_slice %79 {offsets = [0, 32], sizes = [8, 32], strides = [1, 1]} : vector<8x96xf32> to vector<8x32xf32>
    %83 = vector.shape_cast %82 : vector<8x32xf32> to vector<1x8x32xf32>
    %84 = vector.broadcast %81 : vector<8x1x32xf32> to vector<8x8x32xf32>
    %85 = vector.broadcast %83 : vector<1x8x32xf32> to vector<8x8x32xf32>
    %86 = arith.addf %84, %85 : vector<8x8x32xf32>
    %87 = vector.extract_strided_slice %77 {offsets = [0, 0], sizes = [64, 32], strides = [1, 1]} : vector<64x64xf32> to vector<64x32xf32>
    %88 = vector.shape_cast %87 : vector<64x32xf32> to vector<8x8x32xf32>
    %89 = arith.addf %86, %88 : vector<8x8x32xf32>
    %c0_30 = arith.constant 0 : index
    %c384_31 = arith.constant 384 : index
    %90 = vector.load %arg7[%c0_30, %c384_31] : memref<1x2944xf32, #tpu.memory_space<vmem>>, vector<1x32xf32>
    %91 = vector.shape_cast %90 : vector<1x32xf32> to vector<1x1x32xf32>
    %92 = vector.broadcast %91 : vector<1x1x32xf32> to vector<8x8x32xf32>
    %93 = arith.addf %89, %92 : vector<8x8x32xf32>
    %94 = arith.negf %93 : vector<8x8x32xf32>
    %95 = math.exp %94 : vector<8x8x32xf32>
    %cst_32 = arith.constant 1.000000e+00 : f32
    %96 = vector.broadcast %cst_32 : f32 to vector<8x8x32xf32>
    %97 = arith.addf %96, %95 : vector<8x8x32xf32>
    %98 = arith.divf %96, %97 : vector<8x8x32xf32>
    %99 = arith.mulf %93, %98 : vector<8x8x32xf32>
    %100 = vector.shape_cast %99 : vector<8x8x32xf32> to vector<64x32xf32>
    %c0_33 = arith.constant 0 : index
    %c512 = arith.constant 512 : index
    %101 = vector.load %arg5[%c0_33, %c512] : memref<32x2176xf32, #tpu.memory_space<vmem>>, vector<32x32xf32>
    %cst_34 = arith.constant dense<0.000000e+00> : vector<64x32xf32>
    %102 = tpu.matmul %100, %101, %cst_34 {dimension_numbers = #tpu.dot_dimension_numbers<[1], [0], [0], [1], [0, 0, 1, 1], [], []>} : vector<64x32xf32>, vector<32x32xf32>, vector<64x32xf32> -> vector<64x32xf32>
    %c0_35 = arith.constant 0 : index
    %c512_36 = arith.constant 512 : index
    %103 = vector.load %arg7[%c0_35, %c512_36] : memref<1x2944xf32, #tpu.memory_space<vmem>>, vector<1x32xf32>
    %104 = vector.broadcast %103 : vector<1x32xf32> to vector<64x32xf32>
    %105 = arith.addf %102, %104 : vector<64x32xf32>
    %106 = arith.negf %105 : vector<64x32xf32>
    %107 = math.exp %106 : vector<64x32xf32>
    %cst_37 = arith.constant 1.000000e+00 : f32
    %108 = vector.broadcast %cst_37 : f32 to vector<64x32xf32>
    %109 = arith.addf %108, %107 : vector<64x32xf32>
    %110 = arith.divf %108, %109 : vector<64x32xf32>
    %111 = arith.mulf %105, %110 : vector<64x32xf32>
    %112 = vector.shape_cast %111 : vector<64x32xf32> to vector<8x8x32xf32>
    %113 = vector.broadcast %11 : vector<8x8x1xf32> to vector<8x8x32xf32>
    %114 = arith.mulf %112, %113 : vector<8x8x32xf32>
    %cst_38 = arith.constant dense<0.000000e+00> : vector<8x32xf32>
    %115 = vector.multi_reduction <add>, %114, %cst_38 [1] : vector<8x8x32xf32> to vector<8x32xf32>
    %116 = vector.extract_strided_slice %79 {offsets = [0, 64], sizes = [8, 32], strides = [1, 1]} : vector<8x96xf32> to vector<8x32xf32>
    %c0_39 = arith.constant 0 : index
    %c640 = arith.constant 640 : index
    %117 = vector.load %arg5[%c0_39, %c640] : memref<32x2176xf32, #tpu.memory_space<vmem>>, vector<32x32xf32>
    %cst_40 = arith.constant dense<0.000000e+00> : vector<8x32xf32>
    %118 = tpu.matmul %115, %117, %cst_40 {dimension_numbers = #tpu.dot_dimension_numbers<[1], [0], [0], [1], [0, 0, 1, 1], [], []>} : vector<8x32xf32>, vector<32x32xf32>, vector<8x32xf32> -> vector<8x32xf32>
    %119 = arith.addf %116, %118 : vector<8x32xf32>
    %c0_41 = arith.constant 0 : index
    %c640_42 = arith.constant 640 : index
    %120 = vector.load %arg7[%c0_41, %c640_42] : memref<1x2944xf32, #tpu.memory_space<vmem>>, vector<1x32xf32>
    %121 = vector.broadcast %120 : vector<1x32xf32> to vector<8x32xf32>
    %122 = arith.addf %119, %121 : vector<8x32xf32>
    %123 = arith.negf %122 : vector<8x32xf32>
    %124 = math.exp %123 : vector<8x32xf32>
    %cst_43 = arith.constant 1.000000e+00 : f32
    %125 = vector.broadcast %cst_43 : f32 to vector<8x32xf32>
    %126 = arith.addf %125, %124 : vector<8x32xf32>
    %127 = arith.divf %125, %126 : vector<8x32xf32>
    %128 = arith.mulf %122, %127 : vector<8x32xf32>
    %c0_44 = arith.constant 0 : index
    %c768 = arith.constant 768 : index
    %129 = vector.load %arg5[%c0_44, %c768] : memref<32x2176xf32, #tpu.memory_space<vmem>>, vector<32x32xf32>
    %cst_45 = arith.constant dense<0.000000e+00> : vector<8x32xf32>
    %130 = tpu.matmul %128, %129, %cst_45 {dimension_numbers = #tpu.dot_dimension_numbers<[1], [0], [0], [1], [0, 0, 1, 1], [], []>} : vector<8x32xf32>, vector<32x32xf32>, vector<8x32xf32> -> vector<8x32xf32>
    %c0_46 = arith.constant 0 : index
    %c768_47 = arith.constant 768 : index
    %131 = vector.load %arg7[%c0_46, %c768_47] : memref<1x2944xf32, #tpu.memory_space<vmem>>, vector<1x32xf32>
    %132 = vector.broadcast %131 : vector<1x32xf32> to vector<8x32xf32>
    %133 = arith.addf %130, %132 : vector<8x32xf32>
    %134 = arith.negf %133 : vector<8x32xf32>
    %135 = math.exp %134 : vector<8x32xf32>
    %cst_48 = arith.constant 1.000000e+00 : f32
    %136 = vector.broadcast %cst_48 : f32 to vector<8x32xf32>
    %137 = arith.addf %136, %135 : vector<8x32xf32>
    %138 = arith.divf %136, %137 : vector<8x32xf32>
    %139 = arith.mulf %133, %138 : vector<8x32xf32>
    %c0_49 = arith.constant 0 : index
    %c896 = arith.constant 896 : index
    %140 = vector.load %arg5[%c0_49, %c896] : memref<32x2176xf32, #tpu.memory_space<vmem>>, vector<32x64xf32>
    %cst_50 = arith.constant dense<0.000000e+00> : vector<8x64xf32>
    %141 = tpu.matmul %139, %140, %cst_50 {dimension_numbers = #tpu.dot_dimension_numbers<[1], [0], [0], [1], [0, 0, 1, 1], [], []>} : vector<8x32xf32>, vector<32x64xf32>, vector<8x64xf32> -> vector<8x64xf32>
    %142 = vector.extract_strided_slice %141 {offsets = [0, 0], sizes = [8, 32], strides = [1, 1]} : vector<8x64xf32> to vector<8x32xf32>
    %143 = vector.shape_cast %142 : vector<8x32xf32> to vector<8x1x32xf32>
    %144 = vector.extract_strided_slice %141 {offsets = [0, 32], sizes = [8, 32], strides = [1, 1]} : vector<8x64xf32> to vector<8x32xf32>
    %145 = vector.shape_cast %144 : vector<8x32xf32> to vector<1x8x32xf32>
    %146 = vector.broadcast %143 : vector<8x1x32xf32> to vector<8x8x32xf32>
    %147 = vector.broadcast %145 : vector<1x8x32xf32> to vector<8x8x32xf32>
    %148 = arith.addf %146, %147 : vector<8x8x32xf32>
    %149 = vector.extract_strided_slice %77 {offsets = [0, 32], sizes = [64, 32], strides = [1, 1]} : vector<64x64xf32> to vector<64x32xf32>
    %150 = vector.shape_cast %149 : vector<64x32xf32> to vector<8x8x32xf32>
    %151 = arith.addf %148, %150 : vector<8x8x32xf32>
    %c0_51 = arith.constant 0 : index
    %c896_52 = arith.constant 896 : index
    %152 = vector.load %arg7[%c0_51, %c896_52] : memref<1x2944xf32, #tpu.memory_space<vmem>>, vector<1x32xf32>
    %153 = vector.shape_cast %152 : vector<1x32xf32> to vector<1x1x32xf32>
    %154 = vector.broadcast %153 : vector<1x1x32xf32> to vector<8x8x32xf32>
    %155 = arith.addf %151, %154 : vector<8x8x32xf32>
    %156 = arith.negf %155 : vector<8x8x32xf32>
    %157 = math.exp %156 : vector<8x8x32xf32>
    %cst_53 = arith.constant 1.000000e+00 : f32
    %158 = vector.broadcast %cst_53 : f32 to vector<8x8x32xf32>
    %159 = arith.addf %158, %157 : vector<8x8x32xf32>
    %160 = arith.divf %158, %159 : vector<8x8x32xf32>
    %161 = arith.mulf %155, %160 : vector<8x8x32xf32>
    %162 = vector.shape_cast %161 : vector<8x8x32xf32> to vector<64x32xf32>
    %c0_54 = arith.constant 0 : index
    %c1024 = arith.constant 1024 : index
    %163 = vector.load %arg5[%c0_54, %c1024] : memref<32x2176xf32, #tpu.memory_space<vmem>>, vector<32x2xf32>
    %cst_55 = arith.constant dense<0.000000e+00> : vector<64x2xf32>
    %164 = tpu.matmul %162, %163, %cst_55 {dimension_numbers = #tpu.dot_dimension_numbers<[1], [0], [0], [1], [0, 0, 1, 1], [], []>} : vector<64x32xf32>, vector<32x2xf32>, vector<64x2xf32> -> vector<64x2xf32>
    %c0_56 = arith.constant 0 : index
    %c1024_57 = arith.constant 1024 : index
    %165 = vector.load %arg7[%c0_56, %c1024_57] : memref<1x2944xf32, #tpu.memory_space<vmem>>, vector<1x2xf32>
    %166 = vector.broadcast %165 : vector<1x2xf32> to vector<64x2xf32>
    %167 = arith.addf %164, %166 : vector<64x2xf32>
    %168 = arith.negf %167 : vector<64x2xf32>
    %169 = math.exp %168 : vector<64x2xf32>
    %cst_58 = arith.constant 1.000000e+00 : f32
    %170 = vector.broadcast %cst_58 : f32 to vector<64x2xf32>
    %171 = arith.addf %170, %169 : vector<64x2xf32>
    %172 = arith.divf %170, %171 : vector<64x2xf32>
    %173 = arith.mulf %167, %172 : vector<64x2xf32>
    %174 = vector.extract_strided_slice %173 {offsets = [0, 0], sizes = [64, 1], strides = [1, 1]} : vector<64x2xf32> to vector<64x1xf32>
    %175 = vector.extract_strided_slice %173 {offsets = [0, 1], sizes = [64, 1], strides = [1, 1]} : vector<64x2xf32> to vector<64x1xf32>
    %176 = arith.subf %174, %175 : vector<64x1xf32>
    %cst_59 = arith.constant 1.000000e+00 : f32
    %177 = vector.broadcast %cst_59 : f32 to vector<64x1xf32>
    %178 = arith.mulf %176, %177 : vector<64x1xf32>
    %179 = arith.negf %178 : vector<64x1xf32>
    %180 = math.exp %179 : vector<64x1xf32>
    %cst_60 = arith.constant 1.000000e+00 : f32
    %181 = vector.broadcast %cst_60 : f32 to vector<64x1xf32>
    %182 = arith.addf %181, %180 : vector<64x1xf32>
    %183 = arith.divf %181, %182 : vector<64x1xf32>
    %cst_61 = arith.constant 0.000000e+00 : f32
    %184 = vector.broadcast %cst_61 : f32 to vector<8x8x16xf32>
    %185 = vector.extract_strided_slice %3 {offsets = [0, 0, 0], sizes = [1, 8, 16], strides = [1, 1, 1]} : vector<3x8x16xf32> to vector<1x8x16xf32>
    %186 = vector.shape_cast %185 : vector<1x8x16xf32> to vector<8x16xf32>
    %187 = vector.shape_cast %186 : vector<8x16xf32> to vector<8x1x16xf32>
    %188 = vector.extract_strided_slice %3 {offsets = [0, 0, 0], sizes = [1, 8, 16], strides = [1, 1, 1]} : vector<3x8x16xf32> to vector<1x8x16xf32>
    %189 = vector.shape_cast %188 : vector<1x8x16xf32> to vector<8x16xf32>
    %190 = vector.shape_cast %189 : vector<8x16xf32> to vector<1x8x16xf32>
    %191 = vector.broadcast %187 : vector<8x1x16xf32> to vector<8x8x16xf32>
    %192 = vector.broadcast %190 : vector<1x8x16xf32> to vector<8x8x16xf32>
    %193 = arith.subf %191, %192 : vector<8x8x16xf32>
    %194 = arith.mulf %193, %193 : vector<8x8x16xf32>
    %195 = arith.addf %184, %194 : vector<8x8x16xf32>
    %196 = vector.extract_strided_slice %3 {offsets = [1, 0, 0], sizes = [1, 8, 16], strides = [1, 1, 1]} : vector<3x8x16xf32> to vector<1x8x16xf32>
    %197 = vector.shape_cast %196 : vector<1x8x16xf32> to vector<8x16xf32>
    %198 = vector.shape_cast %197 : vector<8x16xf32> to vector<8x1x16xf32>
    %199 = vector.extract_strided_slice %3 {offsets = [1, 0, 0], sizes = [1, 8, 16], strides = [1, 1, 1]} : vector<3x8x16xf32> to vector<1x8x16xf32>
    %200 = vector.shape_cast %199 : vector<1x8x16xf32> to vector<8x16xf32>
    %201 = vector.shape_cast %200 : vector<8x16xf32> to vector<1x8x16xf32>
    %202 = vector.broadcast %198 : vector<8x1x16xf32> to vector<8x8x16xf32>
    %203 = vector.broadcast %201 : vector<1x8x16xf32> to vector<8x8x16xf32>
    %204 = arith.subf %202, %203 : vector<8x8x16xf32>
    %205 = arith.mulf %204, %204 : vector<8x8x16xf32>
    %206 = arith.addf %195, %205 : vector<8x8x16xf32>
    %207 = vector.extract_strided_slice %3 {offsets = [2, 0, 0], sizes = [1, 8, 16], strides = [1, 1, 1]} : vector<3x8x16xf32> to vector<1x8x16xf32>
    %208 = vector.shape_cast %207 : vector<1x8x16xf32> to vector<8x16xf32>
    %209 = vector.shape_cast %208 : vector<8x16xf32> to vector<8x1x16xf32>
    %210 = vector.extract_strided_slice %3 {offsets = [2, 0, 0], sizes = [1, 8, 16], strides = [1, 1, 1]} : vector<3x8x16xf32> to vector<1x8x16xf32>
    %211 = vector.shape_cast %210 : vector<1x8x16xf32> to vector<8x16xf32>
    %212 = vector.shape_cast %211 : vector<8x16xf32> to vector<1x8x16xf32>
    %213 = vector.broadcast %209 : vector<8x1x16xf32> to vector<8x8x16xf32>
    %214 = vector.broadcast %212 : vector<1x8x16xf32> to vector<8x8x16xf32>
    %215 = arith.subf %213, %214 : vector<8x8x16xf32>
    %216 = arith.mulf %215, %215 : vector<8x8x16xf32>
    %217 = arith.addf %206, %216 : vector<8x8x16xf32>
    %218 = math.sqrt %217 : vector<8x8x16xf32>
    %c0_62 = arith.constant 0 : index
    %c1152 = arith.constant 1152 : index
    %219 = vector.load %arg5[%c0_62, %c1152] : memref<32x2176xf32, #tpu.memory_space<vmem>>, vector<32x240xf32>
    %cst_63 = arith.constant dense<0.000000e+00> : vector<8x240xf32>
    %220 = tpu.matmul %16, %219, %cst_63 {dimension_numbers = #tpu.dot_dimension_numbers<[1], [0], [0], [1], [0, 0, 1, 1], [], []>} : vector<8x32xf32>, vector<32x240xf32>, vector<8x240xf32> -> vector<8x240xf32>
    %221 = vector.extract_strided_slice %220 {offsets = [0, 0], sizes = [8, 96], strides = [1, 1]} : vector<8x240xf32> to vector<8x96xf32>
    %222 = vector.extract_strided_slice %220 {offsets = [0, 96], sizes = [8, 96], strides = [1, 1]} : vector<8x240xf32> to vector<8x96xf32>
    %223 = vector.extract_strided_slice %220 {offsets = [0, 192], sizes = [8, 16], strides = [1, 1]} : vector<8x240xf32> to vector<8x16xf32>
    %c0_64 = arith.constant 0 : index
    %c1408 = arith.constant 1408 : index
    %224 = vector.load %arg7[%c0_64, %c1408] : memref<1x2944xf32, #tpu.memory_space<vmem>>, vector<1x16xf32>
    %225 = vector.broadcast %224 : vector<1x16xf32> to vector<8x16xf32>
    %226 = arith.addf %223, %225 : vector<8x16xf32>
    %227 = arith.negf %226 : vector<8x16xf32>
    %228 = math.exp %227 : vector<8x16xf32>
    %cst_65 = arith.constant 1.000000e+00 : f32
    %229 = vector.broadcast %cst_65 : f32 to vector<8x16xf32>
    %230 = arith.addf %229, %228 : vector<8x16xf32>
    %231 = arith.divf %229, %230 : vector<8x16xf32>
    %232 = arith.mulf %226, %231 : vector<8x16xf32>
    %233 = vector.extract_strided_slice %220 {offsets = [0, 208], sizes = [8, 32], strides = [1, 1]} : vector<8x240xf32> to vector<8x32xf32>
    %234 = vector.shape_cast %218 : vector<8x8x16xf32> to vector<64x16xf32>
    %c0_66 = arith.constant 0 : index
    %c128_67 = arith.constant 128 : index
    %235 = vector.load %arg4[%c0_66, %c128_67] : memref<16x1408xf32, #tpu.memory_space<vmem>>, vector<16x96xf32>
    %cst_68 = arith.constant dense<0.000000e+00> : vector<64x96xf32>
    %236 = tpu.matmul %234, %235, %cst_68 {dimension_numbers = #tpu.dot_dimension_numbers<[1], [0], [0], [1], [0, 0, 1, 1], [], []>} : vector<64x16xf32>, vector<16x96xf32>, vector<64x96xf32> -> vector<64x96xf32>
    %237 = vector.shape_cast %221 : vector<8x96xf32> to vector<8x1x96xf32>
    %238 = vector.shape_cast %222 : vector<8x96xf32> to vector<1x8x96xf32>
    %239 = vector.broadcast %237 : vector<8x1x96xf32> to vector<8x8x96xf32>
    %240 = vector.broadcast %238 : vector<1x8x96xf32> to vector<8x8x96xf32>
    %241 = arith.addf %239, %240 : vector<8x8x96xf32>
    %242 = vector.shape_cast %236 : vector<64x96xf32> to vector<8x8x96xf32>
    %243 = arith.addf %241, %242 : vector<8x8x96xf32>
    %c0_69 = arith.constant 0 : index
    %c1152_70 = arith.constant 1152 : index
    %244 = vector.load %arg7[%c0_69, %c1152_70] : memref<1x2944xf32, #tpu.memory_space<vmem>>, vector<1x96xf32>
    %245 = vector.shape_cast %244 : vector<1x96xf32> to vector<1x1x96xf32>
    %246 = vector.broadcast %245 : vector<1x1x96xf32> to vector<8x8x96xf32>
    %247 = arith.addf %243, %246 : vector<8x8x96xf32>
    %248 = arith.negf %247 : vector<8x8x96xf32>
    %249 = math.exp %248 : vector<8x8x96xf32>
    %cst_71 = arith.constant 1.000000e+00 : f32
    %250 = vector.broadcast %cst_71 : f32 to vector<8x8x96xf32>
    %251 = arith.addf %250, %249 : vector<8x8x96xf32>
    %252 = arith.divf %250, %251 : vector<8x8x96xf32>
    %253 = arith.mulf %247, %252 : vector<8x8x96xf32>
    %254 = vector.shape_cast %253 : vector<8x8x96xf32> to vector<64x96xf32>
    %c0_72 = arith.constant 0 : index
    %c0_73 = arith.constant 0 : index
    %255 = vector.load %arg6[%c0_72, %c0_73] : memref<96x256xf32, #tpu.memory_space<vmem>>, vector<96x64xf32>
    %cst_74 = arith.constant dense<0.000000e+00> : vector<64x64xf32>
    %256 = tpu.matmul %254, %255, %cst_74 {dimension_numbers = #tpu.dot_dimension_numbers<[1], [0], [0], [1], [0, 0, 1, 1], [], []>} : vector<64x96xf32>, vector<96x64xf32>, vector<64x64xf32> -> vector<64x64xf32>
    %c0_75 = arith.constant 0 : index
    %c1280 = arith.constant 1280 : index
    %257 = vector.load %arg7[%c0_75, %c1280] : memref<1x2944xf32, #tpu.memory_space<vmem>>, vector<1x64xf32>
    %258 = vector.broadcast %257 : vector<1x64xf32> to vector<64x64xf32>
    %259 = arith.addf %256, %258 : vector<64x64xf32>
    %260 = arith.negf %259 : vector<64x64xf32>
    %261 = math.exp %260 : vector<64x64xf32>
    %cst_76 = arith.constant 1.000000e+00 : f32
    %262 = vector.broadcast %cst_76 : f32 to vector<64x64xf32>
    %263 = arith.addf %262, %261 : vector<64x64xf32>
    %264 = arith.divf %262, %263 : vector<64x64xf32>
    %265 = arith.mulf %259, %264 : vector<64x64xf32>
    %266 = vector.extract_strided_slice %265 {offsets = [0, 0], sizes = [64, 32], strides = [1, 1]} : vector<64x64xf32> to vector<64x32xf32>
    %267 = vector.extract_strided_slice %265 {offsets = [0, 32], sizes = [64, 16], strides = [1, 1]} : vector<64x64xf32> to vector<64x16xf32>
    %268 = vector.extract_strided_slice %265 {offsets = [0, 48], sizes = [64, 16], strides = [1, 1]} : vector<64x64xf32> to vector<64x16xf32>
    %269 = arith.subf %267, %268 : vector<64x16xf32>
    %270 = vector.broadcast %183 : vector<64x1xf32> to vector<64x16xf32>
    %271 = arith.mulf %270, %269 : vector<64x16xf32>
    %272 = arith.addf %268, %271 : vector<64x16xf32>
    %c0_77 = arith.constant 0 : index
    %c256_78 = arith.constant 256 : index
    %273 = vector.load %arg4[%c0_77, %c256_78] : memref<16x1408xf32, #tpu.memory_space<vmem>>, vector<16x16xf32>
    %cst_79 = arith.constant dense<0.000000e+00> : vector<64x16xf32>
    %274 = tpu.matmul %272, %273, %cst_79 {dimension_numbers = #tpu.dot_dimension_numbers<[1], [0], [0], [1], [0, 0, 1, 1], [], []>} : vector<64x16xf32>, vector<16x16xf32>, vector<64x16xf32> -> vector<64x16xf32>
    %c0_80 = arith.constant 0 : index
    %c1536 = arith.constant 1536 : index
    %275 = vector.load %arg7[%c0_80, %c1536] : memref<1x2944xf32, #tpu.memory_space<vmem>>, vector<1x16xf32>
    %276 = vector.broadcast %275 : vector<1x16xf32> to vector<64x16xf32>
    %277 = arith.addf %274, %276 : vector<64x16xf32>
    %278 = arith.negf %277 : vector<64x16xf32>
    %279 = math.exp %278 : vector<64x16xf32>
    %cst_81 = arith.constant 1.000000e+00 : f32
    %280 = vector.broadcast %cst_81 : f32 to vector<64x16xf32>
    %281 = arith.addf %280, %279 : vector<64x16xf32>
    %282 = arith.divf %280, %281 : vector<64x16xf32>
    %283 = arith.mulf %277, %282 : vector<64x16xf32>
    %c0_82 = arith.constant 0 : index
    %c384_83 = arith.constant 384 : index
    %284 = vector.load %arg4[%c0_82, %c384_83] : memref<16x1408xf32, #tpu.memory_space<vmem>>, vector<16x16xf32>
    %cst_84 = arith.constant dense<0.000000e+00> : vector<64x16xf32>
    %285 = tpu.matmul %283, %284, %cst_84 {dimension_numbers = #tpu.dot_dimension_numbers<[1], [0], [0], [1], [0, 0, 1, 1], [], []>} : vector<64x16xf32>, vector<16x16xf32>, vector<64x16xf32> -> vector<64x16xf32>
    %c0_85 = arith.constant 0 : index
    %c1664 = arith.constant 1664 : index
    %286 = vector.load %arg7[%c0_85, %c1664] : memref<1x2944xf32, #tpu.memory_space<vmem>>, vector<1x16xf32>
    %287 = vector.broadcast %286 : vector<1x16xf32> to vector<64x16xf32>
    %288 = arith.addf %285, %287 : vector<64x16xf32>
    %289 = arith.negf %288 : vector<64x16xf32>
    %290 = math.exp %289 : vector<64x16xf32>
    %cst_86 = arith.constant 1.000000e+00 : f32
    %291 = vector.broadcast %cst_86 : f32 to vector<64x16xf32>
    %292 = arith.addf %291, %290 : vector<64x16xf32>
    %293 = arith.divf %291, %292 : vector<64x16xf32>
    %294 = arith.mulf %288, %293 : vector<64x16xf32>
    %295 = vector.shape_cast %294 : vector<64x16xf32> to vector<8x8x16xf32>
    %cst_87 = arith.constant dense<0.000000e+00> : vector<3x8xf32>
    %296 = vector.multi_reduction <add>, %3, %cst_87 [2] : vector<3x8x16xf32> to vector<3x8xf32>
    %297 = vector.shape_cast %296 : vector<3x8xf32> to vector<3x8x1xf32>
    %cst_88 = arith.constant 1.600000e+01 : f32
    %298 = vector.broadcast %cst_88 : f32 to vector<3x8x1xf32>
    %299 = arith.divf %297, %298 : vector<3x8x1xf32>
    %cst_89 = arith.constant dense<0.000000e+00> : vector<3x1xf32>
    %300 = vector.multi_reduction <add>, %299, %cst_89 [1] : vector<3x8x1xf32> to vector<3x1xf32>
    %301 = vector.shape_cast %300 : vector<3x1xf32> to vector<3x1x1xf32>
    %cst_90 = arith.constant 8.000000e+00 : f32
    %302 = vector.broadcast %cst_90 : f32 to vector<3x1x1xf32>
    %303 = arith.divf %301, %302 : vector<3x1x1xf32>
    %304 = vector.shape_cast %232 : vector<8x16xf32> to vector<1x8x16xf32>
    %305 = vector.broadcast %303 : vector<3x1x1xf32> to vector<3x8x16xf32>
    %306 = arith.subf %3, %305 : vector<3x8x16xf32>
    %307 = vector.broadcast %304 : vector<1x8x16xf32> to vector<3x8x16xf32>
    %308 = arith.mulf %307, %306 : vector<3x8x16xf32>
    %309 = arith.addf %308, %3 : vector<3x8x16xf32>
    %310 = arith.mulf %295, %193 : vector<8x8x16xf32>
    %cst_91 = arith.constant dense<0.000000e+00> : vector<8x16xf32>
    %311 = vector.multi_reduction <add>, %310, %cst_91 [1] : vector<8x8x16xf32> to vector<8x16xf32>
    %312 = vector.shape_cast %311 : vector<8x16xf32> to vector<1x8x16xf32>
    %313 = arith.mulf %295, %204 : vector<8x8x16xf32>
    %cst_92 = arith.constant dense<0.000000e+00> : vector<8x16xf32>
    %314 = vector.multi_reduction <add>, %313, %cst_92 [1] : vector<8x8x16xf32> to vector<8x16xf32>
    %315 = vector.shape_cast %314 : vector<8x16xf32> to vector<1x8x16xf32>
    %316 = arith.mulf %295, %215 : vector<8x8x16xf32>
    %cst_93 = arith.constant dense<0.000000e+00> : vector<8x16xf32>
    %317 = vector.multi_reduction <add>, %316, %cst_93 [1] : vector<8x8x16xf32> to vector<8x16xf32>
    %318 = vector.shape_cast %317 : vector<8x16xf32> to vector<1x8x16xf32>
    %319 = tpu.concatenate %312, %315, %318 in 0 : vector<1x8x16xf32>, vector<1x8x16xf32>, vector<1x8x16xf32> -> vector<3x8x16xf32>
    %320 = arith.addf %309, %319 : vector<3x8x16xf32>
    %321 = vector.shape_cast %5 : vector<3x8x16xf32> to vector<24x16xf32>
    %c0_94 = arith.constant 0 : index
    %c512_95 = arith.constant 512 : index
    %322 = vector.load %arg4[%c0_94, %c512_95] : memref<16x1408xf32, #tpu.memory_space<vmem>>, vector<16x16xf32>
    %cst_96 = arith.constant dense<0.000000e+00> : vector<24x16xf32>
    %323 = tpu.matmul %321, %322, %cst_96 {dimension_numbers = #tpu.dot_dimension_numbers<[1], [0], [0], [1], [0, 0, 1, 1], [], []>} : vector<24x16xf32>, vector<16x16xf32>, vector<24x16xf32> -> vector<24x16xf32>
    %324 = vector.shape_cast %323 : vector<24x16xf32> to vector<3x8x16xf32>
    %325 = arith.addf %320, %324 : vector<3x8x16xf32>
    %cst_97 = arith.constant dense<0.000000e+00> : vector<3x8xf32>
    %326 = vector.multi_reduction <add>, %325, %cst_97 [2] : vector<3x8x16xf32> to vector<3x8xf32>
    %327 = vector.shape_cast %326 : vector<3x8xf32> to vector<3x8x1xf32>
    %cst_98 = arith.constant 1.600000e+01 : f32
    %328 = vector.broadcast %cst_98 : f32 to vector<3x8x1xf32>
    %329 = arith.divf %327, %328 : vector<3x8x1xf32>
    %cst_99 = arith.constant dense<0.000000e+00> : vector<3x1xf32>
    %330 = vector.multi_reduction <add>, %329, %cst_99 [1] : vector<3x8x1xf32> to vector<3x1xf32>
    %331 = vector.shape_cast %330 : vector<3x1xf32> to vector<3x1x1xf32>
    %cst_100 = arith.constant 8.000000e+00 : f32
    %332 = vector.broadcast %cst_100 : f32 to vector<3x1x1xf32>
    %333 = arith.divf %331, %332 : vector<3x1x1xf32>
    %334 = vector.broadcast %333 : vector<3x1x1xf32> to vector<3x8x16xf32>
    %335 = arith.subf %325, %334 : vector<3x8x16xf32>
    %336 = vector.shape_cast %335 : vector<3x8x16xf32> to vector<24x16xf32>
    %c0_101 = arith.constant 0 : index
    %c640_102 = arith.constant 640 : index
    %337 = vector.load %arg4[%c0_101, %c640_102] : memref<16x1408xf32, #tpu.memory_space<vmem>>, vector<16x32xf32>
    %cst_103 = arith.constant dense<0.000000e+00> : vector<24x32xf32>
    %338 = tpu.matmul %336, %337, %cst_103 {dimension_numbers = #tpu.dot_dimension_numbers<[1], [0], [0], [1], [0, 0, 1, 1], [], []>} : vector<24x16xf32>, vector<16x32xf32>, vector<24x32xf32> -> vector<24x32xf32>
    %339 = vector.extract_strided_slice %338 {offsets = [0, 0], sizes = [24, 16], strides = [1, 1]} : vector<24x32xf32> to vector<24x16xf32>
    %340 = vector.shape_cast %339 : vector<24x16xf32> to vector<3x8x16xf32>
    %341 = vector.extract_strided_slice %338 {offsets = [0, 16], sizes = [24, 16], strides = [1, 1]} : vector<24x32xf32> to vector<24x16xf32>
    %342 = vector.shape_cast %341 : vector<24x16xf32> to vector<3x8x16xf32>
    %343 = arith.mulf %340, %342 : vector<3x8x16xf32>
    %cst_104 = arith.constant dense<0.000000e+00> : vector<8x16xf32>
    %344 = vector.multi_reduction <add>, %343, %cst_104 [0] : vector<3x8x16xf32> to vector<8x16xf32>
    %345 = vector.shape_cast %344 : vector<8x16xf32> to vector<1x8x16xf32>
    %346 = arith.mulf %342, %342 : vector<3x8x16xf32>
    %cst_105 = arith.constant dense<0.000000e+00> : vector<8x16xf32>
    %347 = vector.multi_reduction <add>, %346, %cst_105 [0] : vector<3x8x16xf32> to vector<8x16xf32>
    %348 = vector.shape_cast %347 : vector<8x16xf32> to vector<1x8x16xf32>
    %cst_106 = arith.constant 9.99999974E-5 : f32
    %349 = vector.broadcast %cst_106 : f32 to vector<1x8x16xf32>
    %350 = arith.addf %348, %349 : vector<1x8x16xf32>
    %351 = tpu.reciprocal %350 {approx = true} : vector<1x8x16xf32> -> vector<1x8x16xf32>
    %352 = arith.mulf %345, %351 : vector<1x8x16xf32>
    %353 = vector.broadcast %352 : vector<1x8x16xf32> to vector<3x8x16xf32>
    %354 = arith.mulf %353, %342 : vector<3x8x16xf32>
    %355 = arith.subf %340, %354 : vector<3x8x16xf32>
    %cst_107 = arith.constant 0.000000e+00 : f32
    %356 = vector.broadcast %cst_107 : f32 to vector<1x8x16xf32>
    %357 = arith.cmpf oge, %345, %356 : vector<1x8x16xf32>
    %358 = vector.shape_cast %357 : vector<1x8x16xi1> to vector<1x8x16xi1>
    %359 = vector.broadcast %358 : vector<1x8x16xi1> to vector<3x8x16xi1>
    %360 = arith.select %359, %340, %355 : vector<3x8x16xi1>, vector<3x8x16xf32>
    %361 = vector.broadcast %333 : vector<3x1x1xf32> to vector<3x8x16xf32>
    %362 = arith.addf %360, %361 : vector<3x8x16xf32>
    %363 = vector.shape_cast %266 : vector<64x32xf32> to vector<8x8x32xf32>
    %364 = vector.broadcast %11 : vector<8x8x1xf32> to vector<8x8x32xf32>
    %365 = arith.mulf %363, %364 : vector<8x8x32xf32>
    %cst_108 = arith.constant dense<0.000000e+00> : vector<8x32xf32>
    %366 = vector.multi_reduction <add>, %365, %cst_108 [1] : vector<8x8x32xf32> to vector<8x32xf32>
    %c0_109 = arith.constant 0 : index
    %c1408_110 = arith.constant 1408 : index
    %367 = vector.load %arg5[%c0_109, %c1408_110] : memref<32x2176xf32, #tpu.memory_space<vmem>>, vector<32x32xf32>
    %cst_111 = arith.constant dense<0.000000e+00> : vector<8x32xf32>
    %368 = tpu.matmul %366, %367, %cst_111 {dimension_numbers = #tpu.dot_dimension_numbers<[1], [0], [0], [1], [0, 0, 1, 1], [], []>} : vector<8x32xf32>, vector<32x32xf32>, vector<8x32xf32> -> vector<8x32xf32>
    %369 = arith.addf %233, %368 : vector<8x32xf32>
    %c0_112 = arith.constant 0 : index
    %c1792 = arith.constant 1792 : index
    %370 = vector.load %arg7[%c0_112, %c1792] : memref<1x2944xf32, #tpu.memory_space<vmem>>, vector<1x32xf32>
    %371 = vector.broadcast %370 : vector<1x32xf32> to vector<8x32xf32>
    %372 = arith.addf %369, %371 : vector<8x32xf32>
    %373 = arith.negf %372 : vector<8x32xf32>
    %374 = math.exp %373 : vector<8x32xf32>
    %cst_113 = arith.constant 1.000000e+00 : f32
    %375 = vector.broadcast %cst_113 : f32 to vector<8x32xf32>
    %376 = arith.addf %375, %374 : vector<8x32xf32>
    %377 = arith.divf %375, %376 : vector<8x32xf32>
    %378 = arith.mulf %372, %377 : vector<8x32xf32>
    %c0_114 = arith.constant 0 : index
    %c1536_115 = arith.constant 1536 : index
    %379 = vector.load %arg5[%c0_114, %c1536_115] : memref<32x2176xf32, #tpu.memory_space<vmem>>, vector<32x32xf32>
    %cst_116 = arith.constant dense<0.000000e+00> : vector<8x32xf32>
    %380 = tpu.matmul %378, %379, %cst_116 {dimension_numbers = #tpu.dot_dimension_numbers<[1], [0], [0], [1], [0, 0, 1, 1], [], []>} : vector<8x32xf32>, vector<32x32xf32>, vector<8x32xf32> -> vector<8x32xf32>
    %c0_117 = arith.constant 0 : index
    %c1920 = arith.constant 1920 : index
    %381 = vector.load %arg7[%c0_117, %c1920] : memref<1x2944xf32, #tpu.memory_space<vmem>>, vector<1x32xf32>
    %382 = vector.broadcast %381 : vector<1x32xf32> to vector<8x32xf32>
    %383 = arith.addf %380, %382 : vector<8x32xf32>
    %cst_118 = arith.constant 0.000000e+00 : f32
    %384 = vector.broadcast %cst_118 : f32 to vector<8x8x16xf32>
    %385 = vector.extract_strided_slice %362 {offsets = [0, 0, 0], sizes = [1, 8, 16], strides = [1, 1, 1]} : vector<3x8x16xf32> to vector<1x8x16xf32>
    %386 = vector.shape_cast %385 : vector<1x8x16xf32> to vector<8x16xf32>
    %387 = vector.shape_cast %386 : vector<8x16xf32> to vector<8x1x16xf32>
    %388 = vector.extract_strided_slice %362 {offsets = [0, 0, 0], sizes = [1, 8, 16], strides = [1, 1, 1]} : vector<3x8x16xf32> to vector<1x8x16xf32>
    %389 = vector.shape_cast %388 : vector<1x8x16xf32> to vector<8x16xf32>
    %390 = vector.shape_cast %389 : vector<8x16xf32> to vector<1x8x16xf32>
    %391 = vector.broadcast %387 : vector<8x1x16xf32> to vector<8x8x16xf32>
    %392 = vector.broadcast %390 : vector<1x8x16xf32> to vector<8x8x16xf32>
    %393 = arith.subf %391, %392 : vector<8x8x16xf32>
    %394 = arith.mulf %393, %393 : vector<8x8x16xf32>
    %395 = arith.addf %384, %394 : vector<8x8x16xf32>
    %396 = vector.extract_strided_slice %362 {offsets = [1, 0, 0], sizes = [1, 8, 16], strides = [1, 1, 1]} : vector<3x8x16xf32> to vector<1x8x16xf32>
    %397 = vector.shape_cast %396 : vector<1x8x16xf32> to vector<8x16xf32>
    %398 = vector.shape_cast %397 : vector<8x16xf32> to vector<8x1x16xf32>
    %399 = vector.extract_strided_slice %362 {offsets = [1, 0, 0], sizes = [1, 8, 16], strides = [1, 1, 1]} : vector<3x8x16xf32> to vector<1x8x16xf32>
    %400 = vector.shape_cast %399 : vector<1x8x16xf32> to vector<8x16xf32>
    %401 = vector.shape_cast %400 : vector<8x16xf32> to vector<1x8x16xf32>
    %402 = vector.broadcast %398 : vector<8x1x16xf32> to vector<8x8x16xf32>
    %403 = vector.broadcast %401 : vector<1x8x16xf32> to vector<8x8x16xf32>
    %404 = arith.subf %402, %403 : vector<8x8x16xf32>
    %405 = arith.mulf %404, %404 : vector<8x8x16xf32>
    %406 = arith.addf %395, %405 : vector<8x8x16xf32>
    %407 = vector.extract_strided_slice %362 {offsets = [2, 0, 0], sizes = [1, 8, 16], strides = [1, 1, 1]} : vector<3x8x16xf32> to vector<1x8x16xf32>
    %408 = vector.shape_cast %407 : vector<1x8x16xf32> to vector<8x16xf32>
    %409 = vector.shape_cast %408 : vector<8x16xf32> to vector<8x1x16xf32>
    %410 = vector.extract_strided_slice %362 {offsets = [2, 0, 0], sizes = [1, 8, 16], strides = [1, 1, 1]} : vector<3x8x16xf32> to vector<1x8x16xf32>
    %411 = vector.shape_cast %410 : vector<1x8x16xf32> to vector<8x16xf32>
    %412 = vector.shape_cast %411 : vector<8x16xf32> to vector<1x8x16xf32>
    %413 = vector.broadcast %409 : vector<8x1x16xf32> to vector<8x8x16xf32>
    %414 = vector.broadcast %412 : vector<1x8x16xf32> to vector<8x8x16xf32>
    %415 = arith.subf %413, %414 : vector<8x8x16xf32>
    %416 = arith.mulf %415, %415 : vector<8x8x16xf32>
    %417 = arith.addf %406, %416 : vector<8x8x16xf32>
    %418 = math.sqrt %417 : vector<8x8x16xf32>
    %c0_119 = arith.constant 0 : index
    %c1664_120 = arith.constant 1664 : index
    %419 = vector.load %arg5[%c0_119, %c1664_120] : memref<32x2176xf32, #tpu.memory_space<vmem>>, vector<32x240xf32>
    %cst_121 = arith.constant dense<0.000000e+00> : vector<8x240xf32>
    %420 = tpu.matmul %383, %419, %cst_121 {dimension_numbers = #tpu.dot_dimension_numbers<[1], [0], [0], [1], [0, 0, 1, 1], [], []>} : vector<8x32xf32>, vector<32x240xf32>, vector<8x240xf32> -> vector<8x240xf32>
    %421 = vector.extract_strided_slice %420 {offsets = [0, 0], sizes = [8, 96], strides = [1, 1]} : vector<8x240xf32> to vector<8x96xf32>
    %422 = vector.extract_strided_slice %420 {offsets = [0, 96], sizes = [8, 96], strides = [1, 1]} : vector<8x240xf32> to vector<8x96xf32>
    %423 = vector.extract_strided_slice %420 {offsets = [0, 192], sizes = [8, 16], strides = [1, 1]} : vector<8x240xf32> to vector<8x16xf32>
    %c0_122 = arith.constant 0 : index
    %c2304 = arith.constant 2304 : index
    %424 = vector.load %arg7[%c0_122, %c2304] : memref<1x2944xf32, #tpu.memory_space<vmem>>, vector<1x16xf32>
    %425 = vector.broadcast %424 : vector<1x16xf32> to vector<8x16xf32>
    %426 = arith.addf %423, %425 : vector<8x16xf32>
    %427 = arith.negf %426 : vector<8x16xf32>
    %428 = math.exp %427 : vector<8x16xf32>
    %cst_123 = arith.constant 1.000000e+00 : f32
    %429 = vector.broadcast %cst_123 : f32 to vector<8x16xf32>
    %430 = arith.addf %429, %428 : vector<8x16xf32>
    %431 = arith.divf %429, %430 : vector<8x16xf32>
    %432 = arith.mulf %426, %431 : vector<8x16xf32>
    %433 = vector.extract_strided_slice %420 {offsets = [0, 208], sizes = [8, 32], strides = [1, 1]} : vector<8x240xf32> to vector<8x32xf32>
    %434 = vector.shape_cast %418 : vector<8x8x16xf32> to vector<64x16xf32>
    %c0_124 = arith.constant 0 : index
    %c768_125 = arith.constant 768 : index
    %435 = vector.load %arg4[%c0_124, %c768_125] : memref<16x1408xf32, #tpu.memory_space<vmem>>, vector<16x96xf32>
    %cst_126 = arith.constant dense<0.000000e+00> : vector<64x96xf32>
    %436 = tpu.matmul %434, %435, %cst_126 {dimension_numbers = #tpu.dot_dimension_numbers<[1], [0], [0], [1], [0, 0, 1, 1], [], []>} : vector<64x16xf32>, vector<16x96xf32>, vector<64x96xf32> -> vector<64x96xf32>
    %437 = vector.shape_cast %421 : vector<8x96xf32> to vector<8x1x96xf32>
    %438 = vector.shape_cast %422 : vector<8x96xf32> to vector<1x8x96xf32>
    %439 = vector.broadcast %437 : vector<8x1x96xf32> to vector<8x8x96xf32>
    %440 = vector.broadcast %438 : vector<1x8x96xf32> to vector<8x8x96xf32>
    %441 = arith.addf %439, %440 : vector<8x8x96xf32>
    %442 = vector.shape_cast %436 : vector<64x96xf32> to vector<8x8x96xf32>
    %443 = arith.addf %441, %442 : vector<8x8x96xf32>
    %c0_127 = arith.constant 0 : index
    %c2048 = arith.constant 2048 : index
    %444 = vector.load %arg7[%c0_127, %c2048] : memref<1x2944xf32, #tpu.memory_space<vmem>>, vector<1x96xf32>
    %445 = vector.shape_cast %444 : vector<1x96xf32> to vector<1x1x96xf32>
    %446 = vector.broadcast %445 : vector<1x1x96xf32> to vector<8x8x96xf32>
    %447 = arith.addf %443, %446 : vector<8x8x96xf32>
    %448 = arith.negf %447 : vector<8x8x96xf32>
    %449 = math.exp %448 : vector<8x8x96xf32>
    %cst_128 = arith.constant 1.000000e+00 : f32
    %450 = vector.broadcast %cst_128 : f32 to vector<8x8x96xf32>
    %451 = arith.addf %450, %449 : vector<8x8x96xf32>
    %452 = arith.divf %450, %451 : vector<8x8x96xf32>
    %453 = arith.mulf %447, %452 : vector<8x8x96xf32>
    %454 = vector.shape_cast %453 : vector<8x8x96xf32> to vector<64x96xf32>
    %c0_129 = arith.constant 0 : index
    %c128_130 = arith.constant 128 : index
    %455 = vector.load %arg6[%c0_129, %c128_130] : memref<96x256xf32, #tpu.memory_space<vmem>>, vector<96x64xf32>
    %cst_131 = arith.constant dense<0.000000e+00> : vector<64x64xf32>
    %456 = tpu.matmul %454, %455, %cst_131 {dimension_numbers = #tpu.dot_dimension_numbers<[1], [0], [0], [1], [0, 0, 1, 1], [], []>} : vector<64x96xf32>, vector<96x64xf32>, vector<64x64xf32> -> vector<64x64xf32>
    %c0_132 = arith.constant 0 : index
    %c2176 = arith.constant 2176 : index
    %457 = vector.load %arg7[%c0_132, %c2176] : memref<1x2944xf32, #tpu.memory_space<vmem>>, vector<1x64xf32>
    %458 = vector.broadcast %457 : vector<1x64xf32> to vector<64x64xf32>
    %459 = arith.addf %456, %458 : vector<64x64xf32>
    %460 = arith.negf %459 : vector<64x64xf32>
    %461 = math.exp %460 : vector<64x64xf32>
    %cst_133 = arith.constant 1.000000e+00 : f32
    %462 = vector.broadcast %cst_133 : f32 to vector<64x64xf32>
    %463 = arith.addf %462, %461 : vector<64x64xf32>
    %464 = arith.divf %462, %463 : vector<64x64xf32>
    %465 = arith.mulf %459, %464 : vector<64x64xf32>
    %466 = vector.extract_strided_slice %465 {offsets = [0, 0], sizes = [64, 32], strides = [1, 1]} : vector<64x64xf32> to vector<64x32xf32>
    %467 = vector.extract_strided_slice %465 {offsets = [0, 32], sizes = [64, 16], strides = [1, 1]} : vector<64x64xf32> to vector<64x16xf32>
    %468 = vector.extract_strided_slice %465 {offsets = [0, 48], sizes = [64, 16], strides = [1, 1]} : vector<64x64xf32> to vector<64x16xf32>
    %469 = arith.subf %467, %468 : vector<64x16xf32>
    %470 = vector.broadcast %183 : vector<64x1xf32> to vector<64x16xf32>
    %471 = arith.mulf %470, %469 : vector<64x16xf32>
    %472 = arith.addf %468, %471 : vector<64x16xf32>
    %c0_134 = arith.constant 0 : index
    %c896_135 = arith.constant 896 : index
    %473 = vector.load %arg4[%c0_134, %c896_135] : memref<16x1408xf32, #tpu.memory_space<vmem>>, vector<16x16xf32>
    %cst_136 = arith.constant dense<0.000000e+00> : vector<64x16xf32>
    %474 = tpu.matmul %472, %473, %cst_136 {dimension_numbers = #tpu.dot_dimension_numbers<[1], [0], [0], [1], [0, 0, 1, 1], [], []>} : vector<64x16xf32>, vector<16x16xf32>, vector<64x16xf32> -> vector<64x16xf32>
    %c0_137 = arith.constant 0 : index
    %c2432 = arith.constant 2432 : index
    %475 = vector.load %arg7[%c0_137, %c2432] : memref<1x2944xf32, #tpu.memory_space<vmem>>, vector<1x16xf32>
    %476 = vector.broadcast %475 : vector<1x16xf32> to vector<64x16xf32>
    %477 = arith.addf %474, %476 : vector<64x16xf32>
    %478 = arith.negf %477 : vector<64x16xf32>
    %479 = math.exp %478 : vector<64x16xf32>
    %cst_138 = arith.constant 1.000000e+00 : f32
    %480 = vector.broadcast %cst_138 : f32 to vector<64x16xf32>
    %481 = arith.addf %480, %479 : vector<64x16xf32>
    %482 = arith.divf %480, %481 : vector<64x16xf32>
    %483 = arith.mulf %477, %482 : vector<64x16xf32>
    %c0_139 = arith.constant 0 : index
    %c1024_140 = arith.constant 1024 : index
    %484 = vector.load %arg4[%c0_139, %c1024_140] : memref<16x1408xf32, #tpu.memory_space<vmem>>, vector<16x16xf32>
    %cst_141 = arith.constant dense<0.000000e+00> : vector<64x16xf32>
    %485 = tpu.matmul %483, %484, %cst_141 {dimension_numbers = #tpu.dot_dimension_numbers<[1], [0], [0], [1], [0, 0, 1, 1], [], []>} : vector<64x16xf32>, vector<16x16xf32>, vector<64x16xf32> -> vector<64x16xf32>
    %c0_142 = arith.constant 0 : index
    %c2560 = arith.constant 2560 : index
    %486 = vector.load %arg7[%c0_142, %c2560] : memref<1x2944xf32, #tpu.memory_space<vmem>>, vector<1x16xf32>
    %487 = vector.broadcast %486 : vector<1x16xf32> to vector<64x16xf32>
    %488 = arith.addf %485, %487 : vector<64x16xf32>
    %489 = arith.negf %488 : vector<64x16xf32>
    %490 = math.exp %489 : vector<64x16xf32>
    %cst_143 = arith.constant 1.000000e+00 : f32
    %491 = vector.broadcast %cst_143 : f32 to vector<64x16xf32>
    %492 = arith.addf %491, %490 : vector<64x16xf32>
    %493 = arith.divf %491, %492 : vector<64x16xf32>
    %494 = arith.mulf %488, %493 : vector<64x16xf32>
    %495 = vector.shape_cast %494 : vector<64x16xf32> to vector<8x8x16xf32>
    %cst_144 = arith.constant dense<0.000000e+00> : vector<3x8xf32>
    %496 = vector.multi_reduction <add>, %362, %cst_144 [2] : vector<3x8x16xf32> to vector<3x8xf32>
    %497 = vector.shape_cast %496 : vector<3x8xf32> to vector<3x8x1xf32>
    %cst_145 = arith.constant 1.600000e+01 : f32
    %498 = vector.broadcast %cst_145 : f32 to vector<3x8x1xf32>
    %499 = arith.divf %497, %498 : vector<3x8x1xf32>
    %cst_146 = arith.constant dense<0.000000e+00> : vector<3x1xf32>
    %500 = vector.multi_reduction <add>, %499, %cst_146 [1] : vector<3x8x1xf32> to vector<3x1xf32>
    %501 = vector.shape_cast %500 : vector<3x1xf32> to vector<3x1x1xf32>
    %cst_147 = arith.constant 8.000000e+00 : f32
    %502 = vector.broadcast %cst_147 : f32 to vector<3x1x1xf32>
    %503 = arith.divf %501, %502 : vector<3x1x1xf32>
    %504 = vector.shape_cast %432 : vector<8x16xf32> to vector<1x8x16xf32>
    %505 = vector.broadcast %503 : vector<3x1x1xf32> to vector<3x8x16xf32>
    %506 = arith.subf %362, %505 : vector<3x8x16xf32>
    %507 = vector.broadcast %504 : vector<1x8x16xf32> to vector<3x8x16xf32>
    %508 = arith.mulf %507, %506 : vector<3x8x16xf32>
    %509 = arith.addf %508, %362 : vector<3x8x16xf32>
    %510 = arith.mulf %495, %393 : vector<8x8x16xf32>
    %cst_148 = arith.constant dense<0.000000e+00> : vector<8x16xf32>
    %511 = vector.multi_reduction <add>, %510, %cst_148 [1] : vector<8x8x16xf32> to vector<8x16xf32>
    %512 = vector.shape_cast %511 : vector<8x16xf32> to vector<1x8x16xf32>
    %513 = arith.mulf %495, %404 : vector<8x8x16xf32>
    %cst_149 = arith.constant dense<0.000000e+00> : vector<8x16xf32>
    %514 = vector.multi_reduction <add>, %513, %cst_149 [1] : vector<8x8x16xf32> to vector<8x16xf32>
    %515 = vector.shape_cast %514 : vector<8x16xf32> to vector<1x8x16xf32>
    %516 = arith.mulf %495, %415 : vector<8x8x16xf32>
    %cst_150 = arith.constant dense<0.000000e+00> : vector<8x16xf32>
    %517 = vector.multi_reduction <add>, %516, %cst_150 [1] : vector<8x8x16xf32> to vector<8x16xf32>
    %518 = vector.shape_cast %517 : vector<8x16xf32> to vector<1x8x16xf32>
    %519 = tpu.concatenate %512, %515, %518 in 0 : vector<1x8x16xf32>, vector<1x8x16xf32>, vector<1x8x16xf32> -> vector<3x8x16xf32>
    %520 = arith.addf %509, %519 : vector<3x8x16xf32>
    %521 = vector.shape_cast %5 : vector<3x8x16xf32> to vector<24x16xf32>
    %c0_151 = arith.constant 0 : index
    %c1152_152 = arith.constant 1152 : index
    %522 = vector.load %arg4[%c0_151, %c1152_152] : memref<16x1408xf32, #tpu.memory_space<vmem>>, vector<16x16xf32>
    %cst_153 = arith.constant dense<0.000000e+00> : vector<24x16xf32>
    %523 = tpu.matmul %521, %522, %cst_153 {dimension_numbers = #tpu.dot_dimension_numbers<[1], [0], [0], [1], [0, 0, 1, 1], [], []>} : vector<24x16xf32>, vector<16x16xf32>, vector<24x16xf32> -> vector<24x16xf32>
    %524 = vector.shape_cast %523 : vector<24x16xf32> to vector<3x8x16xf32>
    %525 = arith.addf %520, %524 : vector<3x8x16xf32>
    %cst_154 = arith.constant dense<0.000000e+00> : vector<3x8xf32>
    %526 = vector.multi_reduction <add>, %525, %cst_154 [2] : vector<3x8x16xf32> to vector<3x8xf32>
    %527 = vector.shape_cast %526 : vector<3x8xf32> to vector<3x8x1xf32>
    %cst_155 = arith.constant 1.600000e+01 : f32
    %528 = vector.broadcast %cst_155 : f32 to vector<3x8x1xf32>
    %529 = arith.divf %527, %528 : vector<3x8x1xf32>
    %cst_156 = arith.constant dense<0.000000e+00> : vector<3x1xf32>
    %530 = vector.multi_reduction <add>, %529, %cst_156 [1] : vector<3x8x1xf32> to vector<3x1xf32>
    %531 = vector.shape_cast %530 : vector<3x1xf32> to vector<3x1x1xf32>
    %cst_157 = arith.constant 8.000000e+00 : f32
    %532 = vector.broadcast %cst_157 : f32 to vector<3x1x1xf32>
    %533 = arith.divf %531, %532 : vector<3x1x1xf32>
    %534 = vector.broadcast %533 : vector<3x1x1xf32> to vector<3x8x16xf32>
    %535 = arith.subf %525, %534 : vector<3x8x16xf32>
    %536 = vector.shape_cast %535 : vector<3x8x16xf32> to vector<24x16xf32>
    %c0_158 = arith.constant 0 : index
    %c1280_159 = arith.constant 1280 : index
    %537 = vector.load %arg4[%c0_158, %c1280_159] : memref<16x1408xf32, #tpu.memory_space<vmem>>, vector<16x32xf32>
    %cst_160 = arith.constant dense<0.000000e+00> : vector<24x32xf32>
    %538 = tpu.matmul %536, %537, %cst_160 {dimension_numbers = #tpu.dot_dimension_numbers<[1], [0], [0], [1], [0, 0, 1, 1], [], []>} : vector<24x16xf32>, vector<16x32xf32>, vector<24x32xf32> -> vector<24x32xf32>
    %539 = vector.extract_strided_slice %538 {offsets = [0, 0], sizes = [24, 16], strides = [1, 1]} : vector<24x32xf32> to vector<24x16xf32>
    %540 = vector.shape_cast %539 : vector<24x16xf32> to vector<3x8x16xf32>
    %541 = vector.extract_strided_slice %538 {offsets = [0, 16], sizes = [24, 16], strides = [1, 1]} : vector<24x32xf32> to vector<24x16xf32>
    %542 = vector.shape_cast %541 : vector<24x16xf32> to vector<3x8x16xf32>
    %543 = arith.mulf %540, %542 : vector<3x8x16xf32>
    %cst_161 = arith.constant dense<0.000000e+00> : vector<8x16xf32>
    %544 = vector.multi_reduction <add>, %543, %cst_161 [0] : vector<3x8x16xf32> to vector<8x16xf32>
    %545 = vector.shape_cast %544 : vector<8x16xf32> to vector<1x8x16xf32>
    %546 = arith.mulf %542, %542 : vector<3x8x16xf32>
    %cst_162 = arith.constant dense<0.000000e+00> : vector<8x16xf32>
    %547 = vector.multi_reduction <add>, %546, %cst_162 [0] : vector<3x8x16xf32> to vector<8x16xf32>
    %548 = vector.shape_cast %547 : vector<8x16xf32> to vector<1x8x16xf32>
    %cst_163 = arith.constant 9.99999974E-5 : f32
    %549 = vector.broadcast %cst_163 : f32 to vector<1x8x16xf32>
    %550 = arith.addf %548, %549 : vector<1x8x16xf32>
    %551 = tpu.reciprocal %550 {approx = true} : vector<1x8x16xf32> -> vector<1x8x16xf32>
    %552 = arith.mulf %545, %551 : vector<1x8x16xf32>
    %553 = vector.broadcast %552 : vector<1x8x16xf32> to vector<3x8x16xf32>
    %554 = arith.mulf %553, %542 : vector<3x8x16xf32>
    %555 = arith.subf %540, %554 : vector<3x8x16xf32>
    %cst_164 = arith.constant 0.000000e+00 : f32
    %556 = vector.broadcast %cst_164 : f32 to vector<1x8x16xf32>
    %557 = arith.cmpf oge, %545, %556 : vector<1x8x16xf32>
    %558 = vector.shape_cast %557 : vector<1x8x16xi1> to vector<1x8x16xi1>
    %559 = vector.broadcast %558 : vector<1x8x16xi1> to vector<3x8x16xi1>
    %560 = arith.select %559, %540, %555 : vector<3x8x16xi1>, vector<3x8x16xf32>
    %561 = vector.broadcast %533 : vector<3x1x1xf32> to vector<3x8x16xf32>
    %562 = arith.addf %560, %561 : vector<3x8x16xf32>
    %563 = vector.shape_cast %466 : vector<64x32xf32> to vector<8x8x32xf32>
    %564 = vector.broadcast %11 : vector<8x8x1xf32> to vector<8x8x32xf32>
    %565 = arith.mulf %563, %564 : vector<8x8x32xf32>
    %cst_165 = arith.constant dense<0.000000e+00> : vector<8x32xf32>
    %566 = vector.multi_reduction <add>, %565, %cst_165 [1] : vector<8x8x32xf32> to vector<8x32xf32>
    %c0_166 = arith.constant 0 : index
    %c1920_167 = arith.constant 1920 : index
    %567 = vector.load %arg5[%c0_166, %c1920_167] : memref<32x2176xf32, #tpu.memory_space<vmem>>, vector<32x32xf32>
    %cst_168 = arith.constant dense<0.000000e+00> : vector<8x32xf32>
    %568 = tpu.matmul %566, %567, %cst_168 {dimension_numbers = #tpu.dot_dimension_numbers<[1], [0], [0], [1], [0, 0, 1, 1], [], []>} : vector<8x32xf32>, vector<32x32xf32>, vector<8x32xf32> -> vector<8x32xf32>
    %569 = arith.addf %433, %568 : vector<8x32xf32>
    %c0_169 = arith.constant 0 : index
    %c2688 = arith.constant 2688 : index
    %570 = vector.load %arg7[%c0_169, %c2688] : memref<1x2944xf32, #tpu.memory_space<vmem>>, vector<1x32xf32>
    %571 = vector.broadcast %570 : vector<1x32xf32> to vector<8x32xf32>
    %572 = arith.addf %569, %571 : vector<8x32xf32>
    %573 = arith.negf %572 : vector<8x32xf32>
    %574 = math.exp %573 : vector<8x32xf32>
    %cst_170 = arith.constant 1.000000e+00 : f32
    %575 = vector.broadcast %cst_170 : f32 to vector<8x32xf32>
    %576 = arith.addf %575, %574 : vector<8x32xf32>
    %577 = arith.divf %575, %576 : vector<8x32xf32>
    %578 = arith.mulf %572, %577 : vector<8x32xf32>
    %c0_171 = arith.constant 0 : index
    %c2048_172 = arith.constant 2048 : index
    %579 = vector.load %arg5[%c0_171, %c2048_172] : memref<32x2176xf32, #tpu.memory_space<vmem>>, vector<32x32xf32>
    %cst_173 = arith.constant dense<0.000000e+00> : vector<8x32xf32>
    %580 = tpu.matmul %578, %579, %cst_173 {dimension_numbers = #tpu.dot_dimension_numbers<[1], [0], [0], [1], [0, 0, 1, 1], [], []>} : vector<8x32xf32>, vector<32x32xf32>, vector<8x32xf32> -> vector<8x32xf32>
    %c0_174 = arith.constant 0 : index
    %c2816 = arith.constant 2816 : index
    %581 = vector.load %arg7[%c0_174, %c2816] : memref<1x2944xf32, #tpu.memory_space<vmem>>, vector<1x32xf32>
    %582 = vector.broadcast %581 : vector<1x32xf32> to vector<8x32xf32>
    %583 = arith.addf %580, %582 : vector<8x32xf32>
    %c0_175 = arith.constant 0 : index
    %c0_176 = arith.constant 0 : index
    %c0_177 = arith.constant 0 : index
    %584 = vector.load %arg8[%c0_175, %c0_176, %c0_177] : memref<1x8x32xf32, #tpu.memory_space<vmem>>, vector<1x8x32xf32>
    %585 = vector.shape_cast %584 : vector<1x8x32xf32> to vector<8x32xf32>
    %586 = vector.shape_cast %583 : vector<8x32xf32> to vector<1x8x32xf32>
    tpu.vector_store %arg8[%c0_175, %c0_176, %c0_177], %586 {strides = array<i32>} : memref<1x8x32xf32, #tpu.memory_space<vmem>>, vector<1x8x32xf32>,
    %c0_178 = arith.constant 0 : index
    %c0_179 = arith.constant 0 : index
    %c0_180 = arith.constant 0 : index
    %c0_181 = arith.constant 0 : index
    %587 = vector.load %arg9[%c0_178, %c0_179, %c0_180, %c0_181] : memref<1x3x8x16xf32, #tpu.memory_space<vmem>>, vector<1x3x8x16xf32>
    %588 = vector.shape_cast %587 : vector<1x3x8x16xf32> to vector<3x8x16xf32>
    %589 = vector.shape_cast %562 : vector<3x8x16xf32> to vector<1x3x8x16xf32>
    tpu.vector_store %arg9[%c0_178, %c0_179, %c0_180, %c0_181], %589 {strides = array<i32>} : memref<1x3x8x16xf32, #tpu.memory_space<vmem>>, vector<1x3x8x16xf32>,
    return
  }
  func.func @transform_0(%arg0: i32) -> (i32, i32, i32) {
    %c0_i32 = arith.constant 0 : i32
    %c0_i32_0 = arith.constant 0 : i32
    %c0_i32_1 = arith.constant 0 : i32
    return %arg0, %c0_i32, %c0_i32_0 : i32, i32, i32
  }
  func.func @transform_1(%arg0: i32) -> (i32, i32, i32, i32) {
    %c0_i32 = arith.constant 0 : i32
    %c0_i32_0 = arith.constant 0 : i32
    %c0_i32_1 = arith.constant 0 : i32
    %c0_i32_2 = arith.constant 0 : i32
    return %arg0, %c0_i32, %c0_i32_0, %c0_i32_1 : i32, i32, i32, i32
  }
  func.func @transform_2(%arg0: i32) -> (i32, i32, i32, i32) {
    %c0_i32 = arith.constant 0 : i32
    %c0_i32_0 = arith.constant 0 : i32
    %c0_i32_1 = arith.constant 0 : i32
    %c0_i32_2 = arith.constant 0 : i32
    return %arg0, %c0_i32, %c0_i32_0, %c0_i32_1 : i32, i32, i32, i32
  }
  func.func @transform_3(%arg0: i32) -> (i32, i32) {
    %c0_i32 = arith.constant 0 : i32
    %c0_i32_0 = arith.constant 0 : i32
    %c0_i32_1 = arith.constant 0 : i32
    return %c0_i32, %c0_i32_0 : i32, i32
  }
  func.func @transform_4(%arg0: i32) -> (i32, i32) {
    %c0_i32 = arith.constant 0 : i32
    %c0_i32_0 = arith.constant 0 : i32
    %c0_i32_1 = arith.constant 0 : i32
    return %c0_i32, %c0_i32_0 : i32, i32
  }
  func.func @transform_5(%arg0: i32) -> (i32, i32) {
    %c0_i32 = arith.constant 0 : i32
    %c0_i32_0 = arith.constant 0 : i32
    %c0_i32_1 = arith.constant 0 : i32
    return %c0_i32, %c0_i32_0 : i32, i32
  }
  func.func @transform_6(%arg0: i32) -> (i32, i32) {
    %c0_i32 = arith.constant 0 : i32
    %c0_i32_0 = arith.constant 0 : i32
    %c0_i32_1 = arith.constant 0 : i32
    return %c0_i32, %c0_i32_0 : i32, i32
  }
  func.func @transform_7(%arg0: i32) -> (i32, i32, i32) {
    %c0_i32 = arith.constant 0 : i32
    %c0_i32_0 = arith.constant 0 : i32
    %c0_i32_1 = arith.constant 0 : i32
    return %arg0, %c0_i32, %c0_i32_0 : i32, i32, i32
  }
  func.func @transform_8(%arg0: i32) -> (i32, i32, i32, i32) {
    %c0_i32 = arith.constant 0 : i32
    %c0_i32_0 = arith.constant 0 : i32
    %c0_i32_1 = arith.constant 0 : i32
    %c0_i32_2 = arith.constant 0 : i32
    return %arg0, %c0_i32, %c0_i32_0, %c0_i32_1 : i32, i32, i32, i32
  }
}

</mosaic_0001>

<llo_original>
// kernel: eqmotion_forward.1
$region0: #{eqmotion_forward.1}
  #allocation0 [shape = 'u32[]', space=smem, size = 0x4, offset = 0x4, fixed_abs, tag = 'smem constant byte address 0x4 - core index']
  #allocation1 [shape = 'u32[144,128]{1,0:T(1,128)}', space=vmem, size = 0x12000, scoped, tag = 'internal scratch']
  %s0 = inlined_call_operand.vmem [shape: f32[2,8,16], index: 0, kind: input, shape index: {}]
  %s1 = inlined_call_operand.vmem [shape: f32[2,3,8,16], index: 1, kind: input, shape index: {}]
  %s2 = inlined_call_operand.vmem [shape: f32[2,3,8,16], index: 2, kind: input, shape index: {}]
  %s3 = inlined_call_operand.hbm [shape: f32[16,1408], index: 3, kind: input, shape index: {}]
  %s4 = inlined_call_operand.vmem [shape: f32[32,2176], index: 4, kind: input, shape index: {}]
  %s5 = inlined_call_operand.hbm [shape: f32[96,256], index: 5, kind: input, shape index: {}]
  %s6 = inlined_call_operand.vmem [shape: f32[1,2944], index: 6, kind: input, shape index: {}]
  %s7 = inlined_call_operand.hbm [shape: f32[2,8,32], index: 7, kind: output, shape index: {0}]
  %s8 = inlined_call_operand.vmem [shape: f32[2,3,8,16], index: 8, kind: output, shape index: {1}]
  %9 = xla_tuple %s7, %s8
  %s10 = sld [smem:[#allocation0]]
  $region77: #{eqmotion_forward.1} parent=0
    _
  %s12 = ssub.s32 1, %s10
  %s13 = scalar_select 0, %s12, %s10
  $region1: #{eqmotion_forward.1} parent=0
    #allocation2 [shape = 'u8[90112]{0}', space=vmem, size = 0x16000, scoped, tag = 'input window, operand 3, single buffered']
    #allocation3 [shape = 's32[2]{0}', space=sflag, size = 0x8, scoped, tag = 'scoped memory for eqmotion_forward.1']
    #allocation4 [shape = 's32[2]{0}', space=sflag, size = 0x8, scoped, tag = 'scoped memory for eqmotion_forward.1']
    #allocation5 [shape = 'u8[98304]{0}', space=vmem, size = 0x18000, scoped, tag = 'input window, operand 5, single buffered']
    #allocation6 [shape = 's32[1]{0}', space=sflag, size = 0x4, scoped, tag = 'scoped memory for eqmotion_forward.1']
    #allocation7 [shape = 'u8[8192]{0}', space=vmem, size = 0x2000, scoped, tag = 'output window, operand 0']
    %14 = vsyncpa [#allocation3], 0
    %15 = vsyncpa [#allocation6], 0
    %16 = vsyncpa [#allocation4], 0
    %s17 = scalar_lea.sflag [#allocation4], 1
    %18 = vsyncpa %s17, 0
    loop: start=0, step=1, limit=4
    $region2: #{eqmotion_forward.1} parent=1 // loop_pre_header
      _
    $region3: #{eqmotion_forward.1} parent=1 // loop_header
      %s20 = sphi 0, %s24
      %p21 = scmp.ge.s32.totalorder %s20, 4
      %s30 = sphi 0, %s32
      %s33 = sphi 0, %s30
      %s34 = sphi 0, %s33
      %s50 = sphi 0, %s34
      %s56 = sphi 0, %s58
      %s59 = sphi 0, %s56
      %s60 = sphi 0, %s59
      %s76 = sphi 0, %s60
      %s82 = sphi 0, %s84
      %s85 = sphi 0, %s82
      %s86 = sphi 0, %s85
      %s102 = sphi 0, %s86
      %s106 = sphi 0, %s106
      %s108 = sphi 0, %s106
      %s109 = sphi 0, %s108
      %s123 = sphi 0, %s109
      %s127 = sphi 0, %s127
      %s129 = sphi 0, %s127
      %s130 = sphi 0, %s129
      %s144 = sphi 0, %s130
      %s148 = sphi 0, %s148
      %s150 = sphi 0, %s148
      %s151 = sphi 0, %s150
      %s165 = sphi 0, %s151
      %s169 = sphi 0, %s169
      %s171 = sphi 0, %s169
      %s172 = sphi 0, %s171
      %s186 = sphi 0, %s172
      %s192 = sphi 0, %s194
      %s195 = sphi 0, %s192
      %s196 = sphi 0, %s195
      %s212 = sphi 0, %s196
      %s218 = sphi 0, %s220
      %s221 = sphi 0, %s218
      %s222 = sphi 0, %s221
      %s238 = sphi 0, %s222
    $region4: #{eqmotion_forward.1} parent=1 // loop_header_branch
      %23 = sbr.rel (%p21) target = $region8
    $region5: #{eqmotion_forward.1} parent=1 // loop_body
      %s25 = ssub.s32 %s20, 1
      %s26 = ssub.s32 %s20, 2
      %s27 = sadd.s32 %s20, 1
      %s28 = ssub.s32 %s20, %s27
      %p29 = scmp.eq.s32.totalorder %s28, 0
      %s31 = sadd.s32 %s30, 1
      %s32 = scalar_select %p29, %s30, %s31
      %p35 = pneg %p29
      %p36 = scmp.eq.s32.totalorder %s20, 1
      %p37 = por %p35, %p36
      %p38 = scmp.ne.s32.totalorder %s30, %s33
      %p39 = scmp.eq.s32.totalorder %s20, 0
      %p40 = por %p38, %p39
      %p41 = scmp.ne.s32.totalorder %s30, %s33
      %p42 = scmp.eq.s32.totalorder %s25, 1
      %p43 = por %p41, %p42
      %p44 = scmp.ne.s32.totalorder %s33, %s34
      %p45 = scmp.eq.s32.totalorder %s25, 0
      %p46 = por %p44, %p45
      %p47 = scmp.ne.s32.totalorder %s33, %s34
      %p48 = scmp.eq.s32.totalorder %s26, 1
      %p49 = por %p47, %p48
      %p51 = scmp.ne.s32.totalorder %s34, %s50
      %p52 = scmp.eq.s32.totalorder %s26, 0
      %p53 = por %p51, %p52
      %s54 = ssub.s32 %s20, %s27
      %p55 = scmp.eq.s32.totalorder %s54, 0
      %s57 = sadd.s32 %s56, 1
      %s58 = scalar_select %p55, %s56, %s57
      %p61 = pneg %p55
      %p62 = scmp.eq.s32.totalorder %s20, 1
      %p63 = por %p61, %p62
      %p64 = scmp.ne.s32.totalorder %s56, %s59
      %p65 = scmp.eq.s32.totalorder %s20, 0
      %p66 = por %p64, %p65
      %p67 = scmp.ne.s32.totalorder %s56, %s59
      %p68 = scmp.eq.s32.totalorder %s25, 1
      %p69 = por %p67, %p68
      %p70 = scmp.ne.s32.totalorder %s59, %s60
      %p71 = scmp.eq.s32.totalorder %s25, 0
      %p72 = por %p70, %p71
      %p73 = scmp.ne.s32.totalorder %s59, %s60
      %p74 = scmp.eq.s32.totalorder %s26, 1
      %p75 = por %p73, %p74
      %p77 = scmp.ne.s32.totalorder %s60, %s76
      %p78 = scmp.eq.s32.totalorder %s26, 0
      %p79 = por %p77, %p78
      %s80 = ssub.s32 %s20, %s27
      %p81 = scmp.eq.s32.totalorder %s80, 0
      %s83 = sadd.s32 %s82, 1
      %s84 = scalar_select %p81, %s82, %s83
      %p87 = pneg %p81
      %p88 = scmp.eq.s32.totalorder %s20, 1
      %p89 = por %p87, %p88
      %p90 = scmp.ne.s32.totalorder %s82, %s85
      %p91 = scmp.eq.s32.totalorder %s20, 0
      %p92 = por %p90, %p91
      %p93 = scmp.ne.s32.totalorder %s82, %s85
      %p94 = scmp.eq.s32.totalorder %s25, 1
      %p95 = por %p93, %p94
      %p96 = scmp.ne.s32.totalorder %s85, %s86
      %p97 = scmp.eq.s32.totalorder %s25, 0
      %p98 = por %p96, %p97
      %p99 = scmp.ne.s32.totalorder %s85, %s86
      %p100 = scmp.eq.s32.totalorder %s26, 1
      %p101 = por %p99, %p100
      %p103 = scmp.ne.s32.totalorder %s86, %s102
      %p104 = scmp.eq.s32.totalorder %s26, 0
      %p105 = por %p103, %p104
      %s107 = sadd.s32 %s106, 1
      %p110 = scmp.eq.s32.totalorder %s20, 1
      %p111 = scmp.ne.s32.totalorder %s106, %s108
      %p112 = scmp.eq.s32.totalorder %s20, 0
      %p113 = por %p111, %p112
      %p114 = scmp.ne.s32.totalorder %s106, %s108
      %p115 = scmp.eq.s32.totalorder %s25, 1
      %p116 = por %p114, %p115
      %p117 = scmp.ne.s32.totalorder %s108, %s109
      %p118 = scmp.eq.s32.totalorder %s25, 0
      %p119 = por %p117, %p118
      %p120 = scmp.ne.s32.totalorder %s108, %s109
      %p121 = scmp.eq.s32.totalorder %s26, 1
      %p122 = por %p120, %p121
      %p124 = scmp.ne.s32.totalorder %s109, %s123
      %p125 = scmp.eq.s32.totalorder %s26, 0
      %p126 = por %p124, %p125
      %s128 = sadd.s32 %s127, 1
      %p131 = scmp.eq.s32.totalorder %s20, 1
      %p132 = scmp.ne.s32.totalorder %s127, %s129
      %p133 = scmp.eq.s32.totalorder %s20, 0
      %p134 = por %p132, %p133
      %p135 = scmp.ne.s32.totalorder %s127, %s129
      %p136 = scmp.eq.s32.totalorder %s25, 1
      %p137 = por %p135, %p136
      %p138 = scmp.ne.s32.totalorder %s129, %s130
      %p139 = scmp.eq.s32.totalorder %s25, 0
      %p140 = por %p138, %p139
      %p141 = scmp.ne.s32.totalorder %s129, %s130
      %p142 = scmp.eq.s32.totalorder %s26, 1
      %p143 = por %p141, %p142
      %p145 = scmp.ne.s32.totalorder %s130, %s144
      %p146 = scmp.eq.s32.totalorder %s26, 0
      %p147 = por %p145, %p146
      %s149 = sadd.s32 %s148, 1
      %p152 = scmp.eq.s32.totalorder %s20, 1
      %p153 = scmp.ne.s32.totalorder %s148, %s150
      %p154 = scmp.eq.s32.totalorder %s20, 0
      %p155 = por %p153, %p154
      %p156 = scmp.ne.s32.totalorder %s148, %s150
      %p157 = scmp.eq.s32.totalorder %s25, 1
      %p158 = por %p156, %p157
      %p159 = scmp.ne.s32.totalorder %s150, %s151
      %p160 = scmp.eq.s32.totalorder %s25, 0
      %p161 = por %p159, %p160
      %p162 = scmp.ne.s32.totalorder %s150, %s151
      %p163 = scmp.eq.s32.totalorder %s26, 1
      %p164 = por %p162, %p163
      %p166 = scmp.ne.s32.totalorder %s151, %s165
      %p167 = scmp.eq.s32.totalorder %s26, 0
      %p168 = por %p166, %p167
      %s170 = sadd.s32 %s169, 1
      %p173 = scmp.eq.s32.totalorder %s20, 1
      %p174 = scmp.ne.s32.totalorder %s169, %s171
      %p175 = scmp.eq.s32.totalorder %s20, 0
      %p176 = por %p174, %p175
      %p177 = scmp.ne.s32.totalorder %s169, %s171
      %p178 = scmp.eq.s32.totalorder %s25, 1
      %p179 = por %p177, %p178
      %p180 = scmp.ne.s32.totalorder %s171, %s172
      %p181 = scmp.eq.s32.totalorder %s25, 0
      %p182 = por %p180, %p181
      %p183 = scmp.ne.s32.totalorder %s171, %s172
      %p184 = scmp.eq.s32.totalorder %s26, 1
      %p185 = por %p183, %p184
      %p187 = scmp.ne.s32.totalorder %s172, %s186
      %p188 = scmp.eq.s32.totalorder %s26, 0
      %p189 = por %p187, %p188
      %s190 = ssub.s32 %s20, %s27
      %p191 = scmp.eq.s32.totalorder %s190, 0
      %s193 = sadd.s32 %s192, 1
      %s194 = scalar_select %p191, %s192, %s193
      %p197 = pneg %p191
      %p198 = scmp.eq.s32.totalorder %s20, 1
      %p199 = por %p197, %p198
      %p200 = scmp.ne.s32.totalorder %s192, %s195
      %p201 = scmp.eq.s32.totalorder %s20, 0
      %p202 = por %p200, %p201
      %p203 = scmp.ne.s32.totalorder %s192, %s195
      %p204 = scmp.eq.s32.totalorder %s25, 1
      %p205 = por %p203, %p204
      %p206 = scmp.ne.s32.totalorder %s195, %s196
      %p207 = scmp.eq.s32.totalorder %s25, 0
      %p208 = por %p206, %p207
      %p209 = scmp.ne.s32.totalorder %s195, %s196
      %p210 = scmp.eq.s32.totalorder %s26, 1
      %p211 = por %p209, %p210
      %p213 = scmp.ne.s32.totalorder %s196, %s212
      %p214 = scmp.eq.s32.totalorder %s26, 0
      %p215 = por %p213, %p214
      %s216 = ssub.s32 %s20, %s27
      %p217 = scmp.eq.s32.totalorder %s216, 0
      %s219 = sadd.s32 %s218, 1
      %s220 = scalar_select %p217, %s218, %s219
      %p223 = pneg %p217
      %p224 = scmp.eq.s32.totalorder %s20, 1
      %p225 = por %p223, %p224
      %p226 = scmp.ne.s32.totalorder %s218, %s221
      %p227 = scmp.eq.s32.totalorder %s20, 0
      %p228 = por %p226, %p227
      %p229 = scmp.ne.s32.totalorder %s218, %s221
      %p230 = scmp.eq.s32.totalorder %s25, 1
      %p231 = por %p229, %p230
      %p232 = scmp.ne.s32.totalorder %s221, %s222
      %p233 = scmp.eq.s32.totalorder %s25, 0
      %p234 = por %p232, %p233
      %p235 = scmp.ne.s32.totalorder %s221, %s222
      %p236 = scmp.eq.s32.totalorder %s26, 1
      %p237 = por %p235, %p236
      %p239 = scmp.ne.s32.totalorder %s222, %s238
      %p240 = scmp.eq.s32.totalorder %s26, 0
      %p241 = por %p239, %p240
      %p242 = scmp.le.s32.totalorder 1, %s20
      %p243 = scmp.lt.s32.totalorder %s20, 3
      %p244 = pnand %p242, %p243
      %p245 = pneg %p244
      // Predicated region
      $region9: #{eqmotion_forward.1} parent=5 // pred_check
        _
      $region10: #{eqmotion_forward.1} parent=5 // pred_check_branch
        %247 = sbr.rel (%p244) target = $region12
      $region11: #{eqmotion_forward.1} parent=5 // pred_region
        %s248 = ssub.s32 %s20, 1
        // Predicated region
        $region13: #{eqmotion_forward.1} parent=11 // pred_check
          %p249 = pneg %p119
        $region14: #{eqmotion_forward.1} parent=11 // pred_check_branch
          %251 = sbr.rel (%p249) target = $region16
        $region15: #{eqmotion_forward.1} parent=11 // pred_region
          %s253 = ssub.s32 2816, 2816
          %254 = vsyncadd [#allocation3], %s253
          %s255 = sshll.u32 [#allocation2], 4
          %s256 = int_to_ptr.vmem [resolvable:$true] %s255
          %261 = dma.hbm_to_vmem [thread:$0]  %s3, 2816, %s256, [#allocation3], 1408, 1408, 88
        $region16: #{eqmotion_forward.1} parent=11 // pred_fallthru
          _
        // Predicated region
        $region17: #{eqmotion_forward.1} parent=11 // pred_check
          %p262 = pneg %p140
        $region18: #{eqmotion_forward.1} parent=11 // pred_check_branch
          %264 = sbr.rel (%p262) target = $region20
        $region19: #{eqmotion_forward.1} parent=11 // pred_region
          _
        $region20: #{eqmotion_forward.1} parent=11 // pred_fallthru
          _
        // Predicated region
        $region21: #{eqmotion_forward.1} parent=11 // pred_check
          %p265 = pneg %p161
        $region22: #{eqmotion_forward.1} parent=11 // pred_check_branch
          %267 = sbr.rel (%p265) target = $region24
        $region23: #{eqmotion_forward.1} parent=11 // pred_region
          %s269 = ssub.s32 3072, 3072
          %270 = vsyncadd [#allocation6], %s269
          %s271 = sshll.u32 [#allocation5], 4
          %s272 = int_to_ptr.vmem [resolvable:$true] %s271
          %277 = dma.hbm_to_vmem [thread:$0]  %s5, 3072, %s272, [#allocation6], 256, 256, 16
        $region24: #{eqmotion_forward.1} parent=11 // pred_fallthru
          _
        // Predicated region
        $region25: #{eqmotion_forward.1} parent=11 // pred_check
          %p278 = pneg %p182
        $region26: #{eqmotion_forward.1} parent=11 // pred_check_branch
          %280 = sbr.rel (%p278) target = $region28
        $region27: #{eqmotion_forward.1} parent=11 // pred_region
          _
        $region28: #{eqmotion_forward.1} parent=11 // pred_fallthru
          _
      $region12: #{eqmotion_forward.1} parent=5 // pred_fallthru
        _
      %p281 = scmp.lt.s32.totalorder %s20, 2
      // Predicated region
      $region29: #{eqmotion_forward.1} parent=5 // pred_check
        %p282 = pneg %p281
      $region30: #{eqmotion_forward.1} parent=5 // pred_check_branch
        %284 = sbr.rel (%p282) target = $region32
      $region31: #{eqmotion_forward.1} parent=5 // pred_region
        // Predicated region
        $region33: #{eqmotion_forward.1} parent=31 // pred_check
          %p285 = pneg %p40
        $region34: #{eqmotion_forward.1} parent=31 // pred_check_branch
          %287 = sbr.rel (%p285) target = $region36
        $region35: #{eqmotion_forward.1} parent=31 // pred_region
          %p288 = scmp.lt.s32.totalorder %s20, 1
          %s289 = scalar_select %p288, %s20, 1
          %s290 = smul.addr %s289, 8
          %s291 = scalar_lea.vmem %s0, %s290
        $region36: #{eqmotion_forward.1} parent=31 // pred_fallthru
          _
        // Predicated region
        $region37: #{eqmotion_forward.1} parent=31 // pred_check
          %p292 = pneg %p66
        $region38: #{eqmotion_forward.1} parent=31 // pred_check_branch
          %294 = sbr.rel (%p292) target = $region40
        $region39: #{eqmotion_forward.1} parent=31 // pred_region
          %p295 = scmp.lt.s32.totalorder %s20, 1
          %s296 = scalar_select %p295, %s20, 1
          %s297 = smul.addr %s296, 3
          %s298 = smul.addr %s297, 8
          %s299 = scalar_lea.vmem %s1, %s298
        $region40: #{eqmotion_forward.1} parent=31 // pred_fallthru
          _
        // Predicated region
        $region41: #{eqmotion_forward.1} parent=31 // pred_check
          %p300 = pneg %p92
        $region42: #{eqmotion_forward.1} parent=31 // pred_check_branch
          %302 = sbr.rel (%p300) target = $region44
        $region43: #{eqmotion_forward.1} parent=31 // pred_region
          %p303 = scmp.lt.s32.totalorder %s20, 1
          %s304 = scalar_select %p303, %s20, 1
          %s305 = smul.addr %s304, 3
          %s306 = smul.addr %s305, 8
          %s307 = scalar_lea.vmem %s2, %s306
        $region44: #{eqmotion_forward.1} parent=31 // pred_fallthru
          _
      $region32: #{eqmotion_forward.1} parent=5 // pred_fallthru
        _
      %p308 = scmp.le.s32.totalorder 1, %s20
      %p309 = scmp.lt.s32.totalorder %s20, 3
      %p310 = pnand %p308, %p309
      %p311 = pneg %p310
      // Predicated region
      $region45: #{eqmotion_forward.1} parent=5 // pred_check
        _
      $region46: #{eqmotion_forward.1} parent=5 // pred_check_branch
        %313 = sbr.rel (%p310) target = $region48
      $region47: #{eqmotion_forward.1} parent=5 // pred_region
        %s314 = ssub.s32 %s20, 1
        // Predicated region
        $region49: #{eqmotion_forward.1} parent=47 // pred_check
          %p315 = pneg %p119
        $region50: #{eqmotion_forward.1} parent=47 // pred_check_branch
          %317 = sbr.rel (%p315) target = $region52
        $region51: #{eqmotion_forward.1} parent=47 // pred_region
          %318 = dma.done [#allocation3], 2816
        $region52: #{eqmotion_forward.1} parent=47 // pred_fallthru
          _
        // Predicated region
        $region53: #{eqmotion_forward.1} parent=47 // pred_check
          %p319 = pneg %p161
        $region54: #{eqmotion_forward.1} parent=47 // pred_check_branch
          %321 = sbr.rel (%p319) target = $region56
        $region55: #{eqmotion_forward.1} parent=47 // pred_region
          %322 = dma.done [#allocation6], 3072
        $region56: #{eqmotion_forward.1} parent=47 // pred_fallthru
          _
        %p323 = scmp.lt.s32.totalorder %s25, 1
        %s324 = scalar_select %p323, %s25, 1
        %s325 = smul.addr %s324, 8
        %s326 = scalar_lea.vmem %s0, %s325
        %p327 = pneg %p46
        %p328 = pneg %p43
        %p329 = scmp.lt.s32.totalorder %s25, 1
        %s330 = scalar_select %p329, %s25, 1
        %s331 = smul.addr %s330, 3
        %s332 = smul.addr %s331, 8
        %s333 = scalar_lea.vmem %s1, %s332
        %p334 = pneg %p72
        %p335 = pneg %p69
        %p336 = scmp.lt.s32.totalorder %s25, 1
        %s337 = scalar_select %p336, %s25, 1
        %s338 = smul.addr %s337, 3
        %s339 = smul.addr %s338, 8
        %s340 = scalar_lea.vmem %s2, %s339
        %p341 = pneg %p98
        %p342 = pneg %p95
        %p343 = pneg %p119
        %p344 = pneg %p116
        %p345 = pneg %p140
        %p346 = pneg %p137
        %p347 = pneg %p161
        %p348 = pneg %p158
        %p349 = pneg %p182
        %p350 = pneg %p179
        %p351 = pneg %p208
        %p352 = pneg %p205
        %s353 = sand.u32 %s195, 1
        %s354 = scalar_lea.sflag [#allocation4], %s353
        %s355 = sand.u32 %s195, 1
        %s356 = smul.addr %s355, 8
        %s357 = scalar_lea.vmem [#allocation7], %s356
        %p358 = pneg %p234
        %p359 = pneg %p231
        %p360 = scmp.lt.s32.totalorder %s25, 1
        %s361 = scalar_select %p360, %s25, 1
        %s362 = smul.addr %s361, 3
        %s363 = smul.addr %s362, 8
        %s364 = scalar_lea.vmem %s8, %s363
        %p365 = scmp.lt.s32.totalorder %s25, 1
        %s366 = scalar_select %p365, %s25, 1
        %s367 = smul.addr %s366, 8
        %s368 = scalar_lea.vmem %s0, %s367
        %p369 = scmp.lt.s32.totalorder %s25, 1
        %s370 = scalar_select %p369, %s25, 1
        %s371 = smul.addr %s370, 3
        %s372 = smul.addr %s371, 8
        %s373 = scalar_lea.vmem %s1, %s372
        %p374 = scmp.lt.s32.totalorder %s25, 1
        %s375 = scalar_select %p374, %s25, 1
        %s376 = smul.addr %s375, 3
        %s377 = smul.addr %s376, 8
        %s378 = scalar_lea.vmem %s2, %s377
        %p379 = scmp.lt.s32.totalorder %s25, 1
        %s380 = scalar_select %p379, %s25, 1
        %s381 = smul.addr %s380, 3
        %s382 = smul.addr %s381, 8
        %s383 = scalar_lea.vmem %s8, %s382
        %v384 = vld [vmem:[%s368] sm:$0xff]
        %v385 = vld [vmem:[%s373] sm:$0xff]
        %v386 = vld [vmem:[%s373 + $0x8] sm:$0xff]
        %v387 = vld [vmem:[%s373 + $0x10] sm:$0xff]
        %v388 = vld [vmem:[%s378] sm:$0xff]
        %v389 = vld [vmem:[%s378 + $0x8] sm:$0xff]
        %v390 = vld [vmem:[%s378 + $0x10] sm:$0xff]
        %v391 = vlaneseq
        %v392 = vshrl.u32 %v391, 7
        %v393 = vlaneseq
        %v394 = vand.u32 %v393, 127
        %vm395 = vcmp.ne.s32.totalorder %v392, %v394
        %v396 = vsel %vm395, 1, 0
        %v397 = vcvt.s32.f32 %v396
        %v398 = vlaneseq
        %v399 = vshrl.u32 %v398, 7
        %v400 = vsub.s32 0, %v399
        %v401 = vrot.slane %v397, %v400
        %403 = vbcast.lane.b32.xlu0 %v401, 256
        %v404 = vpop.permute.xlu0 %403
        %v405 = vlaneseq
        %v406 = vshrl.u32 %v405, 7
        %v407 = vsub.s32 1, %v406
        %v408 = vrot.slane %v397, %v407
        %410 = vbcast.lane.b32.xlu0 %v408, 256
        %v411 = vpop.permute.xlu0 %410
        %v412 = vlaneseq
        %v413 = vshrl.u32 %v412, 7
        %v414 = vsub.s32 2, %v413
        %v415 = vrot.slane %v397, %v414
        %417 = vbcast.lane.b32.xlu0 %v415, 256
        %v418 = vpop.permute.xlu0 %417
        %v419 = vlaneseq
        %v420 = vshrl.u32 %v419, 7
        %v421 = vsub.s32 3, %v420
        %v422 = vrot.slane %v397, %v421
        %424 = vbcast.lane.b32.xlu0 %v422, 256
        %v425 = vpop.permute.xlu0 %424
        %v426 = vlaneseq
        %v427 = vshrl.u32 %v426, 7
        %v428 = vsub.s32 4, %v427
        %v429 = vrot.slane %v397, %v428
        %431 = vbcast.lane.b32.xlu0 %v429, 256
        %v432 = vpop.permute.xlu0 %431
        %v433 = vlaneseq
        %v434 = vshrl.u32 %v433, 7
        %v435 = vsub.s32 5, %v434
        %v436 = vrot.slane %v397, %v435
        %438 = vbcast.lane.b32.xlu0 %v436, 256
        %v439 = vpop.permute.xlu0 %438
        %v440 = vlaneseq
        %v441 = vshrl.u32 %v440, 7
        %v442 = vsub.s32 6, %v441
        %v443 = vrot.slane %v397, %v442
        %445 = vbcast.lane.b32.xlu0 %v443, 256
        %v446 = vpop.permute.xlu0 %445
        %v447 = vlaneseq
        %v448 = vshrl.u32 %v447, 7
        %v449 = vsub.s32 7, %v448
        %v450 = vrot.slane %v397, %v449
        %452 = vbcast.lane.b32.xlu0 %v450, 256
        %v453 = vpop.permute.xlu0 %452
        %v454 = vld [vmem:[#allocation2] sm:$0xff]
        %v455 = vld [vmem:[#allocation2 + $0x58] sm:$0xff]
        %v456 = vld [vmem:[%s6] sm:$0x1]
        %v458 = vlaneseq
        %v459 = vshrl.u32 %v458, 7
        %v460 = vsub.s32 0, %v459
        %v461 = vrot.slane %v456, %v460
        %vm463 = vcmask 130048
        %v465 = vsel %vm463, %v384, 0
        %467 = vmatprep.subr.mxu0 0.0
        %468 = vmatpush1.msra.mxu0 %v454
        %469 = vmatprep.subr.mxu0 0.0
        %470 = vmatpush1.msra.mxu0 %v455
        %471 = vmatprep.subr.mxu0 0.0
        %472 = vmatpush1.msra.mxu0 0.0
        %473 = vmatprep.subr.mxu0 0.0
        %474 = vmatpush1.msra.mxu0 0.0
        %475 = vmatprep.subr.mxu0 0.0
        %476 = vmatpush1.msra.mxu0 0.0
        %477 = vmatprep.subr.mxu0 0.0
        %478 = vmatpush1.msra.mxu0 0.0
        %479 = vmatprep.subr.mxu0 0.0
        %480 = vmatpush1.msra.mxu0 0.0
        %481 = vmatprep.subr.mxu0 0.0
        %482 = vmatpush1.msra.mxu0 0.0
        %483 = vmatprep.subr.mxu0 0.0
        %484 = vmatpush1.msra.mxu0 0.0
        %485 = vmatprep.subr.mxu0 0.0
        %486 = vmatpush1.msra.mxu0 0.0
        %487 = vmatprep.subr.mxu0 0.0
        %488 = vmatpush1.msra.mxu0 0.0
        %489 = vmatprep.subr.mxu0 0.0
        %490 = vmatpush1.msra.mxu0 0.0
        %491 = vmatprep.subr.mxu0 0.0
        %492 = vmatpush1.msra.mxu0 0.0
        %493 = vmatprep.subr.mxu0 0.0
        %494 = vmatpush1.msra.mxu0 0.0
        %495 = vmatprep.subr.mxu0 0.0
        %496 = vmatpush1.msra.mxu0 0.0
        %497 = vmatprep.subr.mxu0 0.0
        %498 = vmatpush1.msra.mxu0 0.0
        %499 = vmatprep.subr.mxu0 0.0
        %500 = vmatpush1.msra.mxu0 0.0
        %501 = vmatprep.subr.mxu0 0.0
        %502 = vmatpush1.msra.mxu0 0.0
        %503 = vmatprep.subr.mxu0 0.0
        %504 = vmatpush1.msra.mxu0 0.0
        %505 = vmatprep.subr.mxu0 0.0
        %506 = vmatpush1.msra.mxu0 0.0
        %507 = vmatprep.subr.mxu0 0.0
        %508 = vmatpush1.msra.mxu0 0.0
        %509 = vmatprep.subr.mxu0 0.0
        %510 = vmatpush1.msra.mxu0 0.0
        %511 = vmatprep.subr.mxu0 0.0
        %512 = vmatpush1.msra.mxu0 0.0
        %513 = vmatprep.subr.mxu0 0.0
        %514 = vmatpush1.msra.mxu0 0.0
        %515 = vmatprep.subr.mxu0 0.0
        %516 = vmatpush1.msra.mxu0 0.0
        %517 = vmatprep.subr.mxu0 0.0
        %518 = vmatpush1.msra.mxu0 0.0
        %519 = vmatprep.subr.mxu0 0.0
        %520 = vmatpush1.msra.mxu0 0.0
        %521 = vmatprep.subr.mxu0 0.0
        %522 = vmatpush1.msra.mxu0 0.0
        %523 = vmatprep.subr.mxu0 0.0
        %524 = vmatpush1.msra.mxu0 0.0
        %525 = vmatprep.subr.mxu0 0.0
        %526 = vmatpush1.msra.mxu0 0.0
        %527 = vmatprep.subr.mxu0 0.0
        %528 = vmatpush1.msra.mxu0 0.0
        %529 = vmatprep.subr.mxu0 0.0
        %530 = vmatpush1.msra.mxu0 0.0
        %531 = vmatprep.mubr.f32.mxu0 0.0
        %532 = vmatmul.mubr.f32.gmra.mrb[0].mxu0 %v465
        %v533 = vpop.f32.mrb[0].mxu0
        %v534 = vadd.f32 %v461, %v533
        %v535 = vpop.f32.mrb[0].mxu0
        %536 = vdwg.mxu0
        %540 = vrot.lane.b32.xlu0 %v388, 16
        %v541 = vpop.permute.xlu0 %540
        %542 = vrot.lane.b32.xlu0 %v389, 16
        %v543 = vpop.permute.xlu0 %542
        %544 = vrot.lane.b32.xlu0 %v390, 16
        %v545 = vpop.permute.xlu0 %544
        %v549 = vsel %vm463, %v385, %v541
        %v550 = vsel %vm463, %v386, %v543
        %v551 = vsel %vm463, %v387, %v545
        %v553 = vcombine.high %v549, %v549
        %v555 = vunpack.c.l.s4 1966171168
        %v556 = vunpack.c.0.s8 %v555
        %v557 = vlaneseq
        %v558 = vshrl.u32 %v557, 7
        %v559 = vsub.s32 %v556, %v558
        %v560 = vrot.slane %v549, %v559
        %v562 = vunpack.c.l.s4 1966171168
        %v563 = vunpack.c.0.s8 %v562
        %v564 = vlaneseq
        %v565 = vshrl.u32 %v564, 7
        %v566 = vsub.s32 %v563, %v565
        %v567 = vrot.slane %v553, %v566
        %v568 = vcombine.high %v560, %v560
        %v569 = vcombine.high %v567, %v567
        %v571 = vunpack.c.l.s4 1966171168
        %v572 = vunpack.c.0.s8 %v571
        %v573 = vlaneseq
        %v574 = vshrl.u32 %v573, 7
        %v575 = vsub.s32 %v572, %v574
        %v576 = vrot.slane %v560, %v575
        %v578 = vunpack.c.l.s4 1966171168
        %v579 = vunpack.c.0.s8 %v578
        %v580 = vlaneseq
        %v581 = vshrl.u32 %v580, 7
        %v582 = vsub.s32 %v579, %v581
        %v583 = vrot.slane %v567, %v582
        %v585 = vunpack.c.l.s4 1966171168
        %v586 = vunpack.c.0.s8 %v585
        %v587 = vlaneseq
        %v588 = vshrl.u32 %v587, 7
        %v589 = vsub.s32 %v586, %v588
        %v590 = vrot.slane %v568, %v589
        %v592 = vunpack.c.l.s4 1966171168
        %v593 = vunpack.c.0.s8 %v592
        %v594 = vlaneseq
        %v595 = vshrl.u32 %v594, 7
        %v596 = vsub.s32 %v593, %v595
        %v597 = vrot.slane %v569, %v596
        %v598 = vcombine.high %v576, %v576
        %v599 = vcombine.high %v583, %v583
        %v600 = vcombine.high %v590, %v590
        %v601 = vcombine.high %v597, %v597
        %v602 = vlaneseq
        %v603 = vshrl.u32 %v602, 7
        %v604 = vsub.s32 0, %v603
        %v605 = vrot.slane %v576, %v604
        %v606 = vlaneseq
        %v607 = vshrl.u32 %v606, 7
        %v608 = vsub.s32 0, %v607
        %v609 = vrot.slane %v590, %v608
        %v610 = vlaneseq
        %v611 = vshrl.u32 %v610, 7
        %v612 = vsub.s32 0, %v611
        %v613 = vrot.slane %v598, %v612
        %v614 = vlaneseq
        %v615 = vshrl.u32 %v614, 7
        %v616 = vsub.s32 0, %v615
        %v617 = vrot.slane %v600, %v616
        %v618 = vlaneseq
        %v619 = vshrl.u32 %v618, 7
        %v620 = vsub.s32 0, %v619
        %v621 = vrot.slane %v583, %v620
        %v622 = vlaneseq
        %v623 = vshrl.u32 %v622, 7
        %v624 = vsub.s32 0, %v623
        %v625 = vrot.slane %v597, %v624
        %v626 = vlaneseq
        %v627 = vshrl.u32 %v626, 7
        %v628 = vsub.s32 0, %v627
        %v629 = vrot.slane %v599, %v628
        %v630 = vlaneseq
        %v631 = vshrl.u32 %v630, 7
        %v632 = vsub.s32 0, %v631
        %v633 = vrot.slane %v601, %v632
        %v642 = vsub.f32 %v605, %v549
        %v643 = vsub.f32 %v609, %v549
        %v644 = vsub.f32 %v613, %v549
        %v645 = vsub.f32 %v617, %v549
        %v646 = vsub.f32 %v621, %v549
        %v647 = vsub.f32 %v625, %v549
        %v648 = vsub.f32 %v629, %v549
        %v649 = vsub.f32 %v633, %v549
        %v650 = vmul.f32 %v642, %v642
        %v651 = vmul.f32 %v643, %v643
        %v652 = vmul.f32 %v644, %v644
        %v653 = vmul.f32 %v645, %v645
        %v654 = vmul.f32 %v646, %v646
        %v655 = vmul.f32 %v647, %v647
        %v656 = vmul.f32 %v648, %v648
        %v657 = vmul.f32 %v649, %v649
        %v658 = vadd.f32 %v650, 0.0
        %v659 = vadd.f32 %v651, 0.0
        %v660 = vadd.f32 %v652, 0.0
        %v661 = vadd.f32 %v653, 0.0
        %v662 = vadd.f32 %v654, 0.0
        %v663 = vadd.f32 %v655, 0.0
        %v664 = vadd.f32 %v656, 0.0
        %v665 = vadd.f32 %v657, 0.0
        %v667 = vcombine.high %v550, %v550
        %v669 = vunpack.c.l.s4 1966171168
        %v670 = vunpack.c.0.s8 %v669
        %v671 = vlaneseq
        %v672 = vshrl.u32 %v671, 7
        %v673 = vsub.s32 %v670, %v672
        %v674 = vrot.slane %v550, %v673
        %v676 = vunpack.c.l.s4 1966171168
        %v677 = vunpack.c.0.s8 %v676
        %v678 = vlaneseq
        %v679 = vshrl.u32 %v678, 7
        %v680 = vsub.s32 %v677, %v679
        %v681 = vrot.slane %v667, %v680
        %v682 = vcombine.high %v674, %v674
        %v683 = vcombine.high %v681, %v681
        %v685 = vunpack.c.l.s4 1966171168
        %v686 = vunpack.c.0.s8 %v685
        %v687 = vlaneseq
        %v688 = vshrl.u32 %v687, 7
        %v689 = vsub.s32 %v686, %v688
        %v690 = vrot.slane %v674, %v689
        %v692 = vunpack.c.l.s4 1966171168
        %v693 = vunpack.c.0.s8 %v692
        %v694 = vlaneseq
        %v695 = vshrl.u32 %v694, 7
        %v696 = vsub.s32 %v693, %v695
        %v697 = vrot.slane %v681, %v696
        %v699 = vunpack.c.l.s4 1966171168
        %v700 = vunpack.c.0.s8 %v699
        %v701 = vlaneseq
        %v702 = vshrl.u32 %v701, 7
        %v703 = vsub.s32 %v700, %v702
        %v704 = vrot.slane %v682, %v703
        %v706 = vunpack.c.l.s4 1966171168
        %v707 = vunpack.c.0.s8 %v706
        %v708 = vlaneseq
        %v709 = vshrl.u32 %v708, 7
        %v710 = vsub.s32 %v707, %v709
        %v711 = vrot.slane %v683, %v710
        %v712 = vcombine.high %v690, %v690
        %v713 = vcombine.high %v697, %v697
        %v714 = vcombine.high %v704, %v704
        %v715 = vcombine.high %v711, %v711
        %v716 = vlaneseq
        %v717 = vshrl.u32 %v716, 7
        %v718 = vsub.s32 0, %v717
        %v719 = vrot.slane %v690, %v718
        %v720 = vlaneseq
        %v721 = vshrl.u32 %v720, 7
        %v722 = vsub.s32 0, %v721
        %v723 = vrot.slane %v704, %v722
        %v724 = vlaneseq
        %v725 = vshrl.u32 %v724, 7
        %v726 = vsub.s32 0, %v725
        %v727 = vrot.slane %v712, %v726
        %v728 = vlaneseq
        %v729 = vshrl.u32 %v728, 7
        %v730 = vsub.s32 0, %v729
        %v731 = vrot.slane %v714, %v730
        %v732 = vlaneseq
        %v733 = vshrl.u32 %v732, 7
        %v734 = vsub.s32 0, %v733
        %v735 = vrot.slane %v697, %v734
        %v736 = vlaneseq
        %v737 = vshrl.u32 %v736, 7
        %v738 = vsub.s32 0, %v737
        %v739 = vrot.slane %v711, %v738
        %v740 = vlaneseq
        %v741 = vshrl.u32 %v740, 7
        %v742 = vsub.s32 0, %v741
        %v743 = vrot.slane %v713, %v742
        %v744 = vlaneseq
        %v745 = vshrl.u32 %v744, 7
        %v746 = vsub.s32 0, %v745
        %v747 = vrot.slane %v715, %v746
        %v756 = vsub.f32 %v719, %v550
        %v757 = vsub.f32 %v723, %v550
        %v758 = vsub.f32 %v727, %v550
        %v759 = vsub.f32 %v731, %v550
        %v760 = vsub.f32 %v735, %v550
        %v761 = vsub.f32 %v739, %v550
        %v762 = vsub.f32 %v743, %v550
        %v763 = vsub.f32 %v747, %v550
        %v764 = vmul.f32 %v756, %v756
        %v765 = vmul.f32 %v757, %v757
        %v766 = vmul.f32 %v758, %v758
        %v767 = vmul.f32 %v759, %v759
        %v768 = vmul.f32 %v760, %v760
        %v769 = vmul.f32 %v761, %v761
        %v770 = vmul.f32 %v762, %v762
        %v771 = vmul.f32 %v763, %v763
        %v772 = vadd.f32 %v658, %v764
        %v773 = vadd.f32 %v659, %v765
        %v774 = vadd.f32 %v660, %v766
        %v775 = vadd.f32 %v661, %v767
        %v776 = vadd.f32 %v662, %v768
        %v777 = vadd.f32 %v663, %v769
        %v778 = vadd.f32 %v664, %v770
        %v779 = vadd.f32 %v665, %v771
        %v781 = vcombine.high %v551, %v551
        %v783 = vunpack.c.l.s4 1966171168
        %v784 = vunpack.c.0.s8 %v783
        %v785 = vlaneseq
        %v786 = vshrl.u32 %v785, 7
        %v787 = vsub.s32 %v784, %v786
        %v788 = vrot.slane %v551, %v787
        %v790 = vunpack.c.l.s4 1966171168
        %v791 = vunpack.c.0.s8 %v790
        %v792 = vlaneseq
        %v793 = vshrl.u32 %v792, 7
        %v794 = vsub.s32 %v791, %v793
        %v795 = vrot.slane %v781, %v794
        %v796 = vcombine.high %v788, %v788
        %v797 = vcombine.high %v795, %v795
        %v799 = vunpack.c.l.s4 1966171168
        %v800 = vunpack.c.0.s8 %v799
        %v801 = vlaneseq
        %v802 = vshrl.u32 %v801, 7
        %v803 = vsub.s32 %v800, %v802
        %v804 = vrot.slane %v788, %v803
        %v806 = vunpack.c.l.s4 1966171168
        %v807 = vunpack.c.0.s8 %v806
        %v808 = vlaneseq
        %v809 = vshrl.u32 %v808, 7
        %v810 = vsub.s32 %v807, %v809
        %v811 = vrot.slane %v795, %v810
        %v813 = vunpack.c.l.s4 1966171168
        %v814 = vunpack.c.0.s8 %v813
        %v815 = vlaneseq
        %v816 = vshrl.u32 %v815, 7
        %v817 = vsub.s32 %v814, %v816
        %v818 = vrot.slane %v796, %v817
        %v820 = vunpack.c.l.s4 1966171168
        %v821 = vunpack.c.0.s8 %v820
        %v822 = vlaneseq
        %v823 = vshrl.u32 %v822, 7
        %v824 = vsub.s32 %v821, %v823
        %v825 = vrot.slane %v797, %v824
        %v826 = vcombine.high %v804, %v804
        %v827 = vcombine.high %v811, %v811
        %v828 = vcombine.high %v818, %v818
        %v829 = vcombine.high %v825, %v825
        %v830 = vlaneseq
        %v831 = vshrl.u32 %v830, 7
        %v832 = vsub.s32 0, %v831
        %v833 = vrot.slane %v804, %v832
        %v834 = vlaneseq
        %v835 = vshrl.u32 %v834, 7
        %v836 = vsub.s32 0, %v835
        %v837 = vrot.slane %v818, %v836
        %v838 = vlaneseq
        %v839 = vshrl.u32 %v838, 7
        %v840 = vsub.s32 0, %v839
        %v841 = vrot.slane %v826, %v840
        %v842 = vlaneseq
        %v843 = vshrl.u32 %v842, 7
        %v844 = vsub.s32 0, %v843
        %v845 = vrot.slane %v828, %v844
        %v846 = vlaneseq
        %v847 = vshrl.u32 %v846, 7
        %v848 = vsub.s32 0, %v847
        %v849 = vrot.slane %v811, %v848
        %v850 = vlaneseq
        %v851 = vshrl.u32 %v850, 7
        %v852 = vsub.s32 0, %v851
        %v853 = vrot.slane %v825, %v852
        %v854 = vlaneseq
        %v855 = vshrl.u32 %v854, 7
        %v856 = vsub.s32 0, %v855
        %v857 = vrot.slane %v827, %v856
        %v858 = vlaneseq
        %v859 = vshrl.u32 %v858, 7
        %v860 = vsub.s32 0, %v859
        %v861 = vrot.slane %v829, %v860
        %v870 = vsub.f32 %v833, %v551
        %v871 = vsub.f32 %v837, %v551
        %v872 = vsub.f32 %v841, %v551
        %v873 = vsub.f32 %v845, %v551
        %v874 = vsub.f32 %v849, %v551
        %v875 = vsub.f32 %v853, %v551
        %v876 = vsub.f32 %v857, %v551
        %v877 = vsub.f32 %v861, %v551
        %v878 = vmul.f32 %v870, %v870
        %v879 = vmul.f32 %v871, %v871
        %v880 = vmul.f32 %v872, %v872
        %v881 = vmul.f32 %v873, %v873
        %v882 = vmul.f32 %v874, %v874
        %v883 = vmul.f32 %v875, %v875
        %v884 = vmul.f32 %v876, %v876
        %v885 = vmul.f32 %v877, %v877
        %v886 = vadd.f32 %v772, %v878
        %v887 = vadd.f32 %v773, %v879
        %v888 = vadd.f32 %v774, %v880
        %v889 = vadd.f32 %v775, %v881
        %v890 = vadd.f32 %v776, %v882
        %v891 = vadd.f32 %v777, %v883
        %v892 = vadd.f32 %v778, %v884
        %v893 = vadd.f32 %v779, %v885
        %v894 = vrsqrt.pop %v886
        %v895 = vmul.f32 %v886, %v894
        %vm896 = vcmp.eq.f32.partialorder %v886, inf
        %v897 = vsel %vm896, %v886, %v895
        %vm898 = vcmp.eq.f32.partialorder %v886, 0.0
        %v899 = vand.u32 %v886, 2147483648
        %v900 = vsel %vm898, %v899, %v897
        %v901 = vrsqrt.pop %v887
        %v902 = vmul.f32 %v887, %v901
        %vm903 = vcmp.eq.f32.partialorder %v887, inf
        %v904 = vsel %vm903, %v887, %v902
        %vm905 = vcmp.eq.f32.partialorder %v887, 0.0
        %v906 = vand.u32 %v887, 2147483648
        %v907 = vsel %vm905, %v906, %v904
        %v908 = vrsqrt.pop %v888
        %v909 = vmul.f32 %v888, %v908
        %vm910 = vcmp.eq.f32.partialorder %v888, inf
        %v911 = vsel %vm910, %v888, %v909
        %vm912 = vcmp.eq.f32.partialorder %v888, 0.0
        %v913 = vand.u32 %v888, 2147483648
        %v914 = vsel %vm912, %v913, %v911
        %v915 = vrsqrt.pop %v889
        %v916 = vmul.f32 %v889, %v915
        %vm917 = vcmp.eq.f32.partialorder %v889, inf
        %v918 = vsel %vm917, %v889, %v916
        %vm919 = vcmp.eq.f32.partialorder %v889, 0.0
        %v920 = vand.u32 %v889, 2147483648
        %v921 = vsel %vm919, %v920, %v918
        %v922 = vrsqrt.pop %v890
        %v923 = vmul.f32 %v890, %v922
        %vm924 = vcmp.eq.f32.partialorder %v890, inf
        %v925 = vsel %vm924, %v890, %v923
        %vm926 = vcmp.eq.f32.partialorder %v890, 0.0
        %v927 = vand.u32 %v890, 2147483648
        %v928 = vsel %vm926, %v927, %v925
        %v929 = vrsqrt.pop %v891
        %v930 = vmul.f32 %v891, %v929
        %vm931 = vcmp.eq.f32.partialorder %v891, inf
        %v932 = vsel %vm931, %v891, %v930
        %vm933 = vcmp.eq.f32.partialorder %v891, 0.0
        %v934 = vand.u32 %v891, 2147483648
        %v935 = vsel %vm933, %v934, %v932
        %v936 = vrsqrt.pop %v892
        %v937 = vmul.f32 %v892, %v936
        %vm938 = vcmp.eq.f32.partialorder %v892, inf
        %v939 = vsel %vm938, %v892, %v937
        %vm940 = vcmp.eq.f32.partialorder %v892, 0.0
        %v941 = vand.u32 %v892, 2147483648
        %v942 = vsel %vm940, %v941, %v939
        %v943 = vrsqrt.pop %v893
        %v944 = vmul.f32 %v893, %v943
        %vm945 = vcmp.eq.f32.partialorder %v893, inf
        %v946 = vsel %vm945, %v893, %v944
        %vm947 = vcmp.eq.f32.partialorder %v893, 0.0
        %v948 = vand.u32 %v893, 2147483648
        %v949 = vsel %vm947, %v948, %v946
        %v950 = vld [vmem:[%s4] sm:$0xff]
        %v951 = vld [vmem:[%s4 + $0x88] sm:$0xff]
        %v952 = vld [vmem:[%s4 + $0x110] sm:$0xff]
        %v953 = vld [vmem:[%s4 + $0x198] sm:$0xff]
        %v954 = vld [vmem:[%s6 + $0x1] sm:$0x1]
        %v956 = vlaneseq
        %v957 = vshrl.u32 %v956, 7
        %v958 = vsub.s32 0, %v957
        %v959 = vrot.slane %v954, %v958
        %vm961 = vcmask 261120
        %v963 = vsel %vm961, %v900, 0
        %v966 = vsel %vm961, %v907, 0
        %v969 = vsel %vm961, %v914, 0
        %v972 = vsel %vm961, %v921, 0
        %v975 = vsel %vm961, %v928, 0
        %v978 = vsel %vm961, %v935, 0
        %v981 = vsel %vm961, %v942, 0
        %v984 = vsel %vm961, %v949, 0
        %986 = vmatprep.subr.mxu0 0.0
        %987 = vmatpush1.msra.mxu0 %v950
        %988 = vmatprep.subr.mxu0 0.0
        %989 = vmatpush1.msra.mxu0 %v951
        %990 = vmatprep.subr.mxu0 0.0
        %991 = vmatpush1.msra.mxu0 %v952
        %992 = vmatprep.subr.mxu0 0.0
        %993 = vmatpush1.msra.mxu0 %v953
        %994 = vmatprep.subr.mxu0 0.0
        %995 = vmatpush1.msra.mxu0 0.0
        %996 = vmatprep.subr.mxu0 0.0
        %997 = vmatpush1.msra.mxu0 0.0
        %998 = vmatprep.subr.mxu0 0.0
        %999 = vmatpush1.msra.mxu0 0.0
        %1000 = vmatprep.subr.mxu0 0.0
        %1001 = vmatpush1.msra.mxu0 0.0
        %1002 = vmatprep.subr.mxu0 0.0
        %1003 = vmatpush1.msra.mxu0 0.0
        %1004 = vmatprep.subr.mxu0 0.0
        %1005 = vmatpush1.msra.mxu0 0.0
        %1006 = vmatprep.subr.mxu0 0.0
        %1007 = vmatpush1.msra.mxu0 0.0
        %1008 = vmatprep.subr.mxu0 0.0
        %1009 = vmatpush1.msra.mxu0 0.0
        %1010 = vmatprep.subr.mxu0 0.0
        %1011 = vmatpush1.msra.mxu0 0.0
        %1012 = vmatprep.subr.mxu0 0.0
        %1013 = vmatpush1.msra.mxu0 0.0
        %1014 = vmatprep.subr.mxu0 0.0
        %1015 = vmatpush1.msra.mxu0 0.0
        %1016 = vmatprep.subr.mxu0 0.0
        %1017 = vmatpush1.msra.mxu0 0.0
        %1018 = vmatprep.subr.mxu0 0.0
        %1019 = vmatpush1.msra.mxu0 0.0
        %1020 = vmatprep.subr.mxu0 0.0
        %1021 = vmatpush1.msra.mxu0 0.0
        %1022 = vmatprep.subr.mxu0 0.0
        %1023 = vmatpush1.msra.mxu0 0.0
        %1024 = vmatprep.subr.mxu0 0.0
        %1025 = vmatpush1.msra.mxu0 0.0
        %1026 = vmatprep.subr.mxu0 0.0
        %1027 = vmatpush1.msra.mxu0 0.0
        %1028 = vmatprep.subr.mxu0 0.0
        %1029 = vmatpush1.msra.mxu0 0.0
        %1030 = vmatprep.subr.mxu0 0.0
        %1031 = vmatpush1.msra.mxu0 0.0
        %1032 = vmatprep.subr.mxu0 0.0
        %1033 = vmatpush1.msra.mxu0 0.0
        %1034 = vmatprep.subr.mxu0 0.0
        %1035 = vmatpush1.msra.mxu0 0.0
        %1036 = vmatprep.subr.mxu0 0.0
        %1037 = vmatpush1.msra.mxu0 0.0
        %1038 = vmatprep.subr.mxu0 0.0
        %1039 = vmatpush1.msra.mxu0 0.0
        %1040 = vmatprep.subr.mxu0 0.0
        %1041 = vmatpush1.msra.mxu0 0.0
        %1042 = vmatprep.subr.mxu0 0.0
        %1043 = vmatpush1.msra.mxu0 0.0
        %1044 = vmatprep.subr.mxu0 0.0
        %1045 = vmatpush1.msra.mxu0 0.0
        %1046 = vmatprep.subr.mxu0 0.0
        %1047 = vmatpush1.msra.mxu0 0.0
        %1048 = vmatprep.subr.mxu0 0.0
        %1049 = vmatpush1.msra.mxu0 0.0
        %1050 = vmatprep.mubr.f32.mxu0 0.0
        %1051 = vmatmul.mubr.f32.gmra.mrb[0].mxu0 %v963
        %v1052 = vpop.f32.mrb[0].mxu0
        %v1053 = vadd.f32 %v959, %v1052
        %v1054 = vpop.f32.mrb[0].mxu0
        %1055 = vmatprep.mubr.f32.mxu0 0.0
        %1056 = vmatmul.mubr.f32.gmra.mrb[0].mxu0 %v966
        %v1057 = vpop.f32.mrb[0].mxu0
        %v1058 = vadd.f32 %v959, %v1057
        %v1059 = vpop.f32.mrb[0].mxu0
        %1060 = vmatprep.mubr.f32.mxu0 0.0
        %1061 = vmatmul.mubr.f32.gmra.mrb[0].mxu0 %v969
        %v1062 = vpop.f32.mrb[0].mxu0
        %v1063 = vadd.f32 %v959, %v1062
        %v1064 = vpop.f32.mrb[0].mxu0
        %1065 = vmatprep.mubr.f32.mxu0 0.0
        %1066 = vmatmul.mubr.f32.gmra.mrb[0].mxu0 %v972
        %v1067 = vpop.f32.mrb[0].mxu0
        %v1068 = vadd.f32 %v959, %v1067
        %v1069 = vpop.f32.mrb[0].mxu0
        %1070 = vmatprep.mubr.f32.mxu0 0.0
        %1071 = vmatmul.mubr.f32.gmra.mrb[0].mxu0 %v975
        %v1072 = vpop.f32.mrb[0].mxu0
        %v1073 = vadd.f32 %v959, %v1072
        %v1074 = vpop.f32.mrb[0].mxu0
        %1075 = vmatprep.mubr.f32.mxu0 0.0
        %1076 = vmatmul.mubr.f32.gmra.mrb[0].mxu0 %v978
        %v1077 = vpop.f32.mrb[0].mxu0
        %v1078 = vadd.f32 %v959, %v1077
        %v1079 = vpop.f32.mrb[0].mxu0
        %1080 = vmatprep.mubr.f32.mxu0 0.0
        %1081 = vmatmul.mubr.f32.gmra.mrb[0].mxu0 %v981
        %v1082 = vpop.f32.mrb[0].mxu0
        %v1083 = vadd.f32 %v959, %v1082
        %v1084 = vpop.f32.mrb[0].mxu0
        %1085 = vmatprep.mubr.f32.mxu0 0.0
        %1086 = vmatmul.mubr.f32.gmra.mrb[0].mxu0 %v984
        %v1087 = vpop.f32.mrb[0].mxu0
        %v1088 = vadd.f32 %v959, %v1087
        %v1089 = vpop.f32.mrb[0].mxu0
        %1090 = vdwg.mxu0
        %v1091 = vxor.u32 %v1053, 2147483648
        %v1092 = vxor.u32 %v1058, 2147483648
        %v1093 = vxor.u32 %v1063, 2147483648
        %v1094 = vxor.u32 %v1068, 2147483648
        %v1095 = vxor.u32 %v1073, 2147483648
        %v1096 = vxor.u32 %v1078, 2147483648
        %v1097 = vxor.u32 %v1083, 2147483648
        %v1098 = vxor.u32 %v1088, 2147483648
        %v1099 = vmul.f32 %v1091, 1.442695
        %v1100 = vpow.pop %v1099
        %v1101 = vmul.f32 %v1092, 1.442695
        %v1102 = vpow.pop %v1101
        %v1103 = vmul.f32 %v1093, 1.442695
        %v1104 = vpow.pop %v1103
        %v1105 = vmul.f32 %v1094, 1.442695
        %v1106 = vpow.pop %v1105
        %v1107 = vmul.f32 %v1095, 1.442695
        %v1108 = vpow.pop %v1107
        %v1109 = vmul.f32 %v1096, 1.442695
        %v1110 = vpow.pop %v1109
        %v1111 = vmul.f32 %v1097, 1.442695
        %v1112 = vpow.pop %v1111
        %v1113 = vmul.f32 %v1098, 1.442695
        %v1114 = vpow.pop %v1113
        %v1115 = vadd.f32 %v1100, 1.0
        %v1116 = vadd.f32 %v1102, 1.0
        %v1117 = vadd.f32 %v1104, 1.0
        %v1118 = vadd.f32 %v1106, 1.0
        %v1119 = vadd.f32 %v1108, 1.0
        %v1120 = vadd.f32 %v1110, 1.0
        %v1121 = vadd.f32 %v1112, 1.0
        %v1122 = vadd.f32 %v1114, 1.0
        %v1123 = vrcp.pop %v1115
        %v1124 = vmul.f32 1.0, %v1123
        %v1125 = vrcp.pop %v1116
        %v1126 = vmul.f32 1.0, %v1125
        %v1127 = vrcp.pop %v1117
        %v1128 = vmul.f32 1.0, %v1127
        %v1129 = vrcp.pop %v1118
        %v1130 = vmul.f32 1.0, %v1129
        %v1131 = vrcp.pop %v1119
        %v1132 = vmul.f32 1.0, %v1131
        %v1133 = vrcp.pop %v1120
        %v1134 = vmul.f32 1.0, %v1133
        %v1135 = vrcp.pop %v1121
        %v1136 = vmul.f32 1.0, %v1135
        %v1137 = vrcp.pop %v1122
        %v1138 = vmul.f32 1.0, %v1137
        %v1139 = vmul.f32 %v1053, %v1124
        %v1140 = vmul.f32 %v1058, %v1126
        %v1141 = vmul.f32 %v1063, %v1128
        %v1142 = vmul.f32 %v1068, %v1130
        %v1143 = vmul.f32 %v1073, %v1132
        %v1144 = vmul.f32 %v1078, %v1134
        %v1145 = vmul.f32 %v1083, %v1136
        %v1146 = vmul.f32 %v1088, %v1138
        %v1147 = vld [vmem:[%s4 + $0x8] sm:$0xff]
        %v1148 = vld [vmem:[%s4 + $0x90] sm:$0xff]
        %v1149 = vld [vmem:[%s4 + $0x118] sm:$0xff]
        %v1150 = vld [vmem:[%s4 + $0x1a0] sm:$0xff]
        %v1151 = vld [vmem:[%s6 + $0x2] sm:$0x1]
        %v1153 = vlaneseq
        %v1154 = vshrl.u32 %v1153, 7
        %v1155 = vsub.s32 0, %v1154
        %v1156 = vrot.slane %v1151, %v1155
        %v1159 = vsel %vm961, %v1139, 0
        %v1162 = vsel %vm961, %v1140, 0
        %v1165 = vsel %vm961, %v1141, 0
        %v1168 = vsel %vm961, %v1142, 0
        %v1171 = vsel %vm961, %v1143, 0
        %v1174 = vsel %vm961, %v1144, 0
        %v1177 = vsel %vm961, %v1145, 0
        %v1180 = vsel %vm961, %v1146, 0
        %1182 = vmatprep.subr.mxu0 0.0
        %1183 = vmatpush1.msra.mxu0 %v1147
        %1184 = vmatprep.subr.mxu0 0.0
        %1185 = vmatpush1.msra.mxu0 %v1148
        %1186 = vmatprep.subr.mxu0 0.0
        %1187 = vmatpush1.msra.mxu0 %v1149
        %1188 = vmatprep.subr.mxu0 0.0
        %1189 = vmatpush1.msra.mxu0 %v1150
        %1190 = vmatprep.subr.mxu0 0.0
        %1191 = vmatpush1.msra.mxu0 0.0
        %1192 = vmatprep.subr.mxu0 0.0
        %1193 = vmatpush1.msra.mxu0 0.0
        %1194 = vmatprep.subr.mxu0 0.0
        %1195 = vmatpush1.msra.mxu0 0.0
        %1196 = vmatprep.subr.mxu0 0.0
        %1197 = vmatpush1.msra.mxu0 0.0
        %1198 = vmatprep.subr.mxu0 0.0
        %1199 = vmatpush1.msra.mxu0 0.0
        %1200 = vmatprep.subr.mxu0 0.0
        %1201 = vmatpush1.msra.mxu0 0.0
        %1202 = vmatprep.subr.mxu0 0.0
        %1203 = vmatpush1.msra.mxu0 0.0
        %1204 = vmatprep.subr.mxu0 0.0
        %1205 = vmatpush1.msra.mxu0 0.0
        %1206 = vmatprep.subr.mxu0 0.0
        %1207 = vmatpush1.msra.mxu0 0.0
        %1208 = vmatprep.subr.mxu0 0.0
        %1209 = vmatpush1.msra.mxu0 0.0
        %1210 = vmatprep.subr.mxu0 0.0
        %1211 = vmatpush1.msra.mxu0 0.0
        %1212 = vmatprep.subr.mxu0 0.0
        %1213 = vmatpush1.msra.mxu0 0.0
        %1214 = vmatprep.subr.mxu0 0.0
        %1215 = vmatpush1.msra.mxu0 0.0
        %1216 = vmatprep.subr.mxu0 0.0
        %1217 = vmatpush1.msra.mxu0 0.0
        %1218 = vmatprep.subr.mxu0 0.0
        %1219 = vmatpush1.msra.mxu0 0.0
        %1220 = vmatprep.subr.mxu0 0.0
        %1221 = vmatpush1.msra.mxu0 0.0
        %1222 = vmatprep.subr.mxu0 0.0
        %1223 = vmatpush1.msra.mxu0 0.0
        %1224 = vmatprep.subr.mxu0 0.0
        %1225 = vmatpush1.msra.mxu0 0.0
        %1226 = vmatprep.subr.mxu0 0.0
        %1227 = vmatpush1.msra.mxu0 0.0
        %1228 = vmatprep.subr.mxu0 0.0
        %1229 = vmatpush1.msra.mxu0 0.0
        %1230 = vmatprep.subr.mxu0 0.0
        %1231 = vmatpush1.msra.mxu0 0.0
        %1232 = vmatprep.subr.mxu0 0.0
        %1233 = vmatpush1.msra.mxu0 0.0
        %1234 = vmatprep.subr.mxu0 0.0
        %1235 = vmatpush1.msra.mxu0 0.0
        %1236 = vmatprep.subr.mxu0 0.0
        %1237 = vmatpush1.msra.mxu0 0.0
        %1238 = vmatprep.subr.mxu0 0.0
        %1239 = vmatpush1.msra.mxu0 0.0
        %1240 = vmatprep.subr.mxu0 0.0
        %1241 = vmatpush1.msra.mxu0 0.0
        %1242 = vmatprep.subr.mxu0 0.0
        %1243 = vmatpush1.msra.mxu0 0.0
        %1244 = vmatprep.subr.mxu0 0.0
        %1245 = vmatpush1.msra.mxu0 0.0
        %1246 = vmatprep.mubr.f32.mxu0 0.0
        %1247 = vmatmul.mubr.f32.gmra.mrb[0].mxu0 %v1159
        %v1248 = vpop.f32.mrb[0].mxu0
        %v1249 = vadd.f32 %v1156, %v1248
        %v1250 = vpop.f32.mrb[0].mxu0
        %1251 = vmatprep.mubr.f32.mxu0 0.0
        %1252 = vmatmul.mubr.f32.gmra.mrb[0].mxu0 %v1162
        %v1253 = vpop.f32.mrb[0].mxu0
        %v1254 = vadd.f32 %v1156, %v1253
        %v1255 = vpop.f32.mrb[0].mxu0
        %1256 = vmatprep.mubr.f32.mxu0 0.0
        %1257 = vmatmul.mubr.f32.gmra.mrb[0].mxu0 %v1165
        %v1258 = vpop.f32.mrb[0].mxu0
        %v1259 = vadd.f32 %v1156, %v1258
        %v1260 = vpop.f32.mrb[0].mxu0
        %1261 = vmatprep.mubr.f32.mxu0 0.0
        %1262 = vmatmul.mubr.f32.gmra.mrb[0].mxu0 %v1168
        %v1263 = vpop.f32.mrb[0].mxu0
        %v1264 = vadd.f32 %v1156, %v1263
        %v1265 = vpop.f32.mrb[0].mxu0
        %1266 = vmatprep.mubr.f32.mxu0 0.0
        %1267 = vmatmul.mubr.f32.gmra.mrb[0].mxu0 %v1171
        %v1268 = vpop.f32.mrb[0].mxu0
        %v1269 = vadd.f32 %v1156, %v1268
        %v1270 = vpop.f32.mrb[0].mxu0
        %1271 = vmatprep.mubr.f32.mxu0 0.0
        %1272 = vmatmul.mubr.f32.gmra.mrb[0].mxu0 %v1174
        %v1273 = vpop.f32.mrb[0].mxu0
        %v1274 = vadd.f32 %v1156, %v1273
        %v1275 = vpop.f32.mrb[0].mxu0
        %1276 = vmatprep.mubr.f32.mxu0 0.0
        %1277 = vmatmul.mubr.f32.gmra.mrb[0].mxu0 %v1177
        %v1278 = vpop.f32.mrb[0].mxu0
        %v1279 = vadd.f32 %v1156, %v1278
        %v1280 = vpop.f32.mrb[0].mxu0
        %1281 = vmatprep.mubr.f32.mxu0 0.0
        %1282 = vmatmul.mubr.f32.gmra.mrb[0].mxu0 %v1180
        %v1283 = vpop.f32.mrb[0].mxu0
        %v1284 = vadd.f32 %v1156, %v1283
        %v1285 = vpop.f32.mrb[0].mxu0
        %1286 = vdwg.mxu0
        %v1287 = vxor.u32 %v1249, 2147483648
        %v1288 = vxor.u32 %v1254, 2147483648
        %v1289 = vxor.u32 %v1259, 2147483648
        %v1290 = vxor.u32 %v1264, 2147483648
        %v1291 = vxor.u32 %v1269, 2147483648
        %v1292 = vxor.u32 %v1274, 2147483648
        %v1293 = vxor.u32 %v1279, 2147483648
        %v1294 = vxor.u32 %v1284, 2147483648
        %v1295 = vmul.f32 %v1287, 1.442695
        %v1296 = vpow.pop %v1295
        %v1297 = vmul.f32 %v1288, 1.442695
        %v1298 = vpow.pop %v1297
        %v1299 = vmul.f32 %v1289, 1.442695
        %v1300 = vpow.pop %v1299
        %v1301 = vmul.f32 %v1290, 1.442695
        %v1302 = vpow.pop %v1301
        %v1303 = vmul.f32 %v1291, 1.442695
        %v1304 = vpow.pop %v1303
        %v1305 = vmul.f32 %v1292, 1.442695
        %v1306 = vpow.pop %v1305
        %v1307 = vmul.f32 %v1293, 1.442695
        %v1308 = vpow.pop %v1307
        %v1309 = vmul.f32 %v1294, 1.442695
        %v1310 = vpow.pop %v1309
        %v1311 = vadd.f32 %v1296, 1.0
        %v1312 = vadd.f32 %v1298, 1.0
        %v1313 = vadd.f32 %v1300, 1.0
        %v1314 = vadd.f32 %v1302, 1.0
        %v1315 = vadd.f32 %v1304, 1.0
        %v1316 = vadd.f32 %v1306, 1.0
        %v1317 = vadd.f32 %v1308, 1.0
        %v1318 = vadd.f32 %v1310, 1.0
        %v1319 = vrcp.pop %v1311
        %v1320 = vmul.f32 1.0, %v1319
        %v1321 = vrcp.pop %v1312
        %v1322 = vmul.f32 1.0, %v1321
        %v1323 = vrcp.pop %v1313
        %v1324 = vmul.f32 1.0, %v1323
        %v1325 = vrcp.pop %v1314
        %v1326 = vmul.f32 1.0, %v1325
        %v1327 = vrcp.pop %v1315
        %v1328 = vmul.f32 1.0, %v1327
        %v1329 = vrcp.pop %v1316
        %v1330 = vmul.f32 1.0, %v1329
        %v1331 = vrcp.pop %v1317
        %v1332 = vmul.f32 1.0, %v1331
        %v1333 = vrcp.pop %v1318
        %v1334 = vmul.f32 1.0, %v1333
        %v1335 = vmul.f32 %v1249, %v1320
        %v1336 = vmul.f32 %v1254, %v1322
        %v1337 = vmul.f32 %v1259, %v1324
        %v1338 = vmul.f32 %v1264, %v1326
        %v1339 = vmul.f32 %v1269, %v1328
        %v1340 = vmul.f32 %v1274, %v1330
        %v1341 = vmul.f32 %v1279, %v1332
        %v1342 = vmul.f32 %v1284, %v1334
        %v1343 = vld [vmem:[%s4 + $0x10] sm:$0xff]
        %v1344 = vld [vmem:[%s4 + $0x98] sm:$0xff]
        %v1345 = vld [vmem:[%s4 + $0x120] sm:$0xff]
        %v1346 = vld [vmem:[%s4 + $0x1a8] sm:$0xff]
        %v1348 = vsel %vm961, %v1335, 0
        %v1351 = vsel %vm961, %v1336, 0
        %v1354 = vsel %vm961, %v1337, 0
        %v1357 = vsel %vm961, %v1338, 0
        %v1360 = vsel %vm961, %v1339, 0
        %v1363 = vsel %vm961, %v1340, 0
        %v1366 = vsel %vm961, %v1341, 0
        %v1369 = vsel %vm961, %v1342, 0
        %1371 = vmatprep.subr.mxu0 0.0
        %1372 = vmatpush1.msra.mxu0 %v1343
        %1373 = vmatprep.subr.mxu0 0.0
        %1374 = vmatpush1.msra.mxu0 %v1344
        %1375 = vmatprep.subr.mxu0 0.0
        %1376 = vmatpush1.msra.mxu0 %v1345
        %1377 = vmatprep.subr.mxu0 0.0
        %1378 = vmatpush1.msra.mxu0 %v1346
        %1379 = vmatprep.subr.mxu0 0.0
        %1380 = vmatpush1.msra.mxu0 0.0
        %1381 = vmatprep.subr.mxu0 0.0
        %1382 = vmatpush1.msra.mxu0 0.0
        %1383 = vmatprep.subr.mxu0 0.0
        %1384 = vmatpush1.msra.mxu0 0.0
        %1385 = vmatprep.subr.mxu0 0.0
        %1386 = vmatpush1.msra.mxu0 0.0
        %1387 = vmatprep.subr.mxu0 0.0
        %1388 = vmatpush1.msra.mxu0 0.0
        %1389 = vmatprep.subr.mxu0 0.0
        %1390 = vmatpush1.msra.mxu0 0.0
        %1391 = vmatprep.subr.mxu0 0.0
        %1392 = vmatpush1.msra.mxu0 0.0
        %1393 = vmatprep.subr.mxu0 0.0
        %1394 = vmatpush1.msra.mxu0 0.0
        %1395 = vmatprep.subr.mxu0 0.0
        %1396 = vmatpush1.msra.mxu0 0.0
        %1397 = vmatprep.subr.mxu0 0.0
        %1398 = vmatpush1.msra.mxu0 0.0
        %1399 = vmatprep.subr.mxu0 0.0
        %1400 = vmatpush1.msra.mxu0 0.0
        %1401 = vmatprep.subr.mxu0 0.0
        %1402 = vmatpush1.msra.mxu0 0.0
        %1403 = vmatprep.subr.mxu0 0.0
        %1404 = vmatpush1.msra.mxu0 0.0
        %1405 = vmatprep.subr.mxu0 0.0
        %1406 = vmatpush1.msra.mxu0 0.0
        %1407 = vmatprep.subr.mxu0 0.0
        %1408 = vmatpush1.msra.mxu0 0.0
        %1409 = vmatprep.subr.mxu0 0.0
        %1410 = vmatpush1.msra.mxu0 0.0
        %1411 = vmatprep.subr.mxu0 0.0
        %1412 = vmatpush1.msra.mxu0 0.0
        %1413 = vmatprep.subr.mxu0 0.0
        %1414 = vmatpush1.msra.mxu0 0.0
        %1415 = vmatprep.subr.mxu0 0.0
        %1416 = vmatpush1.msra.mxu0 0.0
        %1417 = vmatprep.subr.mxu0 0.0
        %1418 = vmatpush1.msra.mxu0 0.0
        %1419 = vmatprep.subr.mxu0 0.0
        %1420 = vmatpush1.msra.mxu0 0.0
        %1421 = vmatprep.subr.mxu0 0.0
        %1422 = vmatpush1.msra.mxu0 0.0
        %1423 = vmatprep.subr.mxu0 0.0
        %1424 = vmatpush1.msra.mxu0 0.0
        %1425 = vmatprep.subr.mxu0 0.0
        %1426 = vmatpush1.msra.mxu0 0.0
        %1427 = vmatprep.subr.mxu0 0.0
        %1428 = vmatpush1.msra.mxu0 0.0
        %1429 = vmatprep.subr.mxu0 0.0
        %1430 = vmatpush1.msra.mxu0 0.0
        %1431 = vmatprep.subr.mxu0 0.0
        %1432 = vmatpush1.msra.mxu0 0.0
        %1433 = vmatprep.subr.mxu0 0.0
        %1434 = vmatpush1.msra.mxu0 0.0
        %1435 = vmatprep.mubr.f32.mxu0 0.0
        %1436 = vmatmul.mubr.f32.gmra.mrb[0].mxu0 %v1348
        %v1437 = vpop.f32.mrb[0].mxu0
        %v1438 = vadd.f32 0.0, %v1437
        %v1439 = vpop.f32.mrb[0].mxu0
        %1440 = vmatprep.mubr.f32.mxu0 0.0
        %1441 = vmatmul.mubr.f32.gmra.mrb[0].mxu0 %v1351
        %v1442 = vpop.f32.mrb[0].mxu0
        %v1443 = vadd.f32 0.0, %v1442
        %v1444 = vpop.f32.mrb[0].mxu0
        %1445 = vmatprep.mubr.f32.mxu0 0.0
        %1446 = vmatmul.mubr.f32.gmra.mrb[0].mxu0 %v1354
        %v1447 = vpop.f32.mrb[0].mxu0
        %v1448 = vadd.f32 0.0, %v1447
        %v1449 = vpop.f32.mrb[0].mxu0
        %1450 = vmatprep.mubr.f32.mxu0 0.0
        %1451 = vmatmul.mubr.f32.gmra.mrb[0].mxu0 %v1357
        %v1452 = vpop.f32.mrb[0].mxu0
        %v1453 = vadd.f32 0.0, %v1452
        %v1454 = vpop.f32.mrb[0].mxu0
        %1455 = vmatprep.mubr.f32.mxu0 0.0
        %1456 = vmatmul.mubr.f32.gmra.mrb[0].mxu0 %v1360
        %v1457 = vpop.f32.mrb[0].mxu0
        %v1458 = vadd.f32 0.0, %v1457
        %v1459 = vpop.f32.mrb[0].mxu0
        %1460 = vmatprep.mubr.f32.mxu0 0.0
        %1461 = vmatmul.mubr.f32.gmra.mrb[0].mxu0 %v1363
        %v1462 = vpop.f32.mrb[0].mxu0
        %v1463 = vadd.f32 0.0, %v1462
        %v1464 = vpop.f32.mrb[0].mxu0
        %1465 = vmatprep.mubr.f32.mxu0 0.0
        %1466 = vmatmul.mubr.f32.gmra.mrb[0].mxu0 %v1366
        %v1467 = vpop.f32.mrb[0].mxu0
        %v1468 = vadd.f32 0.0, %v1467
        %v1469 = vpop.f32.mrb[0].mxu0
        %1470 = vmatprep.mubr.f32.mxu0 0.0
        %1471 = vmatmul.mubr.f32.gmra.mrb[0].mxu0 %v1369
        %v1472 = vpop.f32.mrb[0].mxu0
        %v1473 = vadd.f32 0.0, %v1472
        %v1474 = vpop.f32.mrb[0].mxu0
        %1475 = vdwg.mxu0
        %v1476 = vld [vmem:[%s4 + $0x18] sm:$0xff]
        %v1477 = vld [vmem:[%s4 + $0xa0] sm:$0xff]
        %v1478 = vld [vmem:[%s4 + $0x128] sm:$0xff]
        %v1479 = vld [vmem:[%s4 + $0x1b0] sm:$0xff]
        %v1481 = vsel %vm961, %v534, 0
        %1483 = vmatprep.subr.mxu0 0.0
        %1484 = vmatpush1.msra.mxu0 %v1476
        %1485 = vmatprep.subr.mxu0 0.0
        %1486 = vmatpush1.msra.mxu0 %v1477
        %1487 = vmatprep.subr.mxu0 0.0
        %1488 = vmatpush1.msra.mxu0 %v1478
        %1489 = vmatprep.subr.mxu0 0.0
        %1490 = vmatpush1.msra.mxu0 %v1479
        %1491 = vmatprep.subr.mxu0 0.0
        %1492 = vmatpush1.msra.mxu0 0.0
        %1493 = vmatprep.subr.mxu0 0.0
        %1494 = vmatpush1.msra.mxu0 0.0
        %1495 = vmatprep.subr.mxu0 0.0
        %1496 = vmatpush1.msra.mxu0 0.0
        %1497 = vmatprep.subr.mxu0 0.0
        %1498 = vmatpush1.msra.mxu0 0.0
        %1499 = vmatprep.subr.mxu0 0.0
        %1500 = vmatpush1.msra.mxu0 0.0
        %1501 = vmatprep.subr.mxu0 0.0
        %1502 = vmatpush1.msra.mxu0 0.0
        %1503 = vmatprep.subr.mxu0 0.0
        %1504 = vmatpush1.msra.mxu0 0.0
        %1505 = vmatprep.subr.mxu0 0.0
        %1506 = vmatpush1.msra.mxu0 0.0
        %1507 = vmatprep.subr.mxu0 0.0
        %1508 = vmatpush1.msra.mxu0 0.0
        %1509 = vmatprep.subr.mxu0 0.0
        %1510 = vmatpush1.msra.mxu0 0.0
        %1511 = vmatprep.subr.mxu0 0.0
        %1512 = vmatpush1.msra.mxu0 0.0
        %1513 = vmatprep.subr.mxu0 0.0
        %1514 = vmatpush1.msra.mxu0 0.0
        %1515 = vmatprep.subr.mxu0 0.0
        %1516 = vmatpush1.msra.mxu0 0.0
        %1517 = vmatprep.subr.mxu0 0.0
        %1518 = vmatpush1.msra.mxu0 0.0
        %1519 = vmatprep.subr.mxu0 0.0
        %1520 = vmatpush1.msra.mxu0 0.0
        %1521 = vmatprep.subr.mxu0 0.0
        %1522 = vmatpush1.msra.mxu0 0.0
        %1523 = vmatprep.subr.mxu0 0.0
        %1524 = vmatpush1.msra.mxu0 0.0
        %1525 = vmatprep.subr.mxu0 0.0
        %1526 = vmatpush1.msra.mxu0 0.0
        %1527 = vmatprep.subr.mxu0 0.0
        %1528 = vmatpush1.msra.mxu0 0.0
        %1529 = vmatprep.subr.mxu0 0.0
        %1530 = vmatpush1.msra.mxu0 0.0
        %1531 = vmatprep.subr.mxu0 0.0
        %1532 = vmatpush1.msra.mxu0 0.0
        %1533 = vmatprep.subr.mxu0 0.0
        %1534 = vmatpush1.msra.mxu0 0.0
        %1535 = vmatprep.subr.mxu0 0.0
        %1536 = vmatpush1.msra.mxu0 0.0
        %1537 = vmatprep.subr.mxu0 0.0
        %1538 = vmatpush1.msra.mxu0 0.0
        %1539 = vmatprep.subr.mxu0 0.0
        %1540 = vmatpush1.msra.mxu0 0.0
        %1541 = vmatprep.subr.mxu0 0.0
        %1542 = vmatpush1.msra.mxu0 0.0
        %1543 = vmatprep.subr.mxu0 0.0
        %1544 = vmatpush1.msra.mxu0 0.0
        %1545 = vmatprep.subr.mxu0 0.0
        %1546 = vmatpush1.msra.mxu0 0.0
        %1547 = vmatprep.mubr.f32.mxu0 0.0
        %1548 = vmatmul.mubr.f32.gmra.mrb[0].mxu0 %v1481
        %v1549 = vpop.f32.mrb[0].mxu0
        %v1550 = vadd.f32 0.0, %v1549
        %v1551 = vpop.f32.mrb[0].mxu0
        %1552 = vdwg.mxu0
        %v1554 = vcombine.high %v1550, %v1550
        %v1556 = vunpack.c.l.s4 1966171168
        %v1557 = vunpack.c.0.s8 %v1556
        %v1558 = vlaneseq
        %v1559 = vshrl.u32 %v1558, 7
        %v1560 = vsub.s32 %v1557, %v1559
        %v1561 = vrot.slane %v1550, %v1560
        %v1563 = vunpack.c.l.s4 1966171168
        %v1564 = vunpack.c.0.s8 %v1563
        %v1565 = vlaneseq
        %v1566 = vshrl.u32 %v1565, 7
        %v1567 = vsub.s32 %v1564, %v1566
        %v1568 = vrot.slane %v1554, %v1567
        %v1569 = vcombine.high %v1561, %v1561
        %v1570 = vcombine.high %v1568, %v1568
        %v1572 = vunpack.c.l.s4 1966171168
        %v1573 = vunpack.c.0.s8 %v1572
        %v1574 = vlaneseq
        %v1575 = vshrl.u32 %v1574, 7
        %v1576 = vsub.s32 %v1573, %v1575
        %v1577 = vrot.slane %v1561, %v1576
        %v1579 = vunpack.c.l.s4 1966171168
        %v1580 = vunpack.c.0.s8 %v1579
        %v1581 = vlaneseq
        %v1582 = vshrl.u32 %v1581, 7
        %v1583 = vsub.s32 %v1580, %v1582
        %v1584 = vrot.slane %v1568, %v1583
        %v1586 = vunpack.c.l.s4 1966171168
        %v1587 = vunpack.c.0.s8 %v1586
        %v1588 = vlaneseq
        %v1589 = vshrl.u32 %v1588, 7
        %v1590 = vsub.s32 %v1587, %v1589
        %v1591 = vrot.slane %v1569, %v1590
        %v1593 = vunpack.c.l.s4 1966171168
        %v1594 = vunpack.c.0.s8 %v1593
        %v1595 = vlaneseq
        %v1596 = vshrl.u32 %v1595, 7
        %v1597 = vsub.s32 %v1594, %v1596
        %v1598 = vrot.slane %v1570, %v1597
        %v1599 = vcombine.high %v1577, %v1577
        %v1600 = vcombine.high %v1584, %v1584
        %v1601 = vcombine.high %v1591, %v1591
        %v1602 = vcombine.high %v1598, %v1598
        %v1603 = vlaneseq
        %v1604 = vshrl.u32 %v1603, 7
        %v1605 = vsub.s32 0, %v1604
        %v1606 = vrot.slane %v1577, %v1605
        %v1607 = vlaneseq
        %v1608 = vshrl.u32 %v1607, 7
        %v1609 = vsub.s32 0, %v1608
        %v1610 = vrot.slane %v1591, %v1609
        %v1611 = vlaneseq
        %v1612 = vshrl.u32 %v1611, 7
        %v1613 = vsub.s32 0, %v1612
        %v1614 = vrot.slane %v1599, %v1613
        %v1615 = vlaneseq
        %v1616 = vshrl.u32 %v1615, 7
        %v1617 = vsub.s32 0, %v1616
        %v1618 = vrot.slane %v1601, %v1617
        %v1619 = vlaneseq
        %v1620 = vshrl.u32 %v1619, 7
        %v1621 = vsub.s32 0, %v1620
        %v1622 = vrot.slane %v1584, %v1621
        %v1623 = vlaneseq
        %v1624 = vshrl.u32 %v1623, 7
        %v1625 = vsub.s32 0, %v1624
        %v1626 = vrot.slane %v1598, %v1625
        %v1627 = vlaneseq
        %v1628 = vshrl.u32 %v1627, 7
        %v1629 = vsub.s32 0, %v1628
        %v1630 = vrot.slane %v1600, %v1629
        %v1631 = vlaneseq
        %v1632 = vshrl.u32 %v1631, 7
        %v1633 = vsub.s32 0, %v1632
        %v1634 = vrot.slane %v1602, %v1633
        %1643 = vrot.lane.b32.xlu0 %v1550, 96
        %v1644 = vpop.permute.xlu0 %1643
        %v1646 = vadd.f32 %v1606, %v1644
        %v1647 = vadd.f32 %v1610, %v1644
        %v1648 = vadd.f32 %v1614, %v1644
        %v1649 = vadd.f32 %v1618, %v1644
        %v1650 = vadd.f32 %v1622, %v1644
        %v1651 = vadd.f32 %v1626, %v1644
        %v1652 = vadd.f32 %v1630, %v1644
        %v1653 = vadd.f32 %v1634, %v1644
        %v1654 = vadd.f32 %v1646, %v1438
        %v1655 = vadd.f32 %v1647, %v1443
        %v1656 = vadd.f32 %v1648, %v1448
        %v1657 = vadd.f32 %v1649, %v1453
        %v1658 = vadd.f32 %v1650, %v1458
        %v1659 = vadd.f32 %v1651, %v1463
        %v1660 = vadd.f32 %v1652, %v1468
        %v1661 = vadd.f32 %v1653, %v1473
        %v1662 = vld [vmem:[%s6 + $0x3] sm:$0x1]
        %v1664 = vlaneseq
        %v1665 = vshrl.u32 %v1664, 7
        %v1666 = vsub.s32 0, %v1665
        %v1667 = vrot.slane %v1662, %v1666
        %v1669 = vadd.f32 %v1654, %v1667
        %v1670 = vadd.f32 %v1655, %v1667
        %v1671 = vadd.f32 %v1656, %v1667
        %v1672 = vadd.f32 %v1657, %v1667
        %v1673 = vadd.f32 %v1658, %v1667
        %v1674 = vadd.f32 %v1659, %v1667
        %v1675 = vadd.f32 %v1660, %v1667
        %v1676 = vadd.f32 %v1661, %v1667
        %v1677 = vxor.u32 %v1669, 2147483648
        %v1678 = vxor.u32 %v1670, 2147483648
        %v1679 = vxor.u32 %v1671, 2147483648
        %v1680 = vxor.u32 %v1672, 2147483648
        %v1681 = vxor.u32 %v1673, 2147483648
        %v1682 = vxor.u32 %v1674, 2147483648
        %v1683 = vxor.u32 %v1675, 2147483648
        %v1684 = vxor.u32 %v1676, 2147483648
        %v1685 = vmul.f32 %v1677, 1.442695
        %v1686 = vpow.pop %v1685
        %v1687 = vmul.f32 %v1678, 1.442695
        %v1688 = vpow.pop %v1687
        %v1689 = vmul.f32 %v1679, 1.442695
        %v1690 = vpow.pop %v1689
        %v1691 = vmul.f32 %v1680, 1.442695
        %v1692 = vpow.pop %v1691
        %v1693 = vmul.f32 %v1681, 1.442695
        %v1694 = vpow.pop %v1693
        %v1695 = vmul.f32 %v1682, 1.442695
        %v1696 = vpow.pop %v1695
        %v1697 = vmul.f32 %v1683, 1.442695
        %v1698 = vpow.pop %v1697
        %v1699 = vmul.f32 %v1684, 1.442695
        %v1700 = vpow.pop %v1699
        %v1701 = vadd.f32 %v1686, 1.0
        %v1702 = vadd.f32 %v1688, 1.0
        %v1703 = vadd.f32 %v1690, 1.0
        %v1704 = vadd.f32 %v1692, 1.0
        %v1705 = vadd.f32 %v1694, 1.0
        %v1706 = vadd.f32 %v1696, 1.0
        %v1707 = vadd.f32 %v1698, 1.0
        %v1708 = vadd.f32 %v1700, 1.0
        %v1709 = vrcp.pop %v1701
        %v1710 = vmul.f32 1.0, %v1709
        %v1711 = vrcp.pop %v1702
        %v1712 = vmul.f32 1.0, %v1711
        %v1713 = vrcp.pop %v1703
        %v1714 = vmul.f32 1.0, %v1713
        %v1715 = vrcp.pop %v1704
        %v1716 = vmul.f32 1.0, %v1715
        %v1717 = vrcp.pop %v1705
        %v1718 = vmul.f32 1.0, %v1717
        %v1719 = vrcp.pop %v1706
        %v1720 = vmul.f32 1.0, %v1719
        %v1721 = vrcp.pop %v1707
        %v1722 = vmul.f32 1.0, %v1721
        %v1723 = vrcp.pop %v1708
        %v1724 = vmul.f32 1.0, %v1723
        %v1725 = vmul.f32 %v1669, %v1710
        %v1726 = vmul.f32 %v1670, %v1712
        %v1727 = vmul.f32 %v1671, %v1714
        %v1728 = vmul.f32 %v1672, %v1716
        %v1729 = vmul.f32 %v1673, %v1718
        %v1730 = vmul.f32 %v1674, %v1720
        %v1731 = vmul.f32 %v1675, %v1722
        %v1732 = vmul.f32 %v1676, %v1724
        %v1733 = vld [vmem:[%s4 + $0x20] sm:$0xff]
        %v1734 = vld [vmem:[%s4 + $0xa8] sm:$0xff]
        %v1735 = vld [vmem:[%s4 + $0x130] sm:$0xff]
        %v1736 = vld [vmem:[%s4 + $0x1b8] sm:$0xff]
        %v1737 = vld [vmem:[%s6 + $0x4] sm:$0x1]
        %v1739 = vlaneseq
        %v1740 = vshrl.u32 %v1739, 7
        %v1741 = vsub.s32 0, %v1740
        %v1742 = vrot.slane %v1737, %v1741
        %v1745 = vsel %vm961, %v1725, 0
        %v1748 = vsel %vm961, %v1726, 0
        %v1751 = vsel %vm961, %v1727, 0
        %v1754 = vsel %vm961, %v1728, 0
        %v1757 = vsel %vm961, %v1729, 0
        %v1760 = vsel %vm961, %v1730, 0
        %v1763 = vsel %vm961, %v1731, 0
        %v1766 = vsel %vm961, %v1732, 0
        %1768 = vmatprep.subr.mxu0 0.0
        %1769 = vmatpush1.msra.mxu0 %v1733
        %1770 = vmatprep.subr.mxu0 0.0
        %1771 = vmatpush1.msra.mxu0 %v1734
        %1772 = vmatprep.subr.mxu0 0.0
        %1773 = vmatpush1.msra.mxu0 %v1735
        %1774 = vmatprep.subr.mxu0 0.0
        %1775 = vmatpush1.msra.mxu0 %v1736
        %1776 = vmatprep.subr.mxu0 0.0
        %1777 = vmatpush1.msra.mxu0 0.0
        %1778 = vmatprep.subr.mxu0 0.0
        %1779 = vmatpush1.msra.mxu0 0.0
        %1780 = vmatprep.subr.mxu0 0.0
        %1781 = vmatpush1.msra.mxu0 0.0
        %1782 = vmatprep.subr.mxu0 0.0
        %1783 = vmatpush1.msra.mxu0 0.0
        %1784 = vmatprep.subr.mxu0 0.0
        %1785 = vmatpush1.msra.mxu0 0.0
        %1786 = vmatprep.subr.mxu0 0.0
        %1787 = vmatpush1.msra.mxu0 0.0
        %1788 = vmatprep.subr.mxu0 0.0
        %1789 = vmatpush1.msra.mxu0 0.0
        %1790 = vmatprep.subr.mxu0 0.0
        %1791 = vmatpush1.msra.mxu0 0.0
        %1792 = vmatprep.subr.mxu0 0.0
        %1793 = vmatpush1.msra.mxu0 0.0
        %1794 = vmatprep.subr.mxu0 0.0
        %1795 = vmatpush1.msra.mxu0 0.0
        %1796 = vmatprep.subr.mxu0 0.0
        %1797 = vmatpush1.msra.mxu0 0.0
        %1798 = vmatprep.subr.mxu0 0.0
        %1799 = vmatpush1.msra.mxu0 0.0
        %1800 = vmatprep.subr.mxu0 0.0
        %1801 = vmatpush1.msra.mxu0 0.0
        %1802 = vmatprep.subr.mxu0 0.0
        %1803 = vmatpush1.msra.mxu0 0.0
        %1804 = vmatprep.subr.mxu0 0.0
        %1805 = vmatpush1.msra.mxu0 0.0
        %1806 = vmatprep.subr.mxu0 0.0
        %1807 = vmatpush1.msra.mxu0 0.0
        %1808 = vmatprep.subr.mxu0 0.0
        %1809 = vmatpush1.msra.mxu0 0.0
        %1810 = vmatprep.subr.mxu0 0.0
        %1811 = vmatpush1.msra.mxu0 0.0
        %1812 = vmatprep.subr.mxu0 0.0
        %1813 = vmatpush1.msra.mxu0 0.0
        %1814 = vmatprep.subr.mxu0 0.0
        %1815 = vmatpush1.msra.mxu0 0.0
        %1816 = vmatprep.subr.mxu0 0.0
        %1817 = vmatpush1.msra.mxu0 0.0
        %1818 = vmatprep.subr.mxu0 0.0
        %1819 = vmatpush1.msra.mxu0 0.0
        %1820 = vmatprep.subr.mxu0 0.0
        %1821 = vmatpush1.msra.mxu0 0.0
        %1822 = vmatprep.subr.mxu0 0.0
        %1823 = vmatpush1.msra.mxu0 0.0
        %1824 = vmatprep.subr.mxu0 0.0
        %1825 = vmatpush1.msra.mxu0 0.0
        %1826 = vmatprep.subr.mxu0 0.0
        %1827 = vmatpush1.msra.mxu0 0.0
        %1828 = vmatprep.subr.mxu0 0.0
        %1829 = vmatpush1.msra.mxu0 0.0
        %1830 = vmatprep.subr.mxu0 0.0
        %1831 = vmatpush1.msra.mxu0 0.0
        %1832 = vmatprep.mubr.f32.mxu0 0.0
        %1833 = vmatmul.mubr.f32.gmra.mrb[0].mxu0 %v1745
        %v1834 = vpop.f32.mrb[0].mxu0
        %v1835 = vadd.f32 %v1742, %v1834
        %v1836 = vpop.f32.mrb[0].mxu0
        %1837 = vmatprep.mubr.f32.mxu0 0.0
        %1838 = vmatmul.mubr.f32.gmra.mrb[0].mxu0 %v1748
        %v1839 = vpop.f32.mrb[0].mxu0
        %v1840 = vadd.f32 %v1742, %v1839
        %v1841 = vpop.f32.mrb[0].mxu0
        %1842 = vmatprep.mubr.f32.mxu0 0.0
        %1843 = vmatmul.mubr.f32.gmra.mrb[0].mxu0 %v1751
        %v1844 = vpop.f32.mrb[0].mxu0
        %v1845 = vadd.f32 %v1742, %v1844
        %v1846 = vpop.f32.mrb[0].mxu0
        %1847 = vmatprep.mubr.f32.mxu0 0.0
        %1848 = vmatmul.mubr.f32.gmra.mrb[0].mxu0 %v1754
        %v1849 = vpop.f32.mrb[0].mxu0
        %v1850 = vadd.f32 %v1742, %v1849
        %v1851 = vpop.f32.mrb[0].mxu0
        %1852 = vmatprep.mubr.f32.mxu0 0.0
        %1853 = vmatmul.mubr.f32.gmra.mrb[0].mxu0 %v1757
        %v1854 = vpop.f32.mrb[0].mxu0
        %v1855 = vadd.f32 %v1742, %v1854
        %v1856 = vpop.f32.mrb[0].mxu0
        %1857 = vmatprep.mubr.f32.mxu0 0.0
        %1858 = vmatmul.mubr.f32.gmra.mrb[0].mxu0 %v1760
        %v1859 = vpop.f32.mrb[0].mxu0
        %v1860 = vadd.f32 %v1742, %v1859
        %v1861 = vpop.f32.mrb[0].mxu0
        %1862 = vmatprep.mubr.f32.mxu0 0.0
        %1863 = vmatmul.mubr.f32.gmra.mrb[0].mxu0 %v1763
        %v1864 = vpop.f32.mrb[0].mxu0
        %v1865 = vadd.f32 %v1742, %v1864
        %v1866 = vpop.f32.mrb[0].mxu0
        %1867 = vmatprep.mubr.f32.mxu0 0.0
        %1868 = vmatmul.mubr.f32.gmra.mrb[0].mxu0 %v1766
        %v1869 = vpop.f32.mrb[0].mxu0
        %v1870 = vadd.f32 %v1742, %v1869
        %v1871 = vpop.f32.mrb[0].mxu0
        %1872 = vdwg.mxu0
        %v1873 = vxor.u32 %v1835, 2147483648
        %v1874 = vxor.u32 %v1840, 2147483648
        %v1875 = vxor.u32 %v1845, 2147483648
        %v1876 = vxor.u32 %v1850, 2147483648
        %v1877 = vxor.u32 %v1855, 2147483648
        %v1878 = vxor.u32 %v1860, 2147483648
        %v1879 = vxor.u32 %v1865, 2147483648
        %v1880 = vxor.u32 %v1870, 2147483648
        %v1881 = vmul.f32 %v1873, 1.442695
        %v1882 = vpow.pop %v1881
        %v1883 = vmul.f32 %v1874, 1.442695
        %v1884 = vpow.pop %v1883
        %v1885 = vmul.f32 %v1875, 1.442695
        %v1886 = vpow.pop %v1885
        %v1887 = vmul.f32 %v1876, 1.442695
        %v1888 = vpow.pop %v1887
        %v1889 = vmul.f32 %v1877, 1.442695
        %v1890 = vpow.pop %v1889
        %v1891 = vmul.f32 %v1878, 1.442695
        %v1892 = vpow.pop %v1891
        %v1893 = vmul.f32 %v1879, 1.442695
        %v1894 = vpow.pop %v1893
        %v1895 = vmul.f32 %v1880, 1.442695
        %v1896 = vpow.pop %v1895
        %v1897 = vadd.f32 %v1882, 1.0
        %v1898 = vadd.f32 %v1884, 1.0
        %v1899 = vadd.f32 %v1886, 1.0
        %v1900 = vadd.f32 %v1888, 1.0
        %v1901 = vadd.f32 %v1890, 1.0
        %v1902 = vadd.f32 %v1892, 1.0
        %v1903 = vadd.f32 %v1894, 1.0
        %v1904 = vadd.f32 %v1896, 1.0
        %v1905 = vrcp.pop %v1897
        %v1906 = vmul.f32 1.0, %v1905
        %v1907 = vrcp.pop %v1898
        %v1908 = vmul.f32 1.0, %v1907
        %v1909 = vrcp.pop %v1899
        %v1910 = vmul.f32 1.0, %v1909
        %v1911 = vrcp.pop %v1900
        %v1912 = vmul.f32 1.0, %v1911
        %v1913 = vrcp.pop %v1901
        %v1914 = vmul.f32 1.0, %v1913
        %v1915 = vrcp.pop %v1902
        %v1916 = vmul.f32 1.0, %v1915
        %v1917 = vrcp.pop %v1903
        %v1918 = vmul.f32 1.0, %v1917
        %v1919 = vrcp.pop %v1904
        %v1920 = vmul.f32 1.0, %v1919
        %v1921 = vmul.f32 %v1835, %v1906
        %v1922 = vmul.f32 %v1840, %v1908
        %v1923 = vmul.f32 %v1845, %v1910
        %v1924 = vmul.f32 %v1850, %v1912
        %v1925 = vmul.f32 %v1855, %v1914
        %v1926 = vmul.f32 %v1860, %v1916
        %v1927 = vmul.f32 %v1865, %v1918
        %v1928 = vmul.f32 %v1870, %v1920
        %v1929 = vmul.f32 %v1921, %v404
        %v1930 = vmul.f32 %v1922, %v411
        %v1931 = vmul.f32 %v1923, %v418
        %v1932 = vmul.f32 %v1924, %v425
        %v1933 = vmul.f32 %v1925, %v432
        %v1934 = vmul.f32 %v1926, %v439
        %v1935 = vmul.f32 %v1927, %v446
        %v1936 = vmul.f32 %v1928, %v453
        %v1937 = vsel %vm961, %v1929, 0.0
        %v1938 = vrot.slane %v1937, 4
        %v1939 = vadd.f32 %v1937, %v1938
        %v1940 = vrot.slane %v1939, 2
        %v1941 = vadd.f32 %v1939, %v1940
        %v1942 = vrot.slane %v1941, 1
        %v1943 = vadd.f32 %v1941, %v1942
        %v1944 = vsel %vm961, %v1930, 0.0
        %v1945 = vrot.slane %v1944, 4
        %v1946 = vadd.f32 %v1944, %v1945
        %v1947 = vrot.slane %v1946, 2
        %v1948 = vadd.f32 %v1946, %v1947
        %v1949 = vrot.slane %v1948, 1
        %v1950 = vadd.f32 %v1948, %v1949
        %v1951 = vsel %vm961, %v1931, 0.0
        %v1952 = vrot.slane %v1951, 4
        %v1953 = vadd.f32 %v1951, %v1952
        %v1954 = vrot.slane %v1953, 2
        %v1955 = vadd.f32 %v1953, %v1954
        %v1956 = vrot.slane %v1955, 1
        %v1957 = vadd.f32 %v1955, %v1956
        %v1958 = vsel %vm961, %v1932, 0.0
        %v1959 = vrot.slane %v1958, 4
        %v1960 = vadd.f32 %v1958, %v1959
        %v1961 = vrot.slane %v1960, 2
        %v1962 = vadd.f32 %v1960, %v1961
        %v1963 = vrot.slane %v1962, 1
        %v1964 = vadd.f32 %v1962, %v1963
        %v1965 = vsel %vm961, %v1933, 0.0
        %v1966 = vrot.slane %v1965, 4
        %v1967 = vadd.f32 %v1965, %v1966
        %v1968 = vrot.slane %v1967, 2
        %v1969 = vadd.f32 %v1967, %v1968
        %v1970 = vrot.slane %v1969, 1
        %v1971 = vadd.f32 %v1969, %v1970
        %v1972 = vsel %vm961, %v1934, 0.0
        %v1973 = vrot.slane %v1972, 4
        %v1974 = vadd.f32 %v1972, %v1973
        %v1975 = vrot.slane %v1974, 2
        %v1976 = vadd.f32 %v1974, %v1975
        %v1977 = vrot.slane %v1976, 1
        %v1978 = vadd.f32 %v1976, %v1977
        %v1979 = vsel %vm961, %v1935, 0.0
        %v1980 = vrot.slane %v1979, 4
        %v1981 = vadd.f32 %v1979, %v1980
        %v1982 = vrot.slane %v1981, 2
        %v1983 = vadd.f32 %v1981, %v1982
        %v1984 = vrot.slane %v1983, 1
        %v1985 = vadd.f32 %v1983, %v1984
        %v1986 = vsel %vm961, %v1936, 0.0
        %v1987 = vrot.slane %v1986, 4
        %v1988 = vadd.f32 %v1986, %v1987
        %v1989 = vrot.slane %v1988, 2
        %v1990 = vadd.f32 %v1988, %v1989
        %v1991 = vrot.slane %v1990, 1
        %v1992 = vadd.f32 %v1990, %v1991
        %v1993 = vld [vmem:[%s4 + $0x28] sm:$0xff]
        %v1994 = vld [vmem:[%s4 + $0xb0] sm:$0xff]
        %v1995 = vld [vmem:[%s4 + $0x138] sm:$0xff]
        %v1996 = vld [vmem:[%s4 + $0x1c0] sm:$0xff]
        %vm2005 = vcmask 1041409
        %v2006 = vsel %vm2005, %v1950, %v1943
        %vm2007 = vcmask 1042434
        %v2008 = vsel %vm2007, %v1957, %v2006
        %vm2009 = vcmask 1043459
        %v2010 = vsel %vm2009, %v1964, %v2008
        %vm2011 = vcmask 1044484
        %v2012 = vsel %vm2011, %v1971, %v2010
        %vm2013 = vcmask 1045509
        %v2014 = vsel %vm2013, %v1978, %v2012
        %vm2015 = vcmask 1046534
        %v2016 = vsel %vm2015, %v1985, %v2014
        %vm2017 = vcmask 1047559
        %v2018 = vsel %vm2017, %v1992, %v2016
        %v2019 = vsel %vm961, %v2018, 0
        %2021 = vmatprep.subr.mxu0 0.0
        %2022 = vmatpush1.msra.mxu0 %v1993
        %2023 = vmatprep.subr.mxu0 0.0
        %2024 = vmatpush1.msra.mxu0 %v1994
        %2025 = vmatprep.subr.mxu0 0.0
        %2026 = vmatpush1.msra.mxu0 %v1995
        %2027 = vmatprep.subr.mxu0 0.0
        %2028 = vmatpush1.msra.mxu0 %v1996
        %2029 = vmatprep.subr.mxu0 0.0
        %2030 = vmatpush1.msra.mxu0 0.0
        %2031 = vmatprep.subr.mxu0 0.0
        %2032 = vmatpush1.msra.mxu0 0.0
        %2033 = vmatprep.subr.mxu0 0.0
        %2034 = vmatpush1.msra.mxu0 0.0
        %2035 = vmatprep.subr.mxu0 0.0
        %2036 = vmatpush1.msra.mxu0 0.0
        %2037 = vmatprep.subr.mxu0 0.0
        %2038 = vmatpush1.msra.mxu0 0.0
        %2039 = vmatprep.subr.mxu0 0.0
        %2040 = vmatpush1.msra.mxu0 0.0
        %2041 = vmatprep.subr.mxu0 0.0
        %2042 = vmatpush1.msra.mxu0 0.0
        %2043 = vmatprep.subr.mxu0 0.0
        %2044 = vmatpush1.msra.mxu0 0.0
        %2045 = vmatprep.subr.mxu0 0.0
        %2046 = vmatpush1.msra.mxu0 0.0
        %2047 = vmatprep.subr.mxu0 0.0
        %2048 = vmatpush1.msra.mxu0 0.0
        %2049 = vmatprep.subr.mxu0 0.0
        %2050 = vmatpush1.msra.mxu0 0.0
        %2051 = vmatprep.subr.mxu0 0.0
        %2052 = vmatpush1.msra.mxu0 0.0
        %2053 = vmatprep.subr.mxu0 0.0
        %2054 = vmatpush1.msra.mxu0 0.0
        %2055 = vmatprep.subr.mxu0 0.0
        %2056 = vmatpush1.msra.mxu0 0.0
        %2057 = vmatprep.subr.mxu0 0.0
        %2058 = vmatpush1.msra.mxu0 0.0
        %2059 = vmatprep.subr.mxu0 0.0
        %2060 = vmatpush1.msra.mxu0 0.0
        %2061 = vmatprep.subr.mxu0 0.0
        %2062 = vmatpush1.msra.mxu0 0.0
        %2063 = vmatprep.subr.mxu0 0.0
        %2064 = vmatpush1.msra.mxu0 0.0
        %2065 = vmatprep.subr.mxu0 0.0
        %2066 = vmatpush1.msra.mxu0 0.0
        %2067 = vmatprep.subr.mxu0 0.0
        %2068 = vmatpush1.msra.mxu0 0.0
        %2069 = vmatprep.subr.mxu0 0.0
        %2070 = vmatpush1.msra.mxu0 0.0
        %2071 = vmatprep.subr.mxu0 0.0
        %2072 = vmatpush1.msra.mxu0 0.0
        %2073 = vmatprep.subr.mxu0 0.0
        %2074 = vmatpush1.msra.mxu0 0.0
        %2075 = vmatprep.subr.mxu0 0.0
        %2076 = vmatpush1.msra.mxu0 0.0
        %2077 = vmatprep.subr.mxu0 0.0
        %2078 = vmatpush1.msra.mxu0 0.0
        %2079 = vmatprep.subr.mxu0 0.0
        %2080 = vmatpush1.msra.mxu0 0.0
        %2081 = vmatprep.subr.mxu0 0.0
        %2082 = vmatpush1.msra.mxu0 0.0
        %2083 = vmatprep.subr.mxu0 0.0
        %2084 = vmatpush1.msra.mxu0 0.0
        %2085 = vmatprep.mubr.f32.mxu0 0.0
        %2086 = vmatmul.mubr.f32.gmra.mrb[0].mxu0 %v2019
        %v2087 = vpop.f32.mrb[0].mxu0
        %v2088 = vadd.f32 0.0, %v2087
        %v2089 = vpop.f32.mrb[0].mxu0
        %2090 = vdwg.mxu0
        %2092 = vrot.lane.b32.xlu0 %v2088, 64
        %v2093 = vpop.permute.xlu0 %2092
        %v2095 = vadd.f32 %v1550, %v2093
        %v2096 = vld [vmem:[%s6 + $0x5] sm:$0x1]
        %v2098 = vlaneseq
        %v2099 = vshrl.u32 %v2098, 7
        %v2100 = vsub.s32 0, %v2099
        %v2101 = vrot.slane %v2096, %v2100
        %2102 = vrot.lane.b32.xlu0 %v2101, 64
        %v2103 = vpop.permute.xlu0 %2102
        %v2105 = vadd.f32 %v2095, %v2103
        %v2106 = vxor.u32 %v2105, 2147483648
        %v2107 = vmul.f32 %v2106, 1.442695
        %v2108 = vpow.pop %v2107
        %v2109 = vadd.f32 %v2108, 1.0
        %v2110 = vrcp.pop %v2109
        %v2111 = vmul.f32 1.0, %v2110
        %v2112 = vmul.f32 %v2105, %v2111
        %v2113 = vld [vmem:[%s4 + $0x30] sm:$0xff]
        %v2114 = vld [vmem:[%s4 + $0xb8] sm:$0xff]
        %v2115 = vld [vmem:[%s4 + $0x140] sm:$0xff]
        %v2116 = vld [vmem:[%s4 + $0x1c8] sm:$0xff]
        %v2117 = vld [vmem:[%s6 + $0x6] sm:$0x1]
        %v2119 = vlaneseq
        %v2120 = vshrl.u32 %v2119, 7
        %v2121 = vsub.s32 0, %v2120
        %v2122 = vrot.slane %v2117, %v2121
        %2125 = vrot.lane.b32.xlu0 %v2112, 64
        %v2126 = vpop.permute.xlu0 %2125
        %v2127 = vsel %vm961, %v2126, 0
        %2129 = vmatprep.subr.mxu0 0.0
        %2130 = vmatpush1.msra.mxu0 %v2113
        %2131 = vmatprep.subr.mxu0 0.0
        %2132 = vmatpush1.msra.mxu0 %v2114
        %2133 = vmatprep.subr.mxu0 0.0
        %2134 = vmatpush1.msra.mxu0 %v2115
        %2135 = vmatprep.subr.mxu0 0.0
        %2136 = vmatpush1.msra.mxu0 %v2116
        %2137 = vmatprep.subr.mxu0 0.0
        %2138 = vmatpush1.msra.mxu0 0.0
        %2139 = vmatprep.subr.mxu0 0.0
        %2140 = vmatpush1.msra.mxu0 0.0
        %2141 = vmatprep.subr.mxu0 0.0
        %2142 = vmatpush1.msra.mxu0 0.0
        %2143 = vmatprep.subr.mxu0 0.0
        %2144 = vmatpush1.msra.mxu0 0.0
        %2145 = vmatprep.subr.mxu0 0.0
        %2146 = vmatpush1.msra.mxu0 0.0
        %2147 = vmatprep.subr.mxu0 0.0
        %2148 = vmatpush1.msra.mxu0 0.0
        %2149 = vmatprep.subr.mxu0 0.0
        %2150 = vmatpush1.msra.mxu0 0.0
        %2151 = vmatprep.subr.mxu0 0.0
        %2152 = vmatpush1.msra.mxu0 0.0
        %2153 = vmatprep.subr.mxu0 0.0
        %2154 = vmatpush1.msra.mxu0 0.0
        %2155 = vmatprep.subr.mxu0 0.0
        %2156 = vmatpush1.msra.mxu0 0.0
        %2157 = vmatprep.subr.mxu0 0.0
        %2158 = vmatpush1.msra.mxu0 0.0
        %2159 = vmatprep.subr.mxu0 0.0
        %2160 = vmatpush1.msra.mxu0 0.0
        %2161 = vmatprep.subr.mxu0 0.0
        %2162 = vmatpush1.msra.mxu0 0.0
        %2163 = vmatprep.subr.mxu0 0.0
        %2164 = vmatpush1.msra.mxu0 0.0
        %2165 = vmatprep.subr.mxu0 0.0
        %2166 = vmatpush1.msra.mxu0 0.0
        %2167 = vmatprep.subr.mxu0 0.0
        %2168 = vmatpush1.msra.mxu0 0.0
        %2169 = vmatprep.subr.mxu0 0.0
        %2170 = vmatpush1.msra.mxu0 0.0
        %2171 = vmatprep.subr.mxu0 0.0
        %2172 = vmatpush1.msra.mxu0 0.0
        %2173 = vmatprep.subr.mxu0 0.0
        %2174 = vmatpush1.msra.mxu0 0.0
        %2175 = vmatprep.subr.mxu0 0.0
        %2176 = vmatpush1.msra.mxu0 0.0
        %2177 = vmatprep.subr.mxu0 0.0
        %2178 = vmatpush1.msra.mxu0 0.0
        %2179 = vmatprep.subr.mxu0 0.0
        %2180 = vmatpush1.msra.mxu0 0.0
        %2181 = vmatprep.subr.mxu0 0.0
        %2182 = vmatpush1.msra.mxu0 0.0
        %2183 = vmatprep.subr.mxu0 0.0
        %2184 = vmatpush1.msra.mxu0 0.0
        %2185 = vmatprep.subr.mxu0 0.0
        %2186 = vmatpush1.msra.mxu0 0.0
        %2187 = vmatprep.subr.mxu0 0.0
        %2188 = vmatpush1.msra.mxu0 0.0
        %2189 = vmatprep.subr.mxu0 0.0
        %2190 = vmatpush1.msra.mxu0 0.0
        %2191 = vmatprep.subr.mxu0 0.0
        %2192 = vmatpush1.msra.mxu0 0.0
        %2193 = vmatprep.mubr.f32.mxu0 0.0
        %2194 = vmatmul.mubr.f32.gmra.mrb[0].mxu0 %v2127
        %v2195 = vpop.f32.mrb[0].mxu0
        %v2196 = vadd.f32 %v2122, %v2195
        %v2197 = vpop.f32.mrb[0].mxu0
        %2198 = vdwg.mxu0
        %v2199 = vxor.u32 %v2196, 2147483648
        %v2200 = vmul.f32 %v2199, 1.442695
        %v2201 = vpow.pop %v2200
        %v2202 = vadd.f32 %v2201, 1.0
        %v2203 = vrcp.pop %v2202
        %v2204 = vmul.f32 1.0, %v2203
        %v2205 = vmul.f32 %v2196, %v2204
        %v2206 = vld [vmem:[%s4 + $0x38] sm:$0xff]
        %v2207 = vld [vmem:[%s4 + $0xc0] sm:$0xff]
        %v2208 = vld [vmem:[%s4 + $0x148] sm:$0xff]
        %v2209 = vld [vmem:[%s4 + $0x1d0] sm:$0xff]
        %v2211 = vsel %vm961, %v2205, 0
        %2213 = vmatprep.subr.mxu0 0.0
        %2214 = vmatpush1.msra.mxu0 %v2206
        %2215 = vmatprep.subr.mxu0 0.0
        %2216 = vmatpush1.msra.mxu0 %v2207
        %2217 = vmatprep.subr.mxu0 0.0
        %2218 = vmatpush1.msra.mxu0 %v2208
        %2219 = vmatprep.subr.mxu0 0.0
        %2220 = vmatpush1.msra.mxu0 %v2209
        %2221 = vmatprep.subr.mxu0 0.0
        %2222 = vmatpush1.msra.mxu0 0.0
        %2223 = vmatprep.subr.mxu0 0.0
        %2224 = vmatpush1.msra.mxu0 0.0
        %2225 = vmatprep.subr.mxu0 0.0
        %2226 = vmatpush1.msra.mxu0 0.0
        %2227 = vmatprep.subr.mxu0 0.0
        %2228 = vmatpush1.msra.mxu0 0.0
        %2229 = vmatprep.subr.mxu0 0.0
        %2230 = vmatpush1.msra.mxu0 0.0
        %2231 = vmatprep.subr.mxu0 0.0
        %2232 = vmatpush1.msra.mxu0 0.0
        %2233 = vmatprep.subr.mxu0 0.0
        %2234 = vmatpush1.msra.mxu0 0.0
        %2235 = vmatprep.subr.mxu0 0.0
        %2236 = vmatpush1.msra.mxu0 0.0
        %2237 = vmatprep.subr.mxu0 0.0
        %2238 = vmatpush1.msra.mxu0 0.0
        %2239 = vmatprep.subr.mxu0 0.0
        %2240 = vmatpush1.msra.mxu0 0.0
        %2241 = vmatprep.subr.mxu0 0.0
        %2242 = vmatpush1.msra.mxu0 0.0
        %2243 = vmatprep.subr.mxu0 0.0
        %2244 = vmatpush1.msra.mxu0 0.0
        %2245 = vmatprep.subr.mxu0 0.0
        %2246 = vmatpush1.msra.mxu0 0.0
        %2247 = vmatprep.subr.mxu0 0.0
        %2248 = vmatpush1.msra.mxu0 0.0
        %2249 = vmatprep.subr.mxu0 0.0
        %2250 = vmatpush1.msra.mxu0 0.0
        %2251 = vmatprep.subr.mxu0 0.0
        %2252 = vmatpush1.msra.mxu0 0.0
        %2253 = vmatprep.subr.mxu0 0.0
        %2254 = vmatpush1.msra.mxu0 0.0
        %2255 = vmatprep.subr.mxu0 0.0
        %2256 = vmatpush1.msra.mxu0 0.0
        %2257 = vmatprep.subr.mxu0 0.0
        %2258 = vmatpush1.msra.mxu0 0.0
        %2259 = vmatprep.subr.mxu0 0.0
        %2260 = vmatpush1.msra.mxu0 0.0
        %2261 = vmatprep.subr.mxu0 0.0
        %2262 = vmatpush1.msra.mxu0 0.0
        %2263 = vmatprep.subr.mxu0 0.0
        %2264 = vmatpush1.msra.mxu0 0.0
        %2265 = vmatprep.subr.mxu0 0.0
        %2266 = vmatpush1.msra.mxu0 0.0
        %2267 = vmatprep.subr.mxu0 0.0
        %2268 = vmatpush1.msra.mxu0 0.0
        %2269 = vmatprep.subr.mxu0 0.0
        %2270 = vmatpush1.msra.mxu0 0.0
        %2271 = vmatprep.subr.mxu0 0.0
        %2272 = vmatpush1.msra.mxu0 0.0
        %2273 = vmatprep.subr.mxu0 0.0
        %2274 = vmatpush1.msra.mxu0 0.0
        %2275 = vmatprep.subr.mxu0 0.0
        %2276 = vmatpush1.msra.mxu0 0.0
        %2277 = vmatprep.mubr.f32.mxu0 0.0
        %2278 = vmatmul.mubr.f32.gmra.mrb[0].mxu0 %v2211
        %v2279 = vpop.f32.mrb[0].mxu0
        %v2280 = vadd.f32 0.0, %v2279
        %v2281 = vpop.f32.mrb[0].mxu0
        %2282 = vdwg.mxu0
        %v2284 = vcombine.high %v2280, %v2280
        %v2286 = vunpack.c.l.s4 1966171168
        %v2287 = vunpack.c.0.s8 %v2286
        %v2288 = vlaneseq
        %v2289 = vshrl.u32 %v2288, 7
        %v2290 = vsub.s32 %v2287, %v2289
        %v2291 = vrot.slane %v2280, %v2290
        %v2293 = vunpack.c.l.s4 1966171168
        %v2294 = vunpack.c.0.s8 %v2293
        %v2295 = vlaneseq
        %v2296 = vshrl.u32 %v2295, 7
        %v2297 = vsub.s32 %v2294, %v2296
        %v2298 = vrot.slane %v2284, %v2297
        %v2299 = vcombine.high %v2291, %v2291
        %v2300 = vcombine.high %v2298, %v2298
        %v2302 = vunpack.c.l.s4 1966171168
        %v2303 = vunpack.c.0.s8 %v2302
        %v2304 = vlaneseq
        %v2305 = vshrl.u32 %v2304, 7
        %v2306 = vsub.s32 %v2303, %v2305
        %v2307 = vrot.slane %v2291, %v2306
        %v2309 = vunpack.c.l.s4 1966171168
        %v2310 = vunpack.c.0.s8 %v2309
        %v2311 = vlaneseq
        %v2312 = vshrl.u32 %v2311, 7
        %v2313 = vsub.s32 %v2310, %v2312
        %v2314 = vrot.slane %v2298, %v2313
        %v2316 = vunpack.c.l.s4 1966171168
        %v2317 = vunpack.c.0.s8 %v2316
        %v2318 = vlaneseq
        %v2319 = vshrl.u32 %v2318, 7
        %v2320 = vsub.s32 %v2317, %v2319
        %v2321 = vrot.slane %v2299, %v2320
        %v2323 = vunpack.c.l.s4 1966171168
        %v2324 = vunpack.c.0.s8 %v2323
        %v2325 = vlaneseq
        %v2326 = vshrl.u32 %v2325, 7
        %v2327 = vsub.s32 %v2324, %v2326
        %v2328 = vrot.slane %v2300, %v2327
        %v2329 = vcombine.high %v2307, %v2307
        %v2330 = vcombine.high %v2314, %v2314
        %v2331 = vcombine.high %v2321, %v2321
        %v2332 = vcombine.high %v2328, %v2328
        %v2333 = vlaneseq
        %v2334 = vshrl.u32 %v2333, 7
        %v2335 = vsub.s32 0, %v2334
        %v2336 = vrot.slane %v2307, %v2335
        %v2337 = vlaneseq
        %v2338 = vshrl.u32 %v2337, 7
        %v2339 = vsub.s32 0, %v2338
        %v2340 = vrot.slane %v2321, %v2339
        %v2341 = vlaneseq
        %v2342 = vshrl.u32 %v2341, 7
        %v2343 = vsub.s32 0, %v2342
        %v2344 = vrot.slane %v2329, %v2343
        %v2345 = vlaneseq
        %v2346 = vshrl.u32 %v2345, 7
        %v2347 = vsub.s32 0, %v2346
        %v2348 = vrot.slane %v2331, %v2347
        %v2349 = vlaneseq
        %v2350 = vshrl.u32 %v2349, 7
        %v2351 = vsub.s32 0, %v2350
        %v2352 = vrot.slane %v2314, %v2351
        %v2353 = vlaneseq
        %v2354 = vshrl.u32 %v2353, 7
        %v2355 = vsub.s32 0, %v2354
        %v2356 = vrot.slane %v2328, %v2355
        %v2357 = vlaneseq
        %v2358 = vshrl.u32 %v2357, 7
        %v2359 = vsub.s32 0, %v2358
        %v2360 = vrot.slane %v2330, %v2359
        %v2361 = vlaneseq
        %v2362 = vshrl.u32 %v2361, 7
        %v2363 = vsub.s32 0, %v2362
        %v2364 = vrot.slane %v2332, %v2363
        %2373 = vrot.lane.b32.xlu0 %v2280, 96
        %v2374 = vpop.permute.xlu0 %2373
        %v2376 = vadd.f32 %v2336, %v2374
        %v2377 = vadd.f32 %v2340, %v2374
        %v2378 = vadd.f32 %v2344, %v2374
        %v2379 = vadd.f32 %v2348, %v2374
        %v2380 = vadd.f32 %v2352, %v2374
        %v2381 = vadd.f32 %v2356, %v2374
        %v2382 = vadd.f32 %v2360, %v2374
        %v2383 = vadd.f32 %v2364, %v2374
        %2392 = vrot.lane.b32.xlu0 %v1438, 96
        %v2393 = vpop.permute.xlu0 %2392
        %2394 = vrot.lane.b32.xlu0 %v1443, 96
        %v2395 = vpop.permute.xlu0 %2394
        %2396 = vrot.lane.b32.xlu0 %v1448, 96
        %v2397 = vpop.permute.xlu0 %2396
        %2398 = vrot.lane.b32.xlu0 %v1453, 96
        %v2399 = vpop.permute.xlu0 %2398
        %2400 = vrot.lane.b32.xlu0 %v1458, 96
        %v2401 = vpop.permute.xlu0 %2400
        %2402 = vrot.lane.b32.xlu0 %v1463, 96
        %v2403 = vpop.permute.xlu0 %2402
        %2404 = vrot.lane.b32.xlu0 %v1468, 96
        %v2405 = vpop.permute.xlu0 %2404
        %2406 = vrot.lane.b32.xlu0 %v1473, 96
        %v2407 = vpop.permute.xlu0 %2406
        %v2416 = vadd.f32 %v2376, %v2393
        %v2417 = vadd.f32 %v2377, %v2395
        %v2418 = vadd.f32 %v2378, %v2397
        %v2419 = vadd.f32 %v2379, %v2399
        %v2420 = vadd.f32 %v2380, %v2401
        %v2421 = vadd.f32 %v2381, %v2403
        %v2422 = vadd.f32 %v2382, %v2405
        %v2423 = vadd.f32 %v2383, %v2407
        %v2424 = vld [vmem:[%s6 + $0x7] sm:$0x1]
        %v2426 = vlaneseq
        %v2427 = vshrl.u32 %v2426, 7
        %v2428 = vsub.s32 0, %v2427
        %v2429 = vrot.slane %v2424, %v2428
        %v2431 = vadd.f32 %v2416, %v2429
        %v2432 = vadd.f32 %v2417, %v2429
        %v2433 = vadd.f32 %v2418, %v2429
        %v2434 = vadd.f32 %v2419, %v2429
        %v2435 = vadd.f32 %v2420, %v2429
        %v2436 = vadd.f32 %v2421, %v2429
        %v2437 = vadd.f32 %v2422, %v2429
        %v2438 = vadd.f32 %v2423, %v2429
        %v2439 = vxor.u32 %v2431, 2147483648
        %v2440 = vxor.u32 %v2432, 2147483648
        %v2441 = vxor.u32 %v2433, 2147483648
        %v2442 = vxor.u32 %v2434, 2147483648
        %v2443 = vxor.u32 %v2435, 2147483648
        %v2444 = vxor.u32 %v2436, 2147483648
        %v2445 = vxor.u32 %v2437, 2147483648
        %v2446 = vxor.u32 %v2438, 2147483648
        %v2447 = vmul.f32 %v2439, 1.442695
        %v2448 = vpow.pop %v2447
        %v2449 = vmul.f32 %v2440, 1.442695
        %v2450 = vpow.pop %v2449
        %v2451 = vmul.f32 %v2441, 1.442695
        %v2452 = vpow.pop %v2451
        %v2453 = vmul.f32 %v2442, 1.442695
        %v2454 = vpow.pop %v2453
        %v2455 = vmul.f32 %v2443, 1.442695
        %v2456 = vpow.pop %v2455
        %v2457 = vmul.f32 %v2444, 1.442695
        %v2458 = vpow.pop %v2457
        %v2459 = vmul.f32 %v2445, 1.442695
        %v2460 = vpow.pop %v2459
        %v2461 = vmul.f32 %v2446, 1.442695
        %v2462 = vpow.pop %v2461
        %v2463 = vadd.f32 %v2448, 1.0
        %v2464 = vadd.f32 %v2450, 1.0
        %v2465 = vadd.f32 %v2452, 1.0
        %v2466 = vadd.f32 %v2454, 1.0
        %v2467 = vadd.f32 %v2456, 1.0
        %v2468 = vadd.f32 %v2458, 1.0
        %v2469 = vadd.f32 %v2460, 1.0
        %v2470 = vadd.f32 %v2462, 1.0
        %v2471 = vrcp.pop %v2463
        %v2472 = vmul.f32 1.0, %v2471
        %v2473 = vrcp.pop %v2464
        %v2474 = vmul.f32 1.0, %v2473
        %v2475 = vrcp.pop %v2465
        %v2476 = vmul.f32 1.0, %v2475
        %v2477 = vrcp.pop %v2466
        %v2478 = vmul.f32 1.0, %v2477
        %v2479 = vrcp.pop %v2467
        %v2480 = vmul.f32 1.0, %v2479
        %v2481 = vrcp.pop %v2468
        %v2482 = vmul.f32 1.0, %v2481
        %v2483 = vrcp.pop %v2469
        %v2484 = vmul.f32 1.0, %v2483
        %v2485 = vrcp.pop %v2470
        %v2486 = vmul.f32 1.0, %v2485
        %v2487 = vmul.f32 %v2431, %v2472
        %v2488 = vmul.f32 %v2432, %v2474
        %v2489 = vmul.f32 %v2433, %v2476
        %v2490 = vmul.f32 %v2434, %v2478
        %v2491 = vmul.f32 %v2435, %v2480
        %v2492 = vmul.f32 %v2436, %v2482
        %v2493 = vmul.f32 %v2437, %v2484
        %v2494 = vmul.f32 %v2438, %v2486
        %v2495 = vld [vmem:[%s4 + $0x40] sm:$0xff]
        %v2496 = vld [vmem:[%s4 + $0xc8] sm:$0xff]
        %v2497 = vld [vmem:[%s4 + $0x150] sm:$0xff]
        %v2498 = vld [vmem:[%s4 + $0x1d8] sm:$0xff]
        %v2499 = vld [vmem:[%s6 + $0x8] sm:$0x1]
        %v2501 = vlaneseq
        %v2502 = vshrl.u32 %v2501, 7
        %v2503 = vsub.s32 0, %v2502
        %v2504 = vrot.slane %v2499, %v2503
        %v2507 = vsel %vm961, %v2487, 0
        %v2510 = vsel %vm961, %v2488, 0
        %v2513 = vsel %vm961, %v2489, 0
        %v2516 = vsel %vm961, %v2490, 0
        %v2519 = vsel %vm961, %v2491, 0
        %v2522 = vsel %vm961, %v2492, 0
        %v2525 = vsel %vm961, %v2493, 0
        %v2528 = vsel %vm961, %v2494, 0
        %2530 = vmatprep.subr.mxu0 0.0
        %2531 = vmatpush1.msra.mxu0 %v2495
        %2532 = vmatprep.subr.mxu0 0.0
        %2533 = vmatpush1.msra.mxu0 %v2496
        %2534 = vmatprep.subr.mxu0 0.0
        %2535 = vmatpush1.msra.mxu0 %v2497
        %2536 = vmatprep.subr.mxu0 0.0
        %2537 = vmatpush1.msra.mxu0 %v2498
        %2538 = vmatprep.subr.mxu0 0.0
        %2539 = vmatpush1.msra.mxu0 0.0
        %2540 = vmatprep.subr.mxu0 0.0
        %2541 = vmatpush1.msra.mxu0 0.0
        %2542 = vmatprep.subr.mxu0 0.0
        %2543 = vmatpush1.msra.mxu0 0.0
        %2544 = vmatprep.subr.mxu0 0.0
        %2545 = vmatpush1.msra.mxu0 0.0
        %2546 = vmatprep.subr.mxu0 0.0
        %2547 = vmatpush1.msra.mxu0 0.0
        %2548 = vmatprep.subr.mxu0 0.0
        %2549 = vmatpush1.msra.mxu0 0.0
        %2550 = vmatprep.subr.mxu0 0.0
        %2551 = vmatpush1.msra.mxu0 0.0
        %2552 = vmatprep.subr.mxu0 0.0
        %2553 = vmatpush1.msra.mxu0 0.0
        %2554 = vmatprep.subr.mxu0 0.0
        %2555 = vmatpush1.msra.mxu0 0.0
        %2556 = vmatprep.subr.mxu0 0.0
        %2557 = vmatpush1.msra.mxu0 0.0
        %2558 = vmatprep.subr.mxu0 0.0
        %2559 = vmatpush1.msra.mxu0 0.0
        %2560 = vmatprep.subr.mxu0 0.0
        %2561 = vmatpush1.msra.mxu0 0.0
        %2562 = vmatprep.subr.mxu0 0.0
        %2563 = vmatpush1.msra.mxu0 0.0
        %2564 = vmatprep.subr.mxu0 0.0
        %2565 = vmatpush1.msra.mxu0 0.0
        %2566 = vmatprep.subr.mxu0 0.0
        %2567 = vmatpush1.msra.mxu0 0.0
        %2568 = vmatprep.subr.mxu0 0.0
        %2569 = vmatpush1.msra.mxu0 0.0
        %2570 = vmatprep.subr.mxu0 0.0
        %2571 = vmatpush1.msra.mxu0 0.0
        %2572 = vmatprep.subr.mxu0 0.0
        %2573 = vmatpush1.msra.mxu0 0.0
        %2574 = vmatprep.subr.mxu0 0.0
        %2575 = vmatpush1.msra.mxu0 0.0
        %2576 = vmatprep.subr.mxu0 0.0
        %2577 = vmatpush1.msra.mxu0 0.0
        %2578 = vmatprep.subr.mxu0 0.0
        %2579 = vmatpush1.msra.mxu0 0.0
        %2580 = vmatprep.subr.mxu0 0.0
        %2581 = vmatpush1.msra.mxu0 0.0
        %2582 = vmatprep.subr.mxu0 0.0
        %2583 = vmatpush1.msra.mxu0 0.0
        %2584 = vmatprep.subr.mxu0 0.0
        %2585 = vmatpush1.msra.mxu0 0.0
        %2586 = vmatprep.subr.mxu0 0.0
        %2587 = vmatpush1.msra.mxu0 0.0
        %2588 = vmatprep.subr.mxu0 0.0
        %2589 = vmatpush1.msra.mxu0 0.0
        %2590 = vmatprep.subr.mxu0 0.0
        %2591 = vmatpush1.msra.mxu0 0.0
        %2592 = vmatprep.subr.mxu0 0.0
        %2593 = vmatpush1.msra.mxu0 0.0
        %2594 = vmatprep.mubr.f32.mxu0 0.0
        %2595 = vmatmul.mubr.f32.gmra.mrb[0].mxu0 %v2507
        %v2596 = vpop.f32.mrb[0].mxu0
        %v2597 = vadd.f32 %v2504, %v2596
        %v2598 = vpop.f32.mrb[0].mxu0
        %2599 = vmatprep.mubr.f32.mxu0 0.0
        %2600 = vmatmul.mubr.f32.gmra.mrb[0].mxu0 %v2510
        %v2601 = vpop.f32.mrb[0].mxu0
        %v2602 = vadd.f32 %v2504, %v2601
        %v2603 = vpop.f32.mrb[0].mxu0
        %2604 = vmatprep.mubr.f32.mxu0 0.0
        %2605 = vmatmul.mubr.f32.gmra.mrb[0].mxu0 %v2513
        %v2606 = vpop.f32.mrb[0].mxu0
        %v2607 = vadd.f32 %v2504, %v2606
        %v2608 = vpop.f32.mrb[0].mxu0
        %2609 = vmatprep.mubr.f32.mxu0 0.0
        %2610 = vmatmul.mubr.f32.gmra.mrb[0].mxu0 %v2516
        %v2611 = vpop.f32.mrb[0].mxu0
        %v2612 = vadd.f32 %v2504, %v2611
        %v2613 = vpop.f32.mrb[0].mxu0
        %2614 = vmatprep.mubr.f32.mxu0 0.0
        %2615 = vmatmul.mubr.f32.gmra.mrb[0].mxu0 %v2519
        %v2616 = vpop.f32.mrb[0].mxu0
        %v2617 = vadd.f32 %v2504, %v2616
        %v2618 = vpop.f32.mrb[0].mxu0
        %2619 = vmatprep.mubr.f32.mxu0 0.0
        %2620 = vmatmul.mubr.f32.gmra.mrb[0].mxu0 %v2522
        %v2621 = vpop.f32.mrb[0].mxu0
        %v2622 = vadd.f32 %v2504, %v2621
        %v2623 = vpop.f32.mrb[0].mxu0
        %2624 = vmatprep.mubr.f32.mxu0 0.0
        %2625 = vmatmul.mubr.f32.gmra.mrb[0].mxu0 %v2525
        %v2626 = vpop.f32.mrb[0].mxu0
        %v2627 = vadd.f32 %v2504, %v2626
        %v2628 = vpop.f32.mrb[0].mxu0
        %2629 = vmatprep.mubr.f32.mxu0 0.0
        %2630 = vmatmul.mubr.f32.gmra.mrb[0].mxu0 %v2528
        %v2631 = vpop.f32.mrb[0].mxu0
        %v2632 = vadd.f32 %v2504, %v2631
        %v2633 = vpop.f32.mrb[0].mxu0
        %2634 = vdwg.mxu0
        %v2635 = vxor.u32 %v2597, 2147483648
        %v2636 = vxor.u32 %v2602, 2147483648
        %v2637 = vxor.u32 %v2607, 2147483648
        %v2638 = vxor.u32 %v2612, 2147483648
        %v2639 = vxor.u32 %v2617, 2147483648
        %v2640 = vxor.u32 %v2622, 2147483648
        %v2641 = vxor.u32 %v2627, 2147483648
        %v2642 = vxor.u32 %v2632, 2147483648
        %v2643 = vmul.f32 %v2635, 1.442695
        %v2644 = vpow.pop %v2643
        %v2645 = vmul.f32 %v2636, 1.442695
        %v2646 = vpow.pop %v2645
        %v2647 = vmul.f32 %v2637, 1.442695
        %v2648 = vpow.pop %v2647
        %v2649 = vmul.f32 %v2638, 1.442695
        %v2650 = vpow.pop %v2649
        %v2651 = vmul.f32 %v2639, 1.442695
        %v2652 = vpow.pop %v2651
        %v2653 = vmul.f32 %v2640, 1.442695
        %v2654 = vpow.pop %v2653
        %v2655 = vmul.f32 %v2641, 1.442695
        %v2656 = vpow.pop %v2655
        %v2657 = vmul.f32 %v2642, 1.442695
        %v2658 = vpow.pop %v2657
        %v2659 = vadd.f32 %v2644, 1.0
        %v2660 = vadd.f32 %v2646, 1.0
        %v2661 = vadd.f32 %v2648, 1.0
        %v2662 = vadd.f32 %v2650, 1.0
        %v2663 = vadd.f32 %v2652, 1.0
        %v2664 = vadd.f32 %v2654, 1.0
        %v2665 = vadd.f32 %v2656, 1.0
        %v2666 = vadd.f32 %v2658, 1.0
        %v2667 = vrcp.pop %v2659
        %v2668 = vmul.f32 1.0, %v2667
        %v2669 = vrcp.pop %v2660
        %v2670 = vmul.f32 1.0, %v2669
        %v2671 = vrcp.pop %v2661
        %v2672 = vmul.f32 1.0, %v2671
        %v2673 = vrcp.pop %v2662
        %v2674 = vmul.f32 1.0, %v2673
        %v2675 = vrcp.pop %v2663
        %v2676 = vmul.f32 1.0, %v2675
        %v2677 = vrcp.pop %v2664
        %v2678 = vmul.f32 1.0, %v2677
        %v2679 = vrcp.pop %v2665
        %v2680 = vmul.f32 1.0, %v2679
        %v2681 = vrcp.pop %v2666
        %v2682 = vmul.f32 1.0, %v2681
        %v2683 = vmul.f32 %v2597, %v2668
        %v2684 = vmul.f32 %v2602, %v2670
        %v2685 = vmul.f32 %v2607, %v2672
        %v2686 = vmul.f32 %v2612, %v2674
        %v2687 = vmul.f32 %v2617, %v2676
        %v2688 = vmul.f32 %v2622, %v2678
        %v2689 = vmul.f32 %v2627, %v2680
        %v2690 = vmul.f32 %v2632, %v2682
        %2699 = vrot.lane.b32.xlu0 %v2683, 127
        %v2700 = vpop.permute.xlu0 %2699
        %2701 = vrot.lane.b32.xlu0 %v2684, 127
        %v2702 = vpop.permute.xlu0 %2701
        %2703 = vrot.lane.b32.xlu0 %v2685, 127
        %v2704 = vpop.permute.xlu0 %2703
        %2705 = vrot.lane.b32.xlu0 %v2686, 127
        %v2706 = vpop.permute.xlu0 %2705
        %2707 = vrot.lane.b32.xlu0 %v2687, 127
        %v2708 = vpop.permute.xlu0 %2707
        %2709 = vrot.lane.b32.xlu0 %v2688, 127
        %v2710 = vpop.permute.xlu0 %2709
        %2711 = vrot.lane.b32.xlu0 %v2689, 127
        %v2712 = vpop.permute.xlu0 %2711
        %2713 = vrot.lane.b32.xlu0 %v2690, 127
        %v2714 = vpop.permute.xlu0 %2713
        %v2723 = vsub.f32 %v2683, %v2700
        %v2724 = vsub.f32 %v2684, %v2702
        %v2725 = vsub.f32 %v2685, %v2704
        %v2726 = vsub.f32 %v2686, %v2706
        %v2727 = vsub.f32 %v2687, %v2708
        %v2728 = vsub.f32 %v2688, %v2710
        %v2729 = vsub.f32 %v2689, %v2712
        %v2730 = vsub.f32 %v2690, %v2714
        %v2731 = vxor.u32 %v2723, 2147483648
        %v2732 = vxor.u32 %v2724, 2147483648
        %v2733 = vxor.u32 %v2725, 2147483648
        %v2734 = vxor.u32 %v2726, 2147483648
        %v2735 = vxor.u32 %v2727, 2147483648
        %v2736 = vxor.u32 %v2728, 2147483648
        %v2737 = vxor.u32 %v2729, 2147483648
        %v2738 = vxor.u32 %v2730, 2147483648
        %v2739 = vmul.f32 %v2731, 1.442695
        %v2740 = vpow.pop %v2739
        %v2741 = vmul.f32 %v2732, 1.442695
        %v2742 = vpow.pop %v2741
        %v2743 = vmul.f32 %v2733, 1.442695
        %v2744 = vpow.pop %v2743
        %v2745 = vmul.f32 %v2734, 1.442695
        %v2746 = vpow.pop %v2745
        %v2747 = vmul.f32 %v2735, 1.442695
        %v2748 = vpow.pop %v2747
        %v2749 = vmul.f32 %v2736, 1.442695
        %v2750 = vpow.pop %v2749
        %v2751 = vmul.f32 %v2737, 1.442695
        %v2752 = vpow.pop %v2751
        %v2753 = vmul.f32 %v2738, 1.442695
        %v2754 = vpow.pop %v2753
        %v2755 = vadd.f32 %v2740, 1.0
        %v2756 = vadd.f32 %v2742, 1.0
        %v2757 = vadd.f32 %v2744, 1.0
        %v2758 = vadd.f32 %v2746, 1.0
        %v2759 = vadd.f32 %v2748, 1.0
        %v2760 = vadd.f32 %v2750, 1.0
        %v2761 = vadd.f32 %v2752, 1.0
        %v2762 = vadd.f32 %v2754, 1.0
        %v2763 = vrcp.pop %v2755
        %v2764 = vmul.f32 1.0, %v2763
        %v2765 = vrcp.pop %v2756
        %v2766 = vmul.f32 1.0, %v2765
        %v2767 = vrcp.pop %v2757
        %v2768 = vmul.f32 1.0, %v2767
        %v2769 = vrcp.pop %v2758
        %v2770 = vmul.f32 1.0, %v2769
        %v2771 = vrcp.pop %v2759
        %v2772 = vmul.f32 1.0, %v2771
        %v2773 = vrcp.pop %v2760
        %v2774 = vmul.f32 1.0, %v2773
        %v2775 = vrcp.pop %v2761
        %v2776 = vmul.f32 1.0, %v2775
        %v2777 = vrcp.pop %v2762
        %v2778 = vmul.f32 1.0, %v2777
        %v2780 = vcombine.high %v385, %v385
        %v2782 = vunpack.c.l.s4 1966171168
        %v2783 = vunpack.c.0.s8 %v2782
        %v2784 = vlaneseq
        %v2785 = vshrl.u32 %v2784, 7
        %v2786 = vsub.s32 %v2783, %v2785
        %v2787 = vrot.slane %v385, %v2786
        %v2789 = vunpack.c.l.s4 1966171168
        %v2790 = vunpack.c.0.s8 %v2789
        %v2791 = vlaneseq
        %v2792 = vshrl.u32 %v2791, 7
        %v2793 = vsub.s32 %v2790, %v2792
        %v2794 = vrot.slane %v2780, %v2793
        %v2795 = vcombine.high %v2787, %v2787
        %v2796 = vcombine.high %v2794, %v2794
        %v2798 = vunpack.c.l.s4 1966171168
        %v2799 = vunpack.c.0.s8 %v2798
        %v2800 = vlaneseq
        %v2801 = vshrl.u32 %v2800, 7
        %v2802 = vsub.s32 %v2799, %v2801
        %v2803 = vrot.slane %v2787, %v2802
        %v2805 = vunpack.c.l.s4 1966171168
        %v2806 = vunpack.c.0.s8 %v2805
        %v2807 = vlaneseq
        %v2808 = vshrl.u32 %v2807, 7
        %v2809 = vsub.s32 %v2806, %v2808
        %v2810 = vrot.slane %v2794, %v2809
        %v2812 = vunpack.c.l.s4 1966171168
        %v2813 = vunpack.c.0.s8 %v2812
        %v2814 = vlaneseq
        %v2815 = vshrl.u32 %v2814, 7
        %v2816 = vsub.s32 %v2813, %v2815
        %v2817 = vrot.slane %v2795, %v2816
        %v2819 = vunpack.c.l.s4 1966171168
        %v2820 = vunpack.c.0.s8 %v2819
        %v2821 = vlaneseq
        %v2822 = vshrl.u32 %v2821, 7
        %v2823 = vsub.s32 %v2820, %v2822
        %v2824 = vrot.slane %v2796, %v2823
        %v2825 = vcombine.high %v2803, %v2803
        %v2826 = vcombine.high %v2810, %v2810
        %v2827 = vcombine.high %v2817, %v2817
        %v2828 = vcombine.high %v2824, %v2824
        %v2829 = vlaneseq
        %v2830 = vshrl.u32 %v2829, 7
        %v2831 = vsub.s32 0, %v2830
        %v2832 = vrot.slane %v2803, %v2831
        %v2833 = vlaneseq
        %v2834 = vshrl.u32 %v2833, 7
        %v2835 = vsub.s32 0, %v2834
        %v2836 = vrot.slane %v2817, %v2835
        %v2837 = vlaneseq
        %v2838 = vshrl.u32 %v2837, 7
        %v2839 = vsub.s32 0, %v2838
        %v2840 = vrot.slane %v2825, %v2839
        %v2841 = vlaneseq
        %v2842 = vshrl.u32 %v2841, 7
        %v2843 = vsub.s32 0, %v2842
        %v2844 = vrot.slane %v2827, %v2843
        %v2845 = vlaneseq
        %v2846 = vshrl.u32 %v2845, 7
        %v2847 = vsub.s32 0, %v2846
        %v2848 = vrot.slane %v2810, %v2847
        %v2849 = vlaneseq
        %v2850 = vshrl.u32 %v2849, 7
        %v2851 = vsub.s32 0, %v2850
        %v2852 = vrot.slane %v2824, %v2851
        %v2853 = vlaneseq
        %v2854 = vshrl.u32 %v2853, 7
        %v2855 = vsub.s32 0, %v2854
        %v2856 = vrot.slane %v2826, %v2855
        %v2857 = vlaneseq
        %v2858 = vshrl.u32 %v2857, 7
        %v2859 = vsub.s32 0, %v2858
        %v2860 = vrot.slane %v2828, %v2859
        %v2869 = vsub.f32 %v2832, %v385
        %v2870 = vsub.f32 %v2836, %v385
        %v2871 = vsub.f32 %v2840, %v385
        %v2872 = vsub.f32 %v2844, %v385
        %v2873 = vsub.f32 %v2848, %v385
        %v2874 = vsub.f32 %v2852, %v385
        %v2875 = vsub.f32 %v2856, %v385
        %v2876 = vsub.f32 %v2860, %v385
        %v2877 = vmul.f32 %v2869, %v2869
        %v2878 = vmul.f32 %v2870, %v2870
        %v2879 = vmul.f32 %v2871, %v2871
        %v2880 = vmul.f32 %v2872, %v2872
        %v2881 = vmul.f32 %v2873, %v2873
        %v2882 = vmul.f32 %v2874, %v2874
        %v2883 = vmul.f32 %v2875, %v2875
        %v2884 = vmul.f32 %v2876, %v2876
        %v2885 = vadd.f32 %v2877, 0.0
        %v2886 = vadd.f32 %v2878, 0.0
        %v2887 = vadd.f32 %v2879, 0.0
        %v2888 = vadd.f32 %v2880, 0.0
        %v2889 = vadd.f32 %v2881, 0.0
        %v2890 = vadd.f32 %v2882, 0.0
        %v2891 = vadd.f32 %v2883, 0.0
        %v2892 = vadd.f32 %v2884, 0.0
        %v2894 = vcombine.high %v386, %v386
        %v2896 = vunpack.c.l.s4 1966171168
        %v2897 = vunpack.c.0.s8 %v2896
        %v2898 = vlaneseq
        %v2899 = vshrl.u32 %v2898, 7
        %v2900 = vsub.s32 %v2897, %v2899
        %v2901 = vrot.slane %v386, %v2900
        %v2903 = vunpack.c.l.s4 1966171168
        %v2904 = vunpack.c.0.s8 %v2903
        %v2905 = vlaneseq
        %v2906 = vshrl.u32 %v2905, 7
        %v2907 = vsub.s32 %v2904, %v2906
        %v2908 = vrot.slane %v2894, %v2907
        %v2909 = vcombine.high %v2901, %v2901
        %v2910 = vcombine.high %v2908, %v2908
        %v2912 = vunpack.c.l.s4 1966171168
        %v2913 = vunpack.c.0.s8 %v2912
        %v2914 = vlaneseq
        %v2915 = vshrl.u32 %v2914, 7
        %v2916 = vsub.s32 %v2913, %v2915
        %v2917 = vrot.slane %v2901, %v2916
        %v2919 = vunpack.c.l.s4 1966171168
        %v2920 = vunpack.c.0.s8 %v2919
        %v2921 = vlaneseq
        %v2922 = vshrl.u32 %v2921, 7
        %v2923 = vsub.s32 %v2920, %v2922
        %v2924 = vrot.slane %v2908, %v2923
        %v2926 = vunpack.c.l.s4 1966171168
        %v2927 = vunpack.c.0.s8 %v2926
        %v2928 = vlaneseq
        %v2929 = vshrl.u32 %v2928, 7
        %v2930 = vsub.s32 %v2927, %v2929
        %v2931 = vrot.slane %v2909, %v2930
        %v2933 = vunpack.c.l.s4 1966171168
        %v2934 = vunpack.c.0.s8 %v2933
        %v2935 = vlaneseq
        %v2936 = vshrl.u32 %v2935, 7
        %v2937 = vsub.s32 %v2934, %v2936
        %v2938 = vrot.slane %v2910, %v2937
        %v2939 = vcombine.high %v2917, %v2917
        %v2940 = vcombine.high %v2924, %v2924
        %v2941 = vcombine.high %v2931, %v2931
        %v2942 = vcombine.high %v2938, %v2938
        %v2943 = vlaneseq
        %v2944 = vshrl.u32 %v2943, 7
        %v2945 = vsub.s32 0, %v2944
        %v2946 = vrot.slane %v2917, %v2945
        %v2947 = vlaneseq
        %v2948 = vshrl.u32 %v2947, 7
        %v2949 = vsub.s32 0, %v2948
        %v2950 = vrot.slane %v2931, %v2949
        %v2951 = vlaneseq
        %v2952 = vshrl.u32 %v2951, 7
        %v2953 = vsub.s32 0, %v2952
        %v2954 = vrot.slane %v2939, %v2953
        %v2955 = vlaneseq
        %v2956 = vshrl.u32 %v2955, 7
        %v2957 = vsub.s32 0, %v2956
        %v2958 = vrot.slane %v2941, %v2957
        %v2959 = vlaneseq
        %v2960 = vshrl.u32 %v2959, 7
        %v2961 = vsub.s32 0, %v2960
        %v2962 = vrot.slane %v2924, %v2961
        %v2963 = vlaneseq
        %v2964 = vshrl.u32 %v2963, 7
        %v2965 = vsub.s32 0, %v2964
        %v2966 = vrot.slane %v2938, %v2965
        %v2967 = vlaneseq
        %v2968 = vshrl.u32 %v2967, 7
        %v2969 = vsub.s32 0, %v2968
        %v2970 = vrot.slane %v2940, %v2969
        %v2971 = vlaneseq
        %v2972 = vshrl.u32 %v2971, 7
        %v2973 = vsub.s32 0, %v2972
        %v2974 = vrot.slane %v2942, %v2973
        %v2983 = vsub.f32 %v2946, %v386
        %v2984 = vsub.f32 %v2950, %v386
        %v2985 = vsub.f32 %v2954, %v386
        %v2986 = vsub.f32 %v2958, %v386
        %v2987 = vsub.f32 %v2962, %v386
        %v2988 = vsub.f32 %v2966, %v386
        %v2989 = vsub.f32 %v2970, %v386
        %v2990 = vsub.f32 %v2974, %v386
        %v2991 = vmul.f32 %v2983, %v2983
        %v2992 = vmul.f32 %v2984, %v2984
        %v2993 = vmul.f32 %v2985, %v2985
        %v2994 = vmul.f32 %v2986, %v2986
        %v2995 = vmul.f32 %v2987, %v2987
        %v2996 = vmul.f32 %v2988, %v2988
        %v2997 = vmul.f32 %v2989, %v2989
        %v2998 = vmul.f32 %v2990, %v2990
        %v2999 = vadd.f32 %v2885, %v2991
        %v3000 = vadd.f32 %v2886, %v2992
        %v3001 = vadd.f32 %v2887, %v2993
        %v3002 = vadd.f32 %v2888, %v2994
        %v3003 = vadd.f32 %v2889, %v2995
        %v3004 = vadd.f32 %v2890, %v2996
        %v3005 = vadd.f32 %v2891, %v2997
        %v3006 = vadd.f32 %v2892, %v2998
        %v3008 = vcombine.high %v387, %v387
        %v3010 = vunpack.c.l.s4 1966171168
        %v3011 = vunpack.c.0.s8 %v3010
        %v3012 = vlaneseq
        %v3013 = vshrl.u32 %v3012, 7
        %v3014 = vsub.s32 %v3011, %v3013
        %v3015 = vrot.slane %v387, %v3014
        %v3017 = vunpack.c.l.s4 1966171168
        %v3018 = vunpack.c.0.s8 %v3017
        %v3019 = vlaneseq
        %v3020 = vshrl.u32 %v3019, 7
        %v3021 = vsub.s32 %v3018, %v3020
        %v3022 = vrot.slane %v3008, %v3021
        %v3023 = vcombine.high %v3015, %v3015
        %v3024 = vcombine.high %v3022, %v3022
        %v3026 = vunpack.c.l.s4 1966171168
        %v3027 = vunpack.c.0.s8 %v3026
        %v3028 = vlaneseq
        %v3029 = vshrl.u32 %v3028, 7
        %v3030 = vsub.s32 %v3027, %v3029
        %v3031 = vrot.slane %v3015, %v3030
        %v3033 = vunpack.c.l.s4 1966171168
        %v3034 = vunpack.c.0.s8 %v3033
        %v3035 = vlaneseq
        %v3036 = vshrl.u32 %v3035, 7
        %v3037 = vsub.s32 %v3034, %v3036
        %v3038 = vrot.slane %v3022, %v3037
        %v3040 = vunpack.c.l.s4 1966171168
        %v3041 = vunpack.c.0.s8 %v3040
        %v3042 = vlaneseq
        %v3043 = vshrl.u32 %v3042, 7
        %v3044 = vsub.s32 %v3041, %v3043
        %v3045 = vrot.slane %v3023, %v3044
        %v3047 = vunpack.c.l.s4 1966171168
        %v3048 = vunpack.c.0.s8 %v3047
        %v3049 = vlaneseq
        %v3050 = vshrl.u32 %v3049, 7
        %v3051 = vsub.s32 %v3048, %v3050
        %v3052 = vrot.slane %v3024, %v3051
        %v3053 = vcombine.high %v3031, %v3031
        %v3054 = vcombine.high %v3038, %v3038
        %v3055 = vcombine.high %v3045, %v3045
        %v3056 = vcombine.high %v3052, %v3052
        %v3057 = vlaneseq
        %v3058 = vshrl.u32 %v3057, 7
        %v3059 = vsub.s32 0, %v3058
        %v3060 = vrot.slane %v3031, %v3059
        %v3061 = vlaneseq
        %v3062 = vshrl.u32 %v3061, 7
        %v3063 = vsub.s32 0, %v3062
        %v3064 = vrot.slane %v3045, %v3063
        %v3065 = vlaneseq
        %v3066 = vshrl.u32 %v3065, 7
        %v3067 = vsub.s32 0, %v3066
        %v3068 = vrot.slane %v3053, %v3067
        %v3069 = vlaneseq
        %v3070 = vshrl.u32 %v3069, 7
        %v3071 = vsub.s32 0, %v3070
        %v3072 = vrot.slane %v3055, %v3071
        %v3073 = vlaneseq
        %v3074 = vshrl.u32 %v3073, 7
        %v3075 = vsub.s32 0, %v3074
        %v3076 = vrot.slane %v3038, %v3075
        %v3077 = vlaneseq
        %v3078 = vshrl.u32 %v3077, 7
        %v3079 = vsub.s32 0, %v3078
        %v3080 = vrot.slane %v3052, %v3079
        %v3081 = vlaneseq
        %v3082 = vshrl.u32 %v3081, 7
        %v3083 = vsub.s32 0, %v3082
        %v3084 = vrot.slane %v3054, %v3083
        %v3085 = vlaneseq
        %v3086 = vshrl.u32 %v3085, 7
        %v3087 = vsub.s32 0, %v3086
        %v3088 = vrot.slane %v3056, %v3087
        %v3097 = vsub.f32 %v3060, %v387
        %v3098 = vsub.f32 %v3064, %v387
        %v3099 = vsub.f32 %v3068, %v387
        %v3100 = vsub.f32 %v3072, %v387
        %v3101 = vsub.f32 %v3076, %v387
        %v3102 = vsub.f32 %v3080, %v387
        %v3103 = vsub.f32 %v3084, %v387
        %v3104 = vsub.f32 %v3088, %v387
        %v3105 = vmul.f32 %v3097, %v3097
        %v3106 = vmul.f32 %v3098, %v3098
        %v3107 = vmul.f32 %v3099, %v3099
        %v3108 = vmul.f32 %v3100, %v3100
        %v3109 = vmul.f32 %v3101, %v3101
        %v3110 = vmul.f32 %v3102, %v3102
        %v3111 = vmul.f32 %v3103, %v3103
        %v3112 = vmul.f32 %v3104, %v3104
        %v3113 = vadd.f32 %v2999, %v3105
        %v3114 = vadd.f32 %v3000, %v3106
        %v3115 = vadd.f32 %v3001, %v3107
        %v3116 = vadd.f32 %v3002, %v3108
        %v3117 = vadd.f32 %v3003, %v3109
        %v3118 = vadd.f32 %v3004, %v3110
        %v3119 = vadd.f32 %v3005, %v3111
        %v3120 = vadd.f32 %v3006, %v3112
        %v3121 = vrsqrt.pop %v3113
        %v3122 = vmul.f32 %v3113, %v3121
        %vm3123 = vcmp.eq.f32.partialorder %v3113, inf
        %v3124 = vsel %vm3123, %v3113, %v3122
        %vm3125 = vcmp.eq.f32.partialorder %v3113, 0.0
        %v3126 = vand.u32 %v3113, 2147483648
        %v3127 = vsel %vm3125, %v3126, %v3124
        %v3128 = vrsqrt.pop %v3114
        %v3129 = vmul.f32 %v3114, %v3128
        %vm3130 = vcmp.eq.f32.partialorder %v3114, inf
        %v3131 = vsel %vm3130, %v3114, %v3129
        %vm3132 = vcmp.eq.f32.partialorder %v3114, 0.0
        %v3133 = vand.u32 %v3114, 2147483648
        %v3134 = vsel %vm3132, %v3133, %v3131
        %v3135 = vrsqrt.pop %v3115
        %v3136 = vmul.f32 %v3115, %v3135
        %vm3137 = vcmp.eq.f32.partialorder %v3115, inf
        %v3138 = vsel %vm3137, %v3115, %v3136
        %vm3139 = vcmp.eq.f32.partialorder %v3115, 0.0
        %v3140 = vand.u32 %v3115, 2147483648
        %v3141 = vsel %vm3139, %v3140, %v3138
        %v3142 = vrsqrt.pop %v3116
        %v3143 = vmul.f32 %v3116, %v3142
        %vm3144 = vcmp.eq.f32.partialorder %v3116, inf
        %v3145 = vsel %vm3144, %v3116, %v3143
        %vm3146 = vcmp.eq.f32.partialorder %v3116, 0.0
        %v3147 = vand.u32 %v3116, 2147483648
        %v3148 = vsel %vm3146, %v3147, %v3145
        %v3149 = vrsqrt.pop %v3117
        %v3150 = vmul.f32 %v3117, %v3149
        %vm3151 = vcmp.eq.f32.partialorder %v3117, inf
        %v3152 = vsel %vm3151, %v3117, %v3150
        %vm3153 = vcmp.eq.f32.partialorder %v3117, 0.0
        %v3154 = vand.u32 %v3117, 2147483648
        %v3155 = vsel %vm3153, %v3154, %v3152
        %v3156 = vrsqrt.pop %v3118
        %v3157 = vmul.f32 %v3118, %v3156
        %vm3158 = vcmp.eq.f32.partialorder %v3118, inf
        %v3159 = vsel %vm3158, %v3118, %v3157
        %vm3160 = vcmp.eq.f32.partialorder %v3118, 0.0
        %v3161 = vand.u32 %v3118, 2147483648
        %v3162 = vsel %vm3160, %v3161, %v3159
        %v3163 = vrsqrt.pop %v3119
        %v3164 = vmul.f32 %v3119, %v3163
        %vm3165 = vcmp.eq.f32.partialorder %v3119, inf
        %v3166 = vsel %vm3165, %v3119, %v3164
        %vm3167 = vcmp.eq.f32.partialorder %v3119, 0.0
        %v3168 = vand.u32 %v3119, 2147483648
        %v3169 = vsel %vm3167, %v3168, %v3166
        %v3170 = vrsqrt.pop %v3120
        %v3171 = vmul.f32 %v3120, %v3170
        %vm3172 = vcmp.eq.f32.partialorder %v3120, inf
        %v3173 = vsel %vm3172, %v3120, %v3171
        %vm3174 = vcmp.eq.f32.partialorder %v3120, 0.0
        %v3175 = vand.u32 %v3120, 2147483648
        %v3176 = vsel %vm3174, %v3175, %v3173
        %v3177 = vld [vmem:[%s4 + $0x48] sm:$0xff]
        %v3178 = vld [vmem:[%s4 + $0x50] sm:$0xff]
        %v3179 = vld [vmem:[%s4 + $0xd0] sm:$0xff]
        %v3180 = vld [vmem:[%s4 + $0xd8] sm:$0xff]
        %v3181 = vld [vmem:[%s4 + $0x158] sm:$0xff]
        %v3182 = vld [vmem:[%s4 + $0x160] sm:$0xff]
        %v3183 = vld [vmem:[%s4 + $0x1e0] sm:$0xff]
        %v3184 = vld [vmem:[%s4 + $0x1e8] sm:$0xff]
        %3185 = vmatprep.subr.mxu0 %v3178
        %3186 = vmatpush1.msra.mxu0 %v3177
        %3187 = vmatprep.subr.mxu0 %v3180
        %3188 = vmatpush1.msra.mxu0 %v3179
        %3189 = vmatprep.subr.mxu0 %v3182
        %3190 = vmatpush1.msra.mxu0 %v3181
        %3191 = vmatprep.subr.mxu0 %v3184
        %3192 = vmatpush1.msra.mxu0 %v3183
        %3193 = vmatprep.subr.mxu0 0.0
        %3194 = vmatpush1.msra.mxu0 0.0
        %3195 = vmatprep.subr.mxu0 0.0
        %3196 = vmatpush1.msra.mxu0 0.0
        %3197 = vmatprep.subr.mxu0 0.0
        %3198 = vmatpush1.msra.mxu0 0.0
        %3199 = vmatprep.subr.mxu0 0.0
        %3200 = vmatpush1.msra.mxu0 0.0
        %3201 = vmatprep.subr.mxu0 0.0
        %3202 = vmatpush1.msra.mxu0 0.0
        %3203 = vmatprep.subr.mxu0 0.0
        %3204 = vmatpush1.msra.mxu0 0.0
        %3205 = vmatprep.subr.mxu0 0.0
        %3206 = vmatpush1.msra.mxu0 0.0
        %3207 = vmatprep.subr.mxu0 0.0
        %3208 = vmatpush1.msra.mxu0 0.0
        %3209 = vmatprep.subr.mxu0 0.0
        %3210 = vmatpush1.msra.mxu0 0.0
        %3211 = vmatprep.subr.mxu0 0.0
        %3212 = vmatpush1.msra.mxu0 0.0
        %3213 = vmatprep.subr.mxu0 0.0
        %3214 = vmatpush1.msra.mxu0 0.0
        %3215 = vmatprep.subr.mxu0 0.0
        %3216 = vmatpush1.msra.mxu0 0.0
        %3217 = vmatprep.subr.mxu0 0.0
        %3218 = vmatpush1.msra.mxu0 0.0
        %3219 = vmatprep.subr.mxu0 0.0
        %3220 = vmatpush1.msra.mxu0 0.0
        %3221 = vmatprep.subr.mxu0 0.0
        %3222 = vmatpush1.msra.mxu0 0.0
        %3223 = vmatprep.subr.mxu0 0.0
        %3224 = vmatpush1.msra.mxu0 0.0
        %3225 = vmatprep.subr.mxu0 0.0
        %3226 = vmatpush1.msra.mxu0 0.0
        %3227 = vmatprep.subr.mxu0 0.0
        %3228 = vmatpush1.msra.mxu0 0.0
        %3229 = vmatprep.subr.mxu0 0.0
        %3230 = vmatpush1.msra.mxu0 0.0
        %3231 = vmatprep.subr.mxu0 0.0
        %3232 = vmatpush1.msra.mxu0 0.0
        %3233 = vmatprep.subr.mxu0 0.0
        %3234 = vmatpush1.msra.mxu0 0.0
        %3235 = vmatprep.subr.mxu0 0.0
        %3236 = vmatpush1.msra.mxu0 0.0
        %3237 = vmatprep.subr.mxu0 0.0
        %3238 = vmatpush1.msra.mxu0 0.0
        %3239 = vmatprep.subr.mxu0 0.0
        %3240 = vmatpush1.msra.mxu0 0.0
        %3241 = vmatprep.subr.mxu0 0.0
        %3242 = vmatpush1.msra.mxu0 0.0
        %3243 = vmatprep.subr.mxu0 0.0
        %3244 = vmatpush1.msra.mxu0 0.0
        %3245 = vmatprep.subr.mxu0 0.0
        %3246 = vmatpush1.msra.mxu0 0.0
        %3247 = vmatprep.subr.mxu0 0.0
        %3248 = vmatpush1.msra.mxu0 0.0
        %3249 = vmatprep.mubr.f32.mxu0 0.0
        %3250 = vmatmul.mubr.f32.gmra.mrb[0].mxu0 %v1481
        %v3251 = vpop.f32.mrb[0].mxu0
        %v3252 = vadd.f32 0.0, %v3251
        %v3253 = vpop.f32.mrb[0].mxu0
        %v3254 = vadd.f32 0.0, %v3253
        %3255 = vdwg.mxu0
        %v3256 = vld [vmem:[%s6 + $0xb] sm:$0x1]
        %v3258 = vlaneseq
        %v3259 = vshrl.u32 %v3258, 7
        %v3260 = vsub.s32 0, %v3259
        %v3261 = vrot.slane %v3256, %v3260
        %3262 = vrot.lane.b32.xlu0 %v3261, 64
        %v3263 = vpop.permute.xlu0 %3262
        %v3265 = vadd.f32 %v3254, %v3263
        %v3266 = vxor.u32 %v3265, 2147483648
        %v3267 = vmul.f32 %v3266, 1.442695
        %v3268 = vpow.pop %v3267
        %v3269 = vadd.f32 %v3268, 1.0
        %v3270 = vrcp.pop %v3269
        %v3271 = vmul.f32 1.0, %v3270
        %v3272 = vmul.f32 %v3265, %v3271
        %v3273 = vld [vmem:[#allocation2 + $0x8] sm:$0xff]
        %v3274 = vld [vmem:[#allocation2 + $0x60] sm:$0xff]
        %v3276 = vsel %vm463, %v3127, 0
        %v3279 = vsel %vm463, %v3134, 0
        %v3282 = vsel %vm463, %v3141, 0
        %v3285 = vsel %vm463, %v3148, 0
        %v3288 = vsel %vm463, %v3155, 0
        %v3291 = vsel %vm463, %v3162, 0
        %v3294 = vsel %vm463, %v3169, 0
        %v3297 = vsel %vm463, %v3176, 0
        %3299 = vmatprep.subr.mxu0 0.0
        %3300 = vmatpush1.msra.mxu0 %v3273
        %3301 = vmatprep.subr.mxu0 0.0
        %3302 = vmatpush1.msra.mxu0 %v3274
        %3303 = vmatprep.subr.mxu0 0.0
        %3304 = vmatpush1.msra.mxu0 0.0
        %3305 = vmatprep.subr.mxu0 0.0
        %3306 = vmatpush1.msra.mxu0 0.0
        %3307 = vmatprep.subr.mxu0 0.0
        %3308 = vmatpush1.msra.mxu0 0.0
        %3309 = vmatprep.subr.mxu0 0.0
        %3310 = vmatpush1.msra.mxu0 0.0
        %3311 = vmatprep.subr.mxu0 0.0
        %3312 = vmatpush1.msra.mxu0 0.0
        %3313 = vmatprep.subr.mxu0 0.0
        %3314 = vmatpush1.msra.mxu0 0.0
        %3315 = vmatprep.subr.mxu0 0.0
        %3316 = vmatpush1.msra.mxu0 0.0
        %3317 = vmatprep.subr.mxu0 0.0
        %3318 = vmatpush1.msra.mxu0 0.0
        %3319 = vmatprep.subr.mxu0 0.0
        %3320 = vmatpush1.msra.mxu0 0.0
        %3321 = vmatprep.subr.mxu0 0.0
        %3322 = vmatpush1.msra.mxu0 0.0
        %3323 = vmatprep.subr.mxu0 0.0
        %3324 = vmatpush1.msra.mxu0 0.0
        %3325 = vmatprep.subr.mxu0 0.0
        %3326 = vmatpush1.msra.mxu0 0.0
        %3327 = vmatprep.subr.mxu0 0.0
        %3328 = vmatpush1.msra.mxu0 0.0
        %3329 = vmatprep.subr.mxu0 0.0
        %3330 = vmatpush1.msra.mxu0 0.0
        %3331 = vmatprep.subr.mxu0 0.0
        %3332 = vmatpush1.msra.mxu0 0.0
        %3333 = vmatprep.subr.mxu0 0.0
        %3334 = vmatpush1.msra.mxu0 0.0
        %3335 = vmatprep.subr.mxu0 0.0
        %3336 = vmatpush1.msra.mxu0 0.0
        %3337 = vmatprep.subr.mxu0 0.0
        %3338 = vmatpush1.msra.mxu0 0.0
        %3339 = vmatprep.subr.mxu0 0.0
        %3340 = vmatpush1.msra.mxu0 0.0
        %3341 = vmatprep.subr.mxu0 0.0
        %3342 = vmatpush1.msra.mxu0 0.0
        %3343 = vmatprep.subr.mxu0 0.0
        %3344 = vmatpush1.msra.mxu0 0.0
        %3345 = vmatprep.subr.mxu0 0.0
        %3346 = vmatpush1.msra.mxu0 0.0
        %3347 = vmatprep.subr.mxu0 0.0
        %3348 = vmatpush1.msra.mxu0 0.0
        %3349 = vmatprep.subr.mxu0 0.0
        %3350 = vmatpush1.msra.mxu0 0.0
        %3351 = vmatprep.subr.mxu0 0.0
        %3352 = vmatpush1.msra.mxu0 0.0
        %3353 = vmatprep.subr.mxu0 0.0
        %3354 = vmatpush1.msra.mxu0 0.0
        %3355 = vmatprep.subr.mxu0 0.0
        %3356 = vmatpush1.msra.mxu0 0.0
        %3357 = vmatprep.subr.mxu0 0.0
        %3358 = vmatpush1.msra.mxu0 0.0
        %3359 = vmatprep.subr.mxu0 0.0
        %3360 = vmatpush1.msra.mxu0 0.0
        %3361 = vmatprep.subr.mxu0 0.0
        %3362 = vmatpush1.msra.mxu0 0.0
        %3363 = vmatprep.mubr.f32.mxu0 0.0
        %3364 = vmatmul.mubr.f32.gmra.mrb[0].mxu0 %v3276
        %v3365 = vpop.f32.mrb[0].mxu0
        %v3366 = vadd.f32 0.0, %v3365
        %v3367 = vpop.f32.mrb[0].mxu0
        %3368 = vmatprep.mubr.f32.mxu0 0.0
        %3369 = vmatmul.mubr.f32.gmra.mrb[0].mxu0 %v3279
        %v3370 = vpop.f32.mrb[0].mxu0
        %v3371 = vadd.f32 0.0, %v3370
        %v3372 = vpop.f32.mrb[0].mxu0
        %3373 = vmatprep.mubr.f32.mxu0 0.0
        %3374 = vmatmul.mubr.f32.gmra.mrb[0].mxu0 %v3282
        %v3375 = vpop.f32.mrb[0].mxu0
        %v3376 = vadd.f32 0.0, %v3375
        %v3377 = vpop.f32.mrb[0].mxu0
        %3378 = vmatprep.mubr.f32.mxu0 0.0
        %3379 = vmatmul.mubr.f32.gmra.mrb[0].mxu0 %v3285
        %v3380 = vpop.f32.mrb[0].mxu0
        %v3381 = vadd.f32 0.0, %v3380
        %v3382 = vpop.f32.mrb[0].mxu0
        %3383 = vmatprep.mubr.f32.mxu0 0.0
        %3384 = vmatmul.mubr.f32.gmra.mrb[0].mxu0 %v3288
        %v3385 = vpop.f32.mrb[0].mxu0
        %v3386 = vadd.f32 0.0, %v3385
        %v3387 = vpop.f32.mrb[0].mxu0
        %3388 = vmatprep.mubr.f32.mxu0 0.0
        %3389 = vmatmul.mubr.f32.gmra.mrb[0].mxu0 %v3291
        %v3390 = vpop.f32.mrb[0].mxu0
        %v3391 = vadd.f32 0.0, %v3390
        %v3392 = vpop.f32.mrb[0].mxu0
        %3393 = vmatprep.mubr.f32.mxu0 0.0
        %3394 = vmatmul.mubr.f32.gmra.mrb[0].mxu0 %v3294
        %v3395 = vpop.f32.mrb[0].mxu0
        %v3396 = vadd.f32 0.0, %v3395
        %v3397 = vpop.f32.mrb[0].mxu0
        %3398 = vmatprep.mubr.f32.mxu0 0.0
        %3399 = vmatmul.mubr.f32.gmra.mrb[0].mxu0 %v3297
        %v3400 = vpop.f32.mrb[0].mxu0
        %v3401 = vadd.f32 0.0, %v3400
        %v3402 = vpop.f32.mrb[0].mxu0
        %3403 = vdwg.mxu0
        %v3405 = vcombine.high %v3252, %v3252
        %v3407 = vunpack.c.l.s4 1966171168
        %v3408 = vunpack.c.0.s8 %v3407
        %v3409 = vlaneseq
        %v3410 = vshrl.u32 %v3409, 7
        %v3411 = vsub.s32 %v3408, %v3410
        %v3412 = vrot.slane %v3252, %v3411
        %v3414 = vunpack.c.l.s4 1966171168
        %v3415 = vunpack.c.0.s8 %v3414
        %v3416 = vlaneseq
        %v3417 = vshrl.u32 %v3416, 7
        %v3418 = vsub.s32 %v3415, %v3417
        %v3419 = vrot.slane %v3405, %v3418
        %v3420 = vcombine.high %v3412, %v3412
        %v3421 = vcombine.high %v3419, %v3419
        %v3423 = vunpack.c.l.s4 1966171168
        %v3424 = vunpack.c.0.s8 %v3423
        %v3425 = vlaneseq
        %v3426 = vshrl.u32 %v3425, 7
        %v3427 = vsub.s32 %v3424, %v3426
        %v3428 = vrot.slane %v3412, %v3427
        %v3430 = vunpack.c.l.s4 1966171168
        %v3431 = vunpack.c.0.s8 %v3430
        %v3432 = vlaneseq
        %v3433 = vshrl.u32 %v3432, 7
        %v3434 = vsub.s32 %v3431, %v3433
        %v3435 = vrot.slane %v3419, %v3434
        %v3437 = vunpack.c.l.s4 1966171168
        %v3438 = vunpack.c.0.s8 %v3437
        %v3439 = vlaneseq
        %v3440 = vshrl.u32 %v3439, 7
        %v3441 = vsub.s32 %v3438, %v3440
        %v3442 = vrot.slane %v3420, %v3441
        %v3444 = vunpack.c.l.s4 1966171168
        %v3445 = vunpack.c.0.s8 %v3444
        %v3446 = vlaneseq
        %v3447 = vshrl.u32 %v3446, 7
        %v3448 = vsub.s32 %v3445, %v3447
        %v3449 = vrot.slane %v3421, %v3448
        %v3450 = vcombine.high %v3428, %v3428
        %v3451 = vcombine.high %v3435, %v3435
        %v3452 = vcombine.high %v3442, %v3442
        %v3453 = vcombine.high %v3449, %v3449
        %v3454 = vlaneseq
        %v3455 = vshrl.u32 %v3454, 7
        %v3456 = vsub.s32 0, %v3455
        %v3457 = vrot.slane %v3428, %v3456
        %v3458 = vlaneseq
        %v3459 = vshrl.u32 %v3458, 7
        %v3460 = vsub.s32 0, %v3459
        %v3461 = vrot.slane %v3442, %v3460
        %v3462 = vlaneseq
        %v3463 = vshrl.u32 %v3462, 7
        %v3464 = vsub.s32 0, %v3463
        %v3465 = vrot.slane %v3450, %v3464
        %v3466 = vlaneseq
        %v3467 = vshrl.u32 %v3466, 7
        %v3468 = vsub.s32 0, %v3467
        %v3469 = vrot.slane %v3452, %v3468
        %v3470 = vlaneseq
        %v3471 = vshrl.u32 %v3470, 7
        %v3472 = vsub.s32 0, %v3471
        %v3473 = vrot.slane %v3435, %v3472
        %v3474 = vlaneseq
        %v3475 = vshrl.u32 %v3474, 7
        %v3476 = vsub.s32 0, %v3475
        %v3477 = vrot.slane %v3449, %v3476
        %v3478 = vlaneseq
        %v3479 = vshrl.u32 %v3478, 7
        %v3480 = vsub.s32 0, %v3479
        %v3481 = vrot.slane %v3451, %v3480
        %v3482 = vlaneseq
        %v3483 = vshrl.u32 %v3482, 7
        %v3484 = vsub.s32 0, %v3483
        %v3485 = vrot.slane %v3453, %v3484
        %3495 = vrot.lane.b32.xlu0 %v3252, 32
        %v3496 = vpop.permute.xlu0 %3495
        %3497 = vrot.lane.b32.xlu0 %v3254, 32
        %v3498 = vpop.permute.xlu0 %3497
        %v3499 = vsel %vm961, %v3496, %v3498
        %v3501 = vadd.f32 %v3457, %v3499
        %v3502 = vadd.f32 %v3461, %v3499
        %v3503 = vadd.f32 %v3465, %v3499
        %v3504 = vadd.f32 %v3469, %v3499
        %v3505 = vadd.f32 %v3473, %v3499
        %v3506 = vadd.f32 %v3477, %v3499
        %v3507 = vadd.f32 %v3481, %v3499
        %v3508 = vadd.f32 %v3485, %v3499
        %v3509 = vadd.f32 %v3501, %v3366
        %v3510 = vadd.f32 %v3502, %v3371
        %v3511 = vadd.f32 %v3503, %v3376
        %v3512 = vadd.f32 %v3504, %v3381
        %v3513 = vadd.f32 %v3505, %v3386
        %v3514 = vadd.f32 %v3506, %v3391
        %v3515 = vadd.f32 %v3507, %v3396
        %v3516 = vadd.f32 %v3508, %v3401
        %v3517 = vld [vmem:[%s6 + $0x9] sm:$0x1]
        %v3519 = vlaneseq
        %v3520 = vshrl.u32 %v3519, 7
        %v3521 = vsub.s32 0, %v3520
        %v3522 = vrot.slane %v3517, %v3521
        %v3524 = vadd.f32 %v3509, %v3522
        %v3525 = vadd.f32 %v3510, %v3522
        %v3526 = vadd.f32 %v3511, %v3522
        %v3527 = vadd.f32 %v3512, %v3522
        %v3528 = vadd.f32 %v3513, %v3522
        %v3529 = vadd.f32 %v3514, %v3522
        %v3530 = vadd.f32 %v3515, %v3522
        %v3531 = vadd.f32 %v3516, %v3522
        %v3532 = vxor.u32 %v3524, 2147483648
        %v3533 = vxor.u32 %v3525, 2147483648
        %v3534 = vxor.u32 %v3526, 2147483648
        %v3535 = vxor.u32 %v3527, 2147483648
        %v3536 = vxor.u32 %v3528, 2147483648
        %v3537 = vxor.u32 %v3529, 2147483648
        %v3538 = vxor.u32 %v3530, 2147483648
        %v3539 = vxor.u32 %v3531, 2147483648
        %v3540 = vmul.f32 %v3532, 1.442695
        %v3541 = vpow.pop %v3540
        %v3542 = vmul.f32 %v3533, 1.442695
        %v3543 = vpow.pop %v3542
        %v3544 = vmul.f32 %v3534, 1.442695
        %v3545 = vpow.pop %v3544
        %v3546 = vmul.f32 %v3535, 1.442695
        %v3547 = vpow.pop %v3546
        %v3548 = vmul.f32 %v3536, 1.442695
        %v3549 = vpow.pop %v3548
        %v3550 = vmul.f32 %v3537, 1.442695
        %v3551 = vpow.pop %v3550
        %v3552 = vmul.f32 %v3538, 1.442695
        %v3553 = vpow.pop %v3552
        %v3554 = vmul.f32 %v3539, 1.442695
        %v3555 = vpow.pop %v3554
        %v3556 = vadd.f32 %v3541, 1.0
        %v3557 = vadd.f32 %v3543, 1.0
        %v3558 = vadd.f32 %v3545, 1.0
        %v3559 = vadd.f32 %v3547, 1.0
        %v3560 = vadd.f32 %v3549, 1.0
        %v3561 = vadd.f32 %v3551, 1.0
        %v3562 = vadd.f32 %v3553, 1.0
        %v3563 = vadd.f32 %v3555, 1.0
        %v3564 = vrcp.pop %v3556
        %v3565 = vmul.f32 1.0, %v3564
        %v3566 = vrcp.pop %v3557
        %v3567 = vmul.f32 1.0, %v3566
        %v3568 = vrcp.pop %v3558
        %v3569 = vmul.f32 1.0, %v3568
        %v3570 = vrcp.pop %v3559
        %v3571 = vmul.f32 1.0, %v3570
        %v3572 = vrcp.pop %v3560
        %v3573 = vmul.f32 1.0, %v3572
        %v3574 = vrcp.pop %v3561
        %v3575 = vmul.f32 1.0, %v3574
        %v3576 = vrcp.pop %v3562
        %v3577 = vmul.f32 1.0, %v3576
        %v3578 = vrcp.pop %v3563
        %v3579 = vmul.f32 1.0, %v3578
        %v3580 = vmul.f32 %v3524, %v3565
        %v3581 = vmul.f32 %v3525, %v3567
        %v3582 = vmul.f32 %v3526, %v3569
        %v3583 = vmul.f32 %v3527, %v3571
        %v3584 = vmul.f32 %v3528, %v3573
        %v3585 = vmul.f32 %v3529, %v3575
        %v3586 = vmul.f32 %v3530, %v3577
        %v3587 = vmul.f32 %v3531, %v3579
        %v3588 = vld [vmem:[#allocation5] sm:$0xff]
        %v3589 = vld [vmem:[#allocation5 + $0x10] sm:$0xff]
        %v3590 = vld [vmem:[#allocation5 + $0x20] sm:$0xff]
        %v3591 = vld [vmem:[#allocation5 + $0x30] sm:$0xff]
        %v3592 = vld [vmem:[#allocation5 + $0x40] sm:$0xff]
        %v3593 = vld [vmem:[#allocation5 + $0x50] sm:$0xff]
        %v3594 = vld [vmem:[#allocation5 + $0x60] sm:$0xff]
        %v3595 = vld [vmem:[#allocation5 + $0x70] sm:$0xff]
        %v3596 = vld [vmem:[#allocation5 + $0x80] sm:$0xff]
        %v3597 = vld [vmem:[#allocation5 + $0x90] sm:$0xff]
        %v3598 = vld [vmem:[#allocation5 + $0xa0] sm:$0xff]
        %v3599 = vld [vmem:[#allocation5 + $0xb0] sm:$0xff]
        %v3600 = vld [vmem:[%s6 + $0xa] sm:$0x1]
        %v3602 = vlaneseq
        %v3603 = vshrl.u32 %v3602, 7
        %v3604 = vsub.s32 0, %v3603
        %v3605 = vrot.slane %v3600, %v3604
        %vm3607 = vcmask 785408
        %v3609 = vsel %vm3607, %v3580, 0
        %v3612 = vsel %vm3607, %v3581, 0
        %v3615 = vsel %vm3607, %v3582, 0
        %v3618 = vsel %vm3607, %v3583, 0
        %v3621 = vsel %vm3607, %v3584, 0
        %v3624 = vsel %vm3607, %v3585, 0
        %v3627 = vsel %vm3607, %v3586, 0
        %v3630 = vsel %vm3607, %v3587, 0
        %3632 = vmatprep.subr.mxu0 0.0
        %3633 = vmatpush1.msra.mxu0 %v3588
        %3634 = vmatprep.subr.mxu0 0.0
        %3635 = vmatpush1.msra.mxu0 %v3589
        %3636 = vmatprep.subr.mxu0 0.0
        %3637 = vmatpush1.msra.mxu0 %v3590
        %3638 = vmatprep.subr.mxu0 0.0
        %3639 = vmatpush1.msra.mxu0 %v3591
        %3640 = vmatprep.subr.mxu0 0.0
        %3641 = vmatpush1.msra.mxu0 %v3592
        %3642 = vmatprep.subr.mxu0 0.0
        %3643 = vmatpush1.msra.mxu0 %v3593
        %3644 = vmatprep.subr.mxu0 0.0
        %3645 = vmatpush1.msra.mxu0 %v3594
        %3646 = vmatprep.subr.mxu0 0.0
        %3647 = vmatpush1.msra.mxu0 %v3595
        %3648 = vmatprep.subr.mxu0 0.0
        %3649 = vmatpush1.msra.mxu0 %v3596
        %3650 = vmatprep.subr.mxu0 0.0
        %3651 = vmatpush1.msra.mxu0 %v3597
        %3652 = vmatprep.subr.mxu0 0.0
        %3653 = vmatpush1.msra.mxu0 %v3598
        %3654 = vmatprep.subr.mxu0 0.0
        %3655 = vmatpush1.msra.mxu0 %v3599
        %3656 = vmatprep.subr.mxu0 0.0
        %3657 = vmatpush1.msra.mxu0 0.0
        %3658 = vmatprep.subr.mxu0 0.0
        %3659 = vmatpush1.msra.mxu0 0.0
        %3660 = vmatprep.subr.mxu0 0.0
        %3661 = vmatpush1.msra.mxu0 0.0
        %3662 = vmatprep.subr.mxu0 0.0
        %3663 = vmatpush1.msra.mxu0 0.0
        %3664 = vmatprep.subr.mxu0 0.0
        %3665 = vmatpush1.msra.mxu0 0.0
        %3666 = vmatprep.subr.mxu0 0.0
        %3667 = vmatpush1.msra.mxu0 0.0
        %3668 = vmatprep.subr.mxu0 0.0
        %3669 = vmatpush1.msra.mxu0 0.0
        %3670 = vmatprep.subr.mxu0 0.0
        %3671 = vmatpush1.msra.mxu0 0.0
        %3672 = vmatprep.subr.mxu0 0.0
        %3673 = vmatpush1.msra.mxu0 0.0
        %3674 = vmatprep.subr.mxu0 0.0
        %3675 = vmatpush1.msra.mxu0 0.0
        %3676 = vmatprep.subr.mxu0 0.0
        %3677 = vmatpush1.msra.mxu0 0.0
        %3678 = vmatprep.subr.mxu0 0.0
        %3679 = vmatpush1.msra.mxu0 0.0
        %3680 = vmatprep.subr.mxu0 0.0
        %3681 = vmatpush1.msra.mxu0 0.0
        %3682 = vmatprep.subr.mxu0 0.0
        %3683 = vmatpush1.msra.mxu0 0.0
        %3684 = vmatprep.subr.mxu0 0.0
        %3685 = vmatpush1.msra.mxu0 0.0
        %3686 = vmatprep.subr.mxu0 0.0
        %3687 = vmatpush1.msra.mxu0 0.0
        %3688 = vmatprep.subr.mxu0 0.0
        %3689 = vmatpush1.msra.mxu0 0.0
        %3690 = vmatprep.subr.mxu0 0.0
        %3691 = vmatpush1.msra.mxu0 0.0
        %3692 = vmatprep.subr.mxu0 0.0
        %3693 = vmatpush1.msra.mxu0 0.0
        %3694 = vmatprep.subr.mxu0 0.0
        %3695 = vmatpush1.msra.mxu0 0.0
        %3696 = vmatprep.mubr.f32.mxu0 0.0
        %3697 = vmatmul.mubr.f32.gmra.mrb[0].mxu0 %v3609
        %v3698 = vpop.f32.mrb[0].mxu0
        %v3699 = vadd.f32 %v3605, %v3698
        %v3700 = vpop.f32.mrb[0].mxu0
        %3701 = vmatprep.mubr.f32.mxu0 0.0
        %3702 = vmatmul.mubr.f32.gmra.mrb[0].mxu0 %v3612
        %v3703 = vpop.f32.mrb[0].mxu0
        %v3704 = vadd.f32 %v3605, %v3703
        %v3705 = vpop.f32.mrb[0].mxu0
        %3706 = vmatprep.mubr.f32.mxu0 0.0
        %3707 = vmatmul.mubr.f32.gmra.mrb[0].mxu0 %v3615
        %v3708 = vpop.f32.mrb[0].mxu0
        %v3709 = vadd.f32 %v3605, %v3708
        %v3710 = vpop.f32.mrb[0].mxu0
        %3711 = vmatprep.mubr.f32.mxu0 0.0
        %3712 = vmatmul.mubr.f32.gmra.mrb[0].mxu0 %v3618
        %v3713 = vpop.f32.mrb[0].mxu0
        %v3714 = vadd.f32 %v3605, %v3713
        %v3715 = vpop.f32.mrb[0].mxu0
        %3716 = vmatprep.mubr.f32.mxu0 0.0
        %3717 = vmatmul.mubr.f32.gmra.mrb[0].mxu0 %v3621
        %v3718 = vpop.f32.mrb[0].mxu0
        %v3719 = vadd.f32 %v3605, %v3718
        %v3720 = vpop.f32.mrb[0].mxu0
        %3721 = vmatprep.mubr.f32.mxu0 0.0
        %3722 = vmatmul.mubr.f32.gmra.mrb[0].mxu0 %v3624
        %v3723 = vpop.f32.mrb[0].mxu0
        %v3724 = vadd.f32 %v3605, %v3723
        %v3725 = vpop.f32.mrb[0].mxu0
        %3726 = vmatprep.mubr.f32.mxu0 0.0
        %3727 = vmatmul.mubr.f32.gmra.mrb[0].mxu0 %v3627
        %v3728 = vpop.f32.mrb[0].mxu0
        %v3729 = vadd.f32 %v3605, %v3728
        %v3730 = vpop.f32.mrb[0].mxu0
        %3731 = vmatprep.mubr.f32.mxu0 0.0
        %3732 = vmatmul.mubr.f32.gmra.mrb[0].mxu0 %v3630
        %v3733 = vpop.f32.mrb[0].mxu0
        %v3734 = vadd.f32 %v3605, %v3733
        %v3735 = vpop.f32.mrb[0].mxu0
        %3736 = vdwg.mxu0
        %v3737 = vxor.u32 %v3699, 2147483648
        %v3738 = vxor.u32 %v3704, 2147483648
        %v3739 = vxor.u32 %v3709, 2147483648
        %v3740 = vxor.u32 %v3714, 2147483648
        %v3741 = vxor.u32 %v3719, 2147483648
        %v3742 = vxor.u32 %v3724, 2147483648
        %v3743 = vxor.u32 %v3729, 2147483648
        %v3744 = vxor.u32 %v3734, 2147483648
        %v3745 = vmul.f32 %v3737, 1.442695
        %v3746 = vpow.pop %v3745
        %v3747 = vmul.f32 %v3738, 1.442695
        %v3748 = vpow.pop %v3747
        %v3749 = vmul.f32 %v3739, 1.442695
        %v3750 = vpow.pop %v3749
        %v3751 = vmul.f32 %v3740, 1.442695
        %v3752 = vpow.pop %v3751
        %v3753 = vmul.f32 %v3741, 1.442695
        %v3754 = vpow.pop %v3753
        %v3755 = vmul.f32 %v3742, 1.442695
        %v3756 = vpow.pop %v3755
        %v3757 = vmul.f32 %v3743, 1.442695
        %v3758 = vpow.pop %v3757
        %v3759 = vmul.f32 %v3744, 1.442695
        %v3760 = vpow.pop %v3759
        %v3761 = vadd.f32 %v3746, 1.0
        %v3762 = vadd.f32 %v3748, 1.0
        %v3763 = vadd.f32 %v3750, 1.0
        %v3764 = vadd.f32 %v3752, 1.0
        %v3765 = vadd.f32 %v3754, 1.0
        %v3766 = vadd.f32 %v3756, 1.0
        %v3767 = vadd.f32 %v3758, 1.0
        %v3768 = vadd.f32 %v3760, 1.0
        %v3769 = vrcp.pop %v3761
        %v3770 = vmul.f32 1.0, %v3769
        %v3771 = vrcp.pop %v3762
        %v3772 = vmul.f32 1.0, %v3771
        %v3773 = vrcp.pop %v3763
        %v3774 = vmul.f32 1.0, %v3773
        %v3775 = vrcp.pop %v3764
        %v3776 = vmul.f32 1.0, %v3775
        %v3777 = vrcp.pop %v3765
        %v3778 = vmul.f32 1.0, %v3777
        %v3779 = vrcp.pop %v3766
        %v3780 = vmul.f32 1.0, %v3779
        %v3781 = vrcp.pop %v3767
        %v3782 = vmul.f32 1.0, %v3781
        %v3783 = vrcp.pop %v3768
        %v3784 = vmul.f32 1.0, %v3783
        %v3785 = vmul.f32 %v3699, %v3770
        %v3786 = vmul.f32 %v3704, %v3772
        %v3787 = vmul.f32 %v3709, %v3774
        %v3788 = vmul.f32 %v3714, %v3776
        %v3789 = vmul.f32 %v3719, %v3778
        %v3790 = vmul.f32 %v3724, %v3780
        %v3791 = vmul.f32 %v3729, %v3782
        %v3792 = vmul.f32 %v3734, %v3784
        %3801 = vrot.lane.b32.xlu0 %v3785, 112
        %v3802 = vpop.permute.xlu0 %3801
        %3803 = vrot.lane.b32.xlu0 %v3786, 112
        %v3804 = vpop.permute.xlu0 %3803
        %3805 = vrot.lane.b32.xlu0 %v3787, 112
        %v3806 = vpop.permute.xlu0 %3805
        %3807 = vrot.lane.b32.xlu0 %v3788, 112
        %v3808 = vpop.permute.xlu0 %3807
        %3809 = vrot.lane.b32.xlu0 %v3789, 112
        %v3810 = vpop.permute.xlu0 %3809
        %3811 = vrot.lane.b32.xlu0 %v3790, 112
        %v3812 = vpop.permute.xlu0 %3811
        %3813 = vrot.lane.b32.xlu0 %v3791, 112
        %v3814 = vpop.permute.xlu0 %3813
        %3815 = vrot.lane.b32.xlu0 %v3792, 112
        %v3816 = vpop.permute.xlu0 %3815
        %v3825 = vsub.f32 %v3785, %v3802
        %v3826 = vsub.f32 %v3786, %v3804
        %v3827 = vsub.f32 %v3787, %v3806
        %v3828 = vsub.f32 %v3788, %v3808
        %v3829 = vsub.f32 %v3789, %v3810
        %v3830 = vsub.f32 %v3790, %v3812
        %v3831 = vsub.f32 %v3791, %v3814
        %v3832 = vsub.f32 %v3792, %v3816
        %3834 = vset.pattern.permute.xlu0 0
        %3835 = vperm.xlu0 %3834, %v2764
        %v3836 = vpop.permute.xlu0 %3835
        %3839 = vset.pattern.permute.xlu0 0
        %3840 = vperm.xlu0 %3839, %v2766
        %v3841 = vpop.permute.xlu0 %3840
        %3844 = vset.pattern.permute.xlu0 0
        %3845 = vperm.xlu0 %3844, %v2768
        %v3846 = vpop.permute.xlu0 %3845
        %3849 = vset.pattern.permute.xlu0 0
        %3850 = vperm.xlu0 %3849, %v2770
        %v3851 = vpop.permute.xlu0 %3850
        %3854 = vset.pattern.permute.xlu0 0
        %3855 = vperm.xlu0 %3854, %v2772
        %v3856 = vpop.permute.xlu0 %3855
        %3859 = vset.pattern.permute.xlu0 0
        %3860 = vperm.xlu0 %3859, %v2774
        %v3861 = vpop.permute.xlu0 %3860
        %3864 = vset.pattern.permute.xlu0 0
        %3865 = vperm.xlu0 %3864, %v2776
        %v3866 = vpop.permute.xlu0 %3865
        %3869 = vset.pattern.permute.xlu0 0
        %3870 = vperm.xlu0 %3869, %v2778
        %v3871 = vpop.permute.xlu0 %3870
        %v3873 = vmul.f32 %v3836, %v3825
        %v3874 = vmul.f32 %v3841, %v3826
        %v3875 = vmul.f32 %v3846, %v3827
        %v3876 = vmul.f32 %v3851, %v3828
        %v3877 = vmul.f32 %v3856, %v3829
        %v3878 = vmul.f32 %v3861, %v3830
        %v3879 = vmul.f32 %v3866, %v3831
        %v3880 = vmul.f32 %v3871, %v3832
        %3889 = vrot.lane.b32.xlu0 %v3873, 16
        %v3890 = vpop.permute.xlu0 %3889
        %3891 = vrot.lane.b32.xlu0 %v3874, 16
        %v3892 = vpop.permute.xlu0 %3891
        %3893 = vrot.lane.b32.xlu0 %v3875, 16
        %v3894 = vpop.permute.xlu0 %3893
        %3895 = vrot.lane.b32.xlu0 %v3876, 16
        %v3896 = vpop.permute.xlu0 %3895
        %3897 = vrot.lane.b32.xlu0 %v3877, 16
        %v3898 = vpop.permute.xlu0 %3897
        %3899 = vrot.lane.b32.xlu0 %v3878, 16
        %v3900 = vpop.permute.xlu0 %3899
        %3901 = vrot.lane.b32.xlu0 %v3879, 16
        %v3902 = vpop.permute.xlu0 %3901
        %3903 = vrot.lane.b32.xlu0 %v3880, 16
        %v3904 = vpop.permute.xlu0 %3903
        %v3913 = vadd.f32 %v3785, %v3890
        %v3914 = vadd.f32 %v3786, %v3892
        %v3915 = vadd.f32 %v3787, %v3894
        %v3916 = vadd.f32 %v3788, %v3896
        %v3917 = vadd.f32 %v3789, %v3898
        %v3918 = vadd.f32 %v3790, %v3900
        %v3919 = vadd.f32 %v3791, %v3902
        %v3920 = vadd.f32 %v3792, %v3904
        %v3921 = vld [vmem:[#allocation2 + $0x10] sm:$0xff]
        %v3922 = vld [vmem:[#allocation2 + $0x68] sm:$0xff]
        %v3923 = vld [vmem:[%s6 + $0xc] sm:$0x1]
        %v3925 = vlaneseq
        %v3926 = vshrl.u32 %v3925, 7
        %v3927 = vsub.s32 0, %v3926
        %v3928 = vrot.slane %v3923, %v3927
        %3938 = vrot.lane.b32.xlu0 %v3913, 80
        %v3939 = vpop.permute.xlu0 %3938
        %3940 = vrot.lane.b32.xlu0 %v3914, 80
        %v3941 = vpop.permute.xlu0 %3940
        %3942 = vrot.lane.b32.xlu0 %v3915, 80
        %v3943 = vpop.permute.xlu0 %3942
        %3944 = vrot.lane.b32.xlu0 %v3916, 80
        %v3945 = vpop.permute.xlu0 %3944
        %3946 = vrot.lane.b32.xlu0 %v3917, 80
        %v3947 = vpop.permute.xlu0 %3946
        %3948 = vrot.lane.b32.xlu0 %v3918, 80
        %v3949 = vpop.permute.xlu0 %3948
        %3950 = vrot.lane.b32.xlu0 %v3919, 80
        %v3951 = vpop.permute.xlu0 %3950
        %3952 = vrot.lane.b32.xlu0 %v3920, 80
        %v3953 = vpop.permute.xlu0 %3952
        %v3954 = vsel %vm463, %v3939, 0
        %v3956 = vsel %vm463, %v3941, 0
        %v3958 = vsel %vm463, %v3943, 0
        %v3960 = vsel %vm463, %v3945, 0
        %v3962 = vsel %vm463, %v3947, 0
        %v3964 = vsel %vm463, %v3949, 0
        %v3966 = vsel %vm463, %v3951, 0
        %v3968 = vsel %vm463, %v3953, 0
        %3970 = vmatprep.subr.mxu0 0.0
        %3971 = vmatpush1.msra.mxu0 %v3921
        %3972 = vmatprep.subr.mxu0 0.0
        %3973 = vmatpush1.msra.mxu0 %v3922
        %3974 = vmatprep.subr.mxu0 0.0
        %3975 = vmatpush1.msra.mxu0 0.0
        %3976 = vmatprep.subr.mxu0 0.0
        %3977 = vmatpush1.msra.mxu0 0.0
        %3978 = vmatprep.subr.mxu0 0.0
        %3979 = vmatpush1.msra.mxu0 0.0
        %3980 = vmatprep.subr.mxu0 0.0
        %3981 = vmatpush1.msra.mxu0 0.0
        %3982 = vmatprep.subr.mxu0 0.0
        %3983 = vmatpush1.msra.mxu0 0.0
        %3984 = vmatprep.subr.mxu0 0.0
        %3985 = vmatpush1.msra.mxu0 0.0
        %3986 = vmatprep.subr.mxu0 0.0
        %3987 = vmatpush1.msra.mxu0 0.0
        %3988 = vmatprep.subr.mxu0 0.0
        %3989 = vmatpush1.msra.mxu0 0.0
        %3990 = vmatprep.subr.mxu0 0.0
        %3991 = vmatpush1.msra.mxu0 0.0
        %3992 = vmatprep.subr.mxu0 0.0
        %3993 = vmatpush1.msra.mxu0 0.0
        %3994 = vmatprep.subr.mxu0 0.0
        %3995 = vmatpush1.msra.mxu0 0.0
        %3996 = vmatprep.subr.mxu0 0.0
        %3997 = vmatpush1.msra.mxu0 0.0
        %3998 = vmatprep.subr.mxu0 0.0
        %3999 = vmatpush1.msra.mxu0 0.0
        %4000 = vmatprep.subr.mxu0 0.0
        %4001 = vmatpush1.msra.mxu0 0.0
        %4002 = vmatprep.subr.mxu0 0.0
        %4003 = vmatpush1.msra.mxu0 0.0
        %4004 = vmatprep.subr.mxu0 0.0
        %4005 = vmatpush1.msra.mxu0 0.0
        %4006 = vmatprep.subr.mxu0 0.0
        %4007 = vmatpush1.msra.mxu0 0.0
        %4008 = vmatprep.subr.mxu0 0.0
        %4009 = vmatpush1.msra.mxu0 0.0
        %4010 = vmatprep.subr.mxu0 0.0
        %4011 = vmatpush1.msra.mxu0 0.0
        %4012 = vmatprep.subr.mxu0 0.0
        %4013 = vmatpush1.msra.mxu0 0.0
        %4014 = vmatprep.subr.mxu0 0.0
        %4015 = vmatpush1.msra.mxu0 0.0
        %4016 = vmatprep.subr.mxu0 0.0
        %4017 = vmatpush1.msra.mxu0 0.0
        %4018 = vmatprep.subr.mxu0 0.0
        %4019 = vmatpush1.msra.mxu0 0.0
        %4020 = vmatprep.subr.mxu0 0.0
        %4021 = vmatpush1.msra.mxu0 0.0
        %4022 = vmatprep.subr.mxu0 0.0
        %4023 = vmatpush1.msra.mxu0 0.0
        %4024 = vmatprep.subr.mxu0 0.0
        %4025 = vmatpush1.msra.mxu0 0.0
        %4026 = vmatprep.subr.mxu0 0.0
        %4027 = vmatpush1.msra.mxu0 0.0
        %4028 = vmatprep.subr.mxu0 0.0
        %4029 = vmatpush1.msra.mxu0 0.0
        %4030 = vmatprep.subr.mxu0 0.0
        %4031 = vmatpush1.msra.mxu0 0.0
        %4032 = vmatprep.subr.mxu0 0.0
        %4033 = vmatpush1.msra.mxu0 0.0
        %4034 = vmatprep.mubr.f32.mxu0 0.0
        %4035 = vmatmul.mubr.f32.gmra.mrb[0].mxu0 %v3954
        %v4036 = vpop.f32.mrb[0].mxu0
        %v4037 = vadd.f32 %v3928, %v4036
        %v4038 = vpop.f32.mrb[0].mxu0
        %4039 = vmatprep.mubr.f32.mxu0 0.0
        %4040 = vmatmul.mubr.f32.gmra.mrb[0].mxu0 %v3956
        %v4041 = vpop.f32.mrb[0].mxu0
        %v4042 = vadd.f32 %v3928, %v4041
        %v4043 = vpop.f32.mrb[0].mxu0
        %4044 = vmatprep.mubr.f32.mxu0 0.0
        %4045 = vmatmul.mubr.f32.gmra.mrb[0].mxu0 %v3958
        %v4046 = vpop.f32.mrb[0].mxu0
        %v4047 = vadd.f32 %v3928, %v4046
        %v4048 = vpop.f32.mrb[0].mxu0
        %4049 = vmatprep.mubr.f32.mxu0 0.0
        %4050 = vmatmul.mubr.f32.gmra.mrb[0].mxu0 %v3960
        %v4051 = vpop.f32.mrb[0].mxu0
        %v4052 = vadd.f32 %v3928, %v4051
        %v4053 = vpop.f32.mrb[0].mxu0
        %4054 = vmatprep.mubr.f32.mxu0 0.0
        %4055 = vmatmul.mubr.f32.gmra.mrb[0].mxu0 %v3962
        %v4056 = vpop.f32.mrb[0].mxu0
        %v4057 = vadd.f32 %v3928, %v4056
        %v4058 = vpop.f32.mrb[0].mxu0
        %4059 = vmatprep.mubr.f32.mxu0 0.0
        %4060 = vmatmul.mubr.f32.gmra.mrb[0].mxu0 %v3964
        %v4061 = vpop.f32.mrb[0].mxu0
        %v4062 = vadd.f32 %v3928, %v4061
        %v4063 = vpop.f32.mrb[0].mxu0
        %4064 = vmatprep.mubr.f32.mxu0 0.0
        %4065 = vmatmul.mubr.f32.gmra.mrb[0].mxu0 %v3966
        %v4066 = vpop.f32.mrb[0].mxu0
        %v4067 = vadd.f32 %v3928, %v4066
        %v4068 = vpop.f32.mrb[0].mxu0
        %4069 = vmatprep.mubr.f32.mxu0 0.0
        %4070 = vmatmul.mubr.f32.gmra.mrb[0].mxu0 %v3968
        %v4071 = vpop.f32.mrb[0].mxu0
        %v4072 = vadd.f32 %v3928, %v4071
        %v4073 = vpop.f32.mrb[0].mxu0
        %4074 = vdwg.mxu0
        %v4075 = vxor.u32 %v4037, 2147483648
        %v4076 = vxor.u32 %v4042, 2147483648
        %v4077 = vxor.u32 %v4047, 2147483648
        %v4078 = vxor.u32 %v4052, 2147483648
        %v4079 = vxor.u32 %v4057, 2147483648
        %v4080 = vxor.u32 %v4062, 2147483648
        %v4081 = vxor.u32 %v4067, 2147483648
        %v4082 = vxor.u32 %v4072, 2147483648
        %v4083 = vmul.f32 %v4075, 1.442695
        %v4084 = vpow.pop %v4083
        %v4085 = vmul.f32 %v4076, 1.442695
        %v4086 = vpow.pop %v4085
        %v4087 = vmul.f32 %v4077, 1.442695
        %v4088 = vpow.pop %v4087
        %v4089 = vmul.f32 %v4078, 1.442695
        %v4090 = vpow.pop %v4089
        %v4091 = vmul.f32 %v4079, 1.442695
        %v4092 = vpow.pop %v4091
        %v4093 = vmul.f32 %v4080, 1.442695
        %v4094 = vpow.pop %v4093
        %v4095 = vmul.f32 %v4081, 1.442695
        %v4096 = vpow.pop %v4095
        %v4097 = vmul.f32 %v4082, 1.442695
        %v4098 = vpow.pop %v4097
        %v4099 = vadd.f32 %v4084, 1.0
        %v4100 = vadd.f32 %v4086, 1.0
        %v4101 = vadd.f32 %v4088, 1.0
        %v4102 = vadd.f32 %v4090, 1.0
        %v4103 = vadd.f32 %v4092, 1.0
        %v4104 = vadd.f32 %v4094, 1.0
        %v4105 = vadd.f32 %v4096, 1.0
        %v4106 = vadd.f32 %v4098, 1.0
        %v4107 = vrcp.pop %v4099
        %v4108 = vmul.f32 1.0, %v4107
        %v4109 = vrcp.pop %v4100
        %v4110 = vmul.f32 1.0, %v4109
        %v4111 = vrcp.pop %v4101
        %v4112 = vmul.f32 1.0, %v4111
        %v4113 = vrcp.pop %v4102
        %v4114 = vmul.f32 1.0, %v4113
        %v4115 = vrcp.pop %v4103
        %v4116 = vmul.f32 1.0, %v4115
        %v4117 = vrcp.pop %v4104
        %v4118 = vmul.f32 1.0, %v4117
        %v4119 = vrcp.pop %v4105
        %v4120 = vmul.f32 1.0, %v4119
        %v4121 = vrcp.pop %v4106
        %v4122 = vmul.f32 1.0, %v4121
        %v4123 = vmul.f32 %v4037, %v4108
        %v4124 = vmul.f32 %v4042, %v4110
        %v4125 = vmul.f32 %v4047, %v4112
        %v4126 = vmul.f32 %v4052, %v4114
        %v4127 = vmul.f32 %v4057, %v4116
        %v4128 = vmul.f32 %v4062, %v4118
        %v4129 = vmul.f32 %v4067, %v4120
        %v4130 = vmul.f32 %v4072, %v4122
        %v4131 = vld [vmem:[#allocation2 + $0x18] sm:$0xff]
        %v4132 = vld [vmem:[#allocation2 + $0x70] sm:$0xff]
        %v4133 = vld [vmem:[%s6 + $0xd] sm:$0x1]
        %v4135 = vlaneseq
        %v4136 = vshrl.u32 %v4135, 7
        %v4137 = vsub.s32 0, %v4136
        %v4138 = vrot.slane %v4133, %v4137
        %v4141 = vsel %vm463, %v4123, 0
        %v4144 = vsel %vm463, %v4124, 0
        %v4147 = vsel %vm463, %v4125, 0
        %v4150 = vsel %vm463, %v4126, 0
        %v4153 = vsel %vm463, %v4127, 0
        %v4156 = vsel %vm463, %v4128, 0
        %v4159 = vsel %vm463, %v4129, 0
        %v4162 = vsel %vm463, %v4130, 0
        %4164 = vmatprep.subr.mxu0 0.0
        %4165 = vmatpush1.msra.mxu0 %v4131
        %4166 = vmatprep.subr.mxu0 0.0
        %4167 = vmatpush1.msra.mxu0 %v4132
        %4168 = vmatprep.subr.mxu0 0.0
        %4169 = vmatpush1.msra.mxu0 0.0
        %4170 = vmatprep.subr.mxu0 0.0
        %4171 = vmatpush1.msra.mxu0 0.0
        %4172 = vmatprep.subr.mxu0 0.0
        %4173 = vmatpush1.msra.mxu0 0.0
        %4174 = vmatprep.subr.mxu0 0.0
        %4175 = vmatpush1.msra.mxu0 0.0
        %4176 = vmatprep.subr.mxu0 0.0
        %4177 = vmatpush1.msra.mxu0 0.0
        %4178 = vmatprep.subr.mxu0 0.0
        %4179 = vmatpush1.msra.mxu0 0.0
        %4180 = vmatprep.subr.mxu0 0.0
        %4181 = vmatpush1.msra.mxu0 0.0
        %4182 = vmatprep.subr.mxu0 0.0
        %4183 = vmatpush1.msra.mxu0 0.0
        %4184 = vmatprep.subr.mxu0 0.0
        %4185 = vmatpush1.msra.mxu0 0.0
        %4186 = vmatprep.subr.mxu0 0.0
        %4187 = vmatpush1.msra.mxu0 0.0
        %4188 = vmatprep.subr.mxu0 0.0
        %4189 = vmatpush1.msra.mxu0 0.0
        %4190 = vmatprep.subr.mxu0 0.0
        %4191 = vmatpush1.msra.mxu0 0.0
        %4192 = vmatprep.subr.mxu0 0.0
        %4193 = vmatpush1.msra.mxu0 0.0
        %4194 = vmatprep.subr.mxu0 0.0
        %4195 = vmatpush1.msra.mxu0 0.0
        %4196 = vmatprep.subr.mxu0 0.0
        %4197 = vmatpush1.msra.mxu0 0.0
        %4198 = vmatprep.subr.mxu0 0.0
        %4199 = vmatpush1.msra.mxu0 0.0
        %4200 = vmatprep.subr.mxu0 0.0
        %4201 = vmatpush1.msra.mxu0 0.0
        %4202 = vmatprep.subr.mxu0 0.0
        %4203 = vmatpush1.msra.mxu0 0.0
        %4204 = vmatprep.subr.mxu0 0.0
        %4205 = vmatpush1.msra.mxu0 0.0
        %4206 = vmatprep.subr.mxu0 0.0
        %4207 = vmatpush1.msra.mxu0 0.0
        %4208 = vmatprep.subr.mxu0 0.0
        %4209 = vmatpush1.msra.mxu0 0.0
        %4210 = vmatprep.subr.mxu0 0.0
        %4211 = vmatpush1.msra.mxu0 0.0
        %4212 = vmatprep.subr.mxu0 0.0
        %4213 = vmatpush1.msra.mxu0 0.0
        %4214 = vmatprep.subr.mxu0 0.0
        %4215 = vmatpush1.msra.mxu0 0.0
        %4216 = vmatprep.subr.mxu0 0.0
        %4217 = vmatpush1.msra.mxu0 0.0
        %4218 = vmatprep.subr.mxu0 0.0
        %4219 = vmatpush1.msra.mxu0 0.0
        %4220 = vmatprep.subr.mxu0 0.0
        %4221 = vmatpush1.msra.mxu0 0.0
        %4222 = vmatprep.subr.mxu0 0.0
        %4223 = vmatpush1.msra.mxu0 0.0
        %4224 = vmatprep.subr.mxu0 0.0
        %4225 = vmatpush1.msra.mxu0 0.0
        %4226 = vmatprep.subr.mxu0 0.0
        %4227 = vmatpush1.msra.mxu0 0.0
        %4228 = vmatprep.mubr.f32.mxu0 0.0
        %4229 = vmatmul.mubr.f32.gmra.mrb[0].mxu0 %v4141
        %v4230 = vpop.f32.mrb[0].mxu0
        %v4231 = vadd.f32 %v4138, %v4230
        %v4232 = vpop.f32.mrb[0].mxu0
        %4233 = vmatprep.mubr.f32.mxu0 0.0
        %4234 = vmatmul.mubr.f32.gmra.mrb[0].mxu0 %v4144
        %v4235 = vpop.f32.mrb[0].mxu0
        %v4236 = vadd.f32 %v4138, %v4235
        %v4237 = vpop.f32.mrb[0].mxu0
        %4238 = vmatprep.mubr.f32.mxu0 0.0
        %4239 = vmatmul.mubr.f32.gmra.mrb[0].mxu0 %v4147
        %v4240 = vpop.f32.mrb[0].mxu0
        %v4241 = vadd.f32 %v4138, %v4240
        %v4242 = vpop.f32.mrb[0].mxu0
        %4243 = vmatprep.mubr.f32.mxu0 0.0
        %4244 = vmatmul.mubr.f32.gmra.mrb[0].mxu0 %v4150
        %v4245 = vpop.f32.mrb[0].mxu0
        %v4246 = vadd.f32 %v4138, %v4245
        %v4247 = vpop.f32.mrb[0].mxu0
        %4248 = vmatprep.mubr.f32.mxu0 0.0
        %4249 = vmatmul.mubr.f32.gmra.mrb[0].mxu0 %v4153
        %v4250 = vpop.f32.mrb[0].mxu0
        %v4251 = vadd.f32 %v4138, %v4250
        %v4252 = vpop.f32.mrb[0].mxu0
        %4253 = vmatprep.mubr.f32.mxu0 0.0
        %4254 = vmatmul.mubr.f32.gmra.mrb[0].mxu0 %v4156
        %v4255 = vpop.f32.mrb[0].mxu0
        %v4256 = vadd.f32 %v4138, %v4255
        %v4257 = vpop.f32.mrb[0].mxu0
        %4258 = vmatprep.mubr.f32.mxu0 0.0
        %4259 = vmatmul.mubr.f32.gmra.mrb[0].mxu0 %v4159
        %v4260 = vpop.f32.mrb[0].mxu0
        %v4261 = vadd.f32 %v4138, %v4260
        %v4262 = vpop.f32.mrb[0].mxu0
        %4263 = vmatprep.mubr.f32.mxu0 0.0
        %4264 = vmatmul.mubr.f32.gmra.mrb[0].mxu0 %v4162
        %v4265 = vpop.f32.mrb[0].mxu0
        %v4266 = vadd.f32 %v4138, %v4265
        %v4267 = vpop.f32.mrb[0].mxu0
        %4268 = vdwg.mxu0
        %v4269 = vxor.u32 %v4231, 2147483648
        %v4270 = vxor.u32 %v4236, 2147483648
        %v4271 = vxor.u32 %v4241, 2147483648
        %v4272 = vxor.u32 %v4246, 2147483648
        %v4273 = vxor.u32 %v4251, 2147483648
        %v4274 = vxor.u32 %v4256, 2147483648
        %v4275 = vxor.u32 %v4261, 2147483648
        %v4276 = vxor.u32 %v4266, 2147483648
        %v4277 = vmul.f32 %v4269, 1.442695
        %v4278 = vpow.pop %v4277
        %v4279 = vmul.f32 %v4270, 1.442695
        %v4280 = vpow.pop %v4279
        %v4281 = vmul.f32 %v4271, 1.442695
        %v4282 = vpow.pop %v4281
        %v4283 = vmul.f32 %v4272, 1.442695
        %v4284 = vpow.pop %v4283
        %v4285 = vmul.f32 %v4273, 1.442695
        %v4286 = vpow.pop %v4285
        %v4287 = vmul.f32 %v4274, 1.442695
        %v4288 = vpow.pop %v4287
        %v4289 = vmul.f32 %v4275, 1.442695
        %v4290 = vpow.pop %v4289
        %v4291 = vmul.f32 %v4276, 1.442695
        %v4292 = vpow.pop %v4291
        %v4293 = vadd.f32 %v4278, 1.0
        %v4294 = vadd.f32 %v4280, 1.0
        %v4295 = vadd.f32 %v4282, 1.0
        %v4296 = vadd.f32 %v4284, 1.0
        %v4297 = vadd.f32 %v4286, 1.0
        %v4298 = vadd.f32 %v4288, 1.0
        %v4299 = vadd.f32 %v4290, 1.0
        %v4300 = vadd.f32 %v4292, 1.0
        %v4301 = vrcp.pop %v4293
        %v4302 = vmul.f32 1.0, %v4301
        %v4303 = vrcp.pop %v4294
        %v4304 = vmul.f32 1.0, %v4303
        %v4305 = vrcp.pop %v4295
        %v4306 = vmul.f32 1.0, %v4305
        %v4307 = vrcp.pop %v4296
        %v4308 = vmul.f32 1.0, %v4307
        %v4309 = vrcp.pop %v4297
        %v4310 = vmul.f32 1.0, %v4309
        %v4311 = vrcp.pop %v4298
        %v4312 = vmul.f32 1.0, %v4311
        %v4313 = vrcp.pop %v4299
        %v4314 = vmul.f32 1.0, %v4313
        %v4315 = vrcp.pop %v4300
        %v4316 = vmul.f32 1.0, %v4315
        %v4317 = vmul.f32 %v4231, %v4302
        %v4318 = vmul.f32 %v4236, %v4304
        %v4319 = vmul.f32 %v4241, %v4306
        %v4320 = vmul.f32 %v4246, %v4308
        %v4321 = vmul.f32 %v4251, %v4310
        %v4322 = vmul.f32 %v4256, %v4312
        %v4323 = vmul.f32 %v4261, %v4314
        %v4324 = vmul.f32 %v4266, %v4316
        %v4325 = vsel %vm463, %v385, 0.0
        %4326 = vadd.xlane.f32.xlu0 %v4325
        %v4327 = vpop.xlane.xlu0 %4326
        %v4328 = vsel %vm463, %v386, 0.0
        %4329 = vadd.xlane.f32.xlu0 %v4328
        %v4330 = vpop.xlane.xlu0 %4329
        %v4331 = vsel %vm463, %v387, 0.0
        %4332 = vadd.xlane.f32.xlu0 %v4331
        %v4333 = vpop.xlane.xlu0 %4332
        %v4334 = vrcp.pop 16.0
        %v4335 = vmul.f32 %v4327, %v4334
        %v4336 = vmul.f32 %v4330, %v4334
        %v4337 = vmul.f32 %v4333, %v4334
        %v4338 = vrot.slane %v4335, 4
        %v4339 = vadd.f32 %v4335, %v4338
        %v4340 = vrot.slane %v4339, 2
        %v4341 = vadd.f32 %v4339, %v4340
        %v4342 = vrot.slane %v4341, 1
        %v4343 = vadd.f32 %v4341, %v4342
        %v4344 = vrot.slane %v4336, 4
        %v4345 = vadd.f32 %v4336, %v4344
        %v4346 = vrot.slane %v4345, 2
        %v4347 = vadd.f32 %v4345, %v4346
        %v4348 = vrot.slane %v4347, 1
        %v4349 = vadd.f32 %v4347, %v4348
        %v4350 = vrot.slane %v4337, 4
        %v4351 = vadd.f32 %v4337, %v4350
        %v4352 = vrot.slane %v4351, 2
        %v4353 = vadd.f32 %v4351, %v4352
        %v4354 = vrot.slane %v4353, 1
        %v4355 = vadd.f32 %v4353, %v4354
        %v4356 = vrcp.pop 8.0
        %v4357 = vmul.f32 %v4343, %v4356
        %v4358 = vmul.f32 %v4349, %v4356
        %v4359 = vmul.f32 %v4355, %v4356
        %v4360 = vsub.f32 %v385, %v4357
        %v4361 = vsub.f32 %v386, %v4358
        %v4362 = vsub.f32 %v387, %v4359
        %4366 = vrot.lane.b32.xlu0 %v4360, 64
        %v4367 = vpop.permute.xlu0 %4366
        %4368 = vrot.lane.b32.xlu0 %v4361, 64
        %v4369 = vpop.permute.xlu0 %4368
        %4370 = vrot.lane.b32.xlu0 %v4362, 64
        %v4371 = vpop.permute.xlu0 %4370
        %v4375 = vmul.f32 %v3272, %v4367
        %v4376 = vmul.f32 %v3272, %v4369
        %v4377 = vmul.f32 %v3272, %v4371
        %4378 = vrot.lane.b32.xlu0 %v385, 64
        %v4379 = vpop.permute.xlu0 %4378
        %4380 = vrot.lane.b32.xlu0 %v386, 64
        %v4381 = vpop.permute.xlu0 %4380
        %4382 = vrot.lane.b32.xlu0 %v387, 64
        %v4383 = vpop.permute.xlu0 %4382
        %v4387 = vadd.f32 %v4375, %v4379
        %v4388 = vadd.f32 %v4376, %v4381
        %v4389 = vadd.f32 %v4377, %v4383
        %v4390 = vmul.f32 %v4317, %v2869
        %v4391 = vmul.f32 %v4318, %v2870
        %v4392 = vmul.f32 %v4319, %v2871
        %v4393 = vmul.f32 %v4320, %v2872
        %v4394 = vmul.f32 %v4321, %v2873
        %v4395 = vmul.f32 %v4322, %v2874
        %v4396 = vmul.f32 %v4323, %v2875
        %v4397 = vmul.f32 %v4324, %v2876
        %v4398 = vsel %vm463, %v4390, 0.0
        %v4399 = vrot.slane %v4398, 4
        %v4400 = vadd.f32 %v4398, %v4399
        %v4401 = vrot.slane %v4400, 2
        %v4402 = vadd.f32 %v4400, %v4401
        %v4403 = vrot.slane %v4402, 1
        %v4404 = vadd.f32 %v4402, %v4403
        %v4405 = vsel %vm463, %v4391, 0.0
        %v4406 = vrot.slane %v4405, 4
        %v4407 = vadd.f32 %v4405, %v4406
        %v4408 = vrot.slane %v4407, 2
        %v4409 = vadd.f32 %v4407, %v4408
        %v4410 = vrot.slane %v4409, 1
        %v4411 = vadd.f32 %v4409, %v4410
        %v4412 = vsel %vm463, %v4392, 0.0
        %v4413 = vrot.slane %v4412, 4
        %v4414 = vadd.f32 %v4412, %v4413
        %v4415 = vrot.slane %v4414, 2
        %v4416 = vadd.f32 %v4414, %v4415
        %v4417 = vrot.slane %v4416, 1
        %v4418 = vadd.f32 %v4416, %v4417
        %v4419 = vsel %vm463, %v4393, 0.0
        %v4420 = vrot.slane %v4419, 4
        %v4421 = vadd.f32 %v4419, %v4420
        %v4422 = vrot.slane %v4421, 2
        %v4423 = vadd.f32 %v4421, %v4422
        %v4424 = vrot.slane %v4423, 1
        %v4425 = vadd.f32 %v4423, %v4424
        %v4426 = vsel %vm463, %v4394, 0.0
        %v4427 = vrot.slane %v4426, 4
        %v4428 = vadd.f32 %v4426, %v4427
        %v4429 = vrot.slane %v4428, 2
        %v4430 = vadd.f32 %v4428, %v4429
        %v4431 = vrot.slane %v4430, 1
        %v4432 = vadd.f32 %v4430, %v4431
        %v4433 = vsel %vm463, %v4395, 0.0
        %v4434 = vrot.slane %v4433, 4
        %v4435 = vadd.f32 %v4433, %v4434
        %v4436 = vrot.slane %v4435, 2
        %v4437 = vadd.f32 %v4435, %v4436
        %v4438 = vrot.slane %v4437, 1
        %v4439 = vadd.f32 %v4437, %v4438
        %v4440 = vsel %vm463, %v4396, 0.0
        %v4441 = vrot.slane %v4440, 4
        %v4442 = vadd.f32 %v4440, %v4441
        %v4443 = vrot.slane %v4442, 2
        %v4444 = vadd.f32 %v4442, %v4443
        %v4445 = vrot.slane %v4444, 1
        %v4446 = vadd.f32 %v4444, %v4445
        %v4447 = vsel %vm463, %v4397, 0.0
        %v4448 = vrot.slane %v4447, 4
        %v4449 = vadd.f32 %v4447, %v4448
        %v4450 = vrot.slane %v4449, 2
        %v4451 = vadd.f32 %v4449, %v4450
        %v4452 = vrot.slane %v4451, 1
        %v4453 = vadd.f32 %v4451, %v4452
        %v4454 = vmul.f32 %v4317, %v2983
        %v4455 = vmul.f32 %v4318, %v2984
        %v4456 = vmul.f32 %v4319, %v2985
        %v4457 = vmul.f32 %v4320, %v2986
        %v4458 = vmul.f32 %v4321, %v2987
        %v4459 = vmul.f32 %v4322, %v2988
        %v4460 = vmul.f32 %v4323, %v2989
        %v4461 = vmul.f32 %v4324, %v2990
        %v4462 = vsel %vm463, %v4454, 0.0
        %v4463 = vrot.slane %v4462, 4
        %v4464 = vadd.f32 %v4462, %v4463
        %v4465 = vrot.slane %v4464, 2
        %v4466 = vadd.f32 %v4464, %v4465
        %v4467 = vrot.slane %v4466, 1
        %v4468 = vadd.f32 %v4466, %v4467
        %v4469 = vsel %vm463, %v4455, 0.0
        %v4470 = vrot.slane %v4469, 4
        %v4471 = vadd.f32 %v4469, %v4470
        %v4472 = vrot.slane %v4471, 2
        %v4473 = vadd.f32 %v4471, %v4472
        %v4474 = vrot.slane %v4473, 1
        %v4475 = vadd.f32 %v4473, %v4474
        %v4476 = vsel %vm463, %v4456, 0.0
        %v4477 = vrot.slane %v4476, 4
        %v4478 = vadd.f32 %v4476, %v4477
        %v4479 = vrot.slane %v4478, 2
        %v4480 = vadd.f32 %v4478, %v4479
        %v4481 = vrot.slane %v4480, 1
        %v4482 = vadd.f32 %v4480, %v4481
        %v4483 = vsel %vm463, %v4457, 0.0
        %v4484 = vrot.slane %v4483, 4
        %v4485 = vadd.f32 %v4483, %v4484
        %v4486 = vrot.slane %v4485, 2
        %v4487 = vadd.f32 %v4485, %v4486
        %v4488 = vrot.slane %v4487, 1
        %v4489 = vadd.f32 %v4487, %v4488
        %v4490 = vsel %vm463, %v4458, 0.0
        %v4491 = vrot.slane %v4490, 4
        %v4492 = vadd.f32 %v4490, %v4491
        %v4493 = vrot.slane %v4492, 2
        %v4494 = vadd.f32 %v4492, %v4493
        %v4495 = vrot.slane %v4494, 1
        %v4496 = vadd.f32 %v4494, %v4495
        %v4497 = vsel %vm463, %v4459, 0.0
        %v4498 = vrot.slane %v4497, 4
        %v4499 = vadd.f32 %v4497, %v4498
        %v4500 = vrot.slane %v4499, 2
        %v4501 = vadd.f32 %v4499, %v4500
        %v4502 = vrot.slane %v4501, 1
        %v4503 = vadd.f32 %v4501, %v4502
        %v4504 = vsel %vm463, %v4460, 0.0
        %v4505 = vrot.slane %v4504, 4
        %v4506 = vadd.f32 %v4504, %v4505
        %v4507 = vrot.slane %v4506, 2
        %v4508 = vadd.f32 %v4506, %v4507
        %v4509 = vrot.slane %v4508, 1
        %v4510 = vadd.f32 %v4508, %v4509
        %v4511 = vsel %vm463, %v4461, 0.0
        %v4512 = vrot.slane %v4511, 4
        %v4513 = vadd.f32 %v4511, %v4512
        %v4514 = vrot.slane %v4513, 2
        %v4515 = vadd.f32 %v4513, %v4514
        %v4516 = vrot.slane %v4515, 1
        %v4517 = vadd.f32 %v4515, %v4516
        %v4518 = vmul.f32 %v4317, %v3097
        %v4519 = vmul.f32 %v4318, %v3098
        %v4520 = vmul.f32 %v4319, %v3099
        %v4521 = vmul.f32 %v4320, %v3100
        %v4522 = vmul.f32 %v4321, %v3101
        %v4523 = vmul.f32 %v4322, %v3102
        %v4524 = vmul.f32 %v4323, %v3103
        %v4525 = vmul.f32 %v4324, %v3104
        %v4526 = vsel %vm463, %v4518, 0.0
        %v4527 = vrot.slane %v4526, 4
        %v4528 = vadd.f32 %v4526, %v4527
        %v4529 = vrot.slane %v4528, 2
        %v4530 = vadd.f32 %v4528, %v4529
        %v4531 = vrot.slane %v4530, 1
        %v4532 = vadd.f32 %v4530, %v4531
        %v4533 = vsel %vm463, %v4519, 0.0
        %v4534 = vrot.slane %v4533, 4
        %v4535 = vadd.f32 %v4533, %v4534
        %v4536 = vrot.slane %v4535, 2
        %v4537 = vadd.f32 %v4535, %v4536
        %v4538 = vrot.slane %v4537, 1
        %v4539 = vadd.f32 %v4537, %v4538
        %v4540 = vsel %vm463, %v4520, 0.0
        %v4541 = vrot.slane %v4540, 4
        %v4542 = vadd.f32 %v4540, %v4541
        %v4543 = vrot.slane %v4542, 2
        %v4544 = vadd.f32 %v4542, %v4543
        %v4545 = vrot.slane %v4544, 1
        %v4546 = vadd.f32 %v4544, %v4545
        %v4547 = vsel %vm463, %v4521, 0.0
        %v4548 = vrot.slane %v4547, 4
        %v4549 = vadd.f32 %v4547, %v4548
        %v4550 = vrot.slane %v4549, 2
        %v4551 = vadd.f32 %v4549, %v4550
        %v4552 = vrot.slane %v4551, 1
        %v4553 = vadd.f32 %v4551, %v4552
        %v4554 = vsel %vm463, %v4522, 0.0
        %v4555 = vrot.slane %v4554, 4
        %v4556 = vadd.f32 %v4554, %v4555
        %v4557 = vrot.slane %v4556, 2
        %v4558 = vadd.f32 %v4556, %v4557
        %v4559 = vrot.slane %v4558, 1
        %v4560 = vadd.f32 %v4558, %v4559
        %v4561 = vsel %vm463, %v4523, 0.0
        %v4562 = vrot.slane %v4561, 4
        %v4563 = vadd.f32 %v4561, %v4562
        %v4564 = vrot.slane %v4563, 2
        %v4565 = vadd.f32 %v4563, %v4564
        %v4566 = vrot.slane %v4565, 1
        %v4567 = vadd.f32 %v4565, %v4566
        %v4568 = vsel %vm463, %v4524, 0.0
        %v4569 = vrot.slane %v4568, 4
        %v4570 = vadd.f32 %v4568, %v4569
        %v4571 = vrot.slane %v4570, 2
        %v4572 = vadd.f32 %v4570, %v4571
        %v4573 = vrot.slane %v4572, 1
        %v4574 = vadd.f32 %v4572, %v4573
        %v4575 = vsel %vm463, %v4525, 0.0
        %v4576 = vrot.slane %v4575, 4
        %v4577 = vadd.f32 %v4575, %v4576
        %v4578 = vrot.slane %v4577, 2
        %v4579 = vadd.f32 %v4577, %v4578
        %v4580 = vrot.slane %v4579, 1
        %v4581 = vadd.f32 %v4579, %v4580
        %v4606 = vrot.slane %v4411, 7
        %v4607 = vsel %vm2005, %v4606, %v4404
        %v4608 = vrot.slane %v4418, 6
        %v4609 = vsel %vm2007, %v4608, %v4607
        %v4610 = vrot.slane %v4425, 5
        %v4611 = vsel %vm2009, %v4610, %v4609
        %v4612 = vrot.slane %v4432, 4
        %v4613 = vsel %vm2011, %v4612, %v4611
        %v4614 = vrot.slane %v4439, 3
        %v4615 = vsel %vm2013, %v4614, %v4613
        %v4616 = vrot.slane %v4446, 2
        %v4617 = vsel %vm2015, %v4616, %v4615
        %v4618 = vrot.slane %v4453, 1
        %v4619 = vsel %vm2017, %v4618, %v4617
        %v4620 = vrot.slane %v4475, 7
        %v4621 = vsel %vm2005, %v4620, %v4468
        %v4622 = vrot.slane %v4482, 6
        %v4623 = vsel %vm2007, %v4622, %v4621
        %v4624 = vrot.slane %v4489, 5
        %v4625 = vsel %vm2009, %v4624, %v4623
        %v4626 = vrot.slane %v4496, 4
        %v4627 = vsel %vm2011, %v4626, %v4625
        %v4628 = vrot.slane %v4503, 3
        %v4629 = vsel %vm2013, %v4628, %v4627
        %v4630 = vrot.slane %v4510, 2
        %v4631 = vsel %vm2015, %v4630, %v4629
        %v4632 = vrot.slane %v4517, 1
        %v4633 = vsel %vm2017, %v4632, %v4631
        %v4634 = vrot.slane %v4539, 7
        %v4635 = vsel %vm2005, %v4634, %v4532
        %v4636 = vrot.slane %v4546, 6
        %v4637 = vsel %vm2007, %v4636, %v4635
        %v4638 = vrot.slane %v4553, 5
        %v4639 = vsel %vm2009, %v4638, %v4637
        %v4640 = vrot.slane %v4560, 4
        %v4641 = vsel %vm2011, %v4640, %v4639
        %v4642 = vrot.slane %v4567, 3
        %v4643 = vsel %vm2013, %v4642, %v4641
        %v4644 = vrot.slane %v4574, 2
        %v4645 = vsel %vm2015, %v4644, %v4643
        %v4646 = vrot.slane %v4581, 1
        %v4647 = vsel %vm2017, %v4646, %v4645
        %4648 = vrot.lane.b32.xlu0 %v4619, 64
        %v4649 = vpop.permute.xlu0 %4648
        %4650 = vrot.lane.b32.xlu0 %v4633, 64
        %v4651 = vpop.permute.xlu0 %4650
        %4652 = vrot.lane.b32.xlu0 %v4647, 64
        %v4653 = vpop.permute.xlu0 %4652
        %v4657 = vadd.f32 %v4387, %v4649
        %v4658 = vadd.f32 %v4388, %v4651
        %v4659 = vadd.f32 %v4389, %v4653
        %v4660 = vld [vmem:[#allocation2 + $0x20] sm:$0xff]
        %v4661 = vld [vmem:[#allocation2 + $0x78] sm:$0xff]
        %v4662 = vsel %vm463, %v388, 0
        %v4664 = vsel %vm463, %v389, 0
        %v4666 = vsel %vm463, %v390, 0
        %4668 = vmatprep.subr.mxu0 0.0
        %4669 = vmatpush1.msra.mxu0 %v4660
        %4670 = vmatprep.subr.mxu0 0.0
        %4671 = vmatpush1.msra.mxu0 %v4661
        %4672 = vmatprep.subr.mxu0 0.0
        %4673 = vmatpush1.msra.mxu0 0.0
        %4674 = vmatprep.subr.mxu0 0.0
        %4675 = vmatpush1.msra.mxu0 0.0
        %4676 = vmatprep.subr.mxu0 0.0
        %4677 = vmatpush1.msra.mxu0 0.0
        %4678 = vmatprep.subr.mxu0 0.0
        %4679 = vmatpush1.msra.mxu0 0.0
        %4680 = vmatprep.subr.mxu0 0.0
        %4681 = vmatpush1.msra.mxu0 0.0
        %4682 = vmatprep.subr.mxu0 0.0
        %4683 = vmatpush1.msra.mxu0 0.0
        %4684 = vmatprep.subr.mxu0 0.0
        %4685 = vmatpush1.msra.mxu0 0.0
        %4686 = vmatprep.subr.mxu0 0.0
        %4687 = vmatpush1.msra.mxu0 0.0
        %4688 = vmatprep.subr.mxu0 0.0
        %4689 = vmatpush1.msra.mxu0 0.0
        %4690 = vmatprep.subr.mxu0 0.0
        %4691 = vmatpush1.msra.mxu0 0.0
        %4692 = vmatprep.subr.mxu0 0.0
        %4693 = vmatpush1.msra.mxu0 0.0
        %4694 = vmatprep.subr.mxu0 0.0
        %4695 = vmatpush1.msra.mxu0 0.0
        %4696 = vmatprep.subr.mxu0 0.0
        %4697 = vmatpush1.msra.mxu0 0.0
        %4698 = vmatprep.subr.mxu0 0.0
        %4699 = vmatpush1.msra.mxu0 0.0
        %4700 = vmatprep.subr.mxu0 0.0
        %4701 = vmatpush1.msra.mxu0 0.0
        %4702 = vmatprep.subr.mxu0 0.0
        %4703 = vmatpush1.msra.mxu0 0.0
        %4704 = vmatprep.subr.mxu0 0.0
        %4705 = vmatpush1.msra.mxu0 0.0
        %4706 = vmatprep.subr.mxu0 0.0
        %4707 = vmatpush1.msra.mxu0 0.0
        %4708 = vmatprep.subr.mxu0 0.0
        %4709 = vmatpush1.msra.mxu0 0.0
        %4710 = vmatprep.subr.mxu0 0.0
        %4711 = vmatpush1.msra.mxu0 0.0
        %4712 = vmatprep.subr.mxu0 0.0
        %4713 = vmatpush1.msra.mxu0 0.0
        %4714 = vmatprep.subr.mxu0 0.0
        %4715 = vmatpush1.msra.mxu0 0.0
        %4716 = vmatprep.subr.mxu0 0.0
        %4717 = vmatpush1.msra.mxu0 0.0
        %4718 = vmatprep.subr.mxu0 0.0
        %4719 = vmatpush1.msra.mxu0 0.0
        %4720 = vmatprep.subr.mxu0 0.0
        %4721 = vmatpush1.msra.mxu0 0.0
        %4722 = vmatprep.subr.mxu0 0.0
        %4723 = vmatpush1.msra.mxu0 0.0
        %4724 = vmatprep.subr.mxu0 0.0
        %4725 = vmatpush1.msra.mxu0 0.0
        %4726 = vmatprep.subr.mxu0 0.0
        %4727 = vmatpush1.msra.mxu0 0.0
        %4728 = vmatprep.subr.mxu0 0.0
        %4729 = vmatpush1.msra.mxu0 0.0
        %4730 = vmatprep.subr.mxu0 0.0
        %4731 = vmatpush1.msra.mxu0 0.0
        %4732 = vmatprep.mubr.f32.mxu0 0.0
        %4733 = vmatmul.mubr.f32.gmra.mrb[0].mxu0 %v4662
        %v4734 = vpop.f32.mrb[0].mxu0
        %v4735 = vadd.f32 0.0, %v4734
        %v4736 = vpop.f32.mrb[0].mxu0
        %4737 = vmatprep.mubr.f32.mxu0 0.0
        %4738 = vmatmul.mubr.f32.gmra.mrb[0].mxu0 %v4664
        %v4739 = vpop.f32.mrb[0].mxu0
        %v4740 = vadd.f32 0.0, %v4739
        %v4741 = vpop.f32.mrb[0].mxu0
        %4742 = vmatprep.mubr.f32.mxu0 0.0
        %4743 = vmatmul.mubr.f32.gmra.mrb[0].mxu0 %v4666
        %v4744 = vpop.f32.mrb[0].mxu0
        %v4745 = vadd.f32 0.0, %v4744
        %v4746 = vpop.f32.mrb[0].mxu0
        %4747 = vdwg.mxu0
        %4751 = vrot.lane.b32.xlu0 %v4735, 64
        %v4752 = vpop.permute.xlu0 %4751
        %4753 = vrot.lane.b32.xlu0 %v4740, 64
        %v4754 = vpop.permute.xlu0 %4753
        %4755 = vrot.lane.b32.xlu0 %v4745, 64
        %v4756 = vpop.permute.xlu0 %4755
        %v4760 = vadd.f32 %v4657, %v4752
        %v4761 = vadd.f32 %v4658, %v4754
        %v4762 = vadd.f32 %v4659, %v4756
        %4766 = vrot.lane.b32.xlu0 %v4760, 64
        %v4767 = vpop.permute.xlu0 %4766
        %4768 = vrot.lane.b32.xlu0 %v4761, 64
        %v4769 = vpop.permute.xlu0 %4768
        %4770 = vrot.lane.b32.xlu0 %v4762, 64
        %v4771 = vpop.permute.xlu0 %4770
        %v4775 = vsel %vm463, %v4767, 0.0
        %4776 = vadd.xlane.f32.xlu0 %v4775
        %v4777 = vpop.xlane.xlu0 %4776
        %v4778 = vsel %vm463, %v4769, 0.0
        %4779 = vadd.xlane.f32.xlu0 %v4778
        %v4780 = vpop.xlane.xlu0 %4779
        %v4781 = vsel %vm463, %v4771, 0.0
        %4782 = vadd.xlane.f32.xlu0 %v4781
        %v4783 = vpop.xlane.xlu0 %4782
        %v4784 = vmul.f32 %v4777, %v4334
        %v4785 = vmul.f32 %v4780, %v4334
        %v4786 = vmul.f32 %v4783, %v4334
        %v4787 = vrot.slane %v4784, 4
        %v4788 = vadd.f32 %v4784, %v4787
        %v4789 = vrot.slane %v4788, 2
        %v4790 = vadd.f32 %v4788, %v4789
        %v4791 = vrot.slane %v4790, 1
        %v4792 = vadd.f32 %v4790, %v4791
        %v4793 = vrot.slane %v4785, 4
        %v4794 = vadd.f32 %v4785, %v4793
        %v4795 = vrot.slane %v4794, 2
        %v4796 = vadd.f32 %v4794, %v4795
        %v4797 = vrot.slane %v4796, 1
        %v4798 = vadd.f32 %v4796, %v4797
        %v4799 = vrot.slane %v4786, 4
        %v4800 = vadd.f32 %v4786, %v4799
        %v4801 = vrot.slane %v4800, 2
        %v4802 = vadd.f32 %v4800, %v4801
        %v4803 = vrot.slane %v4802, 1
        %v4804 = vadd.f32 %v4802, %v4803
        %v4805 = vmul.f32 %v4792, %v4356
        %v4806 = vmul.f32 %v4798, %v4356
        %v4807 = vmul.f32 %v4804, %v4356
        %v4808 = vsub.f32 %v4760, %v4805
        %v4809 = vsub.f32 %v4761, %v4806
        %v4810 = vsub.f32 %v4762, %v4807
        %v4811 = vld [vmem:[#allocation2 + $0x28] sm:$0xff]
        %v4812 = vld [vmem:[#allocation2 + $0x80] sm:$0xff]
        %4816 = vrot.lane.b32.xlu0 %v4808, 64
        %v4817 = vpop.permute.xlu0 %4816
        %4818 = vrot.lane.b32.xlu0 %v4809, 64
        %v4819 = vpop.permute.xlu0 %4818
        %4820 = vrot.lane.b32.xlu0 %v4810, 64
        %v4821 = vpop.permute.xlu0 %4820
        %v4822 = vsel %vm463, %v4817, 0
        %v4824 = vsel %vm463, %v4819, 0
        %v4826 = vsel %vm463, %v4821, 0
        %4828 = vmatprep.subr.mxu0 0.0
        %4829 = vmatpush1.msra.mxu0 %v4811
        %4830 = vmatprep.subr.mxu0 0.0
        %4831 = vmatpush1.msra.mxu0 %v4812
        %4832 = vmatprep.subr.mxu0 0.0
        %4833 = vmatpush1.msra.mxu0 0.0
        %4834 = vmatprep.subr.mxu0 0.0
        %4835 = vmatpush1.msra.mxu0 0.0
        %4836 = vmatprep.subr.mxu0 0.0
        %4837 = vmatpush1.msra.mxu0 0.0
        %4838 = vmatprep.subr.mxu0 0.0
        %4839 = vmatpush1.msra.mxu0 0.0
        %4840 = vmatprep.subr.mxu0 0.0
        %4841 = vmatpush1.msra.mxu0 0.0
        %4842 = vmatprep.subr.mxu0 0.0
        %4843 = vmatpush1.msra.mxu0 0.0
        %4844 = vmatprep.subr.mxu0 0.0
        %4845 = vmatpush1.msra.mxu0 0.0
        %4846 = vmatprep.subr.mxu0 0.0
        %4847 = vmatpush1.msra.mxu0 0.0
        %4848 = vmatprep.subr.mxu0 0.0
        %4849 = vmatpush1.msra.mxu0 0.0
        %4850 = vmatprep.subr.mxu0 0.0
        %4851 = vmatpush1.msra.mxu0 0.0
        %4852 = vmatprep.subr.mxu0 0.0
        %4853 = vmatpush1.msra.mxu0 0.0
        %4854 = vmatprep.subr.mxu0 0.0
        %4855 = vmatpush1.msra.mxu0 0.0
        %4856 = vmatprep.subr.mxu0 0.0
        %4857 = vmatpush1.msra.mxu0 0.0
        %4858 = vmatprep.subr.mxu0 0.0
        %4859 = vmatpush1.msra.mxu0 0.0
        %4860 = vmatprep.subr.mxu0 0.0
        %4861 = vmatpush1.msra.mxu0 0.0
        %4862 = vmatprep.subr.mxu0 0.0
        %4863 = vmatpush1.msra.mxu0 0.0
        %4864 = vmatprep.subr.mxu0 0.0
        %4865 = vmatpush1.msra.mxu0 0.0
        %4866 = vmatprep.subr.mxu0 0.0
        %4867 = vmatpush1.msra.mxu0 0.0
        %4868 = vmatprep.subr.mxu0 0.0
        %4869 = vmatpush1.msra.mxu0 0.0
        %4870 = vmatprep.subr.mxu0 0.0
        %4871 = vmatpush1.msra.mxu0 0.0
        %4872 = vmatprep.subr.mxu0 0.0
        %4873 = vmatpush1.msra.mxu0 0.0
        %4874 = vmatprep.subr.mxu0 0.0
        %4875 = vmatpush1.msra.mxu0 0.0
        %4876 = vmatprep.subr.mxu0 0.0
        %4877 = vmatpush1.msra.mxu0 0.0
        %4878 = vmatprep.subr.mxu0 0.0
        %4879 = vmatpush1.msra.mxu0 0.0
        %4880 = vmatprep.subr.mxu0 0.0
        %4881 = vmatpush1.msra.mxu0 0.0
        %4882 = vmatprep.subr.mxu0 0.0
        %4883 = vmatpush1.msra.mxu0 0.0
        %4884 = vmatprep.subr.mxu0 0.0
        %4885 = vmatpush1.msra.mxu0 0.0
        %4886 = vmatprep.subr.mxu0 0.0
        %4887 = vmatpush1.msra.mxu0 0.0
        %4888 = vmatprep.subr.mxu0 0.0
        %4889 = vmatpush1.msra.mxu0 0.0
        %4890 = vmatprep.subr.mxu0 0.0
        %4891 = vmatpush1.msra.mxu0 0.0
        %4892 = vmatprep.mubr.f32.mxu0 0.0
        %4893 = vmatmul.mubr.f32.gmra.mrb[0].mxu0 %v4822
        %v4894 = vpop.f32.mrb[0].mxu0
        %v4895 = vadd.f32 0.0, %v4894
        %v4896 = vpop.f32.mrb[0].mxu0
        %4897 = vmatprep.mubr.f32.mxu0 0.0
        %4898 = vmatmul.mubr.f32.gmra.mrb[0].mxu0 %v4824
        %v4899 = vpop.f32.mrb[0].mxu0
        %v4900 = vadd.f32 0.0, %v4899
        %v4901 = vpop.f32.mrb[0].mxu0
        %4902 = vmatprep.mubr.f32.mxu0 0.0
        %4903 = vmatmul.mubr.f32.gmra.mrb[0].mxu0 %v4826
        %v4904 = vpop.f32.mrb[0].mxu0
        %v4905 = vadd.f32 0.0, %v4904
        %v4906 = vpop.f32.mrb[0].mxu0
        %4907 = vdwg.mxu0
        %4911 = vrot.lane.b32.xlu0 %v4895, 112
        %v4912 = vpop.permute.xlu0 %4911
        %4913 = vrot.lane.b32.xlu0 %v4900, 112
        %v4914 = vpop.permute.xlu0 %4913
        %4915 = vrot.lane.b32.xlu0 %v4905, 112
        %v4916 = vpop.permute.xlu0 %4915
        %v4920 = vmul.f32 %v4895, %v4912
        %v4921 = vmul.f32 %v4900, %v4914
        %v4922 = vmul.f32 %v4905, %v4916
        %v4923 = vsel %vm463, %v4920, 0.0
        %v4924 = vsel %vm463, %v4921, 0.0
        %v4925 = vadd.f32 %v4923, %v4924
        %v4926 = vsel %vm463, %v4922, 0.0
        %v4927 = vadd.f32 %v4925, %v4926
        %v4928 = vmul.f32 %v4895, %v4895
        %v4929 = vmul.f32 %v4900, %v4900
        %v4930 = vmul.f32 %v4905, %v4905
        %vm4931 = vcmask 261248
        %v4932 = vsel %vm4931, %v4928, 0.0
        %v4933 = vsel %vm4931, %v4929, 0.0
        %v4934 = vadd.f32 %v4932, %v4933
        %v4935 = vsel %vm4931, %v4930, 0.0
        %v4936 = vadd.f32 %v4934, %v4935
        %v4937 = vadd.f32 %v4936, 0.0001
        %v4938 = vrcp.pop %v4937
        %4940 = vrot.lane.b32.xlu0 %v4938, 112
        %v4941 = vpop.permute.xlu0 %4940
        %v4943 = vmul.f32 %v4927, %v4941
        %v4944 = vmul.f32 %v4943, %v4912
        %v4945 = vmul.f32 %v4943, %v4914
        %v4946 = vmul.f32 %v4943, %v4916
        %v4947 = vsub.f32 %v4895, %v4944
        %v4948 = vsub.f32 %v4900, %v4945
        %v4949 = vsub.f32 %v4905, %v4946
        %vm4950 = vcmp.ge.f32.partialorder %v4927, 0.0
        %v4951 = vsel %vm4950, 1, 0
        %vm4952 = vcmp.eq.s32.totalorder %v4951, 1
        %v4953 = vsel %vm4952, %v4895, %v4947
        %v4954 = vsel %vm4952, %v4900, %v4948
        %v4955 = vsel %vm4952, %v4905, %v4949
        %v4956 = vadd.f32 %v4953, %v4805
        %v4957 = vadd.f32 %v4954, %v4806
        %v4958 = vadd.f32 %v4955, %v4807
        %v4959 = vmul.f32 %v3785, %v404
        %v4960 = vmul.f32 %v3786, %v411
        %v4961 = vmul.f32 %v3787, %v418
        %v4962 = vmul.f32 %v3788, %v425
        %v4963 = vmul.f32 %v3789, %v432
        %v4964 = vmul.f32 %v3790, %v439
        %v4965 = vmul.f32 %v3791, %v446
        %v4966 = vmul.f32 %v3792, %v453
        %v4967 = vsel %vm961, %v4959, 0.0
        %v4968 = vrot.slane %v4967, 4
        %v4969 = vadd.f32 %v4967, %v4968
        %v4970 = vrot.slane %v4969, 2
        %v4971 = vadd.f32 %v4969, %v4970
        %v4972 = vrot.slane %v4971, 1
        %v4973 = vadd.f32 %v4971, %v4972
        %v4974 = vsel %vm961, %v4960, 0.0
        %v4975 = vrot.slane %v4974, 4
        %v4976 = vadd.f32 %v4974, %v4975
        %v4977 = vrot.slane %v4976, 2
        %v4978 = vadd.f32 %v4976, %v4977
        %v4979 = vrot.slane %v4978, 1
        %v4980 = vadd.f32 %v4978, %v4979
        %v4981 = vsel %vm961, %v4961, 0.0
        %v4982 = vrot.slane %v4981, 4
        %v4983 = vadd.f32 %v4981, %v4982
        %v4984 = vrot.slane %v4983, 2
        %v4985 = vadd.f32 %v4983, %v4984
        %v4986 = vrot.slane %v4985, 1
        %v4987 = vadd.f32 %v4985, %v4986
        %v4988 = vsel %vm961, %v4962, 0.0
        %v4989 = vrot.slane %v4988, 4
        %v4990 = vadd.f32 %v4988, %v4989
        %v4991 = vrot.slane %v4990, 2
        %v4992 = vadd.f32 %v4990, %v4991
        %v4993 = vrot.slane %v4992, 1
        %v4994 = vadd.f32 %v4992, %v4993
        %v4995 = vsel %vm961, %v4963, 0.0
        %v4996 = vrot.slane %v4995, 4
        %v4997 = vadd.f32 %v4995, %v4996
        %v4998 = vrot.slane %v4997, 2
        %v4999 = vadd.f32 %v4997, %v4998
        %v5000 = vrot.slane %v4999, 1
        %v5001 = vadd.f32 %v4999, %v5000
        %v5002 = vsel %vm961, %v4964, 0.0
        %v5003 = vrot.slane %v5002, 4
        %v5004 = vadd.f32 %v5002, %v5003
        %v5005 = vrot.slane %v5004, 2
        %v5006 = vadd.f32 %v5004, %v5005
        %v5007 = vrot.slane %v5006, 1
        %v5008 = vadd.f32 %v5006, %v5007
        %v5009 = vsel %vm961, %v4965, 0.0
        %v5010 = vrot.slane %v5009, 4
        %v5011 = vadd.f32 %v5009, %v5010
        %v5012 = vrot.slane %v5011, 2
        %v5013 = vadd.f32 %v5011, %v5012
        %v5014 = vrot.slane %v5013, 1
        %v5015 = vadd.f32 %v5013, %v5014
        %v5016 = vsel %vm961, %v4966, 0.0
        %v5017 = vrot.slane %v5016, 4
        %v5018 = vadd.f32 %v5016, %v5017
        %v5019 = vrot.slane %v5018, 2
        %v5020 = vadd.f32 %v5018, %v5019
        %v5021 = vrot.slane %v5020, 1
        %v5022 = vadd.f32 %v5020, %v5021
        %v5023 = vld [vmem:[%s4 + $0x58] sm:$0xff]
        %v5024 = vld [vmem:[%s4 + $0xe0] sm:$0xff]
        %v5025 = vld [vmem:[%s4 + $0x168] sm:$0xff]
        %v5026 = vld [vmem:[%s4 + $0x1f0] sm:$0xff]
        %v5035 = vsel %vm2005, %v4980, %v4973
        %v5036 = vsel %vm2007, %v4987, %v5035
        %v5037 = vsel %vm2009, %v4994, %v5036
        %v5038 = vsel %vm2011, %v5001, %v5037
        %v5039 = vsel %vm2013, %v5008, %v5038
        %v5040 = vsel %vm2015, %v5015, %v5039
        %v5041 = vsel %vm2017, %v5022, %v5040
        %v5042 = vsel %vm961, %v5041, 0
        %5044 = vmatprep.subr.mxu0 0.0
        %5045 = vmatpush1.msra.mxu0 %v5023
        %5046 = vmatprep.subr.mxu0 0.0
        %5047 = vmatpush1.msra.mxu0 %v5024
        %5048 = vmatprep.subr.mxu0 0.0
        %5049 = vmatpush1.msra.mxu0 %v5025
        %5050 = vmatprep.subr.mxu0 0.0
        %5051 = vmatpush1.msra.mxu0 %v5026
        %5052 = vmatprep.subr.mxu0 0.0
        %5053 = vmatpush1.msra.mxu0 0.0
        %5054 = vmatprep.subr.mxu0 0.0
        %5055 = vmatpush1.msra.mxu0 0.0
        %5056 = vmatprep.subr.mxu0 0.0
        %5057 = vmatpush1.msra.mxu0 0.0
        %5058 = vmatprep.subr.mxu0 0.0
        %5059 = vmatpush1.msra.mxu0 0.0
        %5060 = vmatprep.subr.mxu0 0.0
        %5061 = vmatpush1.msra.mxu0 0.0
        %5062 = vmatprep.subr.mxu0 0.0
        %5063 = vmatpush1.msra.mxu0 0.0
        %5064 = vmatprep.subr.mxu0 0.0
        %5065 = vmatpush1.msra.mxu0 0.0
        %5066 = vmatprep.subr.mxu0 0.0
        %5067 = vmatpush1.msra.mxu0 0.0
        %5068 = vmatprep.subr.mxu0 0.0
        %5069 = vmatpush1.msra.mxu0 0.0
        %5070 = vmatprep.subr.mxu0 0.0
        %5071 = vmatpush1.msra.mxu0 0.0
        %5072 = vmatprep.subr.mxu0 0.0
        %5073 = vmatpush1.msra.mxu0 0.0
        %5074 = vmatprep.subr.mxu0 0.0
        %5075 = vmatpush1.msra.mxu0 0.0
        %5076 = vmatprep.subr.mxu0 0.0
        %5077 = vmatpush1.msra.mxu0 0.0
        %5078 = vmatprep.subr.mxu0 0.0
        %5079 = vmatpush1.msra.mxu0 0.0
        %5080 = vmatprep.subr.mxu0 0.0
        %5081 = vmatpush1.msra.mxu0 0.0
        %5082 = vmatprep.subr.mxu0 0.0
        %5083 = vmatpush1.msra.mxu0 0.0
        %5084 = vmatprep.subr.mxu0 0.0
        %5085 = vmatpush1.msra.mxu0 0.0
        %5086 = vmatprep.subr.mxu0 0.0
        %5087 = vmatpush1.msra.mxu0 0.0
        %5088 = vmatprep.subr.mxu0 0.0
        %5089 = vmatpush1.msra.mxu0 0.0
        %5090 = vmatprep.subr.mxu0 0.0
        %5091 = vmatpush1.msra.mxu0 0.0
        %5092 = vmatprep.subr.mxu0 0.0
        %5093 = vmatpush1.msra.mxu0 0.0
        %5094 = vmatprep.subr.mxu0 0.0
        %5095 = vmatpush1.msra.mxu0 0.0
        %5096 = vmatprep.subr.mxu0 0.0
        %5097 = vmatpush1.msra.mxu0 0.0
        %5098 = vmatprep.subr.mxu0 0.0
        %5099 = vmatpush1.msra.mxu0 0.0
        %5100 = vmatprep.subr.mxu0 0.0
        %5101 = vmatpush1.msra.mxu0 0.0
        %5102 = vmatprep.subr.mxu0 0.0
        %5103 = vmatpush1.msra.mxu0 0.0
        %5104 = vmatprep.subr.mxu0 0.0
        %5105 = vmatpush1.msra.mxu0 0.0
        %5106 = vmatprep.subr.mxu0 0.0
        %5107 = vmatpush1.msra.mxu0 0.0
        %5108 = vmatprep.mubr.f32.mxu0 0.0
        %5109 = vmatmul.mubr.f32.gmra.mrb[0].mxu0 %v5042
        %v5110 = vpop.f32.mrb[0].mxu0
        %v5111 = vadd.f32 0.0, %v5110
        %v5112 = vpop.f32.mrb[0].mxu0
        %5113 = vdwg.mxu0
        %5115 = vrot.lane.b32.xlu0 %v5111, 80
        %v5116 = vpop.permute.xlu0 %5115
        %v5118 = vadd.f32 %v3254, %v5116
        %v5119 = vld [vmem:[%s6 + $0xe] sm:$0x1]
        %v5121 = vlaneseq
        %v5122 = vshrl.u32 %v5121, 7
        %v5123 = vsub.s32 0, %v5122
        %v5124 = vrot.slane %v5119, %v5123
        %5125 = vrot.lane.b32.xlu0 %v5124, 80
        %v5126 = vpop.permute.xlu0 %5125
        %v5128 = vadd.f32 %v5118, %v5126
        %v5129 = vxor.u32 %v5128, 2147483648
        %v5130 = vmul.f32 %v5129, 1.442695
        %v5131 = vpow.pop %v5130
        %v5132 = vadd.f32 %v5131, 1.0
        %v5133 = vrcp.pop %v5132
        %v5134 = vmul.f32 1.0, %v5133
        %v5135 = vmul.f32 %v5128, %v5134
        %v5136 = vld [vmem:[%s4 + $0x60] sm:$0xff]
        %v5137 = vld [vmem:[%s4 + $0xe8] sm:$0xff]
        %v5138 = vld [vmem:[%s4 + $0x170] sm:$0xff]
        %v5139 = vld [vmem:[%s4 + $0x1f8] sm:$0xff]
        %v5140 = vld [vmem:[%s6 + $0xf] sm:$0x1]
        %v5142 = vlaneseq
        %v5143 = vshrl.u32 %v5142, 7
        %v5144 = vsub.s32 0, %v5143
        %v5145 = vrot.slane %v5140, %v5144
        %5148 = vrot.lane.b32.xlu0 %v5135, 48
        %v5149 = vpop.permute.xlu0 %5148
        %v5150 = vsel %vm961, %v5149, 0
        %5152 = vmatprep.subr.mxu0 0.0
        %5153 = vmatpush1.msra.mxu0 %v5136
        %5154 = vmatprep.subr.mxu0 0.0
        %5155 = vmatpush1.msra.mxu0 %v5137
        %5156 = vmatprep.subr.mxu0 0.0
        %5157 = vmatpush1.msra.mxu0 %v5138
        %5158 = vmatprep.subr.mxu0 0.0
        %5159 = vmatpush1.msra.mxu0 %v5139
        %5160 = vmatprep.subr.mxu0 0.0
        %5161 = vmatpush1.msra.mxu0 0.0
        %5162 = vmatprep.subr.mxu0 0.0
        %5163 = vmatpush1.msra.mxu0 0.0
        %5164 = vmatprep.subr.mxu0 0.0
        %5165 = vmatpush1.msra.mxu0 0.0
        %5166 = vmatprep.subr.mxu0 0.0
        %5167 = vmatpush1.msra.mxu0 0.0
        %5168 = vmatprep.subr.mxu0 0.0
        %5169 = vmatpush1.msra.mxu0 0.0
        %5170 = vmatprep.subr.mxu0 0.0
        %5171 = vmatpush1.msra.mxu0 0.0
        %5172 = vmatprep.subr.mxu0 0.0
        %5173 = vmatpush1.msra.mxu0 0.0
        %5174 = vmatprep.subr.mxu0 0.0
        %5175 = vmatpush1.msra.mxu0 0.0
        %5176 = vmatprep.subr.mxu0 0.0
        %5177 = vmatpush1.msra.mxu0 0.0
        %5178 = vmatprep.subr.mxu0 0.0
        %5179 = vmatpush1.msra.mxu0 0.0
        %5180 = vmatprep.subr.mxu0 0.0
        %5181 = vmatpush1.msra.mxu0 0.0
        %5182 = vmatprep.subr.mxu0 0.0
        %5183 = vmatpush1.msra.mxu0 0.0
        %5184 = vmatprep.subr.mxu0 0.0
        %5185 = vmatpush1.msra.mxu0 0.0
        %5186 = vmatprep.subr.mxu0 0.0
        %5187 = vmatpush1.msra.mxu0 0.0
        %5188 = vmatprep.subr.mxu0 0.0
        %5189 = vmatpush1.msra.mxu0 0.0
        %5190 = vmatprep.subr.mxu0 0.0
        %5191 = vmatpush1.msra.mxu0 0.0
        %5192 = vmatprep.subr.mxu0 0.0
        %5193 = vmatpush1.msra.mxu0 0.0
        %5194 = vmatprep.subr.mxu0 0.0
        %5195 = vmatpush1.msra.mxu0 0.0
        %5196 = vmatprep.subr.mxu0 0.0
        %5197 = vmatpush1.msra.mxu0 0.0
        %5198 = vmatprep.subr.mxu0 0.0
        %5199 = vmatpush1.msra.mxu0 0.0
        %5200 = vmatprep.subr.mxu0 0.0
        %5201 = vmatpush1.msra.mxu0 0.0
        %5202 = vmatprep.subr.mxu0 0.0
        %5203 = vmatpush1.msra.mxu0 0.0
        %5204 = vmatprep.subr.mxu0 0.0
        %5205 = vmatpush1.msra.mxu0 0.0
        %5206 = vmatprep.subr.mxu0 0.0
        %5207 = vmatpush1.msra.mxu0 0.0
        %5208 = vmatprep.subr.mxu0 0.0
        %5209 = vmatpush1.msra.mxu0 0.0
        %5210 = vmatprep.subr.mxu0 0.0
        %5211 = vmatpush1.msra.mxu0 0.0
        %5212 = vmatprep.subr.mxu0 0.0
        %5213 = vmatpush1.msra.mxu0 0.0
        %5214 = vmatprep.subr.mxu0 0.0
        %5215 = vmatpush1.msra.mxu0 0.0
        %5216 = vmatprep.mubr.f32.mxu0 0.0
        %5217 = vmatmul.mubr.f32.gmra.mrb[0].mxu0 %v5150
        %v5218 = vpop.f32.mrb[0].mxu0
        %v5219 = vadd.f32 %v5145, %v5218
        %v5220 = vpop.f32.mrb[0].mxu0
        %5221 = vdwg.mxu0
        %v5223 = vcombine.high %v4956, %v4956
        %v5225 = vunpack.c.l.s4 1966171168
        %v5226 = vunpack.c.0.s8 %v5225
        %v5227 = vlaneseq
        %v5228 = vshrl.u32 %v5227, 7
        %v5229 = vsub.s32 %v5226, %v5228
        %v5230 = vrot.slane %v4956, %v5229
        %v5232 = vunpack.c.l.s4 1966171168
        %v5233 = vunpack.c.0.s8 %v5232
        %v5234 = vlaneseq
        %v5235 = vshrl.u32 %v5234, 7
        %v5236 = vsub.s32 %v5233, %v5235
        %v5237 = vrot.slane %v5223, %v5236
        %v5238 = vcombine.high %v5230, %v5230
        %v5239 = vcombine.high %v5237, %v5237
        %v5241 = vunpack.c.l.s4 1966171168
        %v5242 = vunpack.c.0.s8 %v5241
        %v5243 = vlaneseq
        %v5244 = vshrl.u32 %v5243, 7
        %v5245 = vsub.s32 %v5242, %v5244
        %v5246 = vrot.slane %v5230, %v5245
        %v5248 = vunpack.c.l.s4 1966171168
        %v5249 = vunpack.c.0.s8 %v5248
        %v5250 = vlaneseq
        %v5251 = vshrl.u32 %v5250, 7
        %v5252 = vsub.s32 %v5249, %v5251
        %v5253 = vrot.slane %v5237, %v5252
        %v5255 = vunpack.c.l.s4 1966171168
        %v5256 = vunpack.c.0.s8 %v5255
        %v5257 = vlaneseq
        %v5258 = vshrl.u32 %v5257, 7
        %v5259 = vsub.s32 %v5256, %v5258
        %v5260 = vrot.slane %v5238, %v5259
        %v5262 = vunpack.c.l.s4 1966171168
        %v5263 = vunpack.c.0.s8 %v5262
        %v5264 = vlaneseq
        %v5265 = vshrl.u32 %v5264, 7
        %v5266 = vsub.s32 %v5263, %v5265
        %v5267 = vrot.slane %v5239, %v5266
        %v5268 = vcombine.high %v5246, %v5246
        %v5269 = vcombine.high %v5253, %v5253
        %v5270 = vcombine.high %v5260, %v5260
        %v5271 = vcombine.high %v5267, %v5267
        %v5272 = vlaneseq
        %v5273 = vshrl.u32 %v5272, 7
        %v5274 = vsub.s32 0, %v5273
        %v5275 = vrot.slane %v5246, %v5274
        %v5276 = vlaneseq
        %v5277 = vshrl.u32 %v5276, 7
        %v5278 = vsub.s32 0, %v5277
        %v5279 = vrot.slane %v5260, %v5278
        %v5280 = vlaneseq
        %v5281 = vshrl.u32 %v5280, 7
        %v5282 = vsub.s32 0, %v5281
        %v5283 = vrot.slane %v5268, %v5282
        %v5284 = vlaneseq
        %v5285 = vshrl.u32 %v5284, 7
        %v5286 = vsub.s32 0, %v5285
        %v5287 = vrot.slane %v5270, %v5286
        %v5288 = vlaneseq
        %v5289 = vshrl.u32 %v5288, 7
        %v5290 = vsub.s32 0, %v5289
        %v5291 = vrot.slane %v5253, %v5290
        %v5292 = vlaneseq
        %v5293 = vshrl.u32 %v5292, 7
        %v5294 = vsub.s32 0, %v5293
        %v5295 = vrot.slane %v5267, %v5294
        %v5296 = vlaneseq
        %v5297 = vshrl.u32 %v5296, 7
        %v5298 = vsub.s32 0, %v5297
        %v5299 = vrot.slane %v5269, %v5298
        %v5300 = vlaneseq
        %v5301 = vshrl.u32 %v5300, 7
        %v5302 = vsub.s32 0, %v5301
        %v5303 = vrot.slane %v5271, %v5302
        %v5312 = vsub.f32 %v5275, %v4956
        %v5313 = vsub.f32 %v5279, %v4956
        %v5314 = vsub.f32 %v5283, %v4956
        %v5315 = vsub.f32 %v5287, %v4956
        %v5316 = vsub.f32 %v5291, %v4956
        %v5317 = vsub.f32 %v5295, %v4956
        %v5318 = vsub.f32 %v5299, %v4956
        %v5319 = vsub.f32 %v5303, %v4956
        %v5320 = vmul.f32 %v5312, %v5312
        %v5321 = vmul.f32 %v5313, %v5313
        %v5322 = vmul.f32 %v5314, %v5314
        %v5323 = vmul.f32 %v5315, %v5315
        %v5324 = vmul.f32 %v5316, %v5316
        %v5325 = vmul.f32 %v5317, %v5317
        %v5326 = vmul.f32 %v5318, %v5318
        %v5327 = vmul.f32 %v5319, %v5319
        %v5328 = vadd.f32 %v5320, 0.0
        %v5329 = vadd.f32 %v5321, 0.0
        %v5330 = vadd.f32 %v5322, 0.0
        %v5331 = vadd.f32 %v5323, 0.0
        %v5332 = vadd.f32 %v5324, 0.0
        %v5333 = vadd.f32 %v5325, 0.0
        %v5334 = vadd.f32 %v5326, 0.0
        %v5335 = vadd.f32 %v5327, 0.0
        %v5337 = vcombine.high %v4957, %v4957
        %v5339 = vunpack.c.l.s4 1966171168
        %v5340 = vunpack.c.0.s8 %v5339
        %v5341 = vlaneseq
        %v5342 = vshrl.u32 %v5341, 7
        %v5343 = vsub.s32 %v5340, %v5342
        %v5344 = vrot.slane %v4957, %v5343
        %v5346 = vunpack.c.l.s4 1966171168
        %v5347 = vunpack.c.0.s8 %v5346
        %v5348 = vlaneseq
        %v5349 = vshrl.u32 %v5348, 7
        %v5350 = vsub.s32 %v5347, %v5349
        %v5351 = vrot.slane %v5337, %v5350
        %v5352 = vcombine.high %v5344, %v5344
        %v5353 = vcombine.high %v5351, %v5351
        %v5355 = vunpack.c.l.s4 1966171168
        %v5356 = vunpack.c.0.s8 %v5355
        %v5357 = vlaneseq
        %v5358 = vshrl.u32 %v5357, 7
        %v5359 = vsub.s32 %v5356, %v5358
        %v5360 = vrot.slane %v5344, %v5359
        %v5362 = vunpack.c.l.s4 1966171168
        %v5363 = vunpack.c.0.s8 %v5362
        %v5364 = vlaneseq
        %v5365 = vshrl.u32 %v5364, 7
        %v5366 = vsub.s32 %v5363, %v5365
        %v5367 = vrot.slane %v5351, %v5366
        %v5369 = vunpack.c.l.s4 1966171168
        %v5370 = vunpack.c.0.s8 %v5369
        %v5371 = vlaneseq
        %v5372 = vshrl.u32 %v5371, 7
        %v5373 = vsub.s32 %v5370, %v5372
        %v5374 = vrot.slane %v5352, %v5373
        %v5376 = vunpack.c.l.s4 1966171168
        %v5377 = vunpack.c.0.s8 %v5376
        %v5378 = vlaneseq
        %v5379 = vshrl.u32 %v5378, 7
        %v5380 = vsub.s32 %v5377, %v5379
        %v5381 = vrot.slane %v5353, %v5380
        %v5382 = vcombine.high %v5360, %v5360
        %v5383 = vcombine.high %v5367, %v5367
        %v5384 = vcombine.high %v5374, %v5374
        %v5385 = vcombine.high %v5381, %v5381
        %v5386 = vlaneseq
        %v5387 = vshrl.u32 %v5386, 7
        %v5388 = vsub.s32 0, %v5387
        %v5389 = vrot.slane %v5360, %v5388
        %v5390 = vlaneseq
        %v5391 = vshrl.u32 %v5390, 7
        %v5392 = vsub.s32 0, %v5391
        %v5393 = vrot.slane %v5374, %v5392
        %v5394 = vlaneseq
        %v5395 = vshrl.u32 %v5394, 7
        %v5396 = vsub.s32 0, %v5395
        %v5397 = vrot.slane %v5382, %v5396
        %v5398 = vlaneseq
        %v5399 = vshrl.u32 %v5398, 7
        %v5400 = vsub.s32 0, %v5399
        %v5401 = vrot.slane %v5384, %v5400
        %v5402 = vlaneseq
        %v5403 = vshrl.u32 %v5402, 7
        %v5404 = vsub.s32 0, %v5403
        %v5405 = vrot.slane %v5367, %v5404
        %v5406 = vlaneseq
        %v5407 = vshrl.u32 %v5406, 7
        %v5408 = vsub.s32 0, %v5407
        %v5409 = vrot.slane %v5381, %v5408
        %v5410 = vlaneseq
        %v5411 = vshrl.u32 %v5410, 7
        %v5412 = vsub.s32 0, %v5411
        %v5413 = vrot.slane %v5383, %v5412
        %v5414 = vlaneseq
        %v5415 = vshrl.u32 %v5414, 7
        %v5416 = vsub.s32 0, %v5415
        %v5417 = vrot.slane %v5385, %v5416
        %v5426 = vsub.f32 %v5389, %v4957
        %v5427 = vsub.f32 %v5393, %v4957
        %v5428 = vsub.f32 %v5397, %v4957
        %v5429 = vsub.f32 %v5401, %v4957
        %v5430 = vsub.f32 %v5405, %v4957
        %v5431 = vsub.f32 %v5409, %v4957
        %v5432 = vsub.f32 %v5413, %v4957
        %v5433 = vsub.f32 %v5417, %v4957
        %v5434 = vmul.f32 %v5426, %v5426
        %v5435 = vmul.f32 %v5427, %v5427
        %v5436 = vmul.f32 %v5428, %v5428
        %v5437 = vmul.f32 %v5429, %v5429
        %v5438 = vmul.f32 %v5430, %v5430
        %v5439 = vmul.f32 %v5431, %v5431
        %v5440 = vmul.f32 %v5432, %v5432
        %v5441 = vmul.f32 %v5433, %v5433
        %v5442 = vadd.f32 %v5328, %v5434
        %v5443 = vadd.f32 %v5329, %v5435
        %v5444 = vadd.f32 %v5330, %v5436
        %v5445 = vadd.f32 %v5331, %v5437
        %v5446 = vadd.f32 %v5332, %v5438
        %v5447 = vadd.f32 %v5333, %v5439
        %v5448 = vadd.f32 %v5334, %v5440
        %v5449 = vadd.f32 %v5335, %v5441
        %v5451 = vcombine.high %v4958, %v4958
        %v5453 = vunpack.c.l.s4 1966171168
        %v5454 = vunpack.c.0.s8 %v5453
        %v5455 = vlaneseq
        %v5456 = vshrl.u32 %v5455, 7
        %v5457 = vsub.s32 %v5454, %v5456
        %v5458 = vrot.slane %v4958, %v5457
        %v5460 = vunpack.c.l.s4 1966171168
        %v5461 = vunpack.c.0.s8 %v5460
        %v5462 = vlaneseq
        %v5463 = vshrl.u32 %v5462, 7
        %v5464 = vsub.s32 %v5461, %v5463
        %v5465 = vrot.slane %v5451, %v5464
        %v5466 = vcombine.high %v5458, %v5458
        %v5467 = vcombine.high %v5465, %v5465
        %v5469 = vunpack.c.l.s4 1966171168
        %v5470 = vunpack.c.0.s8 %v5469
        %v5471 = vlaneseq
        %v5472 = vshrl.u32 %v5471, 7
        %v5473 = vsub.s32 %v5470, %v5472
        %v5474 = vrot.slane %v5458, %v5473
        %v5476 = vunpack.c.l.s4 1966171168
        %v5477 = vunpack.c.0.s8 %v5476
        %v5478 = vlaneseq
        %v5479 = vshrl.u32 %v5478, 7
        %v5480 = vsub.s32 %v5477, %v5479
        %v5481 = vrot.slane %v5465, %v5480
        %v5483 = vunpack.c.l.s4 1966171168
        %v5484 = vunpack.c.0.s8 %v5483
        %v5485 = vlaneseq
        %v5486 = vshrl.u32 %v5485, 7
        %v5487 = vsub.s32 %v5484, %v5486
        %v5488 = vrot.slane %v5466, %v5487
        %v5490 = vunpack.c.l.s4 1966171168
        %v5491 = vunpack.c.0.s8 %v5490
        %v5492 = vlaneseq
        %v5493 = vshrl.u32 %v5492, 7
        %v5494 = vsub.s32 %v5491, %v5493
        %v5495 = vrot.slane %v5467, %v5494
        %v5496 = vcombine.high %v5474, %v5474
        %v5497 = vcombine.high %v5481, %v5481
        %v5498 = vcombine.high %v5488, %v5488
        %v5499 = vcombine.high %v5495, %v5495
        %v5500 = vlaneseq
        %v5501 = vshrl.u32 %v5500, 7
        %v5502 = vsub.s32 0, %v5501
        %v5503 = vrot.slane %v5474, %v5502
        %v5504 = vlaneseq
        %v5505 = vshrl.u32 %v5504, 7
        %v5506 = vsub.s32 0, %v5505
        %v5507 = vrot.slane %v5488, %v5506
        %v5508 = vlaneseq
        %v5509 = vshrl.u32 %v5508, 7
        %v5510 = vsub.s32 0, %v5509
        %v5511 = vrot.slane %v5496, %v5510
        %v5512 = vlaneseq
        %v5513 = vshrl.u32 %v5512, 7
        %v5514 = vsub.s32 0, %v5513
        %v5515 = vrot.slane %v5498, %v5514
        %v5516 = vlaneseq
        %v5517 = vshrl.u32 %v5516, 7
        %v5518 = vsub.s32 0, %v5517
        %v5519 = vrot.slane %v5481, %v5518
        %v5520 = vlaneseq
        %v5521 = vshrl.u32 %v5520, 7
        %v5522 = vsub.s32 0, %v5521
        %v5523 = vrot.slane %v5495, %v5522
        %v5524 = vlaneseq
        %v5525 = vshrl.u32 %v5524, 7
        %v5526 = vsub.s32 0, %v5525
        %v5527 = vrot.slane %v5497, %v5526
        %v5528 = vlaneseq
        %v5529 = vshrl.u32 %v5528, 7
        %v5530 = vsub.s32 0, %v5529
        %v5531 = vrot.slane %v5499, %v5530
        %v5540 = vsub.f32 %v5503, %v4958
        %v5541 = vsub.f32 %v5507, %v4958
        %v5542 = vsub.f32 %v5511, %v4958
        %v5543 = vsub.f32 %v5515, %v4958
        %v5544 = vsub.f32 %v5519, %v4958
        %v5545 = vsub.f32 %v5523, %v4958
        %v5546 = vsub.f32 %v5527, %v4958
        %v5547 = vsub.f32 %v5531, %v4958
        %v5548 = vmul.f32 %v5540, %v5540
        %v5549 = vmul.f32 %v5541, %v5541
        %v5550 = vmul.f32 %v5542, %v5542
        %v5551 = vmul.f32 %v5543, %v5543
        %v5552 = vmul.f32 %v5544, %v5544
        %v5553 = vmul.f32 %v5545, %v5545
        %v5554 = vmul.f32 %v5546, %v5546
        %v5555 = vmul.f32 %v5547, %v5547
        %v5556 = vadd.f32 %v5442, %v5548
        %v5557 = vadd.f32 %v5443, %v5549
        %v5558 = vadd.f32 %v5444, %v5550
        %v5559 = vadd.f32 %v5445, %v5551
        %v5560 = vadd.f32 %v5446, %v5552
        %v5561 = vadd.f32 %v5447, %v5553
        %v5562 = vadd.f32 %v5448, %v5554
        %v5563 = vadd.f32 %v5449, %v5555
        %v5564 = vrsqrt.pop %v5556
        %v5565 = vmul.f32 %v5556, %v5564
        %vm5566 = vcmp.eq.f32.partialorder %v5556, inf
        %v5567 = vsel %vm5566, %v5556, %v5565
        %vm5568 = vcmp.eq.f32.partialorder %v5556, 0.0
        %v5569 = vand.u32 %v5556, 2147483648
        %v5570 = vsel %vm5568, %v5569, %v5567
        %v5571 = vrsqrt.pop %v5557
        %v5572 = vmul.f32 %v5557, %v5571
        %vm5573 = vcmp.eq.f32.partialorder %v5557, inf
        %v5574 = vsel %vm5573, %v5557, %v5572
        %vm5575 = vcmp.eq.f32.partialorder %v5557, 0.0
        %v5576 = vand.u32 %v5557, 2147483648
        %v5577 = vsel %vm5575, %v5576, %v5574
        %v5578 = vrsqrt.pop %v5558
        %v5579 = vmul.f32 %v5558, %v5578
        %vm5580 = vcmp.eq.f32.partialorder %v5558, inf
        %v5581 = vsel %vm5580, %v5558, %v5579
        %vm5582 = vcmp.eq.f32.partialorder %v5558, 0.0
        %v5583 = vand.u32 %v5558, 2147483648
        %v5584 = vsel %vm5582, %v5583, %v5581
        %v5585 = vrsqrt.pop %v5559
        %v5586 = vmul.f32 %v5559, %v5585
        %vm5587 = vcmp.eq.f32.partialorder %v5559, inf
        %v5588 = vsel %vm5587, %v5559, %v5586
        %vm5589 = vcmp.eq.f32.partialorder %v5559, 0.0
        %v5590 = vand.u32 %v5559, 2147483648
        %v5591 = vsel %vm5589, %v5590, %v5588
        %v5592 = vrsqrt.pop %v5560
        %v5593 = vmul.f32 %v5560, %v5592
        %vm5594 = vcmp.eq.f32.partialorder %v5560, inf
        %v5595 = vsel %vm5594, %v5560, %v5593
        %vm5596 = vcmp.eq.f32.partialorder %v5560, 0.0
        %v5597 = vand.u32 %v5560, 2147483648
        %v5598 = vsel %vm5596, %v5597, %v5595
        %v5599 = vrsqrt.pop %v5561
        %v5600 = vmul.f32 %v5561, %v5599
        %vm5601 = vcmp.eq.f32.partialorder %v5561, inf
        %v5602 = vsel %vm5601, %v5561, %v5600
        %vm5603 = vcmp.eq.f32.partialorder %v5561, 0.0
        %v5604 = vand.u32 %v5561, 2147483648
        %v5605 = vsel %vm5603, %v5604, %v5602
        %v5606 = vrsqrt.pop %v5562
        %v5607 = vmul.f32 %v5562, %v5606
        %vm5608 = vcmp.eq.f32.partialorder %v5562, inf
        %v5609 = vsel %vm5608, %v5562, %v5607
        %vm5610 = vcmp.eq.f32.partialorder %v5562, 0.0
        %v5611 = vand.u32 %v5562, 2147483648
        %v5612 = vsel %vm5610, %v5611, %v5609
        %v5613 = vrsqrt.pop %v5563
        %v5614 = vmul.f32 %v5563, %v5613
        %vm5615 = vcmp.eq.f32.partialorder %v5563, inf
        %v5616 = vsel %vm5615, %v5563, %v5614
        %vm5617 = vcmp.eq.f32.partialorder %v5563, 0.0
        %v5618 = vand.u32 %v5563, 2147483648
        %v5619 = vsel %vm5617, %v5618, %v5616
        %v5620 = vld [vmem:[%s4 + $0x68] sm:$0xff]
        %v5621 = vld [vmem:[%s4 + $0x70] sm:$0xff]
        %v5622 = vld [vmem:[%s4 + $0xf0] sm:$0xff]
        %v5623 = vld [vmem:[%s4 + $0xf8] sm:$0xff]
        %v5624 = vld [vmem:[%s4 + $0x178] sm:$0xff]
        %v5625 = vld [vmem:[%s4 + $0x180] sm:$0xff]
        %v5626 = vld [vmem:[%s4 + $0x200] sm:$0xff]
        %v5627 = vld [vmem:[%s4 + $0x208] sm:$0xff]
        %v5629 = vsel %vm961, %v5219, 0
        %5631 = vmatprep.subr.mxu0 %v5621
        %5632 = vmatpush1.msra.mxu0 %v5620
        %5633 = vmatprep.subr.mxu0 %v5623
        %5634 = vmatpush1.msra.mxu0 %v5622
        %5635 = vmatprep.subr.mxu0 %v5625
        %5636 = vmatpush1.msra.mxu0 %v5624
        %5637 = vmatprep.subr.mxu0 %v5627
        %5638 = vmatpush1.msra.mxu0 %v5626
        %5639 = vmatprep.subr.mxu0 0.0
        %5640 = vmatpush1.msra.mxu0 0.0
        %5641 = vmatprep.subr.mxu0 0.0
        %5642 = vmatpush1.msra.mxu0 0.0
        %5643 = vmatprep.subr.mxu0 0.0
        %5644 = vmatpush1.msra.mxu0 0.0
        %5645 = vmatprep.subr.mxu0 0.0
        %5646 = vmatpush1.msra.mxu0 0.0
        %5647 = vmatprep.subr.mxu0 0.0
        %5648 = vmatpush1.msra.mxu0 0.0
        %5649 = vmatprep.subr.mxu0 0.0
        %5650 = vmatpush1.msra.mxu0 0.0
        %5651 = vmatprep.subr.mxu0 0.0
        %5652 = vmatpush1.msra.mxu0 0.0
        %5653 = vmatprep.subr.mxu0 0.0
        %5654 = vmatpush1.msra.mxu0 0.0
        %5655 = vmatprep.subr.mxu0 0.0
        %5656 = vmatpush1.msra.mxu0 0.0
        %5657 = vmatprep.subr.mxu0 0.0
        %5658 = vmatpush1.msra.mxu0 0.0
        %5659 = vmatprep.subr.mxu0 0.0
        %5660 = vmatpush1.msra.mxu0 0.0
        %5661 = vmatprep.subr.mxu0 0.0
        %5662 = vmatpush1.msra.mxu0 0.0
        %5663 = vmatprep.subr.mxu0 0.0
        %5664 = vmatpush1.msra.mxu0 0.0
        %5665 = vmatprep.subr.mxu0 0.0
        %5666 = vmatpush1.msra.mxu0 0.0
        %5667 = vmatprep.subr.mxu0 0.0
        %5668 = vmatpush1.msra.mxu0 0.0
        %5669 = vmatprep.subr.mxu0 0.0
        %5670 = vmatpush1.msra.mxu0 0.0
        %5671 = vmatprep.subr.mxu0 0.0
        %5672 = vmatpush1.msra.mxu0 0.0
        %5673 = vmatprep.subr.mxu0 0.0
        %5674 = vmatpush1.msra.mxu0 0.0
        %5675 = vmatprep.subr.mxu0 0.0
        %5676 = vmatpush1.msra.mxu0 0.0
        %5677 = vmatprep.subr.mxu0 0.0
        %5678 = vmatpush1.msra.mxu0 0.0
        %5679 = vmatprep.subr.mxu0 0.0
        %5680 = vmatpush1.msra.mxu0 0.0
        %5681 = vmatprep.subr.mxu0 0.0
        %5682 = vmatpush1.msra.mxu0 0.0
        %5683 = vmatprep.subr.mxu0 0.0
        %5684 = vmatpush1.msra.mxu0 0.0
        %5685 = vmatprep.subr.mxu0 0.0
        %5686 = vmatpush1.msra.mxu0 0.0
        %5687 = vmatprep.subr.mxu0 0.0
        %5688 = vmatpush1.msra.mxu0 0.0
        %5689 = vmatprep.subr.mxu0 0.0
        %5690 = vmatpush1.msra.mxu0 0.0
        %5691 = vmatprep.subr.mxu0 0.0
        %5692 = vmatpush1.msra.mxu0 0.0
        %5693 = vmatprep.subr.mxu0 0.0
        %5694 = vmatpush1.msra.mxu0 0.0
        %5695 = vmatprep.mubr.f32.mxu0 0.0
        %5696 = vmatmul.mubr.f32.gmra.mrb[0].mxu0 %v5629
        %v5697 = vpop.f32.mrb[0].mxu0
        %v5698 = vadd.f32 0.0, %v5697
        %v5699 = vpop.f32.mrb[0].mxu0
        %v5700 = vadd.f32 0.0, %v5699
        %5701 = vdwg.mxu0
        %v5702 = vld [vmem:[%s6 + $0x12] sm:$0x1]
        %v5704 = vlaneseq
        %v5705 = vshrl.u32 %v5704, 7
        %v5706 = vsub.s32 0, %v5705
        %v5707 = vrot.slane %v5702, %v5706
        %5708 = vrot.lane.b32.xlu0 %v5707, 64
        %v5709 = vpop.permute.xlu0 %5708
        %v5711 = vadd.f32 %v5700, %v5709
        %v5712 = vxor.u32 %v5711, 2147483648
        %v5713 = vmul.f32 %v5712, 1.442695
        %v5714 = vpow.pop %v5713
        %v5715 = vadd.f32 %v5714, 1.0
        %v5716 = vrcp.pop %v5715
        %v5717 = vmul.f32 1.0, %v5716
        %v5718 = vmul.f32 %v5711, %v5717
        %v5719 = vld [vmem:[#allocation2 + $0x30] sm:$0xff]
        %v5720 = vld [vmem:[#allocation2 + $0x88] sm:$0xff]
        %v5722 = vsel %vm463, %v5570, 0
        %v5725 = vsel %vm463, %v5577, 0
        %v5728 = vsel %vm463, %v5584, 0
        %v5731 = vsel %vm463, %v5591, 0
        %v5734 = vsel %vm463, %v5598, 0
        %v5737 = vsel %vm463, %v5605, 0
        %v5740 = vsel %vm463, %v5612, 0
        %v5743 = vsel %vm463, %v5619, 0
        %5745 = vmatprep.subr.mxu0 0.0
        %5746 = vmatpush1.msra.mxu0 %v5719
        %5747 = vmatprep.subr.mxu0 0.0
        %5748 = vmatpush1.msra.mxu0 %v5720
        %5749 = vmatprep.subr.mxu0 0.0
        %5750 = vmatpush1.msra.mxu0 0.0
        %5751 = vmatprep.subr.mxu0 0.0
        %5752 = vmatpush1.msra.mxu0 0.0
        %5753 = vmatprep.subr.mxu0 0.0
        %5754 = vmatpush1.msra.mxu0 0.0
        %5755 = vmatprep.subr.mxu0 0.0
        %5756 = vmatpush1.msra.mxu0 0.0
        %5757 = vmatprep.subr.mxu0 0.0
        %5758 = vmatpush1.msra.mxu0 0.0
        %5759 = vmatprep.subr.mxu0 0.0
        %5760 = vmatpush1.msra.mxu0 0.0
        %5761 = vmatprep.subr.mxu0 0.0
        %5762 = vmatpush1.msra.mxu0 0.0
        %5763 = vmatprep.subr.mxu0 0.0
        %5764 = vmatpush1.msra.mxu0 0.0
        %5765 = vmatprep.subr.mxu0 0.0
        %5766 = vmatpush1.msra.mxu0 0.0
        %5767 = vmatprep.subr.mxu0 0.0
        %5768 = vmatpush1.msra.mxu0 0.0
        %5769 = vmatprep.subr.mxu0 0.0
        %5770 = vmatpush1.msra.mxu0 0.0
        %5771 = vmatprep.subr.mxu0 0.0
        %5772 = vmatpush1.msra.mxu0 0.0
        %5773 = vmatprep.subr.mxu0 0.0
        %5774 = vmatpush1.msra.mxu0 0.0
        %5775 = vmatprep.subr.mxu0 0.0
        %5776 = vmatpush1.msra.mxu0 0.0
        %5777 = vmatprep.subr.mxu0 0.0
        %5778 = vmatpush1.msra.mxu0 0.0
        %5779 = vmatprep.subr.mxu0 0.0
        %5780 = vmatpush1.msra.mxu0 0.0
        %5781 = vmatprep.subr.mxu0 0.0
        %5782 = vmatpush1.msra.mxu0 0.0
        %5783 = vmatprep.subr.mxu0 0.0
        %5784 = vmatpush1.msra.mxu0 0.0
        %5785 = vmatprep.subr.mxu0 0.0
        %5786 = vmatpush1.msra.mxu0 0.0
        %5787 = vmatprep.subr.mxu0 0.0
        %5788 = vmatpush1.msra.mxu0 0.0
        %5789 = vmatprep.subr.mxu0 0.0
        %5790 = vmatpush1.msra.mxu0 0.0
        %5791 = vmatprep.subr.mxu0 0.0
        %5792 = vmatpush1.msra.mxu0 0.0
        %5793 = vmatprep.subr.mxu0 0.0
        %5794 = vmatpush1.msra.mxu0 0.0
        %5795 = vmatprep.subr.mxu0 0.0
        %5796 = vmatpush1.msra.mxu0 0.0
        %5797 = vmatprep.subr.mxu0 0.0
        %5798 = vmatpush1.msra.mxu0 0.0
        %5799 = vmatprep.subr.mxu0 0.0
        %5800 = vmatpush1.msra.mxu0 0.0
        %5801 = vmatprep.subr.mxu0 0.0
        %5802 = vmatpush1.msra.mxu0 0.0
        %5803 = vmatprep.subr.mxu0 0.0
        %5804 = vmatpush1.msra.mxu0 0.0
        %5805 = vmatprep.subr.mxu0 0.0
        %5806 = vmatpush1.msra.mxu0 0.0
        %5807 = vmatprep.subr.mxu0 0.0
        %5808 = vmatpush1.msra.mxu0 0.0
        %5809 = vmatprep.mubr.f32.mxu0 0.0
        %5810 = vmatmul.mubr.f32.gmra.mrb[0].mxu0 %v5722
        %v5811 = vpop.f32.mrb[0].mxu0
        %v5812 = vadd.f32 0.0, %v5811
        %v5813 = vpop.f32.mrb[0].mxu0
        %5814 = vmatprep.mubr.f32.mxu0 0.0
        %5815 = vmatmul.mubr.f32.gmra.mrb[0].mxu0 %v5725
        %v5816 = vpop.f32.mrb[0].mxu0
        %v5817 = vadd.f32 0.0, %v5816
        %v5818 = vpop.f32.mrb[0].mxu0
        %5819 = vmatprep.mubr.f32.mxu0 0.0
        %5820 = vmatmul.mubr.f32.gmra.mrb[0].mxu0 %v5728
        %v5821 = vpop.f32.mrb[0].mxu0
        %v5822 = vadd.f32 0.0, %v5821
        %v5823 = vpop.f32.mrb[0].mxu0
        %5824 = vmatprep.mubr.f32.mxu0 0.0
        %5825 = vmatmul.mubr.f32.gmra.mrb[0].mxu0 %v5731
        %v5826 = vpop.f32.mrb[0].mxu0
        %v5827 = vadd.f32 0.0, %v5826
        %v5828 = vpop.f32.mrb[0].mxu0
        %5829 = vmatprep.mubr.f32.mxu0 0.0
        %5830 = vmatmul.mubr.f32.gmra.mrb[0].mxu0 %v5734
        %v5831 = vpop.f32.mrb[0].mxu0
        %v5832 = vadd.f32 0.0, %v5831
        %v5833 = vpop.f32.mrb[0].mxu0
        %5834 = vmatprep.mubr.f32.mxu0 0.0
        %5835 = vmatmul.mubr.f32.gmra.mrb[0].mxu0 %v5737
        %v5836 = vpop.f32.mrb[0].mxu0
        %v5837 = vadd.f32 0.0, %v5836
        %v5838 = vpop.f32.mrb[0].mxu0
        %5839 = vmatprep.mubr.f32.mxu0 0.0
        %5840 = vmatmul.mubr.f32.gmra.mrb[0].mxu0 %v5740
        %v5841 = vpop.f32.mrb[0].mxu0
        %v5842 = vadd.f32 0.0, %v5841
        %v5843 = vpop.f32.mrb[0].mxu0
        %5844 = vmatprep.mubr.f32.mxu0 0.0
        %5845 = vmatmul.mubr.f32.gmra.mrb[0].mxu0 %v5743
        %v5846 = vpop.f32.mrb[0].mxu0
        %v5847 = vadd.f32 0.0, %v5846
        %v5848 = vpop.f32.mrb[0].mxu0
        %5849 = vdwg.mxu0
        %v5851 = vcombine.high %v5698, %v5698
        %v5853 = vunpack.c.l.s4 1966171168
        %v5854 = vunpack.c.0.s8 %v5853
        %v5855 = vlaneseq
        %v5856 = vshrl.u32 %v5855, 7
        %v5857 = vsub.s32 %v5854, %v5856
        %v5858 = vrot.slane %v5698, %v5857
        %v5860 = vunpack.c.l.s4 1966171168
        %v5861 = vunpack.c.0.s8 %v5860
        %v5862 = vlaneseq
        %v5863 = vshrl.u32 %v5862, 7
        %v5864 = vsub.s32 %v5861, %v5863
        %v5865 = vrot.slane %v5851, %v5864
        %v5866 = vcombine.high %v5858, %v5858
        %v5867 = vcombine.high %v5865, %v5865
        %v5869 = vunpack.c.l.s4 1966171168
        %v5870 = vunpack.c.0.s8 %v5869
        %v5871 = vlaneseq
        %v5872 = vshrl.u32 %v5871, 7
        %v5873 = vsub.s32 %v5870, %v5872
        %v5874 = vrot.slane %v5858, %v5873
        %v5876 = vunpack.c.l.s4 1966171168
        %v5877 = vunpack.c.0.s8 %v5876
        %v5878 = vlaneseq
        %v5879 = vshrl.u32 %v5878, 7
        %v5880 = vsub.s32 %v5877, %v5879
        %v5881 = vrot.slane %v5865, %v5880
        %v5883 = vunpack.c.l.s4 1966171168
        %v5884 = vunpack.c.0.s8 %v5883
        %v5885 = vlaneseq
        %v5886 = vshrl.u32 %v5885, 7
        %v5887 = vsub.s32 %v5884, %v5886
        %v5888 = vrot.slane %v5866, %v5887
        %v5890 = vunpack.c.l.s4 1966171168
        %v5891 = vunpack.c.0.s8 %v5890
        %v5892 = vlaneseq
        %v5893 = vshrl.u32 %v5892, 7
        %v5894 = vsub.s32 %v5891, %v5893
        %v5895 = vrot.slane %v5867, %v5894
        %v5896 = vcombine.high %v5874, %v5874
        %v5897 = vcombine.high %v5881, %v5881
        %v5898 = vcombine.high %v5888, %v5888
        %v5899 = vcombine.high %v5895, %v5895
        %v5900 = vlaneseq
        %v5901 = vshrl.u32 %v5900, 7
        %v5902 = vsub.s32 0, %v5901
        %v5903 = vrot.slane %v5874, %v5902
        %v5904 = vlaneseq
        %v5905 = vshrl.u32 %v5904, 7
        %v5906 = vsub.s32 0, %v5905
        %v5907 = vrot.slane %v5888, %v5906
        %v5908 = vlaneseq
        %v5909 = vshrl.u32 %v5908, 7
        %v5910 = vsub.s32 0, %v5909
        %v5911 = vrot.slane %v5896, %v5910
        %v5912 = vlaneseq
        %v5913 = vshrl.u32 %v5912, 7
        %v5914 = vsub.s32 0, %v5913
        %v5915 = vrot.slane %v5898, %v5914
        %v5916 = vlaneseq
        %v5917 = vshrl.u32 %v5916, 7
        %v5918 = vsub.s32 0, %v5917
        %v5919 = vrot.slane %v5881, %v5918
        %v5920 = vlaneseq
        %v5921 = vshrl.u32 %v5920, 7
        %v5922 = vsub.s32 0, %v5921
        %v5923 = vrot.slane %v5895, %v5922
        %v5924 = vlaneseq
        %v5925 = vshrl.u32 %v5924, 7
        %v5926 = vsub.s32 0, %v5925
        %v5927 = vrot.slane %v5897, %v5926
        %v5928 = vlaneseq
        %v5929 = vshrl.u32 %v5928, 7
        %v5930 = vsub.s32 0, %v5929
        %v5931 = vrot.slane %v5899, %v5930
        %5941 = vrot.lane.b32.xlu0 %v5698, 32
        %v5942 = vpop.permute.xlu0 %5941
        %5943 = vrot.lane.b32.xlu0 %v5700, 32
        %v5944 = vpop.permute.xlu0 %5943
        %v5945 = vsel %vm961, %v5942, %v5944
        %v5947 = vadd.f32 %v5903, %v5945
        %v5948 = vadd.f32 %v5907, %v5945
        %v5949 = vadd.f32 %v5911, %v5945
        %v5950 = vadd.f32 %v5915, %v5945
        %v5951 = vadd.f32 %v5919, %v5945
        %v5952 = vadd.f32 %v5923, %v5945
        %v5953 = vadd.f32 %v5927, %v5945
        %v5954 = vadd.f32 %v5931, %v5945
        %v5955 = vadd.f32 %v5947, %v5812
        %v5956 = vadd.f32 %v5948, %v5817
        %v5957 = vadd.f32 %v5949, %v5822
        %v5958 = vadd.f32 %v5950, %v5827
        %v5959 = vadd.f32 %v5951, %v5832
        %v5960 = vadd.f32 %v5952, %v5837
        %v5961 = vadd.f32 %v5953, %v5842
        %v5962 = vadd.f32 %v5954, %v5847
        %v5963 = vld [vmem:[%s6 + $0x10] sm:$0x1]
        %v5965 = vlaneseq
        %v5966 = vshrl.u32 %v5965, 7
        %v5967 = vsub.s32 0, %v5966
        %v5968 = vrot.slane %v5963, %v5967
        %v5970 = vadd.f32 %v5955, %v5968
        %v5971 = vadd.f32 %v5956, %v5968
        %v5972 = vadd.f32 %v5957, %v5968
        %v5973 = vadd.f32 %v5958, %v5968
        %v5974 = vadd.f32 %v5959, %v5968
        %v5975 = vadd.f32 %v5960, %v5968
        %v5976 = vadd.f32 %v5961, %v5968
        %v5977 = vadd.f32 %v5962, %v5968
        %v5978 = vxor.u32 %v5970, 2147483648
        %v5979 = vxor.u32 %v5971, 2147483648
        %v5980 = vxor.u32 %v5972, 2147483648
        %v5981 = vxor.u32 %v5973, 2147483648
        %v5982 = vxor.u32 %v5974, 2147483648
        %v5983 = vxor.u32 %v5975, 2147483648
        %v5984 = vxor.u32 %v5976, 2147483648
        %v5985 = vxor.u32 %v5977, 2147483648
        %v5986 = vmul.f32 %v5978, 1.442695
        %v5987 = vpow.pop %v5986
        %v5988 = vmul.f32 %v5979, 1.442695
        %v5989 = vpow.pop %v5988
        %v5990 = vmul.f32 %v5980, 1.442695
        %v5991 = vpow.pop %v5990
        %v5992 = vmul.f32 %v5981, 1.442695
        %v5993 = vpow.pop %v5992
        %v5994 = vmul.f32 %v5982, 1.442695
        %v5995 = vpow.pop %v5994
        %v5996 = vmul.f32 %v5983, 1.442695
        %v5997 = vpow.pop %v5996
        %v5998 = vmul.f32 %v5984, 1.442695
        %v5999 = vpow.pop %v5998
        %v6000 = vmul.f32 %v5985, 1.442695
        %v6001 = vpow.pop %v6000
        %v6002 = vadd.f32 %v5987, 1.0
        %v6003 = vadd.f32 %v5989, 1.0
        %v6004 = vadd.f32 %v5991, 1.0
        %v6005 = vadd.f32 %v5993, 1.0
        %v6006 = vadd.f32 %v5995, 1.0
        %v6007 = vadd.f32 %v5997, 1.0
        %v6008 = vadd.f32 %v5999, 1.0
        %v6009 = vadd.f32 %v6001, 1.0
        %v6010 = vrcp.pop %v6002
        %v6011 = vmul.f32 1.0, %v6010
        %v6012 = vrcp.pop %v6003
        %v6013 = vmul.f32 1.0, %v6012
        %v6014 = vrcp.pop %v6004
        %v6015 = vmul.f32 1.0, %v6014
        %v6016 = vrcp.pop %v6005
        %v6017 = vmul.f32 1.0, %v6016
        %v6018 = vrcp.pop %v6006
        %v6019 = vmul.f32 1.0, %v6018
        %v6020 = vrcp.pop %v6007
        %v6021 = vmul.f32 1.0, %v6020
        %v6022 = vrcp.pop %v6008
        %v6023 = vmul.f32 1.0, %v6022
        %v6024 = vrcp.pop %v6009
        %v6025 = vmul.f32 1.0, %v6024
        %v6026 = vmul.f32 %v5970, %v6011
        %v6027 = vmul.f32 %v5971, %v6013
        %v6028 = vmul.f32 %v5972, %v6015
        %v6029 = vmul.f32 %v5973, %v6017
        %v6030 = vmul.f32 %v5974, %v6019
        %v6031 = vmul.f32 %v5975, %v6021
        %v6032 = vmul.f32 %v5976, %v6023
        %v6033 = vmul.f32 %v5977, %v6025
        %v6034 = vld [vmem:[#allocation5 + $0x8] sm:$0xff]
        %v6035 = vld [vmem:[#allocation5 + $0x18] sm:$0xff]
        %v6036 = vld [vmem:[#allocation5 + $0x28] sm:$0xff]
        %v6037 = vld [vmem:[#allocation5 + $0x38] sm:$0xff]
        %v6038 = vld [vmem:[#allocation5 + $0x48] sm:$0xff]
        %v6039 = vld [vmem:[#allocation5 + $0x58] sm:$0xff]
        %v6040 = vld [vmem:[#allocation5 + $0x68] sm:$0xff]
        %v6041 = vld [vmem:[#allocation5 + $0x78] sm:$0xff]
        %v6042 = vld [vmem:[#allocation5 + $0x88] sm:$0xff]
        %v6043 = vld [vmem:[#allocation5 + $0x98] sm:$0xff]
        %v6044 = vld [vmem:[#allocation5 + $0xa8] sm:$0xff]
        %v6045 = vld [vmem:[#allocation5 + $0xb8] sm:$0xff]
        %v6046 = vld [vmem:[%s6 + $0x11] sm:$0x1]
        %v6048 = vlaneseq
        %v6049 = vshrl.u32 %v6048, 7
        %v6050 = vsub.s32 0, %v6049
        %v6051 = vrot.slane %v6046, %v6050
        %v6054 = vsel %vm3607, %v6026, 0
        %v6057 = vsel %vm3607, %v6027, 0
        %v6060 = vsel %vm3607, %v6028, 0
        %v6063 = vsel %vm3607, %v6029, 0
        %v6066 = vsel %vm3607, %v6030, 0
        %v6069 = vsel %vm3607, %v6031, 0
        %v6072 = vsel %vm3607, %v6032, 0
        %v6075 = vsel %vm3607, %v6033, 0
        %6077 = vmatprep.subr.mxu0 0.0
        %6078 = vmatpush1.msra.mxu0 %v6034
        %6079 = vmatprep.subr.mxu0 0.0
        %6080 = vmatpush1.msra.mxu0 %v6035
        %6081 = vmatprep.subr.mxu0 0.0
        %6082 = vmatpush1.msra.mxu0 %v6036
        %6083 = vmatprep.subr.mxu0 0.0
        %6084 = vmatpush1.msra.mxu0 %v6037
        %6085 = vmatprep.subr.mxu0 0.0
        %6086 = vmatpush1.msra.mxu0 %v6038
        %6087 = vmatprep.subr.mxu0 0.0
        %6088 = vmatpush1.msra.mxu0 %v6039
        %6089 = vmatprep.subr.mxu0 0.0
        %6090 = vmatpush1.msra.mxu0 %v6040
        %6091 = vmatprep.subr.mxu0 0.0
        %6092 = vmatpush1.msra.mxu0 %v6041
        %6093 = vmatprep.subr.mxu0 0.0
        %6094 = vmatpush1.msra.mxu0 %v6042
        %6095 = vmatprep.subr.mxu0 0.0
        %6096 = vmatpush1.msra.mxu0 %v6043
        %6097 = vmatprep.subr.mxu0 0.0
        %6098 = vmatpush1.msra.mxu0 %v6044
        %6099 = vmatprep.subr.mxu0 0.0
        %6100 = vmatpush1.msra.mxu0 %v6045
        %6101 = vmatprep.subr.mxu0 0.0
        %6102 = vmatpush1.msra.mxu0 0.0
        %6103 = vmatprep.subr.mxu0 0.0
        %6104 = vmatpush1.msra.mxu0 0.0
        %6105 = vmatprep.subr.mxu0 0.0
        %6106 = vmatpush1.msra.mxu0 0.0
        %6107 = vmatprep.subr.mxu0 0.0
        %6108 = vmatpush1.msra.mxu0 0.0
        %6109 = vmatprep.subr.mxu0 0.0
        %6110 = vmatpush1.msra.mxu0 0.0
        %6111 = vmatprep.subr.mxu0 0.0
        %6112 = vmatpush1.msra.mxu0 0.0
        %6113 = vmatprep.subr.mxu0 0.0
        %6114 = vmatpush1.msra.mxu0 0.0
        %6115 = vmatprep.subr.mxu0 0.0
        %6116 = vmatpush1.msra.mxu0 0.0
        %6117 = vmatprep.subr.mxu0 0.0
        %6118 = vmatpush1.msra.mxu0 0.0
        %6119 = vmatprep.subr.mxu0 0.0
        %6120 = vmatpush1.msra.mxu0 0.0
        %6121 = vmatprep.subr.mxu0 0.0
        %6122 = vmatpush1.msra.mxu0 0.0
        %6123 = vmatprep.subr.mxu0 0.0
        %6124 = vmatpush1.msra.mxu0 0.0
        %6125 = vmatprep.subr.mxu0 0.0
        %6126 = vmatpush1.msra.mxu0 0.0
        %6127 = vmatprep.subr.mxu0 0.0
        %6128 = vmatpush1.msra.mxu0 0.0
        %6129 = vmatprep.subr.mxu0 0.0
        %6130 = vmatpush1.msra.mxu0 0.0
        %6131 = vmatprep.subr.mxu0 0.0
        %6132 = vmatpush1.msra.mxu0 0.0
        %6133 = vmatprep.subr.mxu0 0.0
        %6134 = vmatpush1.msra.mxu0 0.0
        %6135 = vmatprep.subr.mxu0 0.0
        %6136 = vmatpush1.msra.mxu0 0.0
        %6137 = vmatprep.subr.mxu0 0.0
        %6138 = vmatpush1.msra.mxu0 0.0
        %6139 = vmatprep.subr.mxu0 0.0
        %6140 = vmatpush1.msra.mxu0 0.0
        %6141 = vmatprep.mubr.f32.mxu0 0.0
        %6142 = vmatmul.mubr.f32.gmra.mrb[0].mxu0 %v6054
        %v6143 = vpop.f32.mrb[0].mxu0
        %v6144 = vadd.f32 %v6051, %v6143
        %v6145 = vpop.f32.mrb[0].mxu0
        %6146 = vmatprep.mubr.f32.mxu0 0.0
        %6147 = vmatmul.mubr.f32.gmra.mrb[0].mxu0 %v6057
        %v6148 = vpop.f32.mrb[0].mxu0
        %v6149 = vadd.f32 %v6051, %v6148
        %v6150 = vpop.f32.mrb[0].mxu0
        %6151 = vmatprep.mubr.f32.mxu0 0.0
        %6152 = vmatmul.mubr.f32.gmra.mrb[0].mxu0 %v6060
        %v6153 = vpop.f32.mrb[0].mxu0
        %v6154 = vadd.f32 %v6051, %v6153
        %v6155 = vpop.f32.mrb[0].mxu0
        %6156 = vmatprep.mubr.f32.mxu0 0.0
        %6157 = vmatmul.mubr.f32.gmra.mrb[0].mxu0 %v6063
        %v6158 = vpop.f32.mrb[0].mxu0
        %v6159 = vadd.f32 %v6051, %v6158
        %v6160 = vpop.f32.mrb[0].mxu0
        %6161 = vmatprep.mubr.f32.mxu0 0.0
        %6162 = vmatmul.mubr.f32.gmra.mrb[0].mxu0 %v6066
        %v6163 = vpop.f32.mrb[0].mxu0
        %v6164 = vadd.f32 %v6051, %v6163
        %v6165 = vpop.f32.mrb[0].mxu0
        %6166 = vmatprep.mubr.f32.mxu0 0.0
        %6167 = vmatmul.mubr.f32.gmra.mrb[0].mxu0 %v6069
        %v6168 = vpop.f32.mrb[0].mxu0
        %v6169 = vadd.f32 %v6051, %v6168
        %v6170 = vpop.f32.mrb[0].mxu0
        %6171 = vmatprep.mubr.f32.mxu0 0.0
        %6172 = vmatmul.mubr.f32.gmra.mrb[0].mxu0 %v6072
        %v6173 = vpop.f32.mrb[0].mxu0
        %v6174 = vadd.f32 %v6051, %v6173
        %v6175 = vpop.f32.mrb[0].mxu0
        %6176 = vmatprep.mubr.f32.mxu0 0.0
        %6177 = vmatmul.mubr.f32.gmra.mrb[0].mxu0 %v6075
        %v6178 = vpop.f32.mrb[0].mxu0
        %v6179 = vadd.f32 %v6051, %v6178
        %v6180 = vpop.f32.mrb[0].mxu0
        %6181 = vdwg.mxu0
        %v6182 = vxor.u32 %v6144, 2147483648
        %v6183 = vxor.u32 %v6149, 2147483648
        %v6184 = vxor.u32 %v6154, 2147483648
        %v6185 = vxor.u32 %v6159, 2147483648
        %v6186 = vxor.u32 %v6164, 2147483648
        %v6187 = vxor.u32 %v6169, 2147483648
        %v6188 = vxor.u32 %v6174, 2147483648
        %v6189 = vxor.u32 %v6179, 2147483648
        %v6190 = vmul.f32 %v6182, 1.442695
        %v6191 = vpow.pop %v6190
        %v6192 = vmul.f32 %v6183, 1.442695
        %v6193 = vpow.pop %v6192
        %v6194 = vmul.f32 %v6184, 1.442695
        %v6195 = vpow.pop %v6194
        %v6196 = vmul.f32 %v6185, 1.442695
        %v6197 = vpow.pop %v6196
        %v6198 = vmul.f32 %v6186, 1.442695
        %v6199 = vpow.pop %v6198
        %v6200 = vmul.f32 %v6187, 1.442695
        %v6201 = vpow.pop %v6200
        %v6202 = vmul.f32 %v6188, 1.442695
        %v6203 = vpow.pop %v6202
        %v6204 = vmul.f32 %v6189, 1.442695
        %v6205 = vpow.pop %v6204
        %v6206 = vadd.f32 %v6191, 1.0
        %v6207 = vadd.f32 %v6193, 1.0
        %v6208 = vadd.f32 %v6195, 1.0
        %v6209 = vadd.f32 %v6197, 1.0
        %v6210 = vadd.f32 %v6199, 1.0
        %v6211 = vadd.f32 %v6201, 1.0
        %v6212 = vadd.f32 %v6203, 1.0
        %v6213 = vadd.f32 %v6205, 1.0
        %v6214 = vrcp.pop %v6206
        %v6215 = vmul.f32 1.0, %v6214
        %v6216 = vrcp.pop %v6207
        %v6217 = vmul.f32 1.0, %v6216
        %v6218 = vrcp.pop %v6208
        %v6219 = vmul.f32 1.0, %v6218
        %v6220 = vrcp.pop %v6209
        %v6221 = vmul.f32 1.0, %v6220
        %v6222 = vrcp.pop %v6210
        %v6223 = vmul.f32 1.0, %v6222
        %v6224 = vrcp.pop %v6211
        %v6225 = vmul.f32 1.0, %v6224
        %v6226 = vrcp.pop %v6212
        %v6227 = vmul.f32 1.0, %v6226
        %v6228 = vrcp.pop %v6213
        %v6229 = vmul.f32 1.0, %v6228
        %v6230 = vmul.f32 %v6144, %v6215
        %v6231 = vmul.f32 %v6149, %v6217
        %v6232 = vmul.f32 %v6154, %v6219
        %v6233 = vmul.f32 %v6159, %v6221
        %v6234 = vmul.f32 %v6164, %v6223
        %v6235 = vmul.f32 %v6169, %v6225
        %v6236 = vmul.f32 %v6174, %v6227
        %v6237 = vmul.f32 %v6179, %v6229
        %6246 = vrot.lane.b32.xlu0 %v6230, 112
        %v6247 = vpop.permute.xlu0 %6246
        %6248 = vrot.lane.b32.xlu0 %v6231, 112
        %v6249 = vpop.permute.xlu0 %6248
        %6250 = vrot.lane.b32.xlu0 %v6232, 112
        %v6251 = vpop.permute.xlu0 %6250
        %6252 = vrot.lane.b32.xlu0 %v6233, 112
        %v6253 = vpop.permute.xlu0 %6252
        %6254 = vrot.lane.b32.xlu0 %v6234, 112
        %v6255 = vpop.permute.xlu0 %6254
        %6256 = vrot.lane.b32.xlu0 %v6235, 112
        %v6257 = vpop.permute.xlu0 %6256
        %6258 = vrot.lane.b32.xlu0 %v6236, 112
        %v6259 = vpop.permute.xlu0 %6258
        %6260 = vrot.lane.b32.xlu0 %v6237, 112
        %v6261 = vpop.permute.xlu0 %6260
        %v6270 = vsub.f32 %v6230, %v6247
        %v6271 = vsub.f32 %v6231, %v6249
        %v6272 = vsub.f32 %v6232, %v6251
        %v6273 = vsub.f32 %v6233, %v6253
        %v6274 = vsub.f32 %v6234, %v6255
        %v6275 = vsub.f32 %v6235, %v6257
        %v6276 = vsub.f32 %v6236, %v6259
        %v6277 = vsub.f32 %v6237, %v6261
        %v6278 = vmul.f32 %v3836, %v6270
        %v6279 = vmul.f32 %v3841, %v6271
        %v6280 = vmul.f32 %v3846, %v6272
        %v6281 = vmul.f32 %v3851, %v6273
        %v6282 = vmul.f32 %v3856, %v6274
        %v6283 = vmul.f32 %v3861, %v6275
        %v6284 = vmul.f32 %v3866, %v6276
        %v6285 = vmul.f32 %v3871, %v6277
        %6294 = vrot.lane.b32.xlu0 %v6278, 16
        %v6295 = vpop.permute.xlu0 %6294
        %6296 = vrot.lane.b32.xlu0 %v6279, 16
        %v6297 = vpop.permute.xlu0 %6296
        %6298 = vrot.lane.b32.xlu0 %v6280, 16
        %v6299 = vpop.permute.xlu0 %6298
        %6300 = vrot.lane.b32.xlu0 %v6281, 16
        %v6301 = vpop.permute.xlu0 %6300
        %6302 = vrot.lane.b32.xlu0 %v6282, 16
        %v6303 = vpop.permute.xlu0 %6302
        %6304 = vrot.lane.b32.xlu0 %v6283, 16
        %v6305 = vpop.permute.xlu0 %6304
        %6306 = vrot.lane.b32.xlu0 %v6284, 16
        %v6307 = vpop.permute.xlu0 %6306
        %6308 = vrot.lane.b32.xlu0 %v6285, 16
        %v6309 = vpop.permute.xlu0 %6308
        %v6318 = vadd.f32 %v6230, %v6295
        %v6319 = vadd.f32 %v6231, %v6297
        %v6320 = vadd.f32 %v6232, %v6299
        %v6321 = vadd.f32 %v6233, %v6301
        %v6322 = vadd.f32 %v6234, %v6303
        %v6323 = vadd.f32 %v6235, %v6305
        %v6324 = vadd.f32 %v6236, %v6307
        %v6325 = vadd.f32 %v6237, %v6309
        %v6326 = vld [vmem:[#allocation2 + $0x38] sm:$0xff]
        %v6327 = vld [vmem:[#allocation2 + $0x90] sm:$0xff]
        %v6328 = vld [vmem:[%s6 + $0x13] sm:$0x1]
        %v6330 = vlaneseq
        %v6331 = vshrl.u32 %v6330, 7
        %v6332 = vsub.s32 0, %v6331
        %v6333 = vrot.slane %v6328, %v6332
        %6343 = vrot.lane.b32.xlu0 %v6318, 80
        %v6344 = vpop.permute.xlu0 %6343
        %6345 = vrot.lane.b32.xlu0 %v6319, 80
        %v6346 = vpop.permute.xlu0 %6345
        %6347 = vrot.lane.b32.xlu0 %v6320, 80
        %v6348 = vpop.permute.xlu0 %6347
        %6349 = vrot.lane.b32.xlu0 %v6321, 80
        %v6350 = vpop.permute.xlu0 %6349
        %6351 = vrot.lane.b32.xlu0 %v6322, 80
        %v6352 = vpop.permute.xlu0 %6351
        %6353 = vrot.lane.b32.xlu0 %v6323, 80
        %v6354 = vpop.permute.xlu0 %6353
        %6355 = vrot.lane.b32.xlu0 %v6324, 80
        %v6356 = vpop.permute.xlu0 %6355
        %6357 = vrot.lane.b32.xlu0 %v6325, 80
        %v6358 = vpop.permute.xlu0 %6357
        %v6359 = vsel %vm463, %v6344, 0
        %v6361 = vsel %vm463, %v6346, 0
        %v6363 = vsel %vm463, %v6348, 0
        %v6365 = vsel %vm463, %v6350, 0
        %v6367 = vsel %vm463, %v6352, 0
        %v6369 = vsel %vm463, %v6354, 0
        %v6371 = vsel %vm463, %v6356, 0
        %v6373 = vsel %vm463, %v6358, 0
        %6375 = vmatprep.subr.mxu0 0.0
        %6376 = vmatpush1.msra.mxu0 %v6326
        %6377 = vmatprep.subr.mxu0 0.0
        %6378 = vmatpush1.msra.mxu0 %v6327
        %6379 = vmatprep.subr.mxu0 0.0
        %6380 = vmatpush1.msra.mxu0 0.0
        %6381 = vmatprep.subr.mxu0 0.0
        %6382 = vmatpush1.msra.mxu0 0.0
        %6383 = vmatprep.subr.mxu0 0.0
        %6384 = vmatpush1.msra.mxu0 0.0
        %6385 = vmatprep.subr.mxu0 0.0
        %6386 = vmatpush1.msra.mxu0 0.0
        %6387 = vmatprep.subr.mxu0 0.0
        %6388 = vmatpush1.msra.mxu0 0.0
        %6389 = vmatprep.subr.mxu0 0.0
        %6390 = vmatpush1.msra.mxu0 0.0
        %6391 = vmatprep.subr.mxu0 0.0
        %6392 = vmatpush1.msra.mxu0 0.0
        %6393 = vmatprep.subr.mxu0 0.0
        %6394 = vmatpush1.msra.mxu0 0.0
        %6395 = vmatprep.subr.mxu0 0.0
        %6396 = vmatpush1.msra.mxu0 0.0
        %6397 = vmatprep.subr.mxu0 0.0
        %6398 = vmatpush1.msra.mxu0 0.0
        %6399 = vmatprep.subr.mxu0 0.0
        %6400 = vmatpush1.msra.mxu0 0.0
        %6401 = vmatprep.subr.mxu0 0.0
        %6402 = vmatpush1.msra.mxu0 0.0
        %6403 = vmatprep.subr.mxu0 0.0
        %6404 = vmatpush1.msra.mxu0 0.0
        %6405 = vmatprep.subr.mxu0 0.0
        %6406 = vmatpush1.msra.mxu0 0.0
        %6407 = vmatprep.subr.mxu0 0.0
        %6408 = vmatpush1.msra.mxu0 0.0
        %6409 = vmatprep.subr.mxu0 0.0
        %6410 = vmatpush1.msra.mxu0 0.0
        %6411 = vmatprep.subr.mxu0 0.0
        %6412 = vmatpush1.msra.mxu0 0.0
        %6413 = vmatprep.subr.mxu0 0.0
        %6414 = vmatpush1.msra.mxu0 0.0
        %6415 = vmatprep.subr.mxu0 0.0
        %6416 = vmatpush1.msra.mxu0 0.0
        %6417 = vmatprep.subr.mxu0 0.0
        %6418 = vmatpush1.msra.mxu0 0.0
        %6419 = vmatprep.subr.mxu0 0.0
        %6420 = vmatpush1.msra.mxu0 0.0
        %6421 = vmatprep.subr.mxu0 0.0
        %6422 = vmatpush1.msra.mxu0 0.0
        %6423 = vmatprep.subr.mxu0 0.0
        %6424 = vmatpush1.msra.mxu0 0.0
        %6425 = vmatprep.subr.mxu0 0.0
        %6426 = vmatpush1.msra.mxu0 0.0
        %6427 = vmatprep.subr.mxu0 0.0
        %6428 = vmatpush1.msra.mxu0 0.0
        %6429 = vmatprep.subr.mxu0 0.0
        %6430 = vmatpush1.msra.mxu0 0.0
        %6431 = vmatprep.subr.mxu0 0.0
        %6432 = vmatpush1.msra.mxu0 0.0
        %6433 = vmatprep.subr.mxu0 0.0
        %6434 = vmatpush1.msra.mxu0 0.0
        %6435 = vmatprep.subr.mxu0 0.0
        %6436 = vmatpush1.msra.mxu0 0.0
        %6437 = vmatprep.subr.mxu0 0.0
        %6438 = vmatpush1.msra.mxu0 0.0
        %6439 = vmatprep.mubr.f32.mxu0 0.0
        %6440 = vmatmul.mubr.f32.gmra.mrb[0].mxu0 %v6359
        %v6441 = vpop.f32.mrb[0].mxu0
        %v6442 = vadd.f32 %v6333, %v6441
        %v6443 = vpop.f32.mrb[0].mxu0
        %6444 = vmatprep.mubr.f32.mxu0 0.0
        %6445 = vmatmul.mubr.f32.gmra.mrb[0].mxu0 %v6361
        %v6446 = vpop.f32.mrb[0].mxu0
        %v6447 = vadd.f32 %v6333, %v6446
        %v6448 = vpop.f32.mrb[0].mxu0
        %6449 = vmatprep.mubr.f32.mxu0 0.0
        %6450 = vmatmul.mubr.f32.gmra.mrb[0].mxu0 %v6363
        %v6451 = vpop.f32.mrb[0].mxu0
        %v6452 = vadd.f32 %v6333, %v6451
        %v6453 = vpop.f32.mrb[0].mxu0
        %6454 = vmatprep.mubr.f32.mxu0 0.0
        %6455 = vmatmul.mubr.f32.gmra.mrb[0].mxu0 %v6365
        %v6456 = vpop.f32.mrb[0].mxu0
        %v6457 = vadd.f32 %v6333, %v6456
        %v6458 = vpop.f32.mrb[0].mxu0
        %6459 = vmatprep.mubr.f32.mxu0 0.0
        %6460 = vmatmul.mubr.f32.gmra.mrb[0].mxu0 %v6367
        %v6461 = vpop.f32.mrb[0].mxu0
        %v6462 = vadd.f32 %v6333, %v6461
        %v6463 = vpop.f32.mrb[0].mxu0
        %6464 = vmatprep.mubr.f32.mxu0 0.0
        %6465 = vmatmul.mubr.f32.gmra.mrb[0].mxu0 %v6369
        %v6466 = vpop.f32.mrb[0].mxu0
        %v6467 = vadd.f32 %v6333, %v6466
        %v6468 = vpop.f32.mrb[0].mxu0
        %6469 = vmatprep.mubr.f32.mxu0 0.0
        %6470 = vmatmul.mubr.f32.gmra.mrb[0].mxu0 %v6371
        %v6471 = vpop.f32.mrb[0].mxu0
        %v6472 = vadd.f32 %v6333, %v6471
        %v6473 = vpop.f32.mrb[0].mxu0
        %6474 = vmatprep.mubr.f32.mxu0 0.0
        %6475 = vmatmul.mubr.f32.gmra.mrb[0].mxu0 %v6373
        %v6476 = vpop.f32.mrb[0].mxu0
        %v6477 = vadd.f32 %v6333, %v6476
        %v6478 = vpop.f32.mrb[0].mxu0
        %6479 = vdwg.mxu0
        %v6480 = vxor.u32 %v6442, 2147483648
        %v6481 = vxor.u32 %v6447, 2147483648
        %v6482 = vxor.u32 %v6452, 2147483648
        %v6483 = vxor.u32 %v6457, 2147483648
        %v6484 = vxor.u32 %v6462, 2147483648
        %v6485 = vxor.u32 %v6467, 2147483648
        %v6486 = vxor.u32 %v6472, 2147483648
        %v6487 = vxor.u32 %v6477, 2147483648
        %v6488 = vmul.f32 %v6480, 1.442695
        %v6489 = vpow.pop %v6488
        %v6490 = vmul.f32 %v6481, 1.442695
        %v6491 = vpow.pop %v6490
        %v6492 = vmul.f32 %v6482, 1.442695
        %v6493 = vpow.pop %v6492
        %v6494 = vmul.f32 %v6483, 1.442695
        %v6495 = vpow.pop %v6494
        %v6496 = vmul.f32 %v6484, 1.442695
        %v6497 = vpow.pop %v6496
        %v6498 = vmul.f32 %v6485, 1.442695
        %v6499 = vpow.pop %v6498
        %v6500 = vmul.f32 %v6486, 1.442695
        %v6501 = vpow.pop %v6500
        %v6502 = vmul.f32 %v6487, 1.442695
        %v6503 = vpow.pop %v6502
        %v6504 = vadd.f32 %v6489, 1.0
        %v6505 = vadd.f32 %v6491, 1.0
        %v6506 = vadd.f32 %v6493, 1.0
        %v6507 = vadd.f32 %v6495, 1.0
        %v6508 = vadd.f32 %v6497, 1.0
        %v6509 = vadd.f32 %v6499, 1.0
        %v6510 = vadd.f32 %v6501, 1.0
        %v6511 = vadd.f32 %v6503, 1.0
        %v6512 = vrcp.pop %v6504
        %v6513 = vmul.f32 1.0, %v6512
        %v6514 = vrcp.pop %v6505
        %v6515 = vmul.f32 1.0, %v6514
        %v6516 = vrcp.pop %v6506
        %v6517 = vmul.f32 1.0, %v6516
        %v6518 = vrcp.pop %v6507
        %v6519 = vmul.f32 1.0, %v6518
        %v6520 = vrcp.pop %v6508
        %v6521 = vmul.f32 1.0, %v6520
        %v6522 = vrcp.pop %v6509
        %v6523 = vmul.f32 1.0, %v6522
        %v6524 = vrcp.pop %v6510
        %v6525 = vmul.f32 1.0, %v6524
        %v6526 = vrcp.pop %v6511
        %v6527 = vmul.f32 1.0, %v6526
        %v6528 = vmul.f32 %v6442, %v6513
        %v6529 = vmul.f32 %v6447, %v6515
        %v6530 = vmul.f32 %v6452, %v6517
        %v6531 = vmul.f32 %v6457, %v6519
        %v6532 = vmul.f32 %v6462, %v6521
        %v6533 = vmul.f32 %v6467, %v6523
        %v6534 = vmul.f32 %v6472, %v6525
        %v6535 = vmul.f32 %v6477, %v6527
        %v6536 = vld [vmem:[#allocation2 + $0x40] sm:$0xff]
        %v6537 = vld [vmem:[#allocation2 + $0x98] sm:$0xff]
        %v6538 = vld [vmem:[%s6 + $0x14] sm:$0x1]
        %v6540 = vlaneseq
        %v6541 = vshrl.u32 %v6540, 7
        %v6542 = vsub.s32 0, %v6541
        %v6543 = vrot.slane %v6538, %v6542
        %v6546 = vsel %vm463, %v6528, 0
        %v6549 = vsel %vm463, %v6529, 0
        %v6552 = vsel %vm463, %v6530, 0
        %v6555 = vsel %vm463, %v6531, 0
        %v6558 = vsel %vm463, %v6532, 0
        %v6561 = vsel %vm463, %v6533, 0
        %v6564 = vsel %vm463, %v6534, 0
        %v6567 = vsel %vm463, %v6535, 0
        %6569 = vmatprep.subr.mxu0 0.0
        %6570 = vmatpush1.msra.mxu0 %v6536
        %6571 = vmatprep.subr.mxu0 0.0
        %6572 = vmatpush1.msra.mxu0 %v6537
        %6573 = vmatprep.subr.mxu0 0.0
        %6574 = vmatpush1.msra.mxu0 0.0
        %6575 = vmatprep.subr.mxu0 0.0
        %6576 = vmatpush1.msra.mxu0 0.0
        %6577 = vmatprep.subr.mxu0 0.0
        %6578 = vmatpush1.msra.mxu0 0.0
        %6579 = vmatprep.subr.mxu0 0.0
        %6580 = vmatpush1.msra.mxu0 0.0
        %6581 = vmatprep.subr.mxu0 0.0
        %6582 = vmatpush1.msra.mxu0 0.0
        %6583 = vmatprep.subr.mxu0 0.0
        %6584 = vmatpush1.msra.mxu0 0.0
        %6585 = vmatprep.subr.mxu0 0.0
        %6586 = vmatpush1.msra.mxu0 0.0
        %6587 = vmatprep.subr.mxu0 0.0
        %6588 = vmatpush1.msra.mxu0 0.0
        %6589 = vmatprep.subr.mxu0 0.0
        %6590 = vmatpush1.msra.mxu0 0.0
        %6591 = vmatprep.subr.mxu0 0.0
        %6592 = vmatpush1.msra.mxu0 0.0
        %6593 = vmatprep.subr.mxu0 0.0
        %6594 = vmatpush1.msra.mxu0 0.0
        %6595 = vmatprep.subr.mxu0 0.0
        %6596 = vmatpush1.msra.mxu0 0.0
        %6597 = vmatprep.subr.mxu0 0.0
        %6598 = vmatpush1.msra.mxu0 0.0
        %6599 = vmatprep.subr.mxu0 0.0
        %6600 = vmatpush1.msra.mxu0 0.0
        %6601 = vmatprep.subr.mxu0 0.0
        %6602 = vmatpush1.msra.mxu0 0.0
        %6603 = vmatprep.subr.mxu0 0.0
        %6604 = vmatpush1.msra.mxu0 0.0
        %6605 = vmatprep.subr.mxu0 0.0
        %6606 = vmatpush1.msra.mxu0 0.0
        %6607 = vmatprep.subr.mxu0 0.0
        %6608 = vmatpush1.msra.mxu0 0.0
        %6609 = vmatprep.subr.mxu0 0.0
        %6610 = vmatpush1.msra.mxu0 0.0
        %6611 = vmatprep.subr.mxu0 0.0
        %6612 = vmatpush1.msra.mxu0 0.0
        %6613 = vmatprep.subr.mxu0 0.0
        %6614 = vmatpush1.msra.mxu0 0.0
        %6615 = vmatprep.subr.mxu0 0.0
        %6616 = vmatpush1.msra.mxu0 0.0
        %6617 = vmatprep.subr.mxu0 0.0
        %6618 = vmatpush1.msra.mxu0 0.0
        %6619 = vmatprep.subr.mxu0 0.0
        %6620 = vmatpush1.msra.mxu0 0.0
        %6621 = vmatprep.subr.mxu0 0.0
        %6622 = vmatpush1.msra.mxu0 0.0
        %6623 = vmatprep.subr.mxu0 0.0
        %6624 = vmatpush1.msra.mxu0 0.0
        %6625 = vmatprep.subr.mxu0 0.0
        %6626 = vmatpush1.msra.mxu0 0.0
        %6627 = vmatprep.subr.mxu0 0.0
        %6628 = vmatpush1.msra.mxu0 0.0
        %6629 = vmatprep.subr.mxu0 0.0
        %6630 = vmatpush1.msra.mxu0 0.0
        %6631 = vmatprep.subr.mxu0 0.0
        %6632 = vmatpush1.msra.mxu0 0.0
        %6633 = vmatprep.mubr.f32.mxu0 0.0
        %6634 = vmatmul.mubr.f32.gmra.mrb[0].mxu0 %v6546
        %v6635 = vpop.f32.mrb[0].mxu0
        %v6636 = vadd.f32 %v6543, %v6635
        %v6637 = vpop.f32.mrb[0].mxu0
        %6638 = vmatprep.mubr.f32.mxu0 0.0
        %6639 = vmatmul.mubr.f32.gmra.mrb[0].mxu0 %v6549
        %v6640 = vpop.f32.mrb[0].mxu0
        %v6641 = vadd.f32 %v6543, %v6640
        %v6642 = vpop.f32.mrb[0].mxu0
        %6643 = vmatprep.mubr.f32.mxu0 0.0
        %6644 = vmatmul.mubr.f32.gmra.mrb[0].mxu0 %v6552
        %v6645 = vpop.f32.mrb[0].mxu0
        %v6646 = vadd.f32 %v6543, %v6645
        %v6647 = vpop.f32.mrb[0].mxu0
        %6648 = vmatprep.mubr.f32.mxu0 0.0
        %6649 = vmatmul.mubr.f32.gmra.mrb[0].mxu0 %v6555
        %v6650 = vpop.f32.mrb[0].mxu0
        %v6651 = vadd.f32 %v6543, %v6650
        %v6652 = vpop.f32.mrb[0].mxu0
        %6653 = vmatprep.mubr.f32.mxu0 0.0
        %6654 = vmatmul.mubr.f32.gmra.mrb[0].mxu0 %v6558
        %v6655 = vpop.f32.mrb[0].mxu0
        %v6656 = vadd.f32 %v6543, %v6655
        %v6657 = vpop.f32.mrb[0].mxu0
        %6658 = vmatprep.mubr.f32.mxu0 0.0
        %6659 = vmatmul.mubr.f32.gmra.mrb[0].mxu0 %v6561
        %v6660 = vpop.f32.mrb[0].mxu0
        %v6661 = vadd.f32 %v6543, %v6660
        %v6662 = vpop.f32.mrb[0].mxu0
        %6663 = vmatprep.mubr.f32.mxu0 0.0
        %6664 = vmatmul.mubr.f32.gmra.mrb[0].mxu0 %v6564
        %v6665 = vpop.f32.mrb[0].mxu0
        %v6666 = vadd.f32 %v6543, %v6665
        %v6667 = vpop.f32.mrb[0].mxu0
        %6668 = vmatprep.mubr.f32.mxu0 0.0
        %6669 = vmatmul.mubr.f32.gmra.mrb[0].mxu0 %v6567
        %v6670 = vpop.f32.mrb[0].mxu0
        %v6671 = vadd.f32 %v6543, %v6670
        %v6672 = vpop.f32.mrb[0].mxu0
        %6673 = vdwg.mxu0
        %v6674 = vxor.u32 %v6636, 2147483648
        %v6675 = vxor.u32 %v6641, 2147483648
        %v6676 = vxor.u32 %v6646, 2147483648
        %v6677 = vxor.u32 %v6651, 2147483648
        %v6678 = vxor.u32 %v6656, 2147483648
        %v6679 = vxor.u32 %v6661, 2147483648
        %v6680 = vxor.u32 %v6666, 2147483648
        %v6681 = vxor.u32 %v6671, 2147483648
        %v6682 = vmul.f32 %v6674, 1.442695
        %v6683 = vpow.pop %v6682
        %v6684 = vmul.f32 %v6675, 1.442695
        %v6685 = vpow.pop %v6684
        %v6686 = vmul.f32 %v6676, 1.442695
        %v6687 = vpow.pop %v6686
        %v6688 = vmul.f32 %v6677, 1.442695
        %v6689 = vpow.pop %v6688
        %v6690 = vmul.f32 %v6678, 1.442695
        %v6691 = vpow.pop %v6690
        %v6692 = vmul.f32 %v6679, 1.442695
        %v6693 = vpow.pop %v6692
        %v6694 = vmul.f32 %v6680, 1.442695
        %v6695 = vpow.pop %v6694
        %v6696 = vmul.f32 %v6681, 1.442695
        %v6697 = vpow.pop %v6696
        %v6698 = vadd.f32 %v6683, 1.0
        %v6699 = vadd.f32 %v6685, 1.0
        %v6700 = vadd.f32 %v6687, 1.0
        %v6701 = vadd.f32 %v6689, 1.0
        %v6702 = vadd.f32 %v6691, 1.0
        %v6703 = vadd.f32 %v6693, 1.0
        %v6704 = vadd.f32 %v6695, 1.0
        %v6705 = vadd.f32 %v6697, 1.0
        %v6706 = vrcp.pop %v6698
        %v6707 = vmul.f32 1.0, %v6706
        %v6708 = vrcp.pop %v6699
        %v6709 = vmul.f32 1.0, %v6708
        %v6710 = vrcp.pop %v6700
        %v6711 = vmul.f32 1.0, %v6710
        %v6712 = vrcp.pop %v6701
        %v6713 = vmul.f32 1.0, %v6712
        %v6714 = vrcp.pop %v6702
        %v6715 = vmul.f32 1.0, %v6714
        %v6716 = vrcp.pop %v6703
        %v6717 = vmul.f32 1.0, %v6716
        %v6718 = vrcp.pop %v6704
        %v6719 = vmul.f32 1.0, %v6718
        %v6720 = vrcp.pop %v6705
        %v6721 = vmul.f32 1.0, %v6720
        %v6722 = vmul.f32 %v6636, %v6707
        %v6723 = vmul.f32 %v6641, %v6709
        %v6724 = vmul.f32 %v6646, %v6711
        %v6725 = vmul.f32 %v6651, %v6713
        %v6726 = vmul.f32 %v6656, %v6715
        %v6727 = vmul.f32 %v6661, %v6717
        %v6728 = vmul.f32 %v6666, %v6719
        %v6729 = vmul.f32 %v6671, %v6721
        %v6730 = vsel %vm463, %v4956, 0.0
        %6731 = vadd.xlane.f32.xlu0 %v6730
        %v6732 = vpop.xlane.xlu0 %6731
        %v6733 = vsel %vm463, %v4957, 0.0
        %6734 = vadd.xlane.f32.xlu0 %v6733
        %v6735 = vpop.xlane.xlu0 %6734
        %v6736 = vsel %vm463, %v4958, 0.0
        %6737 = vadd.xlane.f32.xlu0 %v6736
        %v6738 = vpop.xlane.xlu0 %6737
        %v6739 = vmul.f32 %v6732, %v4334
        %v6740 = vmul.f32 %v6735, %v4334
        %v6741 = vmul.f32 %v6738, %v4334
        %v6742 = vrot.slane %v6739, 4
        %v6743 = vadd.f32 %v6739, %v6742
        %v6744 = vrot.slane %v6743, 2
        %v6745 = vadd.f32 %v6743, %v6744
        %v6746 = vrot.slane %v6745, 1
        %v6747 = vadd.f32 %v6745, %v6746
        %v6748 = vrot.slane %v6740, 4
        %v6749 = vadd.f32 %v6740, %v6748
        %v6750 = vrot.slane %v6749, 2
        %v6751 = vadd.f32 %v6749, %v6750
        %v6752 = vrot.slane %v6751, 1
        %v6753 = vadd.f32 %v6751, %v6752
        %v6754 = vrot.slane %v6741, 4
        %v6755 = vadd.f32 %v6741, %v6754
        %v6756 = vrot.slane %v6755, 2
        %v6757 = vadd.f32 %v6755, %v6756
        %v6758 = vrot.slane %v6757, 1
        %v6759 = vadd.f32 %v6757, %v6758
        %v6760 = vmul.f32 %v6747, %v4356
        %v6761 = vmul.f32 %v6753, %v4356
        %v6762 = vmul.f32 %v6759, %v4356
        %v6763 = vsub.f32 %v4956, %v6760
        %v6764 = vsub.f32 %v4957, %v6761
        %v6765 = vsub.f32 %v4958, %v6762
        %6769 = vrot.lane.b32.xlu0 %v6763, 64
        %v6770 = vpop.permute.xlu0 %6769
        %6771 = vrot.lane.b32.xlu0 %v6764, 64
        %v6772 = vpop.permute.xlu0 %6771
        %6773 = vrot.lane.b32.xlu0 %v6765, 64
        %v6774 = vpop.permute.xlu0 %6773
        %v6778 = vmul.f32 %v5718, %v6770
        %v6779 = vmul.f32 %v5718, %v6772
        %v6780 = vmul.f32 %v5718, %v6774
        %6781 = vrot.lane.b32.xlu0 %v4956, 64
        %v6782 = vpop.permute.xlu0 %6781
        %6783 = vrot.lane.b32.xlu0 %v4957, 64
        %v6784 = vpop.permute.xlu0 %6783
        %6785 = vrot.lane.b32.xlu0 %v4958, 64
        %v6786 = vpop.permute.xlu0 %6785
        %v6790 = vadd.f32 %v6778, %v6782
        %v6791 = vadd.f32 %v6779, %v6784
        %v6792 = vadd.f32 %v6780, %v6786
        %v6793 = vmul.f32 %v6722, %v5312
        %v6794 = vmul.f32 %v6723, %v5313
        %v6795 = vmul.f32 %v6724, %v5314
        %v6796 = vmul.f32 %v6725, %v5315
        %v6797 = vmul.f32 %v6726, %v5316
        %v6798 = vmul.f32 %v6727, %v5317
        %v6799 = vmul.f32 %v6728, %v5318
        %v6800 = vmul.f32 %v6729, %v5319
        %v6801 = vsel %vm463, %v6793, 0.0
        %v6802 = vrot.slane %v6801, 4
        %v6803 = vadd.f32 %v6801, %v6802
        %v6804 = vrot.slane %v6803, 2
        %v6805 = vadd.f32 %v6803, %v6804
        %v6806 = vrot.slane %v6805, 1
        %v6807 = vadd.f32 %v6805, %v6806
        %v6808 = vsel %vm463, %v6794, 0.0
        %v6809 = vrot.slane %v6808, 4
        %v6810 = vadd.f32 %v6808, %v6809
        %v6811 = vrot.slane %v6810, 2
        %v6812 = vadd.f32 %v6810, %v6811
        %v6813 = vrot.slane %v6812, 1
        %v6814 = vadd.f32 %v6812, %v6813
        %v6815 = vsel %vm463, %v6795, 0.0
        %v6816 = vrot.slane %v6815, 4
        %v6817 = vadd.f32 %v6815, %v6816
        %v6818 = vrot.slane %v6817, 2
        %v6819 = vadd.f32 %v6817, %v6818
        %v6820 = vrot.slane %v6819, 1
        %v6821 = vadd.f32 %v6819, %v6820
        %v6822 = vsel %vm463, %v6796, 0.0
        %v6823 = vrot.slane %v6822, 4
        %v6824 = vadd.f32 %v6822, %v6823
        %v6825 = vrot.slane %v6824, 2
        %v6826 = vadd.f32 %v6824, %v6825
        %v6827 = vrot.slane %v6826, 1
        %v6828 = vadd.f32 %v6826, %v6827
        %v6829 = vsel %vm463, %v6797, 0.0
        %v6830 = vrot.slane %v6829, 4
        %v6831 = vadd.f32 %v6829, %v6830
        %v6832 = vrot.slane %v6831, 2
        %v6833 = vadd.f32 %v6831, %v6832
        %v6834 = vrot.slane %v6833, 1
        %v6835 = vadd.f32 %v6833, %v6834
        %v6836 = vsel %vm463, %v6798, 0.0
        %v6837 = vrot.slane %v6836, 4
        %v6838 = vadd.f32 %v6836, %v6837
        %v6839 = vrot.slane %v6838, 2
        %v6840 = vadd.f32 %v6838, %v6839
        %v6841 = vrot.slane %v6840, 1
        %v6842 = vadd.f32 %v6840, %v6841
        %v6843 = vsel %vm463, %v6799, 0.0
        %v6844 = vrot.slane %v6843, 4
        %v6845 = vadd.f32 %v6843, %v6844
        %v6846 = vrot.slane %v6845, 2
        %v6847 = vadd.f32 %v6845, %v6846
        %v6848 = vrot.slane %v6847, 1
        %v6849 = vadd.f32 %v6847, %v6848
        %v6850 = vsel %vm463, %v6800, 0.0
        %v6851 = vrot.slane %v6850, 4
        %v6852 = vadd.f32 %v6850, %v6851
        %v6853 = vrot.slane %v6852, 2
        %v6854 = vadd.f32 %v6852, %v6853
        %v6855 = vrot.slane %v6854, 1
        %v6856 = vadd.f32 %v6854, %v6855
        %v6857 = vmul.f32 %v6722, %v5426
        %v6858 = vmul.f32 %v6723, %v5427
        %v6859 = vmul.f32 %v6724, %v5428
        %v6860 = vmul.f32 %v6725, %v5429
        %v6861 = vmul.f32 %v6726, %v5430
        %v6862 = vmul.f32 %v6727, %v5431
        %v6863 = vmul.f32 %v6728, %v5432
        %v6864 = vmul.f32 %v6729, %v5433
        %v6865 = vsel %vm463, %v6857, 0.0
        %v6866 = vrot.slane %v6865, 4
        %v6867 = vadd.f32 %v6865, %v6866
        %v6868 = vrot.slane %v6867, 2
        %v6869 = vadd.f32 %v6867, %v6868
        %v6870 = vrot.slane %v6869, 1
        %v6871 = vadd.f32 %v6869, %v6870
        %v6872 = vsel %vm463, %v6858, 0.0
        %v6873 = vrot.slane %v6872, 4
        %v6874 = vadd.f32 %v6872, %v6873
        %v6875 = vrot.slane %v6874, 2
        %v6876 = vadd.f32 %v6874, %v6875
        %v6877 = vrot.slane %v6876, 1
        %v6878 = vadd.f32 %v6876, %v6877
        %v6879 = vsel %vm463, %v6859, 0.0
        %v6880 = vrot.slane %v6879, 4
        %v6881 = vadd.f32 %v6879, %v6880
        %v6882 = vrot.slane %v6881, 2
        %v6883 = vadd.f32 %v6881, %v6882
        %v6884 = vrot.slane %v6883, 1
        %v6885 = vadd.f32 %v6883, %v6884
        %v6886 = vsel %vm463, %v6860, 0.0
        %v6887 = vrot.slane %v6886, 4
        %v6888 = vadd.f32 %v6886, %v6887
        %v6889 = vrot.slane %v6888, 2
        %v6890 = vadd.f32 %v6888, %v6889
        %v6891 = vrot.slane %v6890, 1
        %v6892 = vadd.f32 %v6890, %v6891
        %v6893 = vsel %vm463, %v6861, 0.0
        %v6894 = vrot.slane %v6893, 4
        %v6895 = vadd.f32 %v6893, %v6894
        %v6896 = vrot.slane %v6895, 2
        %v6897 = vadd.f32 %v6895, %v6896
        %v6898 = vrot.slane %v6897, 1
        %v6899 = vadd.f32 %v6897, %v6898
        %v6900 = vsel %vm463, %v6862, 0.0
        %v6901 = vrot.slane %v6900, 4
        %v6902 = vadd.f32 %v6900, %v6901
        %v6903 = vrot.slane %v6902, 2
        %v6904 = vadd.f32 %v6902, %v6903
        %v6905 = vrot.slane %v6904, 1
        %v6906 = vadd.f32 %v6904, %v6905
        %v6907 = vsel %vm463, %v6863, 0.0
        %v6908 = vrot.slane %v6907, 4
        %v6909 = vadd.f32 %v6907, %v6908
        %v6910 = vrot.slane %v6909, 2
        %v6911 = vadd.f32 %v6909, %v6910
        %v6912 = vrot.slane %v6911, 1
        %v6913 = vadd.f32 %v6911, %v6912
        %v6914 = vsel %vm463, %v6864, 0.0
        %v6915 = vrot.slane %v6914, 4
        %v6916 = vadd.f32 %v6914, %v6915
        %v6917 = vrot.slane %v6916, 2
        %v6918 = vadd.f32 %v6916, %v6917
        %v6919 = vrot.slane %v6918, 1
        %v6920 = vadd.f32 %v6918, %v6919
        %v6921 = vmul.f32 %v6722, %v5540
        %v6922 = vmul.f32 %v6723, %v5541
        %v6923 = vmul.f32 %v6724, %v5542
        %v6924 = vmul.f32 %v6725, %v5543
        %v6925 = vmul.f32 %v6726, %v5544
        %v6926 = vmul.f32 %v6727, %v5545
        %v6927 = vmul.f32 %v6728, %v5546
        %v6928 = vmul.f32 %v6729, %v5547
        %v6929 = vsel %vm463, %v6921, 0.0
        %v6930 = vrot.slane %v6929, 4
        %v6931 = vadd.f32 %v6929, %v6930
        %v6932 = vrot.slane %v6931, 2
        %v6933 = vadd.f32 %v6931, %v6932
        %v6934 = vrot.slane %v6933, 1
        %v6935 = vadd.f32 %v6933, %v6934
        %v6936 = vsel %vm463, %v6922, 0.0
        %v6937 = vrot.slane %v6936, 4
        %v6938 = vadd.f32 %v6936, %v6937
        %v6939 = vrot.slane %v6938, 2
        %v6940 = vadd.f32 %v6938, %v6939
        %v6941 = vrot.slane %v6940, 1
        %v6942 = vadd.f32 %v6940, %v6941
        %v6943 = vsel %vm463, %v6923, 0.0
        %v6944 = vrot.slane %v6943, 4
        %v6945 = vadd.f32 %v6943, %v6944
        %v6946 = vrot.slane %v6945, 2
        %v6947 = vadd.f32 %v6945, %v6946
        %v6948 = vrot.slane %v6947, 1
        %v6949 = vadd.f32 %v6947, %v6948
        %v6950 = vsel %vm463, %v6924, 0.0
        %v6951 = vrot.slane %v6950, 4
        %v6952 = vadd.f32 %v6950, %v6951
        %v6953 = vrot.slane %v6952, 2
        %v6954 = vadd.f32 %v6952, %v6953
        %v6955 = vrot.slane %v6954, 1
        %v6956 = vadd.f32 %v6954, %v6955
        %v6957 = vsel %vm463, %v6925, 0.0
        %v6958 = vrot.slane %v6957, 4
        %v6959 = vadd.f32 %v6957, %v6958
        %v6960 = vrot.slane %v6959, 2
        %v6961 = vadd.f32 %v6959, %v6960
        %v6962 = vrot.slane %v6961, 1
        %v6963 = vadd.f32 %v6961, %v6962
        %v6964 = vsel %vm463, %v6926, 0.0
        %v6965 = vrot.slane %v6964, 4
        %v6966 = vadd.f32 %v6964, %v6965
        %v6967 = vrot.slane %v6966, 2
        %v6968 = vadd.f32 %v6966, %v6967
        %v6969 = vrot.slane %v6968, 1
        %v6970 = vadd.f32 %v6968, %v6969
        %v6971 = vsel %vm463, %v6927, 0.0
        %v6972 = vrot.slane %v6971, 4
        %v6973 = vadd.f32 %v6971, %v6972
        %v6974 = vrot.slane %v6973, 2
        %v6975 = vadd.f32 %v6973, %v6974
        %v6976 = vrot.slane %v6975, 1
        %v6977 = vadd.f32 %v6975, %v6976
        %v6978 = vsel %vm463, %v6928, 0.0
        %v6979 = vrot.slane %v6978, 4
        %v6980 = vadd.f32 %v6978, %v6979
        %v6981 = vrot.slane %v6980, 2
        %v6982 = vadd.f32 %v6980, %v6981
        %v6983 = vrot.slane %v6982, 1
        %v6984 = vadd.f32 %v6982, %v6983
        %v7009 = vrot.slane %v6814, 7
        %v7010 = vsel %vm2005, %v7009, %v6807
        %v7011 = vrot.slane %v6821, 6
        %v7012 = vsel %vm2007, %v7011, %v7010
        %v7013 = vrot.slane %v6828, 5
        %v7014 = vsel %vm2009, %v7013, %v7012
        %v7015 = vrot.slane %v6835, 4
        %v7016 = vsel %vm2011, %v7015, %v7014
        %v7017 = vrot.slane %v6842, 3
        %v7018 = vsel %vm2013, %v7017, %v7016
        %v7019 = vrot.slane %v6849, 2
        %v7020 = vsel %vm2015, %v7019, %v7018
        %v7021 = vrot.slane %v6856, 1
        %v7022 = vsel %vm2017, %v7021, %v7020
        %v7023 = vrot.slane %v6878, 7
        %v7024 = vsel %vm2005, %v7023, %v6871
        %v7025 = vrot.slane %v6885, 6
        %v7026 = vsel %vm2007, %v7025, %v7024
        %v7027 = vrot.slane %v6892, 5
        %v7028 = vsel %vm2009, %v7027, %v7026
        %v7029 = vrot.slane %v6899, 4
        %v7030 = vsel %vm2011, %v7029, %v7028
        %v7031 = vrot.slane %v6906, 3
        %v7032 = vsel %vm2013, %v7031, %v7030
        %v7033 = vrot.slane %v6913, 2
        %v7034 = vsel %vm2015, %v7033, %v7032
        %v7035 = vrot.slane %v6920, 1
        %v7036 = vsel %vm2017, %v7035, %v7034
        %v7037 = vrot.slane %v6942, 7
        %v7038 = vsel %vm2005, %v7037, %v6935
        %v7039 = vrot.slane %v6949, 6
        %v7040 = vsel %vm2007, %v7039, %v7038
        %v7041 = vrot.slane %v6956, 5
        %v7042 = vsel %vm2009, %v7041, %v7040
        %v7043 = vrot.slane %v6963, 4
        %v7044 = vsel %vm2011, %v7043, %v7042
        %v7045 = vrot.slane %v6970, 3
        %v7046 = vsel %vm2013, %v7045, %v7044
        %v7047 = vrot.slane %v6977, 2
        %v7048 = vsel %vm2015, %v7047, %v7046
        %v7049 = vrot.slane %v6984, 1
        %v7050 = vsel %vm2017, %v7049, %v7048
        %7051 = vrot.lane.b32.xlu0 %v7022, 64
        %v7052 = vpop.permute.xlu0 %7051
        %7053 = vrot.lane.b32.xlu0 %v7036, 64
        %v7054 = vpop.permute.xlu0 %7053
        %7055 = vrot.lane.b32.xlu0 %v7050, 64
        %v7056 = vpop.permute.xlu0 %7055
        %v7060 = vadd.f32 %v6790, %v7052
        %v7061 = vadd.f32 %v6791, %v7054
        %v7062 = vadd.f32 %v6792, %v7056
        %v7063 = vld [vmem:[#allocation2 + $0x48] sm:$0xff]
        %v7064 = vld [vmem:[#allocation2 + $0xa0] sm:$0xff]
        %7065 = vmatprep.subr.mxu0 0.0
        %7066 = vmatpush1.msra.mxu0 %v7063
        %7067 = vmatprep.subr.mxu0 0.0
        %7068 = vmatpush1.msra.mxu0 %v7064
        %7069 = vmatprep.subr.mxu0 0.0
        %7070 = vmatpush1.msra.mxu0 0.0
        %7071 = vmatprep.subr.mxu0 0.0
        %7072 = vmatpush1.msra.mxu0 0.0
        %7073 = vmatprep.subr.mxu0 0.0
        %7074 = vmatpush1.msra.mxu0 0.0
        %7075 = vmatprep.subr.mxu0 0.0
        %7076 = vmatpush1.msra.mxu0 0.0
        %7077 = vmatprep.subr.mxu0 0.0
        %7078 = vmatpush1.msra.mxu0 0.0
        %7079 = vmatprep.subr.mxu0 0.0
        %7080 = vmatpush1.msra.mxu0 0.0
        %7081 = vmatprep.subr.mxu0 0.0
        %7082 = vmatpush1.msra.mxu0 0.0
        %7083 = vmatprep.subr.mxu0 0.0
        %7084 = vmatpush1.msra.mxu0 0.0
        %7085 = vmatprep.subr.mxu0 0.0
        %7086 = vmatpush1.msra.mxu0 0.0
        %7087 = vmatprep.subr.mxu0 0.0
        %7088 = vmatpush1.msra.mxu0 0.0
        %7089 = vmatprep.subr.mxu0 0.0
        %7090 = vmatpush1.msra.mxu0 0.0
        %7091 = vmatprep.subr.mxu0 0.0
        %7092 = vmatpush1.msra.mxu0 0.0
        %7093 = vmatprep.subr.mxu0 0.0
        %7094 = vmatpush1.msra.mxu0 0.0
        %7095 = vmatprep.subr.mxu0 0.0
        %7096 = vmatpush1.msra.mxu0 0.0
        %7097 = vmatprep.subr.mxu0 0.0
        %7098 = vmatpush1.msra.mxu0 0.0
        %7099 = vmatprep.subr.mxu0 0.0
        %7100 = vmatpush1.msra.mxu0 0.0
        %7101 = vmatprep.subr.mxu0 0.0
        %7102 = vmatpush1.msra.mxu0 0.0
        %7103 = vmatprep.subr.mxu0 0.0
        %7104 = vmatpush1.msra.mxu0 0.0
        %7105 = vmatprep.subr.mxu0 0.0
        %7106 = vmatpush1.msra.mxu0 0.0
        %7107 = vmatprep.subr.mxu0 0.0
        %7108 = vmatpush1.msra.mxu0 0.0
        %7109 = vmatprep.subr.mxu0 0.0
        %7110 = vmatpush1.msra.mxu0 0.0
        %7111 = vmatprep.subr.mxu0 0.0
        %7112 = vmatpush1.msra.mxu0 0.0
        %7113 = vmatprep.subr.mxu0 0.0
        %7114 = vmatpush1.msra.mxu0 0.0
        %7115 = vmatprep.subr.mxu0 0.0
        %7116 = vmatpush1.msra.mxu0 0.0
        %7117 = vmatprep.subr.mxu0 0.0
        %7118 = vmatpush1.msra.mxu0 0.0
        %7119 = vmatprep.subr.mxu0 0.0
        %7120 = vmatpush1.msra.mxu0 0.0
        %7121 = vmatprep.subr.mxu0 0.0
        %7122 = vmatpush1.msra.mxu0 0.0
        %7123 = vmatprep.subr.mxu0 0.0
        %7124 = vmatpush1.msra.mxu0 0.0
        %7125 = vmatprep.subr.mxu0 0.0
        %7126 = vmatpush1.msra.mxu0 0.0
        %7127 = vmatprep.subr.mxu0 0.0
        %7128 = vmatpush1.msra.mxu0 0.0
        %7129 = vmatprep.mubr.f32.mxu0 0.0
        %7130 = vmatmul.mubr.f32.gmra.mrb[0].mxu0 %v4662
        %v7131 = vpop.f32.mrb[0].mxu0
        %v7132 = vadd.f32 0.0, %v7131
        %v7133 = vpop.f32.mrb[0].mxu0
        %7134 = vmatprep.mubr.f32.mxu0 0.0
        %7135 = vmatmul.mubr.f32.gmra.mrb[0].mxu0 %v4664
        %v7136 = vpop.f32.mrb[0].mxu0
        %v7137 = vadd.f32 0.0, %v7136
        %v7138 = vpop.f32.mrb[0].mxu0
        %7139 = vmatprep.mubr.f32.mxu0 0.0
        %7140 = vmatmul.mubr.f32.gmra.mrb[0].mxu0 %v4666
        %v7141 = vpop.f32.mrb[0].mxu0
        %v7142 = vadd.f32 0.0, %v7141
        %v7143 = vpop.f32.mrb[0].mxu0
        %7144 = vdwg.mxu0
        %7148 = vrot.lane.b32.xlu0 %v7132, 64
        %v7149 = vpop.permute.xlu0 %7148
        %7150 = vrot.lane.b32.xlu0 %v7137, 64
        %v7151 = vpop.permute.xlu0 %7150
        %7152 = vrot.lane.b32.xlu0 %v7142, 64
        %v7153 = vpop.permute.xlu0 %7152
        %v7157 = vadd.f32 %v7060, %v7149
        %v7158 = vadd.f32 %v7061, %v7151
        %v7159 = vadd.f32 %v7062, %v7153
        %7163 = vrot.lane.b32.xlu0 %v7157, 64
        %v7164 = vpop.permute.xlu0 %7163
        %7165 = vrot.lane.b32.xlu0 %v7158, 64
        %v7166 = vpop.permute.xlu0 %7165
        %7167 = vrot.lane.b32.xlu0 %v7159, 64
        %v7168 = vpop.permute.xlu0 %7167
        %v7172 = vsel %vm463, %v7164, 0.0
        %7173 = vadd.xlane.f32.xlu0 %v7172
        %v7174 = vpop.xlane.xlu0 %7173
        %v7175 = vsel %vm463, %v7166, 0.0
        %7176 = vadd.xlane.f32.xlu0 %v7175
        %v7177 = vpop.xlane.xlu0 %7176
        %v7178 = vsel %vm463, %v7168, 0.0
        %7179 = vadd.xlane.f32.xlu0 %v7178
        %v7180 = vpop.xlane.xlu0 %7179
        %v7181 = vmul.f32 %v7174, %v4334
        %v7182 = vmul.f32 %v7177, %v4334
        %v7183 = vmul.f32 %v7180, %v4334
        %v7184 = vrot.slane %v7181, 4
        %v7185 = vadd.f32 %v7181, %v7184
        %v7186 = vrot.slane %v7185, 2
        %v7187 = vadd.f32 %v7185, %v7186
        %v7188 = vrot.slane %v7187, 1
        %v7189 = vadd.f32 %v7187, %v7188
        %v7190 = vrot.slane %v7182, 4
        %v7191 = vadd.f32 %v7182, %v7190
        %v7192 = vrot.slane %v7191, 2
        %v7193 = vadd.f32 %v7191, %v7192
        %v7194 = vrot.slane %v7193, 1
        %v7195 = vadd.f32 %v7193, %v7194
        %v7196 = vrot.slane %v7183, 4
        %v7197 = vadd.f32 %v7183, %v7196
        %v7198 = vrot.slane %v7197, 2
        %v7199 = vadd.f32 %v7197, %v7198
        %v7200 = vrot.slane %v7199, 1
        %v7201 = vadd.f32 %v7199, %v7200
        %v7202 = vmul.f32 %v7189, %v4356
        %v7203 = vmul.f32 %v7195, %v4356
        %v7204 = vmul.f32 %v7201, %v4356
        %v7205 = vsub.f32 %v7157, %v7202
        %v7206 = vsub.f32 %v7158, %v7203
        %v7207 = vsub.f32 %v7159, %v7204
        %v7208 = vld [vmem:[#allocation2 + $0x50] sm:$0xff]
        %v7209 = vld [vmem:[#allocation2 + $0xa8] sm:$0xff]
        %7213 = vrot.lane.b32.xlu0 %v7205, 64
        %v7214 = vpop.permute.xlu0 %7213
        %7215 = vrot.lane.b32.xlu0 %v7206, 64
        %v7216 = vpop.permute.xlu0 %7215
        %7217 = vrot.lane.b32.xlu0 %v7207, 64
        %v7218 = vpop.permute.xlu0 %7217
        %v7219 = vsel %vm463, %v7214, 0
        %v7221 = vsel %vm463, %v7216, 0
        %v7223 = vsel %vm463, %v7218, 0
        %7225 = vmatprep.subr.mxu0 0.0
        %7226 = vmatpush1.msra.mxu0 %v7208
        %7227 = vmatprep.subr.mxu0 0.0
        %7228 = vmatpush1.msra.mxu0 %v7209
        %7229 = vmatprep.subr.mxu0 0.0
        %7230 = vmatpush1.msra.mxu0 0.0
        %7231 = vmatprep.subr.mxu0 0.0
        %7232 = vmatpush1.msra.mxu0 0.0
        %7233 = vmatprep.subr.mxu0 0.0
        %7234 = vmatpush1.msra.mxu0 0.0
        %7235 = vmatprep.subr.mxu0 0.0
        %7236 = vmatpush1.msra.mxu0 0.0
        %7237 = vmatprep.subr.mxu0 0.0
        %7238 = vmatpush1.msra.mxu0 0.0
        %7239 = vmatprep.subr.mxu0 0.0
        %7240 = vmatpush1.msra.mxu0 0.0
        %7241 = vmatprep.subr.mxu0 0.0
        %7242 = vmatpush1.msra.mxu0 0.0
        %7243 = vmatprep.subr.mxu0 0.0
        %7244 = vmatpush1.msra.mxu0 0.0
        %7245 = vmatprep.subr.mxu0 0.0
        %7246 = vmatpush1.msra.mxu0 0.0
        %7247 = vmatprep.subr.mxu0 0.0
        %7248 = vmatpush1.msra.mxu0 0.0
        %7249 = vmatprep.subr.mxu0 0.0
        %7250 = vmatpush1.msra.mxu0 0.0
        %7251 = vmatprep.subr.mxu0 0.0
        %7252 = vmatpush1.msra.mxu0 0.0
        %7253 = vmatprep.subr.mxu0 0.0
        %7254 = vmatpush1.msra.mxu0 0.0
        %7255 = vmatprep.subr.mxu0 0.0
        %7256 = vmatpush1.msra.mxu0 0.0
        %7257 = vmatprep.subr.mxu0 0.0
        %7258 = vmatpush1.msra.mxu0 0.0
        %7259 = vmatprep.subr.mxu0 0.0
        %7260 = vmatpush1.msra.mxu0 0.0
        %7261 = vmatprep.subr.mxu0 0.0
        %7262 = vmatpush1.msra.mxu0 0.0
        %7263 = vmatprep.subr.mxu0 0.0
        %7264 = vmatpush1.msra.mxu0 0.0
        %7265 = vmatprep.subr.mxu0 0.0
        %7266 = vmatpush1.msra.mxu0 0.0
        %7267 = vmatprep.subr.mxu0 0.0
        %7268 = vmatpush1.msra.mxu0 0.0
        %7269 = vmatprep.subr.mxu0 0.0
        %7270 = vmatpush1.msra.mxu0 0.0
        %7271 = vmatprep.subr.mxu0 0.0
        %7272 = vmatpush1.msra.mxu0 0.0
        %7273 = vmatprep.subr.mxu0 0.0
        %7274 = vmatpush1.msra.mxu0 0.0
        %7275 = vmatprep.subr.mxu0 0.0
        %7276 = vmatpush1.msra.mxu0 0.0
        %7277 = vmatprep.subr.mxu0 0.0
        %7278 = vmatpush1.msra.mxu0 0.0
        %7279 = vmatprep.subr.mxu0 0.0
        %7280 = vmatpush1.msra.mxu0 0.0
        %7281 = vmatprep.subr.mxu0 0.0
        %7282 = vmatpush1.msra.mxu0 0.0
        %7283 = vmatprep.subr.mxu0 0.0
        %7284 = vmatpush1.msra.mxu0 0.0
        %7285 = vmatprep.subr.mxu0 0.0
        %7286 = vmatpush1.msra.mxu0 0.0
        %7287 = vmatprep.subr.mxu0 0.0
        %7288 = vmatpush1.msra.mxu0 0.0
        %7289 = vmatprep.mubr.f32.mxu0 0.0
        %7290 = vmatmul.mubr.f32.gmra.mrb[0].mxu0 %v7219
        %v7291 = vpop.f32.mrb[0].mxu0
        %v7292 = vadd.f32 0.0, %v7291
        %v7293 = vpop.f32.mrb[0].mxu0
        %7294 = vmatprep.mubr.f32.mxu0 0.0
        %7295 = vmatmul.mubr.f32.gmra.mrb[0].mxu0 %v7221
        %v7296 = vpop.f32.mrb[0].mxu0
        %v7297 = vadd.f32 0.0, %v7296
        %v7298 = vpop.f32.mrb[0].mxu0
        %7299 = vmatprep.mubr.f32.mxu0 0.0
        %7300 = vmatmul.mubr.f32.gmra.mrb[0].mxu0 %v7223
        %v7301 = vpop.f32.mrb[0].mxu0
        %v7302 = vadd.f32 0.0, %v7301
        %v7303 = vpop.f32.mrb[0].mxu0
        %7304 = vdwg.mxu0
        %7308 = vrot.lane.b32.xlu0 %v7292, 112
        %v7309 = vpop.permute.xlu0 %7308
        %7310 = vrot.lane.b32.xlu0 %v7297, 112
        %v7311 = vpop.permute.xlu0 %7310
        %7312 = vrot.lane.b32.xlu0 %v7302, 112
        %v7313 = vpop.permute.xlu0 %7312
        %v7317 = vmul.f32 %v7292, %v7309
        %v7318 = vmul.f32 %v7297, %v7311
        %v7319 = vmul.f32 %v7302, %v7313
        %v7320 = vsel %vm463, %v7317, 0.0
        %v7321 = vsel %vm463, %v7318, 0.0
        %v7322 = vadd.f32 %v7320, %v7321
        %v7323 = vsel %vm463, %v7319, 0.0
        %v7324 = vadd.f32 %v7322, %v7323
        %v7325 = vmul.f32 %v7292, %v7292
        %v7326 = vmul.f32 %v7297, %v7297
        %v7327 = vmul.f32 %v7302, %v7302
        %v7328 = vsel %vm4931, %v7325, 0.0
        %v7329 = vsel %vm4931, %v7326, 0.0
        %v7330 = vadd.f32 %v7328, %v7329
        %v7331 = vsel %vm4931, %v7327, 0.0
        %v7332 = vadd.f32 %v7330, %v7331
        %v7333 = vadd.f32 %v7332, 0.0001
        %v7334 = vrcp.pop %v7333
        %7336 = vrot.lane.b32.xlu0 %v7334, 112
        %v7337 = vpop.permute.xlu0 %7336
        %v7339 = vmul.f32 %v7324, %v7337
        %v7340 = vmul.f32 %v7339, %v7309
        %v7341 = vmul.f32 %v7339, %v7311
        %v7342 = vmul.f32 %v7339, %v7313
        %v7343 = vsub.f32 %v7292, %v7340
        %v7344 = vsub.f32 %v7297, %v7341
        %v7345 = vsub.f32 %v7302, %v7342
        %vm7346 = vcmp.ge.f32.partialorder %v7324, 0.0
        %v7347 = vsel %vm7346, 1, 0
        %vm7348 = vcmp.eq.s32.totalorder %v7347, 1
        %v7349 = vsel %vm7348, %v7292, %v7343
        %v7350 = vsel %vm7348, %v7297, %v7344
        %v7351 = vsel %vm7348, %v7302, %v7345
        %v7352 = vadd.f32 %v7349, %v7202
        %v7353 = vadd.f32 %v7350, %v7203
        %v7354 = vadd.f32 %v7351, %v7204
        %v7355 = vmul.f32 %v6230, %v404
        %v7356 = vmul.f32 %v6231, %v411
        %v7357 = vmul.f32 %v6232, %v418
        %v7358 = vmul.f32 %v6233, %v425
        %v7359 = vmul.f32 %v6234, %v432
        %v7360 = vmul.f32 %v6235, %v439
        %v7361 = vmul.f32 %v6236, %v446
        %v7362 = vmul.f32 %v6237, %v453
        %v7363 = vsel %vm961, %v7355, 0.0
        %v7364 = vrot.slane %v7363, 4
        %v7365 = vadd.f32 %v7363, %v7364
        %v7366 = vrot.slane %v7365, 2
        %v7367 = vadd.f32 %v7365, %v7366
        %v7368 = vrot.slane %v7367, 1
        %v7369 = vadd.f32 %v7367, %v7368
        %v7370 = vsel %vm961, %v7356, 0.0
        %v7371 = vrot.slane %v7370, 4
        %v7372 = vadd.f32 %v7370, %v7371
        %v7373 = vrot.slane %v7372, 2
        %v7374 = vadd.f32 %v7372, %v7373
        %v7375 = vrot.slane %v7374, 1
        %v7376 = vadd.f32 %v7374, %v7375
        %v7377 = vsel %vm961, %v7357, 0.0
        %v7378 = vrot.slane %v7377, 4
        %v7379 = vadd.f32 %v7377, %v7378
        %v7380 = vrot.slane %v7379, 2
        %v7381 = vadd.f32 %v7379, %v7380
        %v7382 = vrot.slane %v7381, 1
        %v7383 = vadd.f32 %v7381, %v7382
        %v7384 = vsel %vm961, %v7358, 0.0
        %v7385 = vrot.slane %v7384, 4
        %v7386 = vadd.f32 %v7384, %v7385
        %v7387 = vrot.slane %v7386, 2
        %v7388 = vadd.f32 %v7386, %v7387
        %v7389 = vrot.slane %v7388, 1
        %v7390 = vadd.f32 %v7388, %v7389
        %v7391 = vsel %vm961, %v7359, 0.0
        %v7392 = vrot.slane %v7391, 4
        %v7393 = vadd.f32 %v7391, %v7392
        %v7394 = vrot.slane %v7393, 2
        %v7395 = vadd.f32 %v7393, %v7394
        %v7396 = vrot.slane %v7395, 1
        %v7397 = vadd.f32 %v7395, %v7396
        %v7398 = vsel %vm961, %v7360, 0.0
        %v7399 = vrot.slane %v7398, 4
        %v7400 = vadd.f32 %v7398, %v7399
        %v7401 = vrot.slane %v7400, 2
        %v7402 = vadd.f32 %v7400, %v7401
        %v7403 = vrot.slane %v7402, 1
        %v7404 = vadd.f32 %v7402, %v7403
        %v7405 = vsel %vm961, %v7361, 0.0
        %v7406 = vrot.slane %v7405, 4
        %v7407 = vadd.f32 %v7405, %v7406
        %v7408 = vrot.slane %v7407, 2
        %v7409 = vadd.f32 %v7407, %v7408
        %v7410 = vrot.slane %v7409, 1
        %v7411 = vadd.f32 %v7409, %v7410
        %v7412 = vsel %vm961, %v7362, 0.0
        %v7413 = vrot.slane %v7412, 4
        %v7414 = vadd.f32 %v7412, %v7413
        %v7415 = vrot.slane %v7414, 2
        %v7416 = vadd.f32 %v7414, %v7415
        %v7417 = vrot.slane %v7416, 1
        %v7418 = vadd.f32 %v7416, %v7417
        %v7419 = vld [vmem:[%s4 + $0x78] sm:$0xff]
        %v7420 = vld [vmem:[%s4 + $0x100] sm:$0xff]
        %v7421 = vld [vmem:[%s4 + $0x188] sm:$0xff]
        %v7422 = vld [vmem:[%s4 + $0x210] sm:$0xff]
        %v7431 = vsel %vm2005, %v7376, %v7369
        %v7432 = vsel %vm2007, %v7383, %v7431
        %v7433 = vsel %vm2009, %v7390, %v7432
        %v7434 = vsel %vm2011, %v7397, %v7433
        %v7435 = vsel %vm2013, %v7404, %v7434
        %v7436 = vsel %vm2015, %v7411, %v7435
        %v7437 = vsel %vm2017, %v7418, %v7436
        %v7438 = vsel %vm961, %v7437, 0
        %7440 = vmatprep.subr.mxu0 0.0
        %7441 = vmatpush1.msra.mxu0 %v7419
        %7442 = vmatprep.subr.mxu0 0.0
        %7443 = vmatpush1.msra.mxu0 %v7420
        %7444 = vmatprep.subr.mxu0 0.0
        %7445 = vmatpush1.msra.mxu0 %v7421
        %7446 = vmatprep.subr.mxu0 0.0
        %7447 = vmatpush1.msra.mxu0 %v7422
        %7448 = vmatprep.subr.mxu0 0.0
        %7449 = vmatpush1.msra.mxu0 0.0
        %7450 = vmatprep.subr.mxu0 0.0
        %7451 = vmatpush1.msra.mxu0 0.0
        %7452 = vmatprep.subr.mxu0 0.0
        %7453 = vmatpush1.msra.mxu0 0.0
        %7454 = vmatprep.subr.mxu0 0.0
        %7455 = vmatpush1.msra.mxu0 0.0
        %7456 = vmatprep.subr.mxu0 0.0
        %7457 = vmatpush1.msra.mxu0 0.0
        %7458 = vmatprep.subr.mxu0 0.0
        %7459 = vmatpush1.msra.mxu0 0.0
        %7460 = vmatprep.subr.mxu0 0.0
        %7461 = vmatpush1.msra.mxu0 0.0
        %7462 = vmatprep.subr.mxu0 0.0
        %7463 = vmatpush1.msra.mxu0 0.0
        %7464 = vmatprep.subr.mxu0 0.0
        %7465 = vmatpush1.msra.mxu0 0.0
        %7466 = vmatprep.subr.mxu0 0.0
        %7467 = vmatpush1.msra.mxu0 0.0
        %7468 = vmatprep.subr.mxu0 0.0
        %7469 = vmatpush1.msra.mxu0 0.0
        %7470 = vmatprep.subr.mxu0 0.0
        %7471 = vmatpush1.msra.mxu0 0.0
        %7472 = vmatprep.subr.mxu0 0.0
        %7473 = vmatpush1.msra.mxu0 0.0
        %7474 = vmatprep.subr.mxu0 0.0
        %7475 = vmatpush1.msra.mxu0 0.0
        %7476 = vmatprep.subr.mxu0 0.0
        %7477 = vmatpush1.msra.mxu0 0.0
        %7478 = vmatprep.subr.mxu0 0.0
        %7479 = vmatpush1.msra.mxu0 0.0
        %7480 = vmatprep.subr.mxu0 0.0
        %7481 = vmatpush1.msra.mxu0 0.0
        %7482 = vmatprep.subr.mxu0 0.0
        %7483 = vmatpush1.msra.mxu0 0.0
        %7484 = vmatprep.subr.mxu0 0.0
        %7485 = vmatpush1.msra.mxu0 0.0
        %7486 = vmatprep.subr.mxu0 0.0
        %7487 = vmatpush1.msra.mxu0 0.0
        %7488 = vmatprep.subr.mxu0 0.0
        %7489 = vmatpush1.msra.mxu0 0.0
        %7490 = vmatprep.subr.mxu0 0.0
        %7491 = vmatpush1.msra.mxu0 0.0
        %7492 = vmatprep.subr.mxu0 0.0
        %7493 = vmatpush1.msra.mxu0 0.0
        %7494 = vmatprep.subr.mxu0 0.0
        %7495 = vmatpush1.msra.mxu0 0.0
        %7496 = vmatprep.subr.mxu0 0.0
        %7497 = vmatpush1.msra.mxu0 0.0
        %7498 = vmatprep.subr.mxu0 0.0
        %7499 = vmatpush1.msra.mxu0 0.0
        %7500 = vmatprep.subr.mxu0 0.0
        %7501 = vmatpush1.msra.mxu0 0.0
        %7502 = vmatprep.subr.mxu0 0.0
        %7503 = vmatpush1.msra.mxu0 0.0
        %7504 = vmatprep.mubr.f32.mxu0 0.0
        %7505 = vmatmul.mubr.f32.gmra.mrb[0].mxu0 %v7438
        %v7506 = vpop.f32.mrb[0].mxu0
        %v7507 = vadd.f32 0.0, %v7506
        %v7508 = vpop.f32.mrb[0].mxu0
        %7509 = vdwg.mxu0
        %7511 = vrot.lane.b32.xlu0 %v7507, 80
        %v7512 = vpop.permute.xlu0 %7511
        %v7514 = vadd.f32 %v5700, %v7512
        %v7515 = vld [vmem:[%s6 + $0x15] sm:$0x1]
        %v7517 = vlaneseq
        %v7518 = vshrl.u32 %v7517, 7
        %v7519 = vsub.s32 0, %v7518
        %v7520 = vrot.slane %v7515, %v7519
        %7521 = vrot.lane.b32.xlu0 %v7520, 80
        %v7522 = vpop.permute.xlu0 %7521
        %v7524 = vadd.f32 %v7514, %v7522
        %v7525 = vxor.u32 %v7524, 2147483648
        %v7526 = vmul.f32 %v7525, 1.442695
        %v7527 = vpow.pop %v7526
        %v7528 = vadd.f32 %v7527, 1.0
        %v7529 = vrcp.pop %v7528
        %v7530 = vmul.f32 1.0, %v7529
        %v7531 = vmul.f32 %v7524, %v7530
        %v7532 = vld [vmem:[%s4 + $0x80] sm:$0xff]
        %v7533 = vld [vmem:[%s4 + $0x108] sm:$0xff]
        %v7534 = vld [vmem:[%s4 + $0x190] sm:$0xff]
        %v7535 = vld [vmem:[%s4 + $0x218] sm:$0xff]
        %v7536 = vld [vmem:[%s6 + $0x16] sm:$0x1]
        %v7538 = vlaneseq
        %v7539 = vshrl.u32 %v7538, 7
        %v7540 = vsub.s32 0, %v7539
        %v7541 = vrot.slane %v7536, %v7540
        %7544 = vrot.lane.b32.xlu0 %v7531, 48
        %v7545 = vpop.permute.xlu0 %7544
        %v7546 = vsel %vm961, %v7545, 0
        %7548 = vmatprep.subr.mxu0 0.0
        %7549 = vmatpush1.msra.mxu0 %v7532
        %7550 = vmatprep.subr.mxu0 0.0
        %7551 = vmatpush1.msra.mxu0 %v7533
        %7552 = vmatprep.subr.mxu0 0.0
        %7553 = vmatpush1.msra.mxu0 %v7534
        %7554 = vmatprep.subr.mxu0 0.0
        %7555 = vmatpush1.msra.mxu0 %v7535
        %7556 = vmatprep.subr.mxu0 0.0
        %7557 = vmatpush1.msra.mxu0 0.0
        %7558 = vmatprep.subr.mxu0 0.0
        %7559 = vmatpush1.msra.mxu0 0.0
        %7560 = vmatprep.subr.mxu0 0.0
        %7561 = vmatpush1.msra.mxu0 0.0
        %7562 = vmatprep.subr.mxu0 0.0
        %7563 = vmatpush1.msra.mxu0 0.0
        %7564 = vmatprep.subr.mxu0 0.0
        %7565 = vmatpush1.msra.mxu0 0.0
        %7566 = vmatprep.subr.mxu0 0.0
        %7567 = vmatpush1.msra.mxu0 0.0
        %7568 = vmatprep.subr.mxu0 0.0
        %7569 = vmatpush1.msra.mxu0 0.0
        %7570 = vmatprep.subr.mxu0 0.0
        %7571 = vmatpush1.msra.mxu0 0.0
        %7572 = vmatprep.subr.mxu0 0.0
        %7573 = vmatpush1.msra.mxu0 0.0
        %7574 = vmatprep.subr.mxu0 0.0
        %7575 = vmatpush1.msra.mxu0 0.0
        %7576 = vmatprep.subr.mxu0 0.0
        %7577 = vmatpush1.msra.mxu0 0.0
        %7578 = vmatprep.subr.mxu0 0.0
        %7579 = vmatpush1.msra.mxu0 0.0
        %7580 = vmatprep.subr.mxu0 0.0
        %7581 = vmatpush1.msra.mxu0 0.0
        %7582 = vmatprep.subr.mxu0 0.0
        %7583 = vmatpush1.msra.mxu0 0.0
        %7584 = vmatprep.subr.mxu0 0.0
        %7585 = vmatpush1.msra.mxu0 0.0
        %7586 = vmatprep.subr.mxu0 0.0
        %7587 = vmatpush1.msra.mxu0 0.0
        %7588 = vmatprep.subr.mxu0 0.0
        %7589 = vmatpush1.msra.mxu0 0.0
        %7590 = vmatprep.subr.mxu0 0.0
        %7591 = vmatpush1.msra.mxu0 0.0
        %7592 = vmatprep.subr.mxu0 0.0
        %7593 = vmatpush1.msra.mxu0 0.0
        %7594 = vmatprep.subr.mxu0 0.0
        %7595 = vmatpush1.msra.mxu0 0.0
        %7596 = vmatprep.subr.mxu0 0.0
        %7597 = vmatpush1.msra.mxu0 0.0
        %7598 = vmatprep.subr.mxu0 0.0
        %7599 = vmatpush1.msra.mxu0 0.0
        %7600 = vmatprep.subr.mxu0 0.0
        %7601 = vmatpush1.msra.mxu0 0.0
        %7602 = vmatprep.subr.mxu0 0.0
        %7603 = vmatpush1.msra.mxu0 0.0
        %7604 = vmatprep.subr.mxu0 0.0
        %7605 = vmatpush1.msra.mxu0 0.0
        %7606 = vmatprep.subr.mxu0 0.0
        %7607 = vmatpush1.msra.mxu0 0.0
        %7608 = vmatprep.subr.mxu0 0.0
        %7609 = vmatpush1.msra.mxu0 0.0
        %7610 = vmatprep.subr.mxu0 0.0
        %7611 = vmatpush1.msra.mxu0 0.0
        %7612 = vmatprep.mubr.f32.mxu0 0.0
        %7613 = vmatmul.mubr.f32.gmra.mrb[0].mxu0 %v7546
        %v7614 = vpop.f32.mrb[0].mxu0
        %v7615 = vadd.f32 %v7541, %v7614
        %v7616 = vpop.f32.mrb[0].mxu0
        %7617 = vdwg.mxu0
        %7618 = vst.msk [vmem:[%s357] sm:$0xff] %vm961, %v7615
        %7619 = vst.msk [vmem:[%s383] sm:$0xff] %vm463, %v7352
        %7620 = vst.msk [vmem:[%s383 + $0x8] sm:$0xff] %vm463, %v7353
        %7621 = vst.msk [vmem:[%s383 + $0x10] sm:$0xff] %vm463, %v7354
        %s7622 = sand.u32 %s195, 1
        %s7623 = scalar_lea.sflag [#allocation4], %s7622
        %s7624 = sand.u32 %s195, 1
        %s7625 = smul.addr %s7624, 8
        %s7626 = scalar_lea.vmem [#allocation7], %s7625
        %p7627 = scmp.lt.s32.totalorder %s25, 1
        %s7628 = scalar_select %p7627, %s25, 1
        %s7629 = smul.addr %s7628, 3
        %s7630 = smul.addr %s7629, 8
        %s7631 = scalar_lea.vmem %s8, %s7630
        // Predicated region
        $region57: #{eqmotion_forward.1} parent=47 // pred_check
          %p7632 = pneg %p205
        $region58: #{eqmotion_forward.1} parent=47 // pred_check_branch
          %7634 = sbr.rel (%p7632) target = $region60
        $region59: #{eqmotion_forward.1} parent=47 // pred_region
          %s7636 = ssub.s32 128, 128
          %7637 = vsyncadd %s7623, %s7636
          %s7638 = smul.addr %s25, 128
          %s7639 = scalar_lea.hbm %s7, %s7638
          %s7641 = sshll.u32 %s7626, 4
          %s7642 = int_to_ptr.vmem [resolvable:$true] %s7641
          %7644 = dma.vmem_to_hbm [thread:$0]  %s7642, 128, %s7639, %s7623
        $region60: #{eqmotion_forward.1} parent=47 // pred_fallthru
          _
        // Predicated region
        $region61: #{eqmotion_forward.1} parent=47 // pred_check
          %p7645 = pneg %p231
        $region62: #{eqmotion_forward.1} parent=47 // pred_check_branch
          %7647 = sbr.rel (%p7645) target = $region64
        $region63: #{eqmotion_forward.1} parent=47 // pred_region
          _
        $region64: #{eqmotion_forward.1} parent=47 // pred_fallthru
          _
      $region48: #{eqmotion_forward.1} parent=5 // pred_fallthru
        _
      %p7648 = scmp.le.s32.totalorder 2, %s20
      // Predicated region
      $region65: #{eqmotion_forward.1} parent=5 // pred_check
        %p7649 = pneg %p7648
      $region66: #{eqmotion_forward.1} parent=5 // pred_check_branch
        %7651 = sbr.rel (%p7649) target = $region68
      $region67: #{eqmotion_forward.1} parent=5 // pred_region
        %s7652 = ssub.s32 %s20, 2
        // Predicated region
        $region69: #{eqmotion_forward.1} parent=67 // pred_check
          %p7653 = pneg %p211
        $region70: #{eqmotion_forward.1} parent=67 // pred_check_branch
          %7655 = sbr.rel (%p7653) target = $region72
        $region71: #{eqmotion_forward.1} parent=67 // pred_region
          %s7656 = sand.u32 %s196, 1
          %s7657 = scalar_lea.sflag [#allocation4], %s7656
          %s7658 = sand.u32 %s196, 1
          %s7659 = smul.addr %s7658, 8
          %s7660 = scalar_lea.vmem [#allocation7], %s7659
          %7661 = dma.done %s7657, 128
        $region72: #{eqmotion_forward.1} parent=67 // pred_fallthru
          _
        // Predicated region
        $region73: #{eqmotion_forward.1} parent=67 // pred_check
          %p7662 = pneg %p237
        $region74: #{eqmotion_forward.1} parent=67 // pred_check_branch
          %7664 = sbr.rel (%p7662) target = $region76
        $region75: #{eqmotion_forward.1} parent=67 // pred_region
          %p7665 = scmp.lt.s32.totalorder %s26, 1
          %s7666 = scalar_select %p7665, %s26, 1
          %s7667 = smul.addr %s7666, 3
          %s7668 = smul.addr %s7667, 8
          %s7669 = scalar_lea.vmem %s8, %s7668
        $region76: #{eqmotion_forward.1} parent=67 // pred_fallthru
          _
      $region68: #{eqmotion_forward.1} parent=5 // pred_fallthru
        _
    $region6: #{eqmotion_forward.1} parent=1 // loop_footer
      %s24 = sadd.s32 1, %s20
    $region7: #{eqmotion_forward.1} parent=1 // loop_footer_branch
      %19 = sbr.rel target = $region3
    $region8: #{eqmotion_forward.1} parent=1 // loop_exit
      _
    %7670 = vsyncpa [#allocation3], 1
    %s7671 = scalar_lea.sflag [#allocation3], 1
    %7672 = vsyncpa %s7671, 1
    %7673 = vsyncpa [#allocation6], 1
    %7674 = vsyncpa [#allocation4], 1
    %s7675 = scalar_lea.sflag [#allocation4], 1
    %7676 = vsyncpa %s7675, 1

</llo_original>
